<compile_context>
chip_gen: v7x
topology: tpu7x:2x2x1
jax: 0.10.0
libtpu: 0.0.40
codegen_flags: <defaults>
</compile_context>

<pallas_src>
import numpy as np
import jax
import jax.numpy as jnp
from jax.experimental import pallas as pl
from jax.experimental.pallas import tpu as pltpu


def fused_cnn_kernel(x_ref, t1_ref, s1_ref, b1_ref,
                     t2_ref, s2_ref, b2_ref, wf_ref, bf_ref,
                     o_ref, pad1_ref, pad2_ref):
    # x_ref:   (1, H, W*Cin)        f32  one image, NHWC flattened over (W, C)
    # t1_ref:  (K, W*Cin, W*C1)     bf16 per-dy Toeplitz conv1 weights
    # s1_ref:  (1, W*C1)            f32  folded BN1 scale (tiled over W)
    # b1_ref:  (1, W*C1)            f32  folded conv1-bias + BN1 shift
    # t2_ref:  (K, W*C1, W2*C2)     bf16 per-dy Toeplitz conv2 weights (rows in
    #                                    the "wide" pooled-layer1 lane layout)
    # s2_ref/b2_ref: (1, W2*C2)     f32
    # wf_ref:  (H3, W2*C2)          f32  FC weights permuted to the wide layout
    # bf_ref:  (1, 1)               f32
    # o_ref:   (1, 1, 1)            f32
    # pad1_ref: VMEM (H+4,  W*Cin)  bf16 scratch (H-halo zero-padded input)
    # pad2_ref: VMEM (H2+4, W*C1)   bf16 scratch (H-halo zero-padded pooled l1)
    K = t1_ref.shape[0]
    P = K // 2
    H1 = x_ref.shape[1]
    W1 = H1                              # square images
    C1 = t1_ref.shape[2] // W1
    H2, W2 = H1 // 2, W1 // 2
    C2 = t2_ref.shape[2] // W2
    H3 = H2 // 2

    # ----- layer1: conv(5x5, pad=2) as K accumulated Toeplitz MXU matmuls -----
    pad1_ref[...] = jnp.zeros(pad1_ref.shape, pad1_ref.dtype)
    pad1_ref[P:P + H1, :] = x_ref[0].astype(pad1_ref.dtype)

    acc1 = jnp.zeros((H1, W1 * C1), jnp.float32)
    for dy in range(K):                  # static unroll: dx & Cin folded into RHS
        acc1 = acc1 + jnp.dot(pad1_ref[dy:dy + H1, :], t1_ref[dy],
                              preferred_element_type=jnp.float32)

    # folded BatchNorm (eval) + ReLU, f32 on the VPU
    y1 = jnp.maximum(acc1 * s1_ref[...] + b1_ref[...], 0.0)

    # 2x2 max-pool: rows via reshape+max, cols via a C1-lane shift + max.
    # "wide" layout: pooled (i, j, c) lands at lane 2*j*C1 + c; odd-j lanes are
    # dead and are zero-weighted by t2 downstream.
    y1h = jnp.max(y1.reshape(H2, 2, W1 * C1), axis=1)
    y1s = jnp.concatenate([y1h[:, C1:], y1h[:, :C1]], axis=1)
    y1w = jnp.maximum(y1h, y1s)

    # ----- layer2 -----
    pad2_ref[...] = jnp.zeros(pad2_ref.shape, pad2_ref.dtype)
    pad2_ref[P:P + H2, :] = y1w.astype(pad2_ref.dtype)

    acc2 = jnp.zeros((H2, W2 * C2), jnp.float32)
    for dy in range(K):
        acc2 = acc2 + jnp.dot(pad2_ref[dy:dy + H2, :], t2_ref[dy],
                              preferred_element_type=jnp.float32)

    y2 = jnp.maximum(acc2 * s2_ref[...] + b2_ref[...], 0.0)

    y2h = jnp.max(y2.reshape(H3, 2, W2 * C2), axis=1)
    y2s = jnp.concatenate([y2h[:, C2:], y2h[:, :C2]], axis=1)
    y2w = jnp.maximum(y2h, y2s)

    # ----- fc folded in as a VPU multiply + reduce (weights pre-permuted) -----
    prod = y2w * wf_ref[...]
    o = jnp.sum(jnp.sum(prod, axis=1, keepdims=True), axis=0, keepdims=True)
    o_ref[0] = (o + bf_ref[...]).astype(o_ref.dtype)


def prepare_params(params, H=32, W=32):
    """One-time host-side weight preprocessing (Toeplitz / BN-fold / FC permute)."""
    (w1, b1, g1, be1, rm1, rv1,
     w2, b2, g2, be2, rm2, rv2, wf, bf) = [np.asarray(p, np.float32) for p in params]

    Cin, C1 = w1.shape[1], w1.shape[0]      # 3, 16
    C2 = w2.shape[0]                        # 32
    K = w1.shape[2]                         # 5
    W1, W2 = W, W // 2
    H3, W3 = H // 4, W // 4

    def toeplitz(w, w_sp, row_stride):
        # rows: input lane index j_in*row_stride + c ; cols: output lane j*cout + co
        cout, cin, k, _ = w.shape
        T = np.zeros((k, w_sp * row_stride, w_sp * cout), np.float32)
        for dy in range(k):
            for dx in range(k):
                blk = w[:, :, dy, dx].T                      # (cin, cout)
                for j in range(w_sp):
                    j_in = j + dx - (k // 2)
                    if 0 <= j_in < w_sp:                     # W-padding = dropped taps
                        T[dy,
                          j_in * row_stride:j_in * row_stride + cin,
                          j * cout:(j + 1) * cout] = blk
        return T

    t1 = toeplitz(w1, W1, Cin)        # (5, W*Cin,  W*C1)  = (5, 96, 512)
    t2 = toeplitz(w2, W2, 2 * C1)     # (5, W*C1,   W2*C2) = (5, 512, 512), wide stride

    def bn_fold(b, g, be, rm, rv, reps, eps=1e-5):
        scale = g / np.sqrt(rv + eps)
        bias = (b - rm) * scale + be
        return (np.tile(scale, reps)[None, :].astype(np.float32),
                np.tile(bias, reps)[None, :].astype(np.float32))

    s1w, b1w = bn_fold(b1, g1, be1, rm1, rv1, W1)     # (1, 512)
    s2w, b2w = bn_fold(b2, g2, be2, rm2, rv2, W2)     # (1, 512)

    # FC weights permuted into the kernel's wide pooled-layer2 layout
    # (NCHW flatten f = c*H3*W3 + i*W3 + j  ->  row i, lane 2*j*C2 + c).
    wf_mat = np.zeros((H3, W2 * C2), np.float32)      # (8, 512)
    for c in range(C2):
        for i in range(H3):
            for j in range(W3):
                wf_mat[i, 2 * j * C2 + c] = wf[c * (H3 * W3) + i * W3 + j, 0]

    return dict(
        t1=jnp.asarray(t1).astype(jnp.bfloat16),
        t2=jnp.asarray(t2).astype(jnp.bfloat16),
        s1=jnp.asarray(s1w), b1=jnp.asarray(b1w),
        s2=jnp.asarray(s2w), b2=jnp.asarray(b2w),
        wf=jnp.asarray(wf_mat),
        bf=jnp.asarray(bf.reshape(1, 1)),
    )


def cnn_forward(x_nchw, prep):
    N, Cin, H, W = x_nchw.shape
    K = prep["t1"].shape[0]
    P = K // 2
    C1 = prep["t1"].shape[2] // W
    H2, W2 = H // 2, W // 2
    C2 = prep["t2"].shape[2] // W2
    H3 = H2 // 2

    # single tiny input-layout op (the input must be read from HBM anyway);
    # no activation pad/transpose happens between layers.
    x_flat = jnp.transpose(x_nchw, (0, 2, 3, 1)).reshape(N, H, W * Cin)

    out = pl.pallas_call(
        fused_cnn_kernel,
        out_shape=jax.ShapeDtypeStruct((N, 1, 1), jnp.float32),
        grid_spec=pltpu.PrefetchScalarGridSpec(
            num_scalar_prefetch=0,
            grid=(N,),
            in_specs=[
                pl.BlockSpec((1, H, W * Cin), lambda n: (n, 0, 0)),       # x
                pl.BlockSpec((K, W * Cin, W * C1), lambda n: (0, 0, 0)),  # t1
                pl.BlockSpec((1, W * C1), lambda n: (0, 0)),              # s1
                pl.BlockSpec((1, W * C1), lambda n: (0, 0)),              # b1
                pl.BlockSpec((K, W * C1, W2 * C2), lambda n: (0, 0, 0)),  # t2
                pl.BlockSpec((1, W2 * C2), lambda n: (0, 0)),             # s2
                pl.BlockSpec((1, W2 * C2), lambda n: (0, 0)),             # b2
                pl.BlockSpec((H3, W2 * C2), lambda n: (0, 0)),            # wf
                pl.BlockSpec((1, 1), lambda n: (0, 0)),                   # bf
            ],
            out_specs=pl.BlockSpec((1, 1, 1), lambda n: (n, 0, 0)),
            scratch_shapes=[
                pltpu.VMEM((H + 2 * P, W * Cin), jnp.bfloat16),   # padded layer1 input
                pltpu.VMEM((H2 + 2 * P, W * C1), jnp.bfloat16),   # padded pooled layer1
            ],
        ),
        compiler_params=pltpu.CompilerParams(
            dimension_semantics=("parallel",)),
    )(x_flat, prep["t1"], prep["s1"], prep["b1"],
      prep["t2"], prep["s2"], prep["b2"], prep["wf"], prep["bf"])
    return out.reshape(N, 1)


def reference_forward(x, params):
    """Pure-JAX f32 reference for validation."""
    (w1, b1, g1, be1, rm1, rv1,
     w2, b2, g2, be2, rm2, rv2, wf, bf) = params

    def block(z, w, b, g, be, rm, rv, eps=1e-5):
        z = jax.lax.conv_general_dilated(
            z, w, window_strides=(1, 1), padding=((2, 2), (2, 2)),
            dimension_numbers=("NCHW", "OIHW", "NCHW"),
            precision=jax.lax.Precision.HIGHEST)
        z = z + b[None, :, None, None]
        z = ((z - rm[None, :, None, None]) /
             jnp.sqrt(rv[None, :, None, None] + eps) * g[None, :, None, None]
             + be[None, :, None, None])
        z = jnp.maximum(z, 0.0)
        return jax.lax.reduce_window(z, -jnp.inf, jax.lax.max,
                                     (1, 1, 2, 2), (1, 1, 2, 2), "VALID")

    z = block(x, w1, b1, g1, be1, rm1, rv1)
    z = block(z, w2, b2, g2, be2, rm2, rv2)
    flat = z.reshape(z.shape[0], -1)
    return jnp.dot(flat, wf, precision=jax.lax.Precision.HIGHEST) + bf


if __name__ == "__main__":
    key = jax.random.PRNGKey(0)
    keys = jax.random.split(key, 8)

    N, Cin, H, W = 2, 3, 32, 32
    x = jax.random.normal(keys[0], (N, Cin, H, W), dtype=jnp.float32)

    # layer1: Conv2d(3 -> 16, k=5, pad=2), BN(16)
    w1 = jax.random.normal(keys[1], (16, 3, 5, 5), jnp.float32) * 0.05
    b1 = jax.random.normal(keys[2], (16,), jnp.float32) * 0.05
    g1, be1 = jnp.ones((16,), jnp.float32), jnp.zeros((16,), jnp.float32)
    rm1, rv1 = jnp.zeros((16,), jnp.float32), jnp.ones((16,), jnp.float32)

    # layer2: Conv2d(16 -> 32, k=5, pad=2), BN(32)
    w2 = jax.random.normal(keys[3], (32, 16, 5, 5), jnp.float32) * 0.05
    b2 = jax.random.normal(keys[4], (32,), jnp.float32) * 0.05
    g2, be2 = jnp.ones((32,), jnp.float32), jnp.zeros((32,), jnp.float32)
    rm2, rv2 = jnp.zeros((32,), jnp.float32), jnp.ones((32,), jnp.float32)

    # fc: Linear(32 * (H//4) * (W//4) -> 1)
    feat = 32 * (H // 4) * (W // 4)
    wf = jax.random.normal(keys[5], (feat, 1), jnp.float32) * 0.01
    bf = (jax.random.normal(keys[6], (1,), jnp.float32) * 0.01).reshape(1, 1)

    params = (w1, b1, g1, be1, rm1, rv1,
              w2, b2, g2, be2, rm2, rv2, wf, bf)

    prep = prepare_params(params, H=H, W=W)
    out = jax.jit(cnn_forward)(x, prep)
    jax.block_until_ready(out)
    assert out.shape == (N, 1)

    # validate the fused bf16-MXU kernel against a pure-JAX f32 reference
    ref = reference_forward(x, params)
    np.testing.assert_allclose(np.asarray(out), np.asarray(ref),
                               rtol=1e-1, atol=5e-2)

    print("KERNEL_OK")
</pallas_src>

<mosaic_0001>
module attributes {stable_mosaic.version = 11 : i64} {
  func.func @fused_cnn_kernel(%arg0: i32, %arg1: memref<1x32x96xf32, #tpu.memory_space<vmem>>, %arg2: memref<5x96x512xbf16, #tpu.memory_space<vmem>>, %arg3: memref<1x512xf32, #tpu.memory_space<vmem>>, %arg4: memref<1x512xf32, #tpu.memory_space<vmem>>, %arg5: memref<5x512x512xbf16, #tpu.memory_space<vmem>>, %arg6: memref<1x512xf32, #tpu.memory_space<vmem>>, %arg7: memref<1x512xf32, #tpu.memory_space<vmem>>, %arg8: memref<8x512xf32, #tpu.memory_space<vmem>>, %arg9: memref<1x1xf32, #tpu.memory_space<vmem>>, %arg10: memref<1x1x1xf32, #tpu.memory_space<vmem>>, %arg11: memref<36x96xbf16, #tpu.memory_space<vmem>>, %arg12: memref<20x512xbf16, #tpu.memory_space<vmem>>) attributes {dimension_semantics = [#tpu.dimension_semantics<parallel>], iteration_bounds = array<i64: 2>, scalar_prefetch = 0 : i64, scratch_operands = 2 : i64, tpu.core_type = #tpu.core_type<tc>, window_params = [{transform_indices = @transform_0, window_bounds = array<i64: 1, 32, 96>}, {pipeline_mode = #tpu.pipeline_mode<synchronous>, transform_indices = @transform_1, window_bounds = array<i64: 5, 96, 512>}, {pipeline_mode = #tpu.pipeline_mode<synchronous>, transform_indices = @transform_2, window_bounds = array<i64: 1, 512>}, {pipeline_mode = #tpu.pipeline_mode<synchronous>, transform_indices = @transform_3, window_bounds = array<i64: 1, 512>}, {pipeline_mode = #tpu.pipeline_mode<synchronous>, transform_indices = @transform_4, window_bounds = array<i64: 5, 512, 512>}, {pipeline_mode = #tpu.pipeline_mode<synchronous>, transform_indices = @transform_5, window_bounds = array<i64: 1, 512>}, {pipeline_mode = #tpu.pipeline_mode<synchronous>, transform_indices = @transform_6, window_bounds = array<i64: 1, 512>}, {pipeline_mode = #tpu.pipeline_mode<synchronous>, transform_indices = @transform_7, window_bounds = array<i64: 8, 512>}, {pipeline_mode = #tpu.pipeline_mode<synchronous>, transform_indices = @transform_8, window_bounds = array<i64: 1, 1>}, {transform_indices = @transform_9, window_bounds = array<i64: 1, 1, 1>}]} {
    %cst = arith.constant 0.000000e+00 : bf16
    %0 = vector.broadcast %cst : bf16 to vector<36x96xbf16>
    %c0 = arith.constant 0 : index
    %c0_0 = arith.constant 0 : index
    %1 = vector.load %arg11[%c0, %c0_0] : memref<36x96xbf16, #tpu.memory_space<vmem>>, vector<36x96xbf16>
    tpu.vector_store %arg11[%c0, %c0_0], %0 {strides = array<i32>} : memref<36x96xbf16, #tpu.memory_space<vmem>>, vector<36x96xbf16>,
    %c0_1 = arith.constant 0 : index
    %c0_2 = arith.constant 0 : index
    %c0_3 = arith.constant 0 : index
    %2 = vector.load %arg1[%c0_1, %c0_2, %c0_3] : memref<1x32x96xf32, #tpu.memory_space<vmem>>, vector<1x32x96xf32>
    %3 = vector.shape_cast %2 : vector<1x32x96xf32> to vector<32x96xf32>
    %4 = arith.truncf %3 : vector<32x96xf32> to vector<32x96xbf16>
    %c2 = arith.constant 2 : index
    %c0_4 = arith.constant 0 : index
    %5 = vector.load %arg11[%c2, %c0_4] : memref<36x96xbf16, #tpu.memory_space<vmem>>, vector<32x96xbf16>
    tpu.vector_store %arg11[%c2, %c0_4], %4 {strides = array<i32>} : memref<36x96xbf16, #tpu.memory_space<vmem>>, vector<32x96xbf16>,
    %cst_5 = arith.constant 0.000000e+00 : f32
    %6 = vector.broadcast %cst_5 : f32 to vector<32x512xf32>
    %c0_6 = arith.constant 0 : index
    %c0_7 = arith.constant 0 : index
    %7 = vector.load %arg11[%c0_6, %c0_7] : memref<36x96xbf16, #tpu.memory_space<vmem>>, vector<32x96xbf16>
    %c0_8 = arith.constant 0 : index
    %c0_9 = arith.constant 0 : index
    %c0_10 = arith.constant 0 : index
    %8 = vector.load %arg2[%c0_8, %c0_9, %c0_10] : memref<5x96x512xbf16, #tpu.memory_space<vmem>>, vector<1x96x512xbf16>
    %9 = vector.shape_cast %8 : vector<1x96x512xbf16> to vector<96x512xbf16>
    %cst_11 = arith.constant dense<0.000000e+00> : vector<32x512xf32>
    %10 = tpu.matmul %7, %9, %cst_11 {dimension_numbers = #tpu.dot_dimension_numbers<[1], [0], [0], [1], [0, 0, 1, 1], [], []>} : vector<32x96xbf16>, vector<96x512xbf16>, vector<32x512xf32> -> vector<32x512xf32>
    %11 = arith.addf %6, %10 : vector<32x512xf32>
    %c1 = arith.constant 1 : index
    %c0_12 = arith.constant 0 : index
    %12 = vector.load %arg11[%c1, %c0_12] : memref<36x96xbf16, #tpu.memory_space<vmem>>, vector<32x96xbf16>
    %c1_13 = arith.constant 1 : index
    %c0_14 = arith.constant 0 : index
    %c0_15 = arith.constant 0 : index
    %13 = vector.load %arg2[%c1_13, %c0_14, %c0_15] : memref<5x96x512xbf16, #tpu.memory_space<vmem>>, vector<1x96x512xbf16>
    %14 = vector.shape_cast %13 : vector<1x96x512xbf16> to vector<96x512xbf16>
    %cst_16 = arith.constant dense<0.000000e+00> : vector<32x512xf32>
    %15 = tpu.matmul %12, %14, %cst_16 {dimension_numbers = #tpu.dot_dimension_numbers<[1], [0], [0], [1], [0, 0, 1, 1], [], []>} : vector<32x96xbf16>, vector<96x512xbf16>, vector<32x512xf32> -> vector<32x512xf32>
    %16 = arith.addf %11, %15 : vector<32x512xf32>
    %c2_17 = arith.constant 2 : index
    %c0_18 = arith.constant 0 : index
    %17 = vector.load %arg11[%c2_17, %c0_18] : memref<36x96xbf16, #tpu.memory_space<vmem>>, vector<32x96xbf16>
    %c2_19 = arith.constant 2 : index
    %c0_20 = arith.constant 0 : index
    %c0_21 = arith.constant 0 : index
    %18 = vector.load %arg2[%c2_19, %c0_20, %c0_21] : memref<5x96x512xbf16, #tpu.memory_space<vmem>>, vector<1x96x512xbf16>
    %19 = vector.shape_cast %18 : vector<1x96x512xbf16> to vector<96x512xbf16>
    %cst_22 = arith.constant dense<0.000000e+00> : vector<32x512xf32>
    %20 = tpu.matmul %17, %19, %cst_22 {dimension_numbers = #tpu.dot_dimension_numbers<[1], [0], [0], [1], [0, 0, 1, 1], [], []>} : vector<32x96xbf16>, vector<96x512xbf16>, vector<32x512xf32> -> vector<32x512xf32>
    %21 = arith.addf %16, %20 : vector<32x512xf32>
    %c3 = arith.constant 3 : index
    %c0_23 = arith.constant 0 : index
    %22 = vector.load %arg11[%c3, %c0_23] : memref<36x96xbf16, #tpu.memory_space<vmem>>, vector<32x96xbf16>
    %c3_24 = arith.constant 3 : index
    %c0_25 = arith.constant 0 : index
    %c0_26 = arith.constant 0 : index
    %23 = vector.load %arg2[%c3_24, %c0_25, %c0_26] : memref<5x96x512xbf16, #tpu.memory_space<vmem>>, vector<1x96x512xbf16>
    %24 = vector.shape_cast %23 : vector<1x96x512xbf16> to vector<96x512xbf16>
    %cst_27 = arith.constant dense<0.000000e+00> : vector<32x512xf32>
    %25 = tpu.matmul %22, %24, %cst_27 {dimension_numbers = #tpu.dot_dimension_numbers<[1], [0], [0], [1], [0, 0, 1, 1], [], []>} : vector<32x96xbf16>, vector<96x512xbf16>, vector<32x512xf32> -> vector<32x512xf32>
    %26 = arith.addf %21, %25 : vector<32x512xf32>
    %c4 = arith.constant 4 : index
    %c0_28 = arith.constant 0 : index
    %27 = vector.load %arg11[%c4, %c0_28] : memref<36x96xbf16, #tpu.memory_space<vmem>>, vector<32x96xbf16>
    %c4_29 = arith.constant 4 : index
    %c0_30 = arith.constant 0 : index
    %c0_31 = arith.constant 0 : index
    %28 = vector.load %arg2[%c4_29, %c0_30, %c0_31] : memref<5x96x512xbf16, #tpu.memory_space<vmem>>, vector<1x96x512xbf16>
    %29 = vector.shape_cast %28 : vector<1x96x512xbf16> to vector<96x512xbf16>
    %cst_32 = arith.constant dense<0.000000e+00> : vector<32x512xf32>
    %30 = tpu.matmul %27, %29, %cst_32 {dimension_numbers = #tpu.dot_dimension_numbers<[1], [0], [0], [1], [0, 0, 1, 1], [], []>} : vector<32x96xbf16>, vector<96x512xbf16>, vector<32x512xf32> -> vector<32x512xf32>
    %31 = arith.addf %26, %30 : vector<32x512xf32>
    %c0_33 = arith.constant 0 : index
    %c0_34 = arith.constant 0 : index
    %32 = vector.load %arg3[%c0_33, %c0_34] : memref<1x512xf32, #tpu.memory_space<vmem>>, vector<1x512xf32>
    %33 = vector.broadcast %32 : vector<1x512xf32> to vector<32x512xf32>
    %34 = arith.mulf %31, %33 : vector<32x512xf32>
    %c0_35 = arith.constant 0 : index
    %c0_36 = arith.constant 0 : index
    %35 = vector.load %arg4[%c0_35, %c0_36] : memref<1x512xf32, #tpu.memory_space<vmem>>, vector<1x512xf32>
    %36 = vector.broadcast %35 : vector<1x512xf32> to vector<32x512xf32>
    %37 = arith.addf %34, %36 : vector<32x512xf32>
    %cst_37 = arith.constant 0.000000e+00 : f32
    %38 = vector.broadcast %cst_37 : f32 to vector<32x512xf32>
    %39 = arith.maximumf %37, %38 : vector<32x512xf32>
    %40 = vector.shape_cast %39 : vector<32x512xf32> to vector<16x2x512xf32>
    %cst_38 = arith.constant dense<0xFF800000> : vector<16x512xf32>
    %41 = vector.multi_reduction <maximumf>, %40, %cst_38 [1] : vector<16x2x512xf32> to vector<16x512xf32>
    %42 = vector.extract_strided_slice %41 {offsets = [0, 16], sizes = [16, 496], strides = [1, 1]} : vector<16x512xf32> to vector<16x496xf32>
    %43 = vector.extract_strided_slice %41 {offsets = [0, 0], sizes = [16, 16], strides = [1, 1]} : vector<16x512xf32> to vector<16x16xf32>
    %44 = tpu.concatenate %42, %43 in 1 : vector<16x496xf32>, vector<16x16xf32> -> vector<16x512xf32>
    %45 = arith.maximumf %41, %44 : vector<16x512xf32>
    %cst_39 = arith.constant 0.000000e+00 : bf16
    %46 = vector.broadcast %cst_39 : bf16 to vector<20x512xbf16>
    %c0_40 = arith.constant 0 : index
    %c0_41 = arith.constant 0 : index
    %47 = vector.load %arg12[%c0_40, %c0_41] : memref<20x512xbf16, #tpu.memory_space<vmem>>, vector<20x512xbf16>
    tpu.vector_store %arg12[%c0_40, %c0_41], %46 {strides = array<i32>} : memref<20x512xbf16, #tpu.memory_space<vmem>>, vector<20x512xbf16>,
    %48 = arith.truncf %45 : vector<16x512xf32> to vector<16x512xbf16>
    %c2_42 = arith.constant 2 : index
    %c0_43 = arith.constant 0 : index
    %49 = vector.load %arg12[%c2_42, %c0_43] : memref<20x512xbf16, #tpu.memory_space<vmem>>, vector<16x512xbf16>
    tpu.vector_store %arg12[%c2_42, %c0_43], %48 {strides = array<i32>} : memref<20x512xbf16, #tpu.memory_space<vmem>>, vector<16x512xbf16>,
    %cst_44 = arith.constant 0.000000e+00 : f32
    %50 = vector.broadcast %cst_44 : f32 to vector<16x512xf32>
    %c0_45 = arith.constant 0 : index
    %c0_46 = arith.constant 0 : index
    %51 = vector.load %arg12[%c0_45, %c0_46] : memref<20x512xbf16, #tpu.memory_space<vmem>>, vector<16x512xbf16>
    %c0_47 = arith.constant 0 : index
    %c0_48 = arith.constant 0 : index
    %c0_49 = arith.constant 0 : index
    %52 = vector.load %arg5[%c0_47, %c0_48, %c0_49] : memref<5x512x512xbf16, #tpu.memory_space<vmem>>, vector<1x512x512xbf16>
    %53 = vector.shape_cast %52 : vector<1x512x512xbf16> to vector<512x512xbf16>
    %cst_50 = arith.constant dense<0.000000e+00> : vector<16x512xf32>
    %54 = tpu.matmul %51, %53, %cst_50 {dimension_numbers = #tpu.dot_dimension_numbers<[1], [0], [0], [1], [0, 0, 1, 1], [], []>} : vector<16x512xbf16>, vector<512x512xbf16>, vector<16x512xf32> -> vector<16x512xf32>
    %55 = arith.addf %50, %54 : vector<16x512xf32>
    %c1_51 = arith.constant 1 : index
    %c0_52 = arith.constant 0 : index
    %56 = vector.load %arg12[%c1_51, %c0_52] : memref<20x512xbf16, #tpu.memory_space<vmem>>, vector<16x512xbf16>
    %c1_53 = arith.constant 1 : index
    %c0_54 = arith.constant 0 : index
    %c0_55 = arith.constant 0 : index
    %57 = vector.load %arg5[%c1_53, %c0_54, %c0_55] : memref<5x512x512xbf16, #tpu.memory_space<vmem>>, vector<1x512x512xbf16>
    %58 = vector.shape_cast %57 : vector<1x512x512xbf16> to vector<512x512xbf16>
    %cst_56 = arith.constant dense<0.000000e+00> : vector<16x512xf32>
    %59 = tpu.matmul %56, %58, %cst_56 {dimension_numbers = #tpu.dot_dimension_numbers<[1], [0], [0], [1], [0, 0, 1, 1], [], []>} : vector<16x512xbf16>, vector<512x512xbf16>, vector<16x512xf32> -> vector<16x512xf32>
    %60 = arith.addf %55, %59 : vector<16x512xf32>
    %c2_57 = arith.constant 2 : index
    %c0_58 = arith.constant 0 : index
    %61 = vector.load %arg12[%c2_57, %c0_58] : memref<20x512xbf16, #tpu.memory_space<vmem>>, vector<16x512xbf16>
    %c2_59 = arith.constant 2 : index
    %c0_60 = arith.constant 0 : index
    %c0_61 = arith.constant 0 : index
    %62 = vector.load %arg5[%c2_59, %c0_60, %c0_61] : memref<5x512x512xbf16, #tpu.memory_space<vmem>>, vector<1x512x512xbf16>
    %63 = vector.shape_cast %62 : vector<1x512x512xbf16> to vector<512x512xbf16>
    %cst_62 = arith.constant dense<0.000000e+00> : vector<16x512xf32>
    %64 = tpu.matmul %61, %63, %cst_62 {dimension_numbers = #tpu.dot_dimension_numbers<[1], [0], [0], [1], [0, 0, 1, 1], [], []>} : vector<16x512xbf16>, vector<512x512xbf16>, vector<16x512xf32> -> vector<16x512xf32>
    %65 = arith.addf %60, %64 : vector<16x512xf32>
    %c3_63 = arith.constant 3 : index
    %c0_64 = arith.constant 0 : index
    %66 = vector.load %arg12[%c3_63, %c0_64] : memref<20x512xbf16, #tpu.memory_space<vmem>>, vector<16x512xbf16>
    %c3_65 = arith.constant 3 : index
    %c0_66 = arith.constant 0 : index
    %c0_67 = arith.constant 0 : index
    %67 = vector.load %arg5[%c3_65, %c0_66, %c0_67] : memref<5x512x512xbf16, #tpu.memory_space<vmem>>, vector<1x512x512xbf16>
    %68 = vector.shape_cast %67 : vector<1x512x512xbf16> to vector<512x512xbf16>
    %cst_68 = arith.constant dense<0.000000e+00> : vector<16x512xf32>
    %69 = tpu.matmul %66, %68, %cst_68 {dimension_numbers = #tpu.dot_dimension_numbers<[1], [0], [0], [1], [0, 0, 1, 1], [], []>} : vector<16x512xbf16>, vector<512x512xbf16>, vector<16x512xf32> -> vector<16x512xf32>
    %70 = arith.addf %65, %69 : vector<16x512xf32>
    %c4_69 = arith.constant 4 : index
    %c0_70 = arith.constant 0 : index
    %71 = vector.load %arg12[%c4_69, %c0_70] : memref<20x512xbf16, #tpu.memory_space<vmem>>, vector<16x512xbf16>
    %c4_71 = arith.constant 4 : index
    %c0_72 = arith.constant 0 : index
    %c0_73 = arith.constant 0 : index
    %72 = vector.load %arg5[%c4_71, %c0_72, %c0_73] : memref<5x512x512xbf16, #tpu.memory_space<vmem>>, vector<1x512x512xbf16>
    %73 = vector.shape_cast %72 : vector<1x512x512xbf16> to vector<512x512xbf16>
    %cst_74 = arith.constant dense<0.000000e+00> : vector<16x512xf32>
    %74 = tpu.matmul %71, %73, %cst_74 {dimension_numbers = #tpu.dot_dimension_numbers<[1], [0], [0], [1], [0, 0, 1, 1], [], []>} : vector<16x512xbf16>, vector<512x512xbf16>, vector<16x512xf32> -> vector<16x512xf32>
    %75 = arith.addf %70, %74 : vector<16x512xf32>
    %c0_75 = arith.constant 0 : index
    %c0_76 = arith.constant 0 : index
    %76 = vector.load %arg6[%c0_75, %c0_76] : memref<1x512xf32, #tpu.memory_space<vmem>>, vector<1x512xf32>
    %77 = vector.broadcast %76 : vector<1x512xf32> to vector<16x512xf32>
    %78 = arith.mulf %75, %77 : vector<16x512xf32>
    %c0_77 = arith.constant 0 : index
    %c0_78 = arith.constant 0 : index
    %79 = vector.load %arg7[%c0_77, %c0_78] : memref<1x512xf32, #tpu.memory_space<vmem>>, vector<1x512xf32>
    %80 = vector.broadcast %79 : vector<1x512xf32> to vector<16x512xf32>
    %81 = arith.addf %78, %80 : vector<16x512xf32>
    %cst_79 = arith.constant 0.000000e+00 : f32
    %82 = vector.broadcast %cst_79 : f32 to vector<16x512xf32>
    %83 = arith.maximumf %81, %82 : vector<16x512xf32>
    %84 = vector.shape_cast %83 : vector<16x512xf32> to vector<8x2x512xf32>
    %cst_80 = arith.constant dense<0xFF800000> : vector<8x512xf32>
    %85 = vector.multi_reduction <maximumf>, %84, %cst_80 [1] : vector<8x2x512xf32> to vector<8x512xf32>
    %86 = vector.extract_strided_slice %85 {offsets = [0, 32], sizes = [8, 480], strides = [1, 1]} : vector<8x512xf32> to vector<8x480xf32>
    %87 = vector.extract_strided_slice %85 {offsets = [0, 0], sizes = [8, 32], strides = [1, 1]} : vector<8x512xf32> to vector<8x32xf32>
    %88 = tpu.concatenate %86, %87 in 1 : vector<8x480xf32>, vector<8x32xf32> -> vector<8x512xf32>
    %89 = arith.maximumf %85, %88 : vector<8x512xf32>
    %c0_81 = arith.constant 0 : index
    %c0_82 = arith.constant 0 : index
    %90 = vector.load %arg8[%c0_81, %c0_82] : memref<8x512xf32, #tpu.memory_space<vmem>>, vector<8x512xf32>
    %91 = arith.mulf %89, %90 : vector<8x512xf32>
    %cst_83 = arith.constant dense<0.000000e+00> : vector<8xf32>
    %92 = vector.multi_reduction <add>, %91, %cst_83 [1] : vector<8x512xf32> to vector<8xf32>
    %93 = vector.shape_cast %92 : vector<8xf32> to vector<8x1xf32>
    %cst_84 = arith.constant dense<0.000000e+00> : vector<1xf32>
    %94 = vector.multi_reduction <add>, %93, %cst_84 [0] : vector<8x1xf32> to vector<1xf32>
    %95 = vector.shape_cast %94 : vector<1xf32> to vector<1x1xf32>
    %c0_85 = arith.constant 0 : index
    %c0_86 = arith.constant 0 : index
    %96 = vector.load %arg9[%c0_85, %c0_86] : memref<1x1xf32, #tpu.memory_space<vmem>>, vector<1x1xf32>
    %97 = arith.addf %95, %96 : vector<1x1xf32>
    %c0_87 = arith.constant 0 : index
    %c0_88 = arith.constant 0 : index
    %c0_89 = arith.constant 0 : index
    %98 = vector.load %arg10[%c0_87, %c0_88, %c0_89] : memref<1x1x1xf32, #tpu.memory_space<vmem>>, vector<1x1x1xf32>
    %99 = vector.shape_cast %98 : vector<1x1x1xf32> to vector<1x1xf32>
    %100 = vector.shape_cast %97 : vector<1x1xf32> to vector<1x1x1xf32>
    tpu.vector_store %arg10[%c0_87, %c0_88, %c0_89], %100 {strides = array<i32>} : memref<1x1x1xf32, #tpu.memory_space<vmem>>, vector<1x1x1xf32>,
    return
  }
  func.func @transform_0(%arg0: i32) -> (i32, i32, i32) {
    %c0_i32 = arith.constant 0 : i32
    %c0_i32_0 = arith.constant 0 : i32
    %c0_i32_1 = arith.constant 0 : i32
    return %arg0, %c0_i32, %c0_i32_0 : i32, i32, i32
  }
  func.func @transform_1(%arg0: i32) -> (i32, i32, i32) {
    %c0_i32 = arith.constant 0 : i32
    %c0_i32_0 = arith.constant 0 : i32
    %c0_i32_1 = arith.constant 0 : i32
    %c0_i32_2 = arith.constant 0 : i32
    return %c0_i32, %c0_i32_0, %c0_i32_1 : i32, i32, i32
  }
  func.func @transform_2(%arg0: i32) -> (i32, i32) {
    %c0_i32 = arith.constant 0 : i32
    %c0_i32_0 = arith.constant 0 : i32
    %c0_i32_1 = arith.constant 0 : i32
    return %c0_i32, %c0_i32_0 : i32, i32
  }
  func.func @transform_3(%arg0: i32) -> (i32, i32) {
    %c0_i32 = arith.constant 0 : i32
    %c0_i32_0 = arith.constant 0 : i32
    %c0_i32_1 = arith.constant 0 : i32
    return %c0_i32, %c0_i32_0 : i32, i32
  }
  func.func @transform_4(%arg0: i32) -> (i32, i32, i32) {
    %c0_i32 = arith.constant 0 : i32
    %c0_i32_0 = arith.constant 0 : i32
    %c0_i32_1 = arith.constant 0 : i32
    %c0_i32_2 = arith.constant 0 : i32
    return %c0_i32, %c0_i32_0, %c0_i32_1 : i32, i32, i32
  }
  func.func @transform_5(%arg0: i32) -> (i32, i32) {
    %c0_i32 = arith.constant 0 : i32
    %c0_i32_0 = arith.constant 0 : i32
    %c0_i32_1 = arith.constant 0 : i32
    return %c0_i32, %c0_i32_0 : i32, i32
  }
  func.func @transform_6(%arg0: i32) -> (i32, i32) {
    %c0_i32 = arith.constant 0 : i32
    %c0_i32_0 = arith.constant 0 : i32
    %c0_i32_1 = arith.constant 0 : i32
    return %c0_i32, %c0_i32_0 : i32, i32
  }
  func.func @transform_7(%arg0: i32) -> (i32, i32) {
    %c0_i32 = arith.constant 0 : i32
    %c0_i32_0 = arith.constant 0 : i32
    %c0_i32_1 = arith.constant 0 : i32
    return %c0_i32, %c0_i32_0 : i32, i32
  }
  func.func @transform_8(%arg0: i32) -> (i32, i32) {
    %c0_i32 = arith.constant 0 : i32
    %c0_i32_0 = arith.constant 0 : i32
    %c0_i32_1 = arith.constant 0 : i32
    return %c0_i32, %c0_i32_0 : i32, i32
  }
  func.func @transform_9(%arg0: i32) -> (i32, i32, i32) {
    %c0_i32 = arith.constant 0 : i32
    %c0_i32_0 = arith.constant 0 : i32
    %c0_i32_1 = arith.constant 0 : i32
    return %arg0, %c0_i32, %c0_i32_0 : i32, i32, i32
  }
}

</mosaic_0001>

<llo_original>
// kernel: cnn_forward.1
$region0: #{cnn_forward.1}
  #allocation0 [shape = 'u32[]', space=smem, size = 0x4, offset = 0x4, fixed_abs, tag = 'smem constant byte address 0x4 - core index']
  #allocation1 [shape = 'u32[144,128]{1,0:T(1,128)}', space=vmem, size = 0x12000, scoped, tag = 'internal scratch']
  #allocation2 [shape = 'bf16[36,96]{1,0:T(8,128)(2,1)}', space=vmem, size = 0x2800, scoped, tag = 'scratch operand']
  #allocation3 [shape = 'bf16[20,512]{1,0:T(8,128)(2,1)}', space=vmem, size = 0x6000, scoped, tag = 'scratch operand']
  #allocation4 [shape = 'f32[1,1]{1,0:T(1,128)S(1)}', space=vmem, size = 0x200, scoped, tag = 'scoped memory for cnn_forward.1']
  %s0 = inlined_call_operand.vmem [shape: f32[2,32,96], index: 0, kind: input, shape index: {}]
  %s1 = inlined_call_operand.hbm [shape: bf16[5,96,512], index: 1, kind: input, shape index: {}]
  %s2 = inlined_call_operand.hbm [shape: f32[1,512], index: 2, kind: input, shape index: {}]
  %s3 = inlined_call_operand.hbm [shape: f32[1,512], index: 3, kind: input, shape index: {}]
  %s4 = inlined_call_operand.hbm [shape: bf16[5,512,512], index: 4, kind: input, shape index: {}]
  %s5 = inlined_call_operand.hbm [shape: f32[1,512], index: 5, kind: input, shape index: {}]
  %s6 = inlined_call_operand.hbm [shape: f32[1,512], index: 6, kind: input, shape index: {}]
  %s7 = inlined_call_operand.hbm [shape: f32[8,512], index: 7, kind: input, shape index: {}]
  %s8 = inlined_call_operand.<no memory space> [shape: f32[1,1], index: 8, kind: input, shape index: {}]
  %s9 = inlined_call_operand.vmem [shape: f32[2,1,1], index: 9, kind: output, shape index: {}]
  %s10 = sld [smem:[#allocation0]]
  $region97: #{cnn_forward.1} parent=0
    _
  %s12 = ssub.s32 1, %s10
  %s13 = scalar_select 0, %s12, %s10
  %v14 = vstv %s8
  %15 = vst [vmem:[#allocation4] sm:$0x1] %v14
  $region1: #{cnn_forward.1} parent=0
    #allocation5 [shape = 'u8[491520]{0}', space=vmem, size = 0x78000, scoped, tag = 'input window, operand 1, single buffered']
    #allocation6 [shape = 's32[2]{0}', space=sflag, size = 0x8, scoped, tag = 'scoped memory for cnn_forward.1']
    #allocation7 [shape = 'u8[2048]{0}', space=vmem, size = 0x800, scoped, tag = 'input window, operand 2, single buffered']
    #allocation8 [shape = 's32[1]{0}', space=sflag, size = 0x4, scoped, tag = 'scoped memory for cnn_forward.1']
    #allocation9 [shape = 'u8[2048]{0}', space=vmem, size = 0x800, scoped, tag = 'input window, operand 3, single buffered']
    #allocation10 [shape = 'u8[2621440]{0}', space=vmem, size = 0x280000, scoped, tag = 'input window, operand 4, single buffered']
    #allocation11 [shape = 's32[1]{0}', space=sflag, size = 0x4, scoped, tag = 'scoped memory for cnn_forward.1']
    #allocation12 [shape = 'u8[2048]{0}', space=vmem, size = 0x800, scoped, tag = 'input window, operand 5, single buffered']
    #allocation13 [shape = 'u8[2048]{0}', space=vmem, size = 0x800, scoped, tag = 'input window, operand 6, single buffered']
    #allocation14 [shape = 's32[1]{0}', space=sflag, size = 0x4, scoped, tag = 'scoped memory for cnn_forward.1']
    #allocation15 [shape = 'u8[16384]{0}', space=vmem, size = 0x4000, scoped, tag = 'input window, operand 7, single buffered']
    %16 = vsyncpa [#allocation6], 0
    %17 = vsyncpa [#allocation8], 0
    %18 = vsyncpa [#allocation11], 0
    %19 = vsyncpa [#allocation14], 0
    loop: start=0, step=1, limit=4
    $region2: #{cnn_forward.1} parent=1 // loop_pre_header
      _
    $region3: #{cnn_forward.1} parent=1 // loop_header
      %s21 = sphi 0, %s25
      %p22 = scmp.ge.s32.totalorder %s21, 4
      %s31 = sphi 0, %s33
      %s34 = sphi 0, %s31
      %s35 = sphi 0, %s34
      %s51 = sphi 0, %s35
      %s55 = sphi 0, %s55
      %s57 = sphi 0, %s55
      %s58 = sphi 0, %s57
      %s72 = sphi 0, %s58
      %s76 = sphi 0, %s76
      %s78 = sphi 0, %s76
      %s79 = sphi 0, %s78
      %s93 = sphi 0, %s79
      %s97 = sphi 0, %s97
      %s99 = sphi 0, %s97
      %s100 = sphi 0, %s99
      %s114 = sphi 0, %s100
      %s118 = sphi 0, %s118
      %s120 = sphi 0, %s118
      %s121 = sphi 0, %s120
      %s135 = sphi 0, %s121
      %s139 = sphi 0, %s139
      %s141 = sphi 0, %s139
      %s142 = sphi 0, %s141
      %s156 = sphi 0, %s142
      %s160 = sphi 0, %s160
      %s162 = sphi 0, %s160
      %s163 = sphi 0, %s162
      %s177 = sphi 0, %s163
      %s181 = sphi 0, %s181
      %s183 = sphi 0, %s181
      %s184 = sphi 0, %s183
      %s198 = sphi 0, %s184
      %s202 = sphi 0, %s202
      %s204 = sphi 0, %s202
      %s205 = sphi 0, %s204
      %s219 = sphi 0, %s205
      %s225 = sphi 0, %s227
      %s228 = sphi 0, %s225
      %s229 = sphi 0, %s228
      %s245 = sphi 0, %s229
    $region4: #{cnn_forward.1} parent=1 // loop_header_branch
      %24 = sbr.rel (%p22) target = $region8
    $region5: #{cnn_forward.1} parent=1 // loop_body
      %s26 = ssub.s32 %s21, 1
      %s27 = ssub.s32 %s21, 2
      %s28 = sadd.s32 %s21, 1
      %s29 = ssub.s32 %s21, %s28
      %p30 = scmp.eq.s32.totalorder %s29, 0
      %s32 = sadd.s32 %s31, 1
      %s33 = scalar_select %p30, %s31, %s32
      %p36 = pneg %p30
      %p37 = scmp.eq.s32.totalorder %s21, 1
      %p38 = por %p36, %p37
      %p39 = scmp.ne.s32.totalorder %s31, %s34
      %p40 = scmp.eq.s32.totalorder %s21, 0
      %p41 = por %p39, %p40
      %p42 = scmp.ne.s32.totalorder %s31, %s34
      %p43 = scmp.eq.s32.totalorder %s26, 1
      %p44 = por %p42, %p43
      %p45 = scmp.ne.s32.totalorder %s34, %s35
      %p46 = scmp.eq.s32.totalorder %s26, 0
      %p47 = por %p45, %p46
      %p48 = scmp.ne.s32.totalorder %s34, %s35
      %p49 = scmp.eq.s32.totalorder %s27, 1
      %p50 = por %p48, %p49
      %p52 = scmp.ne.s32.totalorder %s35, %s51
      %p53 = scmp.eq.s32.totalorder %s27, 0
      %p54 = por %p52, %p53
      %s56 = sadd.s32 %s55, 1
      %p59 = scmp.eq.s32.totalorder %s21, 1
      %p60 = scmp.ne.s32.totalorder %s55, %s57
      %p61 = scmp.eq.s32.totalorder %s21, 0
      %p62 = por %p60, %p61
      %p63 = scmp.ne.s32.totalorder %s55, %s57
      %p64 = scmp.eq.s32.totalorder %s26, 1
      %p65 = por %p63, %p64
      %p66 = scmp.ne.s32.totalorder %s57, %s58
      %p67 = scmp.eq.s32.totalorder %s26, 0
      %p68 = por %p66, %p67
      %p69 = scmp.ne.s32.totalorder %s57, %s58
      %p70 = scmp.eq.s32.totalorder %s27, 1
      %p71 = por %p69, %p70
      %p73 = scmp.ne.s32.totalorder %s58, %s72
      %p74 = scmp.eq.s32.totalorder %s27, 0
      %p75 = por %p73, %p74
      %s77 = sadd.s32 %s76, 1
      %p80 = scmp.eq.s32.totalorder %s21, 1
      %p81 = scmp.ne.s32.totalorder %s76, %s78
      %p82 = scmp.eq.s32.totalorder %s21, 0
      %p83 = por %p81, %p82
      %p84 = scmp.ne.s32.totalorder %s76, %s78
      %p85 = scmp.eq.s32.totalorder %s26, 1
      %p86 = por %p84, %p85
      %p87 = scmp.ne.s32.totalorder %s78, %s79
      %p88 = scmp.eq.s32.totalorder %s26, 0
      %p89 = por %p87, %p88
      %p90 = scmp.ne.s32.totalorder %s78, %s79
      %p91 = scmp.eq.s32.totalorder %s27, 1
      %p92 = por %p90, %p91
      %p94 = scmp.ne.s32.totalorder %s79, %s93
      %p95 = scmp.eq.s32.totalorder %s27, 0
      %p96 = por %p94, %p95
      %s98 = sadd.s32 %s97, 1
      %p101 = scmp.eq.s32.totalorder %s21, 1
      %p102 = scmp.ne.s32.totalorder %s97, %s99
      %p103 = scmp.eq.s32.totalorder %s21, 0
      %p104 = por %p102, %p103
      %p105 = scmp.ne.s32.totalorder %s97, %s99
      %p106 = scmp.eq.s32.totalorder %s26, 1
      %p107 = por %p105, %p106
      %p108 = scmp.ne.s32.totalorder %s99, %s100
      %p109 = scmp.eq.s32.totalorder %s26, 0
      %p110 = por %p108, %p109
      %p111 = scmp.ne.s32.totalorder %s99, %s100
      %p112 = scmp.eq.s32.totalorder %s27, 1
      %p113 = por %p111, %p112
      %p115 = scmp.ne.s32.totalorder %s100, %s114
      %p116 = scmp.eq.s32.totalorder %s27, 0
      %p117 = por %p115, %p116
      %s119 = sadd.s32 %s118, 1
      %p122 = scmp.eq.s32.totalorder %s21, 1
      %p123 = scmp.ne.s32.totalorder %s118, %s120
      %p124 = scmp.eq.s32.totalorder %s21, 0
      %p125 = por %p123, %p124
      %p126 = scmp.ne.s32.totalorder %s118, %s120
      %p127 = scmp.eq.s32.totalorder %s26, 1
      %p128 = por %p126, %p127
      %p129 = scmp.ne.s32.totalorder %s120, %s121
      %p130 = scmp.eq.s32.totalorder %s26, 0
      %p131 = por %p129, %p130
      %p132 = scmp.ne.s32.totalorder %s120, %s121
      %p133 = scmp.eq.s32.totalorder %s27, 1
      %p134 = por %p132, %p133
      %p136 = scmp.ne.s32.totalorder %s121, %s135
      %p137 = scmp.eq.s32.totalorder %s27, 0
      %p138 = por %p136, %p137
      %s140 = sadd.s32 %s139, 1
      %p143 = scmp.eq.s32.totalorder %s21, 1
      %p144 = scmp.ne.s32.totalorder %s139, %s141
      %p145 = scmp.eq.s32.totalorder %s21, 0
      %p146 = por %p144, %p145
      %p147 = scmp.ne.s32.totalorder %s139, %s141
      %p148 = scmp.eq.s32.totalorder %s26, 1
      %p149 = por %p147, %p148
      %p150 = scmp.ne.s32.totalorder %s141, %s142
      %p151 = scmp.eq.s32.totalorder %s26, 0
      %p152 = por %p150, %p151
      %p153 = scmp.ne.s32.totalorder %s141, %s142
      %p154 = scmp.eq.s32.totalorder %s27, 1
      %p155 = por %p153, %p154
      %p157 = scmp.ne.s32.totalorder %s142, %s156
      %p158 = scmp.eq.s32.totalorder %s27, 0
      %p159 = por %p157, %p158
      %s161 = sadd.s32 %s160, 1
      %p164 = scmp.eq.s32.totalorder %s21, 1
      %p165 = scmp.ne.s32.totalorder %s160, %s162
      %p166 = scmp.eq.s32.totalorder %s21, 0
      %p167 = por %p165, %p166
      %p168 = scmp.ne.s32.totalorder %s160, %s162
      %p169 = scmp.eq.s32.totalorder %s26, 1
      %p170 = por %p168, %p169
      %p171 = scmp.ne.s32.totalorder %s162, %s163
      %p172 = scmp.eq.s32.totalorder %s26, 0
      %p173 = por %p171, %p172
      %p174 = scmp.ne.s32.totalorder %s162, %s163
      %p175 = scmp.eq.s32.totalorder %s27, 1
      %p176 = por %p174, %p175
      %p178 = scmp.ne.s32.totalorder %s163, %s177
      %p179 = scmp.eq.s32.totalorder %s27, 0
      %p180 = por %p178, %p179
      %s182 = sadd.s32 %s181, 1
      %p185 = scmp.eq.s32.totalorder %s21, 1
      %p186 = scmp.ne.s32.totalorder %s181, %s183
      %p187 = scmp.eq.s32.totalorder %s21, 0
      %p188 = por %p186, %p187
      %p189 = scmp.ne.s32.totalorder %s181, %s183
      %p190 = scmp.eq.s32.totalorder %s26, 1
      %p191 = por %p189, %p190
      %p192 = scmp.ne.s32.totalorder %s183, %s184
      %p193 = scmp.eq.s32.totalorder %s26, 0
      %p194 = por %p192, %p193
      %p195 = scmp.ne.s32.totalorder %s183, %s184
      %p196 = scmp.eq.s32.totalorder %s27, 1
      %p197 = por %p195, %p196
      %p199 = scmp.ne.s32.totalorder %s184, %s198
      %p200 = scmp.eq.s32.totalorder %s27, 0
      %p201 = por %p199, %p200
      %s203 = sadd.s32 %s202, 1
      %p206 = scmp.eq.s32.totalorder %s21, 1
      %p207 = scmp.ne.s32.totalorder %s202, %s204
      %p208 = scmp.eq.s32.totalorder %s21, 0
      %p209 = por %p207, %p208
      %p210 = scmp.ne.s32.totalorder %s202, %s204
      %p211 = scmp.eq.s32.totalorder %s26, 1
      %p212 = por %p210, %p211
      %p213 = scmp.ne.s32.totalorder %s204, %s205
      %p214 = scmp.eq.s32.totalorder %s26, 0
      %p215 = por %p213, %p214
      %p216 = scmp.ne.s32.totalorder %s204, %s205
      %p217 = scmp.eq.s32.totalorder %s27, 1
      %p218 = por %p216, %p217
      %p220 = scmp.ne.s32.totalorder %s205, %s219
      %p221 = scmp.eq.s32.totalorder %s27, 0
      %p222 = por %p220, %p221
      %s223 = ssub.s32 %s21, %s28
      %p224 = scmp.eq.s32.totalorder %s223, 0
      %s226 = sadd.s32 %s225, 1
      %s227 = scalar_select %p224, %s225, %s226
      %p230 = pneg %p224
      %p231 = scmp.eq.s32.totalorder %s21, 1
      %p232 = por %p230, %p231
      %p233 = scmp.ne.s32.totalorder %s225, %s228
      %p234 = scmp.eq.s32.totalorder %s21, 0
      %p235 = por %p233, %p234
      %p236 = scmp.ne.s32.totalorder %s225, %s228
      %p237 = scmp.eq.s32.totalorder %s26, 1
      %p238 = por %p236, %p237
      %p239 = scmp.ne.s32.totalorder %s228, %s229
      %p240 = scmp.eq.s32.totalorder %s26, 0
      %p241 = por %p239, %p240
      %p242 = scmp.ne.s32.totalorder %s228, %s229
      %p243 = scmp.eq.s32.totalorder %s27, 1
      %p244 = por %p242, %p243
      %p246 = scmp.ne.s32.totalorder %s229, %s245
      %p247 = scmp.eq.s32.totalorder %s27, 0
      %p248 = por %p246, %p247
      %p249 = scmp.le.s32.totalorder 1, %s21
      %p250 = scmp.lt.s32.totalorder %s21, 3
      %p251 = pnand %p249, %p250
      %p252 = pneg %p251
      // Predicated region
      $region9: #{cnn_forward.1} parent=5 // pred_check
        _
      $region10: #{cnn_forward.1} parent=5 // pred_check_branch
        %254 = sbr.rel (%p251) target = $region12
      $region11: #{cnn_forward.1} parent=5 // pred_region
        %s255 = ssub.s32 %s21, 1
        // Predicated region
        $region13: #{cnn_forward.1} parent=11 // pred_check
          %p256 = pneg %p68
        $region14: #{cnn_forward.1} parent=11 // pred_check_branch
          %258 = sbr.rel (%p256) target = $region16
        $region15: #{cnn_forward.1} parent=11 // pred_region
          %s260 = ssub.s32 15360, 15360
          %261 = vsyncadd [#allocation6], %s260
          %s262 = sshll.u32 [#allocation5], 4
          %s263 = int_to_ptr.vmem [resolvable:$true] %s262
          %268 = dma.hbm_to_vmem [thread:$0]  %s1, 15360, %s263, [#allocation6], 256, 256, 16
        $region16: #{cnn_forward.1} parent=11 // pred_fallthru
          _
        // Predicated region
        $region17: #{cnn_forward.1} parent=11 // pred_check
          %p269 = pneg %p89
        $region18: #{cnn_forward.1} parent=11 // pred_check_branch
          %271 = sbr.rel (%p269) target = $region20
        $region19: #{cnn_forward.1} parent=11 // pred_region
          %s273 = ssub.s32 64, 64
          %274 = vsyncadd [#allocation8], %s273
          %s276 = sshll.u32 [#allocation7], 4
          %s277 = int_to_ptr.vmem [resolvable:$true] %s276
          %279 = dma.hbm_to_vmem [thread:$0]  %s2, 64, %s277, [#allocation8]
        $region20: #{cnn_forward.1} parent=11 // pred_fallthru
          _
        // Predicated region
        $region21: #{cnn_forward.1} parent=11 // pred_check
          %p280 = pneg %p110
        $region22: #{cnn_forward.1} parent=11 // pred_check_branch
          %282 = sbr.rel (%p280) target = $region24
        $region23: #{cnn_forward.1} parent=11 // pred_region
          %s284 = ssub.s32 64, 64
          %285 = vsyncadd [#allocation8], %s284
          %s287 = sshll.u32 [#allocation9], 4
          %s288 = int_to_ptr.vmem [resolvable:$true] %s287
          %290 = dma.hbm_to_vmem [thread:$0]  %s3, 64, %s288, [#allocation8]
        $region24: #{cnn_forward.1} parent=11 // pred_fallthru
          _
        // Predicated region
        $region25: #{cnn_forward.1} parent=11 // pred_check
          %p291 = pneg %p131
        $region26: #{cnn_forward.1} parent=11 // pred_check_branch
          %293 = sbr.rel (%p291) target = $region28
        $region27: #{cnn_forward.1} parent=11 // pred_region
          %s295 = ssub.s32 81920, 81920
          %296 = vsyncadd [#allocation11], %s295
          %s297 = sshll.u32 [#allocation10], 4
          %s298 = int_to_ptr.vmem [resolvable:$true] %s297
          %303 = dma.hbm_to_vmem [thread:$0]  %s4, 81920, %s298, [#allocation11], 256, 256, 16
        $region28: #{cnn_forward.1} parent=11 // pred_fallthru
          _
        // Predicated region
        $region29: #{cnn_forward.1} parent=11 // pred_check
          %p304 = pneg %p152
        $region30: #{cnn_forward.1} parent=11 // pred_check_branch
          %306 = sbr.rel (%p304) target = $region32
        $region31: #{cnn_forward.1} parent=11 // pred_region
          %s308 = ssub.s32 64, 64
          %309 = vsyncadd [#allocation11], %s308
          %s311 = sshll.u32 [#allocation12], 4
          %s312 = int_to_ptr.vmem [resolvable:$true] %s311
          %314 = dma.hbm_to_vmem [thread:$0]  %s5, 64, %s312, [#allocation11]
        $region32: #{cnn_forward.1} parent=11 // pred_fallthru
          _
        // Predicated region
        $region33: #{cnn_forward.1} parent=11 // pred_check
          %p315 = pneg %p173
        $region34: #{cnn_forward.1} parent=11 // pred_check_branch
          %317 = sbr.rel (%p315) target = $region36
        $region35: #{cnn_forward.1} parent=11 // pred_region
          %s319 = ssub.s32 64, 64
          %320 = vsyncadd [#allocation14], %s319
          %s322 = sshll.u32 [#allocation13], 4
          %s323 = int_to_ptr.vmem [resolvable:$true] %s322
          %325 = dma.hbm_to_vmem [thread:$0]  %s6, 64, %s323, [#allocation14]
        $region36: #{cnn_forward.1} parent=11 // pred_fallthru
          _
        // Predicated region
        $region37: #{cnn_forward.1} parent=11 // pred_check
          %p326 = pneg %p194
        $region38: #{cnn_forward.1} parent=11 // pred_check_branch
          %328 = sbr.rel (%p326) target = $region40
        $region39: #{cnn_forward.1} parent=11 // pred_region
          %s330 = ssub.s32 512, 512
          %331 = vsyncadd [#allocation14], %s330
          %s333 = sshll.u32 [#allocation15], 4
          %s334 = int_to_ptr.vmem [resolvable:$true] %s333
          %336 = dma.hbm_to_vmem [thread:$0]  %s7, 512, %s334, [#allocation14]
        $region40: #{cnn_forward.1} parent=11 // pred_fallthru
          _
        // Predicated region
        $region41: #{cnn_forward.1} parent=11 // pred_check
          %p337 = pneg %p215
        $region42: #{cnn_forward.1} parent=11 // pred_check_branch
          %339 = sbr.rel (%p337) target = $region44
        $region43: #{cnn_forward.1} parent=11 // pred_region
          _
        $region44: #{cnn_forward.1} parent=11 // pred_fallthru
          _
      $region12: #{cnn_forward.1} parent=5 // pred_fallthru
        _
      %p340 = scmp.lt.s32.totalorder %s21, 2
      // Predicated region
      $region45: #{cnn_forward.1} parent=5 // pred_check
        %p341 = pneg %p340
      $region46: #{cnn_forward.1} parent=5 // pred_check_branch
        %343 = sbr.rel (%p341) target = $region48
      $region47: #{cnn_forward.1} parent=5 // pred_region
        // Predicated region
        $region49: #{cnn_forward.1} parent=47 // pred_check
          %p344 = pneg %p41
        $region50: #{cnn_forward.1} parent=47 // pred_check_branch
          %346 = sbr.rel (%p344) target = $region52
        $region51: #{cnn_forward.1} parent=47 // pred_region
          %p347 = scmp.lt.s32.totalorder %s21, 1
          %s348 = scalar_select %p347, %s21, 1
          %s349 = smul.addr %s348, 4
          %s350 = smul.addr %s349, 8
          %s351 = scalar_lea.vmem %s0, %s350
        $region52: #{cnn_forward.1} parent=47 // pred_fallthru
          _
      $region48: #{cnn_forward.1} parent=5 // pred_fallthru
        _
      %p352 = scmp.le.s32.totalorder 1, %s21
      %p353 = scmp.lt.s32.totalorder %s21, 3
      %p354 = pnand %p352, %p353
      %p355 = pneg %p354
      // Predicated region
      $region53: #{cnn_forward.1} parent=5 // pred_check
        _
      $region54: #{cnn_forward.1} parent=5 // pred_check_branch
        %357 = sbr.rel (%p354) target = $region56
      $region55: #{cnn_forward.1} parent=5 // pred_region
        %s358 = ssub.s32 %s21, 1
        // Predicated region
        $region57: #{cnn_forward.1} parent=55 // pred_check
          %p359 = pneg %p68
        $region58: #{cnn_forward.1} parent=55 // pred_check_branch
          %361 = sbr.rel (%p359) target = $region60
        $region59: #{cnn_forward.1} parent=55 // pred_region
          %362 = dma.done [#allocation6], 15360
        $region60: #{cnn_forward.1} parent=55 // pred_fallthru
          _
        // Predicated region
        $region61: #{cnn_forward.1} parent=55 // pred_check
          %p363 = pneg %p89
        $region62: #{cnn_forward.1} parent=55 // pred_check_branch
          %365 = sbr.rel (%p363) target = $region64
        $region63: #{cnn_forward.1} parent=55 // pred_region
          %366 = dma.done [#allocation8], 64
        $region64: #{cnn_forward.1} parent=55 // pred_fallthru
          _
        // Predicated region
        $region65: #{cnn_forward.1} parent=55 // pred_check
          %p367 = pneg %p110
        $region66: #{cnn_forward.1} parent=55 // pred_check_branch
          %369 = sbr.rel (%p367) target = $region68
        $region67: #{cnn_forward.1} parent=55 // pred_region
          %370 = dma.done [#allocation8], 64
        $region68: #{cnn_forward.1} parent=55 // pred_fallthru
          _
        // Predicated region
        $region69: #{cnn_forward.1} parent=55 // pred_check
          %p371 = pneg %p131
        $region70: #{cnn_forward.1} parent=55 // pred_check_branch
          %373 = sbr.rel (%p371) target = $region72
        $region71: #{cnn_forward.1} parent=55 // pred_region
          %374 = dma.done [#allocation11], 81920
        $region72: #{cnn_forward.1} parent=55 // pred_fallthru
          _
        // Predicated region
        $region73: #{cnn_forward.1} parent=55 // pred_check
          %p375 = pneg %p152
        $region74: #{cnn_forward.1} parent=55 // pred_check_branch
          %377 = sbr.rel (%p375) target = $region76
        $region75: #{cnn_forward.1} parent=55 // pred_region
          %378 = dma.done [#allocation11], 64
        $region76: #{cnn_forward.1} parent=55 // pred_fallthru
          _
        // Predicated region
        $region77: #{cnn_forward.1} parent=55 // pred_check
          %p379 = pneg %p173
        $region78: #{cnn_forward.1} parent=55 // pred_check_branch
          %381 = sbr.rel (%p379) target = $region80
        $region79: #{cnn_forward.1} parent=55 // pred_region
          %382 = dma.done [#allocation14], 64
        $region80: #{cnn_forward.1} parent=55 // pred_fallthru
          _
        // Predicated region
        $region81: #{cnn_forward.1} parent=55 // pred_check
          %p383 = pneg %p194
        $region82: #{cnn_forward.1} parent=55 // pred_check_branch
          %385 = sbr.rel (%p383) target = $region84
        $region83: #{cnn_forward.1} parent=55 // pred_region
          %386 = dma.done [#allocation14], 512
        $region84: #{cnn_forward.1} parent=55 // pred_fallthru
          _
        %p387 = scmp.lt.s32.totalorder %s26, 1
        %s388 = scalar_select %p387, %s26, 1
        %s389 = smul.addr %s388, 4
        %s390 = smul.addr %s389, 8
        %s391 = scalar_lea.vmem %s0, %s390
        %p392 = pneg %p47
        %p393 = pneg %p44
        %p394 = pneg %p68
        %p395 = pneg %p65
        %p396 = pneg %p89
        %p397 = pneg %p86
        %p398 = pneg %p110
        %p399 = pneg %p107
        %p400 = pneg %p131
        %p401 = pneg %p128
        %p402 = pneg %p152
        %p403 = pneg %p149
        %p404 = pneg %p173
        %p405 = pneg %p170
        %p406 = pneg %p194
        %p407 = pneg %p191
        %p408 = pneg %p215
        %p409 = pneg %p212
        %p410 = pneg %p241
        %p411 = pneg %p238
        %p412 = scmp.lt.s32.totalorder %s26, 1
        %s413 = scalar_select %p412, %s26, 1
        %s414 = scalar_lea.vmem %s9, %s413
        %p415 = scmp.lt.s32.totalorder %s26, 1
        %s416 = scalar_select %p415, %s26, 1
        %s417 = smul.addr %s416, 4
        %s418 = smul.addr %s417, 8
        %s419 = scalar_lea.vmem %s0, %s418
        %p420 = scmp.lt.s32.totalorder %s26, 1
        %s421 = scalar_select %p420, %s26, 1
        %s422 = scalar_lea.vmem %s9, %s421
        %vm424 = vcmask 781312
        %425 = vst.msk [vmem:[#allocation2] sm:$0xf] %vm424, 0
        %426 = vst.msk [vmem:[#allocation2 + $0x4] sm:$0xf] %vm424, 0
        %427 = vst.msk [vmem:[#allocation2 + $0x8] sm:$0xf] %vm424, 0
        %428 = vst.msk [vmem:[#allocation2 + $0xc] sm:$0xf] %vm424, 0
        %vm429 = vcmask 779264
        %430 = vst.msk [vmem:[#allocation2 + $0x10] sm:$0x3] %vm429, 0
        %v431 = vld [vmem:[%s419] sm:$0xff]
        %v432 = vld [vmem:[%s419 + $0x8] sm:$0xff]
        %v433 = vld [vmem:[%s419 + $0x10] sm:$0xff]
        %v434 = vld [vmem:[%s419 + $0x18] sm:$0xff]
        %v435 = vpack.c.bf16 %v432, %v431
        %v436 = vpack.c.bf16 %v434, %v433
        %v439 = vunpack.c.l.b16 %v435
        %v440 = vunpack.c.h.b16 %v435
        %v441 = vunpack.c.l.b16 %v436
        %v442 = vunpack.c.h.b16 %v436
        %v443 = vpack.c.b16 %v439, %v439
        %v444 = vpack.c.b16 %v440, %v440
        %v445 = vpack.c.b16 %v441, %v441
        %v446 = vpack.c.b16 %v442, %v442
        %vm447 = vcmask 1040384
        %vm448 = vcmask 1044484
        %vm449 = vmor %vm447, %vm448
        %v450 = vrot.slane %v443, 7
        %v451 = vrot.slane %v450, 4
        %v452 = vrot.slane %v444, 7
        %v453 = vsel %vm449, %v451, %v452
        %v454 = vrot.slane %v452, 4
        %v455 = vrot.slane %v445, 7
        %v456 = vsel %vm449, %v454, %v455
        %v457 = vrot.slane %v455, 4
        %v458 = vrot.slane %v446, 7
        %v459 = vsel %vm449, %v457, %v458
        %v460 = vrot.slane %v458, 4
        %vm466 = vcmask 781313
        %467 = vst.msk [vmem:[#allocation2] sm:$0xe] %vm466, %v450
        %468 = vst.msk [vmem:[#allocation2 + $0x4] sm:$0xf] %vm424, %v453
        %469 = vst.msk [vmem:[#allocation2 + $0x8] sm:$0xf] %vm424, %v456
        %470 = vst.msk [vmem:[#allocation2 + $0xc] sm:$0xf] %vm424, %v459
        %vm471 = vcmask 778240
        %472 = vst.msk [vmem:[#allocation2 + $0x10] sm:$0x1] %vm471, %v460
        %v473 = vld [vmem:[#allocation2] sm:$0xf]
        %v474 = vld [vmem:[#allocation2 + $0x4] sm:$0xf]
        %v475 = vld [vmem:[#allocation2 + $0x8] sm:$0xf]
        %v476 = vld [vmem:[#allocation2 + $0xc] sm:$0xf]
        %v477 = vld [vmem:[#allocation5] sm:$0xff]
        %v478 = vld [vmem:[#allocation5 + $0x8] sm:$0xff]
        %v479 = vld [vmem:[#allocation5 + $0x10] sm:$0xff]
        %v480 = vld [vmem:[#allocation5 + $0x18] sm:$0xff]
        %v481 = vld [vmem:[#allocation5 + $0x20] sm:$0xff]
        %v482 = vld [vmem:[#allocation5 + $0x28] sm:$0xff]
        %v483 = vld [vmem:[#allocation5 + $0x30] sm:$0xff]
        %v484 = vld [vmem:[#allocation5 + $0x38] sm:$0xff]
        %v485 = vld [vmem:[#allocation5 + $0x40] sm:$0xff]
        %v486 = vld [vmem:[#allocation5 + $0x48] sm:$0xff]
        %v487 = vld [vmem:[#allocation5 + $0x50] sm:$0xff]
        %v488 = vld [vmem:[#allocation5 + $0x58] sm:$0xff]
        %v489 = vld [vmem:[#allocation5 + $0x60] sm:$0xff]
        %v490 = vld [vmem:[#allocation5 + $0x68] sm:$0xff]
        %v491 = vld [vmem:[#allocation5 + $0x70] sm:$0xff]
        %v492 = vld [vmem:[#allocation5 + $0x78] sm:$0xff]
        %v493 = vld [vmem:[#allocation5 + $0x80] sm:$0xff]
        %v494 = vld [vmem:[#allocation5 + $0x88] sm:$0xff]
        %v495 = vld [vmem:[#allocation5 + $0x90] sm:$0xff]
        %v496 = vld [vmem:[#allocation5 + $0x98] sm:$0xff]
        %v497 = vld [vmem:[#allocation5 + $0xa0] sm:$0xff]
        %v498 = vld [vmem:[#allocation5 + $0xa8] sm:$0xff]
        %v499 = vld [vmem:[#allocation5 + $0xb0] sm:$0xff]
        %v500 = vld [vmem:[#allocation5 + $0xb8] sm:$0xff]
        %v501 = vld [vmem:[#allocation2 + $0x10] sm:$0x1]
        %s502 = scalar_lea.vmem [#allocation5], 192
        %v503 = vld [vmem:[%s502] sm:$0xff]
        %v504 = vld [vmem:[%s502 + $0x8] sm:$0xff]
        %v505 = vld [vmem:[%s502 + $0x10] sm:$0xff]
        %v506 = vld [vmem:[%s502 + $0x18] sm:$0xff]
        %v507 = vld [vmem:[%s502 + $0x20] sm:$0xff]
        %v508 = vld [vmem:[%s502 + $0x28] sm:$0xff]
        %v509 = vld [vmem:[%s502 + $0x30] sm:$0xff]
        %v510 = vld [vmem:[%s502 + $0x38] sm:$0xff]
        %v511 = vld [vmem:[%s502 + $0x40] sm:$0xff]
        %v512 = vld [vmem:[%s502 + $0x48] sm:$0xff]
        %v513 = vld [vmem:[%s502 + $0x50] sm:$0xff]
        %v514 = vld [vmem:[%s502 + $0x58] sm:$0xff]
        %v515 = vld [vmem:[%s502 + $0x60] sm:$0xff]
        %v516 = vld [vmem:[%s502 + $0x68] sm:$0xff]
        %v517 = vld [vmem:[%s502 + $0x70] sm:$0xff]
        %v518 = vld [vmem:[%s502 + $0x78] sm:$0xff]
        %v519 = vld [vmem:[%s502 + $0x80] sm:$0xff]
        %v520 = vld [vmem:[%s502 + $0x88] sm:$0xff]
        %v521 = vld [vmem:[%s502 + $0x90] sm:$0xff]
        %v522 = vld [vmem:[%s502 + $0x98] sm:$0xff]
        %v523 = vld [vmem:[%s502 + $0xa0] sm:$0xff]
        %v524 = vld [vmem:[%s502 + $0xa8] sm:$0xff]
        %v525 = vld [vmem:[%s502 + $0xb0] sm:$0xff]
        %v526 = vld [vmem:[%s502 + $0xb8] sm:$0xff]
        %v532 = vunpack.c.l.b16 %v473
        %v533 = vunpack.c.l.b16 %v474
        %v534 = vunpack.c.l.b16 %v475
        %v535 = vunpack.c.l.b16 %v476
        %v536 = vunpack.c.l.b16 %v501
        %v537 = vpack.c.b16 %v533, %v532
        %v538 = vpack.c.b16 %v535, %v534
        %v539 = vpack.c.b16 %v536, %v536
        %vm540 = vsmask.f32 7424
        %v542 = vshrl.u32 %v537, 16
        %v544 = vshll.u32 %v537, 16
        %v546 = vrot.slane %v544, 1
        %v547 = vor.u32 %v542, %v546
        %v549 = vshll.u32 %v538, 16
        %v551 = vrot.slane %v549, 1
        %v552 = vsel %vm540, %v547, %v551
        %v553 = vshrl.u32 %v538, 16
        %v555 = vor.u32 %v553, %v551
        %v557 = vshll.u32 %v539, 16
        %v559 = vrot.slane %v557, 1
        %v560 = vsel %vm540, %v555, %v559
        %v585 = vunpack.c.l.b16 %v503
        %v586 = vunpack.c.h.b16 %v503
        %v587 = vunpack.c.l.b16 %v504
        %v588 = vunpack.c.h.b16 %v504
        %v589 = vunpack.c.l.b16 %v505
        %v590 = vunpack.c.h.b16 %v505
        %v591 = vunpack.c.l.b16 %v506
        %v592 = vunpack.c.h.b16 %v506
        %v593 = vunpack.c.l.b16 %v507
        %v594 = vunpack.c.h.b16 %v507
        %v595 = vunpack.c.l.b16 %v508
        %v596 = vunpack.c.h.b16 %v508
        %v597 = vunpack.c.l.b16 %v509
        %v598 = vunpack.c.h.b16 %v509
        %v599 = vunpack.c.l.b16 %v510
        %v600 = vunpack.c.h.b16 %v510
        %v601 = vunpack.c.l.b16 %v511
        %v602 = vunpack.c.h.b16 %v511
        %v603 = vunpack.c.l.b16 %v512
        %v604 = vunpack.c.h.b16 %v512
        %v605 = vunpack.c.l.b16 %v513
        %v606 = vunpack.c.h.b16 %v513
        %v607 = vunpack.c.l.b16 %v514
        %v608 = vunpack.c.h.b16 %v514
        %v609 = vunpack.c.l.b16 %v515
        %v610 = vunpack.c.h.b16 %v515
        %v611 = vunpack.c.l.b16 %v516
        %v612 = vunpack.c.h.b16 %v516
        %v613 = vunpack.c.l.b16 %v517
        %v614 = vunpack.c.h.b16 %v517
        %v615 = vunpack.c.l.b16 %v518
        %v616 = vunpack.c.h.b16 %v518
        %v617 = vunpack.c.l.b16 %v519
        %v618 = vunpack.c.h.b16 %v519
        %v619 = vunpack.c.l.b16 %v520
        %v620 = vunpack.c.h.b16 %v520
        %v621 = vunpack.c.l.b16 %v521
        %v622 = vunpack.c.h.b16 %v521
        %v623 = vunpack.c.l.b16 %v522
        %v624 = vunpack.c.h.b16 %v522
        %v625 = vunpack.c.l.b16 %v523
        %v626 = vunpack.c.h.b16 %v523
        %v627 = vunpack.c.l.b16 %v524
        %v628 = vunpack.c.h.b16 %v524
        %v629 = vunpack.c.l.b16 %v525
        %v630 = vunpack.c.h.b16 %v525
        %v631 = vunpack.c.l.b16 %v526
        %v632 = vunpack.c.h.b16 %v526
        %v633 = vpack.c.b16 %v589, %v585
        %v634 = vpack.c.b16 %v590, %v586
        %v635 = vpack.c.b16 %v591, %v587
        %v636 = vpack.c.b16 %v592, %v588
        %v637 = vpack.c.b16 %v597, %v593
        %v638 = vpack.c.b16 %v598, %v594
        %v639 = vpack.c.b16 %v599, %v595
        %v640 = vpack.c.b16 %v600, %v596
        %v641 = vpack.c.b16 %v605, %v601
        %v642 = vpack.c.b16 %v606, %v602
        %v643 = vpack.c.b16 %v607, %v603
        %v644 = vpack.c.b16 %v608, %v604
        %v645 = vpack.c.b16 %v613, %v609
        %v646 = vpack.c.b16 %v614, %v610
        %v647 = vpack.c.b16 %v615, %v611
        %v648 = vpack.c.b16 %v616, %v612
        %v649 = vpack.c.b16 %v621, %v617
        %v650 = vpack.c.b16 %v622, %v618
        %v651 = vpack.c.b16 %v623, %v619
        %v652 = vpack.c.b16 %v624, %v620
        %v653 = vpack.c.b16 %v629, %v625
        %v654 = vpack.c.b16 %v630, %v626
        %v655 = vpack.c.b16 %v631, %v627
        %v656 = vpack.c.b16 %v632, %v628
        %vm681 = vcmask 785408
        %v683 = vsel %vm681, %v552, 0
        %v686 = vsel %vm681, %v560, 0
        %688 = vmatprep.subr.bf16.mxu0 %v634
        %689 = vmatpush1.bf16.msra.mxu0 %v633
        %690 = vmatprep.subr.bf16.mxu0 %v638
        %691 = vmatpush1.bf16.msra.mxu0 %v637
        %692 = vmatprep.subr.bf16.mxu0 %v642
        %693 = vmatpush1.bf16.msra.mxu0 %v641
        %694 = vmatprep.subr.bf16.mxu0 %v646
        %695 = vmatpush1.bf16.msra.mxu0 %v645
        %696 = vmatprep.subr.bf16.mxu0 %v650
        %697 = vmatpush1.bf16.msra.mxu0 %v649
        %698 = vmatprep.subr.bf16.mxu0 %v654
        %699 = vmatpush1.bf16.msra.mxu0 %v653
        %700 = vmatprep.subr.bf16.mxu0 0
        %701 = vmatpush1.bf16.msra.mxu0 0
        %702 = vmatprep.subr.bf16.mxu0 0
        %703 = vmatpush1.bf16.msra.mxu0 0
        %704 = vmatprep.subr.bf16.mxu0 0
        %705 = vmatpush1.bf16.msra.mxu0 0
        %706 = vmatprep.subr.bf16.mxu0 0
        %707 = vmatpush1.bf16.msra.mxu0 0
        %708 = vmatprep.subr.bf16.mxu0 0
        %709 = vmatpush1.bf16.msra.mxu0 0
        %710 = vmatprep.subr.bf16.mxu0 0
        %711 = vmatpush1.bf16.msra.mxu0 0
        %712 = vmatprep.subr.bf16.mxu0 0
        %713 = vmatpush1.bf16.msra.mxu0 0
        %714 = vmatprep.subr.bf16.mxu0 0
        %715 = vmatpush1.bf16.msra.mxu0 0
        %716 = vmatprep.subr.bf16.mxu0 0
        %717 = vmatpush1.bf16.msra.mxu0 0
        %718 = vmatprep.subr.bf16.mxu0 0
        %719 = vmatpush1.bf16.msra.mxu0 0
        %720 = vmatprep.mubr.bf16.mxu0 0
        %721 = vmatmul.mubr.bf16.gmra.mrb[0].mxu0 %v683
        %v722 = vpop.f32.mrb[0].mxu0
        %v723 = vadd.f32 0.0, %v722
        %v724 = vpop.f32.mrb[0].mxu0
        %v725 = vadd.f32 0.0, %v724
        %v726 = vpop.f32.mrb[0].mxu0
        %v727 = vadd.f32 0.0, %v726
        %v728 = vpop.f32.mrb[0].mxu0
        %v729 = vadd.f32 0.0, %v728
        %730 = vmatprep.mubr.bf16.mxu0 0
        %731 = vmatmul.mubr.bf16.gmra.mrb[0].mxu0 %v686
        %v732 = vpop.f32.mrb[0].mxu0
        %v733 = vadd.f32 0.0, %v732
        %v734 = vpop.f32.mrb[0].mxu0
        %v735 = vadd.f32 0.0, %v734
        %v736 = vpop.f32.mrb[0].mxu0
        %v737 = vadd.f32 0.0, %v736
        %v738 = vpop.f32.mrb[0].mxu0
        %v739 = vadd.f32 0.0, %v738
        %740 = vdwg.mxu0
        %741 = vmatprep.subr.bf16.mxu0 %v636
        %742 = vmatpush1.bf16.msra.mxu0 %v635
        %743 = vmatprep.subr.bf16.mxu0 %v640
        %744 = vmatpush1.bf16.msra.mxu0 %v639
        %745 = vmatprep.subr.bf16.mxu0 %v644
        %746 = vmatpush1.bf16.msra.mxu0 %v643
        %747 = vmatprep.subr.bf16.mxu0 %v648
        %748 = vmatpush1.bf16.msra.mxu0 %v647
        %749 = vmatprep.subr.bf16.mxu0 %v652
        %750 = vmatpush1.bf16.msra.mxu0 %v651
        %751 = vmatprep.subr.bf16.mxu0 %v656
        %752 = vmatpush1.bf16.msra.mxu0 %v655
        %753 = vmatprep.subr.bf16.mxu0 0
        %754 = vmatpush1.bf16.msra.mxu0 0
        %755 = vmatprep.subr.bf16.mxu0 0
        %756 = vmatpush1.bf16.msra.mxu0 0
        %757 = vmatprep.subr.bf16.mxu0 0
        %758 = vmatpush1.bf16.msra.mxu0 0
        %759 = vmatprep.subr.bf16.mxu0 0
        %760 = vmatpush1.bf16.msra.mxu0 0
        %761 = vmatprep.subr.bf16.mxu0 0
        %762 = vmatpush1.bf16.msra.mxu0 0
        %763 = vmatprep.subr.bf16.mxu0 0
        %764 = vmatpush1.bf16.msra.mxu0 0
        %765 = vmatprep.subr.bf16.mxu0 0
        %766 = vmatpush1.bf16.msra.mxu0 0
        %767 = vmatprep.subr.bf16.mxu0 0
        %768 = vmatpush1.bf16.msra.mxu0 0
        %769 = vmatprep.subr.bf16.mxu0 0
        %770 = vmatpush1.bf16.msra.mxu0 0
        %771 = vmatprep.subr.bf16.mxu0 0
        %772 = vmatpush1.bf16.msra.mxu0 0
        %773 = vmatprep.mubr.bf16.mxu0 0
        %774 = vmatmul.mubr.bf16.gmra.mrb[0].mxu0 %v683
        %v775 = vpop.f32.mrb[0].mxu0
        %v776 = vadd.f32 0.0, %v775
        %v777 = vpop.f32.mrb[0].mxu0
        %v778 = vadd.f32 0.0, %v777
        %v779 = vpop.f32.mrb[0].mxu0
        %v780 = vadd.f32 0.0, %v779
        %v781 = vpop.f32.mrb[0].mxu0
        %v782 = vadd.f32 0.0, %v781
        %783 = vmatprep.mubr.bf16.mxu0 0
        %784 = vmatmul.mubr.bf16.gmra.mrb[0].mxu0 %v686
        %v785 = vpop.f32.mrb[0].mxu0
        %v786 = vadd.f32 0.0, %v785
        %v787 = vpop.f32.mrb[0].mxu0
        %v788 = vadd.f32 0.0, %v787
        %v789 = vpop.f32.mrb[0].mxu0
        %v790 = vadd.f32 0.0, %v789
        %v791 = vpop.f32.mrb[0].mxu0
        %v792 = vadd.f32 0.0, %v791
        %793 = vdwg.mxu0
        %v818 = vunpack.c.l.b16 %v477
        %v819 = vunpack.c.h.b16 %v477
        %v820 = vunpack.c.l.b16 %v478
        %v821 = vunpack.c.h.b16 %v478
        %v822 = vunpack.c.l.b16 %v479
        %v823 = vunpack.c.h.b16 %v479
        %v824 = vunpack.c.l.b16 %v480
        %v825 = vunpack.c.h.b16 %v480
        %v826 = vunpack.c.l.b16 %v481
        %v827 = vunpack.c.h.b16 %v481
        %v828 = vunpack.c.l.b16 %v482
        %v829 = vunpack.c.h.b16 %v482
        %v830 = vunpack.c.l.b16 %v483
        %v831 = vunpack.c.h.b16 %v483
        %v832 = vunpack.c.l.b16 %v484
        %v833 = vunpack.c.h.b16 %v484
        %v834 = vunpack.c.l.b16 %v485
        %v835 = vunpack.c.h.b16 %v485
        %v836 = vunpack.c.l.b16 %v486
        %v837 = vunpack.c.h.b16 %v486
        %v838 = vunpack.c.l.b16 %v487
        %v839 = vunpack.c.h.b16 %v487
        %v840 = vunpack.c.l.b16 %v488
        %v841 = vunpack.c.h.b16 %v488
        %v842 = vunpack.c.l.b16 %v489
        %v843 = vunpack.c.h.b16 %v489
        %v844 = vunpack.c.l.b16 %v490
        %v845 = vunpack.c.h.b16 %v490
        %v846 = vunpack.c.l.b16 %v491
        %v847 = vunpack.c.h.b16 %v491
        %v848 = vunpack.c.l.b16 %v492
        %v849 = vunpack.c.h.b16 %v492
        %v850 = vunpack.c.l.b16 %v493
        %v851 = vunpack.c.h.b16 %v493
        %v852 = vunpack.c.l.b16 %v494
        %v853 = vunpack.c.h.b16 %v494
        %v854 = vunpack.c.l.b16 %v495
        %v855 = vunpack.c.h.b16 %v495
        %v856 = vunpack.c.l.b16 %v496
        %v857 = vunpack.c.h.b16 %v496
        %v858 = vunpack.c.l.b16 %v497
        %v859 = vunpack.c.h.b16 %v497
        %v860 = vunpack.c.l.b16 %v498
        %v861 = vunpack.c.h.b16 %v498
        %v862 = vunpack.c.l.b16 %v499
        %v863 = vunpack.c.h.b16 %v499
        %v864 = vunpack.c.l.b16 %v500
        %v865 = vunpack.c.h.b16 %v500
        %v866 = vpack.c.b16 %v822, %v818
        %v867 = vpack.c.b16 %v823, %v819
        %v868 = vpack.c.b16 %v824, %v820
        %v869 = vpack.c.b16 %v825, %v821
        %v870 = vpack.c.b16 %v830, %v826
        %v871 = vpack.c.b16 %v831, %v827
        %v872 = vpack.c.b16 %v832, %v828
        %v873 = vpack.c.b16 %v833, %v829
        %v874 = vpack.c.b16 %v838, %v834
        %v875 = vpack.c.b16 %v839, %v835
        %v876 = vpack.c.b16 %v840, %v836
        %v877 = vpack.c.b16 %v841, %v837
        %v878 = vpack.c.b16 %v846, %v842
        %v879 = vpack.c.b16 %v847, %v843
        %v880 = vpack.c.b16 %v848, %v844
        %v881 = vpack.c.b16 %v849, %v845
        %v882 = vpack.c.b16 %v854, %v850
        %v883 = vpack.c.b16 %v855, %v851
        %v884 = vpack.c.b16 %v856, %v852
        %v885 = vpack.c.b16 %v857, %v853
        %v886 = vpack.c.b16 %v862, %v858
        %v887 = vpack.c.b16 %v863, %v859
        %v888 = vpack.c.b16 %v864, %v860
        %v889 = vpack.c.b16 %v865, %v861
        %v914 = vsel %vm681, %v537, 0
        %v916 = vsel %vm681, %v538, 0
        %918 = vmatprep.subr.bf16.mxu0 %v867
        %919 = vmatpush1.bf16.msra.mxu0 %v866
        %920 = vmatprep.subr.bf16.mxu0 %v871
        %921 = vmatpush1.bf16.msra.mxu0 %v870
        %922 = vmatprep.subr.bf16.mxu0 %v875
        %923 = vmatpush1.bf16.msra.mxu0 %v874
        %924 = vmatprep.subr.bf16.mxu0 %v879
        %925 = vmatpush1.bf16.msra.mxu0 %v878
        %926 = vmatprep.subr.bf16.mxu0 %v883
        %927 = vmatpush1.bf16.msra.mxu0 %v882
        %928 = vmatprep.subr.bf16.mxu0 %v887
        %929 = vmatpush1.bf16.msra.mxu0 %v886
        %930 = vmatprep.subr.bf16.mxu0 0
        %931 = vmatpush1.bf16.msra.mxu0 0
        %932 = vmatprep.subr.bf16.mxu0 0
        %933 = vmatpush1.bf16.msra.mxu0 0
        %934 = vmatprep.subr.bf16.mxu0 0
        %935 = vmatpush1.bf16.msra.mxu0 0
        %936 = vmatprep.subr.bf16.mxu0 0
        %937 = vmatpush1.bf16.msra.mxu0 0
        %938 = vmatprep.subr.bf16.mxu0 0
        %939 = vmatpush1.bf16.msra.mxu0 0
        %940 = vmatprep.subr.bf16.mxu0 0
        %941 = vmatpush1.bf16.msra.mxu0 0
        %942 = vmatprep.subr.bf16.mxu0 0
        %943 = vmatpush1.bf16.msra.mxu0 0
        %944 = vmatprep.subr.bf16.mxu0 0
        %945 = vmatpush1.bf16.msra.mxu0 0
        %946 = vmatprep.subr.bf16.mxu0 0
        %947 = vmatpush1.bf16.msra.mxu0 0
        %948 = vmatprep.subr.bf16.mxu0 0
        %949 = vmatpush1.bf16.msra.mxu0 0
        %950 = vmatprep.mubr.bf16.mxu0 0
        %951 = vmatmul.mubr.bf16.gmra.mrb[0].mxu0 %v914
        %v952 = vpop.f32.mrb[0].mxu0
        %v953 = vadd.f32 %v723, %v952
        %v954 = vpop.f32.mrb[0].mxu0
        %v955 = vadd.f32 %v725, %v954
        %v956 = vpop.f32.mrb[0].mxu0
        %v957 = vadd.f32 %v727, %v956
        %v958 = vpop.f32.mrb[0].mxu0
        %v959 = vadd.f32 %v729, %v958
        %960 = vmatprep.mubr.bf16.mxu0 0
        %961 = vmatmul.mubr.bf16.gmra.mrb[0].mxu0 %v916
        %v962 = vpop.f32.mrb[0].mxu0
        %v963 = vadd.f32 %v733, %v962
        %v964 = vpop.f32.mrb[0].mxu0
        %v965 = vadd.f32 %v735, %v964
        %v966 = vpop.f32.mrb[0].mxu0
        %v967 = vadd.f32 %v737, %v966
        %v968 = vpop.f32.mrb[0].mxu0
        %v969 = vadd.f32 %v739, %v968
        %970 = vdwg.mxu0
        %971 = vmatprep.subr.bf16.mxu0 %v869
        %972 = vmatpush1.bf16.msra.mxu0 %v868
        %973 = vmatprep.subr.bf16.mxu0 %v873
        %974 = vmatpush1.bf16.msra.mxu0 %v872
        %975 = vmatprep.subr.bf16.mxu0 %v877
        %976 = vmatpush1.bf16.msra.mxu0 %v876
        %977 = vmatprep.subr.bf16.mxu0 %v881
        %978 = vmatpush1.bf16.msra.mxu0 %v880
        %979 = vmatprep.subr.bf16.mxu0 %v885
        %980 = vmatpush1.bf16.msra.mxu0 %v884
        %981 = vmatprep.subr.bf16.mxu0 %v889
        %982 = vmatpush1.bf16.msra.mxu0 %v888
        %983 = vmatprep.subr.bf16.mxu0 0
        %984 = vmatpush1.bf16.msra.mxu0 0
        %985 = vmatprep.subr.bf16.mxu0 0
        %986 = vmatpush1.bf16.msra.mxu0 0
        %987 = vmatprep.subr.bf16.mxu0 0
        %988 = vmatpush1.bf16.msra.mxu0 0
        %989 = vmatprep.subr.bf16.mxu0 0
        %990 = vmatpush1.bf16.msra.mxu0 0
        %991 = vmatprep.subr.bf16.mxu0 0
        %992 = vmatpush1.bf16.msra.mxu0 0
        %993 = vmatprep.subr.bf16.mxu0 0
        %994 = vmatpush1.bf16.msra.mxu0 0
        %995 = vmatprep.subr.bf16.mxu0 0
        %996 = vmatpush1.bf16.msra.mxu0 0
        %997 = vmatprep.subr.bf16.mxu0 0
        %998 = vmatpush1.bf16.msra.mxu0 0
        %999 = vmatprep.subr.bf16.mxu0 0
        %1000 = vmatpush1.bf16.msra.mxu0 0
        %1001 = vmatprep.subr.bf16.mxu0 0
        %1002 = vmatpush1.bf16.msra.mxu0 0
        %1003 = vmatprep.mubr.bf16.mxu0 0
        %1004 = vmatmul.mubr.bf16.gmra.mrb[0].mxu0 %v914
        %v1005 = vpop.f32.mrb[0].mxu0
        %v1006 = vadd.f32 %v776, %v1005
        %v1007 = vpop.f32.mrb[0].mxu0
        %v1008 = vadd.f32 %v778, %v1007
        %v1009 = vpop.f32.mrb[0].mxu0
        %v1010 = vadd.f32 %v780, %v1009
        %v1011 = vpop.f32.mrb[0].mxu0
        %v1012 = vadd.f32 %v782, %v1011
        %1013 = vmatprep.mubr.bf16.mxu0 0
        %1014 = vmatmul.mubr.bf16.gmra.mrb[0].mxu0 %v916
        %v1015 = vpop.f32.mrb[0].mxu0
        %v1016 = vadd.f32 %v786, %v1015
        %v1017 = vpop.f32.mrb[0].mxu0
        %v1018 = vadd.f32 %v788, %v1017
        %v1019 = vpop.f32.mrb[0].mxu0
        %v1020 = vadd.f32 %v790, %v1019
        %v1021 = vpop.f32.mrb[0].mxu0
        %v1022 = vadd.f32 %v792, %v1021
        %1023 = vdwg.mxu0
        %v1024 = vld [vmem:[#allocation2] sm:$0xe]
        %s1025 = scalar_lea.vmem [#allocation5], 384
        %v1026 = vld [vmem:[%s1025] sm:$0xff]
        %v1027 = vld [vmem:[%s1025 + $0x8] sm:$0xff]
        %v1028 = vld [vmem:[%s1025 + $0x10] sm:$0xff]
        %v1029 = vld [vmem:[%s1025 + $0x18] sm:$0xff]
        %v1030 = vld [vmem:[%s1025 + $0x20] sm:$0xff]
        %v1031 = vld [vmem:[%s1025 + $0x28] sm:$0xff]
        %v1032 = vld [vmem:[%s1025 + $0x30] sm:$0xff]
        %v1033 = vld [vmem:[%s1025 + $0x38] sm:$0xff]
        %v1034 = vld [vmem:[%s1025 + $0x40] sm:$0xff]
        %v1035 = vld [vmem:[%s1025 + $0x48] sm:$0xff]
        %v1036 = vld [vmem:[%s1025 + $0x50] sm:$0xff]
        %v1037 = vld [vmem:[%s1025 + $0x58] sm:$0xff]
        %v1038 = vld [vmem:[%s1025 + $0x60] sm:$0xff]
        %v1039 = vld [vmem:[%s1025 + $0x68] sm:$0xff]
        %v1040 = vld [vmem:[%s1025 + $0x70] sm:$0xff]
        %v1041 = vld [vmem:[%s1025 + $0x78] sm:$0xff]
        %v1042 = vld [vmem:[%s1025 + $0x80] sm:$0xff]
        %v1043 = vld [vmem:[%s1025 + $0x88] sm:$0xff]
        %v1044 = vld [vmem:[%s1025 + $0x90] sm:$0xff]
        %v1045 = vld [vmem:[%s1025 + $0x98] sm:$0xff]
        %v1046 = vld [vmem:[%s1025 + $0xa0] sm:$0xff]
        %v1047 = vld [vmem:[%s1025 + $0xa8] sm:$0xff]
        %v1048 = vld [vmem:[%s1025 + $0xb0] sm:$0xff]
        %v1049 = vld [vmem:[%s1025 + $0xb8] sm:$0xff]
        %v1051 = vunpack.c.l.b16 %v1024
        %v1052 = vpack.c.b16 %v533, %v1051
        %vm1053 = vcmask 1046528
        %v1054 = vrot.slane %v1052, 1
        %v1055 = vrot.slane %v538, 1
        %v1056 = vsel %vm1053, %v1054, %v1055
        %v1057 = vrot.slane %v539, 1
        %v1058 = vsel %vm1053, %v1055, %v1057
        %v1083 = vunpack.c.l.b16 %v1026
        %v1084 = vunpack.c.h.b16 %v1026
        %v1085 = vunpack.c.l.b16 %v1027
        %v1086 = vunpack.c.h.b16 %v1027
        %v1087 = vunpack.c.l.b16 %v1028
        %v1088 = vunpack.c.h.b16 %v1028
        %v1089 = vunpack.c.l.b16 %v1029
        %v1090 = vunpack.c.h.b16 %v1029
        %v1091 = vunpack.c.l.b16 %v1030
        %v1092 = vunpack.c.h.b16 %v1030
        %v1093 = vunpack.c.l.b16 %v1031
        %v1094 = vunpack.c.h.b16 %v1031
        %v1095 = vunpack.c.l.b16 %v1032
        %v1096 = vunpack.c.h.b16 %v1032
        %v1097 = vunpack.c.l.b16 %v1033
        %v1098 = vunpack.c.h.b16 %v1033
        %v1099 = vunpack.c.l.b16 %v1034
        %v1100 = vunpack.c.h.b16 %v1034
        %v1101 = vunpack.c.l.b16 %v1035
        %v1102 = vunpack.c.h.b16 %v1035
        %v1103 = vunpack.c.l.b16 %v1036
        %v1104 = vunpack.c.h.b16 %v1036
        %v1105 = vunpack.c.l.b16 %v1037
        %v1106 = vunpack.c.h.b16 %v1037
        %v1107 = vunpack.c.l.b16 %v1038
        %v1108 = vunpack.c.h.b16 %v1038
        %v1109 = vunpack.c.l.b16 %v1039
        %v1110 = vunpack.c.h.b16 %v1039
        %v1111 = vunpack.c.l.b16 %v1040
        %v1112 = vunpack.c.h.b16 %v1040
        %v1113 = vunpack.c.l.b16 %v1041
        %v1114 = vunpack.c.h.b16 %v1041
        %v1115 = vunpack.c.l.b16 %v1042
        %v1116 = vunpack.c.h.b16 %v1042
        %v1117 = vunpack.c.l.b16 %v1043
        %v1118 = vunpack.c.h.b16 %v1043
        %v1119 = vunpack.c.l.b16 %v1044
        %v1120 = vunpack.c.h.b16 %v1044
        %v1121 = vunpack.c.l.b16 %v1045
        %v1122 = vunpack.c.h.b16 %v1045
        %v1123 = vunpack.c.l.b16 %v1046
        %v1124 = vunpack.c.h.b16 %v1046
        %v1125 = vunpack.c.l.b16 %v1047
        %v1126 = vunpack.c.h.b16 %v1047
        %v1127 = vunpack.c.l.b16 %v1048
        %v1128 = vunpack.c.h.b16 %v1048
        %v1129 = vunpack.c.l.b16 %v1049
        %v1130 = vunpack.c.h.b16 %v1049
        %v1131 = vpack.c.b16 %v1087, %v1083
        %v1132 = vpack.c.b16 %v1088, %v1084
        %v1133 = vpack.c.b16 %v1089, %v1085
        %v1134 = vpack.c.b16 %v1090, %v1086
        %v1135 = vpack.c.b16 %v1095, %v1091
        %v1136 = vpack.c.b16 %v1096, %v1092
        %v1137 = vpack.c.b16 %v1097, %v1093
        %v1138 = vpack.c.b16 %v1098, %v1094
        %v1139 = vpack.c.b16 %v1103, %v1099
        %v1140 = vpack.c.b16 %v1104, %v1100
        %v1141 = vpack.c.b16 %v1105, %v1101
        %v1142 = vpack.c.b16 %v1106, %v1102
        %v1143 = vpack.c.b16 %v1111, %v1107
        %v1144 = vpack.c.b16 %v1112, %v1108
        %v1145 = vpack.c.b16 %v1113, %v1109
        %v1146 = vpack.c.b16 %v1114, %v1110
        %v1147 = vpack.c.b16 %v1119, %v1115
        %v1148 = vpack.c.b16 %v1120, %v1116
        %v1149 = vpack.c.b16 %v1121, %v1117
        %v1150 = vpack.c.b16 %v1122, %v1118
        %v1151 = vpack.c.b16 %v1127, %v1123
        %v1152 = vpack.c.b16 %v1128, %v1124
        %v1153 = vpack.c.b16 %v1129, %v1125
        %v1154 = vpack.c.b16 %v1130, %v1126
        %v1180 = vsel %vm681, %v1056, 0
        %v1183 = vsel %vm681, %v1058, 0
        %1185 = vmatprep.subr.bf16.mxu0 %v1132
        %1186 = vmatpush1.bf16.msra.mxu0 %v1131
        %1187 = vmatprep.subr.bf16.mxu0 %v1136
        %1188 = vmatpush1.bf16.msra.mxu0 %v1135
        %1189 = vmatprep.subr.bf16.mxu0 %v1140
        %1190 = vmatpush1.bf16.msra.mxu0 %v1139
        %1191 = vmatprep.subr.bf16.mxu0 %v1144
        %1192 = vmatpush1.bf16.msra.mxu0 %v1143
        %1193 = vmatprep.subr.bf16.mxu0 %v1148
        %1194 = vmatpush1.bf16.msra.mxu0 %v1147
        %1195 = vmatprep.subr.bf16.mxu0 %v1152
        %1196 = vmatpush1.bf16.msra.mxu0 %v1151
        %1197 = vmatprep.subr.bf16.mxu0 0
        %1198 = vmatpush1.bf16.msra.mxu0 0
        %1199 = vmatprep.subr.bf16.mxu0 0
        %1200 = vmatpush1.bf16.msra.mxu0 0
        %1201 = vmatprep.subr.bf16.mxu0 0
        %1202 = vmatpush1.bf16.msra.mxu0 0
        %1203 = vmatprep.subr.bf16.mxu0 0
        %1204 = vmatpush1.bf16.msra.mxu0 0
        %1205 = vmatprep.subr.bf16.mxu0 0
        %1206 = vmatpush1.bf16.msra.mxu0 0
        %1207 = vmatprep.subr.bf16.mxu0 0
        %1208 = vmatpush1.bf16.msra.mxu0 0
        %1209 = vmatprep.subr.bf16.mxu0 0
        %1210 = vmatpush1.bf16.msra.mxu0 0
        %1211 = vmatprep.subr.bf16.mxu0 0
        %1212 = vmatpush1.bf16.msra.mxu0 0
        %1213 = vmatprep.subr.bf16.mxu0 0
        %1214 = vmatpush1.bf16.msra.mxu0 0
        %1215 = vmatprep.subr.bf16.mxu0 0
        %1216 = vmatpush1.bf16.msra.mxu0 0
        %1217 = vmatprep.mubr.bf16.mxu0 0
        %1218 = vmatmul.mubr.bf16.gmra.mrb[0].mxu0 %v1180
        %v1219 = vpop.f32.mrb[0].mxu0
        %v1220 = vadd.f32 0.0, %v1219
        %v1221 = vpop.f32.mrb[0].mxu0
        %v1222 = vadd.f32 0.0, %v1221
        %v1223 = vpop.f32.mrb[0].mxu0
        %v1224 = vadd.f32 0.0, %v1223
        %v1225 = vpop.f32.mrb[0].mxu0
        %v1226 = vadd.f32 0.0, %v1225
        %1227 = vmatprep.mubr.bf16.mxu0 0
        %1228 = vmatmul.mubr.bf16.gmra.mrb[0].mxu0 %v1183
        %v1229 = vpop.f32.mrb[0].mxu0
        %v1230 = vadd.f32 0.0, %v1229
        %v1231 = vpop.f32.mrb[0].mxu0
        %v1232 = vadd.f32 0.0, %v1231
        %v1233 = vpop.f32.mrb[0].mxu0
        %v1234 = vadd.f32 0.0, %v1233
        %v1235 = vpop.f32.mrb[0].mxu0
        %v1236 = vadd.f32 0.0, %v1235
        %1237 = vdwg.mxu0
        %1238 = vmatprep.subr.bf16.mxu0 %v1134
        %1239 = vmatpush1.bf16.msra.mxu0 %v1133
        %1240 = vmatprep.subr.bf16.mxu0 %v1138
        %1241 = vmatpush1.bf16.msra.mxu0 %v1137
        %1242 = vmatprep.subr.bf16.mxu0 %v1142
        %1243 = vmatpush1.bf16.msra.mxu0 %v1141
        %1244 = vmatprep.subr.bf16.mxu0 %v1146
        %1245 = vmatpush1.bf16.msra.mxu0 %v1145
        %1246 = vmatprep.subr.bf16.mxu0 %v1150
        %1247 = vmatpush1.bf16.msra.mxu0 %v1149
        %1248 = vmatprep.subr.bf16.mxu0 %v1154
        %1249 = vmatpush1.bf16.msra.mxu0 %v1153
        %1250 = vmatprep.subr.bf16.mxu0 0
        %1251 = vmatpush1.bf16.msra.mxu0 0
        %1252 = vmatprep.subr.bf16.mxu0 0
        %1253 = vmatpush1.bf16.msra.mxu0 0
        %1254 = vmatprep.subr.bf16.mxu0 0
        %1255 = vmatpush1.bf16.msra.mxu0 0
        %1256 = vmatprep.subr.bf16.mxu0 0
        %1257 = vmatpush1.bf16.msra.mxu0 0
        %1258 = vmatprep.subr.bf16.mxu0 0
        %1259 = vmatpush1.bf16.msra.mxu0 0
        %1260 = vmatprep.subr.bf16.mxu0 0
        %1261 = vmatpush1.bf16.msra.mxu0 0
        %1262 = vmatprep.subr.bf16.mxu0 0
        %1263 = vmatpush1.bf16.msra.mxu0 0
        %1264 = vmatprep.subr.bf16.mxu0 0
        %1265 = vmatpush1.bf16.msra.mxu0 0
        %1266 = vmatprep.subr.bf16.mxu0 0
        %1267 = vmatpush1.bf16.msra.mxu0 0
        %1268 = vmatprep.subr.bf16.mxu0 0
        %1269 = vmatpush1.bf16.msra.mxu0 0
        %1270 = vmatprep.mubr.bf16.mxu0 0
        %1271 = vmatmul.mubr.bf16.gmra.mrb[0].mxu0 %v1180
        %v1272 = vpop.f32.mrb[0].mxu0
        %v1273 = vadd.f32 0.0, %v1272
        %v1274 = vpop.f32.mrb[0].mxu0
        %v1275 = vadd.f32 0.0, %v1274
        %v1276 = vpop.f32.mrb[0].mxu0
        %v1277 = vadd.f32 0.0, %v1276
        %v1278 = vpop.f32.mrb[0].mxu0
        %v1279 = vadd.f32 0.0, %v1278
        %1280 = vmatprep.mubr.bf16.mxu0 0
        %1281 = vmatmul.mubr.bf16.gmra.mrb[0].mxu0 %v1183
        %v1282 = vpop.f32.mrb[0].mxu0
        %v1283 = vadd.f32 0.0, %v1282
        %v1284 = vpop.f32.mrb[0].mxu0
        %v1285 = vadd.f32 0.0, %v1284
        %v1286 = vpop.f32.mrb[0].mxu0
        %v1287 = vadd.f32 0.0, %v1286
        %v1288 = vpop.f32.mrb[0].mxu0
        %v1289 = vadd.f32 0.0, %v1288
        %1290 = vdwg.mxu0
        %v1291 = vadd.f32 %v953, %v1220
        %v1292 = vadd.f32 %v955, %v1222
        %v1293 = vadd.f32 %v1006, %v1273
        %v1294 = vadd.f32 %v1008, %v1275
        %v1295 = vadd.f32 %v957, %v1224
        %v1296 = vadd.f32 %v959, %v1226
        %v1297 = vadd.f32 %v1010, %v1277
        %v1298 = vadd.f32 %v1012, %v1279
        %v1299 = vadd.f32 %v963, %v1230
        %v1300 = vadd.f32 %v965, %v1232
        %v1301 = vadd.f32 %v1016, %v1283
        %v1302 = vadd.f32 %v1018, %v1285
        %v1303 = vadd.f32 %v967, %v1234
        %v1304 = vadd.f32 %v969, %v1236
        %v1305 = vadd.f32 %v1020, %v1287
        %v1306 = vadd.f32 %v1022, %v1289
        %v1307 = vld [vmem:[#allocation2 + $0x10] sm:$0x3]
        %s1308 = scalar_lea.vmem [#allocation5], 576
        %v1309 = vld [vmem:[%s1308] sm:$0xff]
        %v1310 = vld [vmem:[%s1308 + $0x8] sm:$0xff]
        %v1311 = vld [vmem:[%s1308 + $0x10] sm:$0xff]
        %v1312 = vld [vmem:[%s1308 + $0x18] sm:$0xff]
        %v1313 = vld [vmem:[%s1308 + $0x20] sm:$0xff]
        %v1314 = vld [vmem:[%s1308 + $0x28] sm:$0xff]
        %v1315 = vld [vmem:[%s1308 + $0x30] sm:$0xff]
        %v1316 = vld [vmem:[%s1308 + $0x38] sm:$0xff]
        %v1317 = vld [vmem:[%s1308 + $0x40] sm:$0xff]
        %v1318 = vld [vmem:[%s1308 + $0x48] sm:$0xff]
        %v1319 = vld [vmem:[%s1308 + $0x50] sm:$0xff]
        %v1320 = vld [vmem:[%s1308 + $0x58] sm:$0xff]
        %v1321 = vld [vmem:[%s1308 + $0x60] sm:$0xff]
        %v1322 = vld [vmem:[%s1308 + $0x68] sm:$0xff]
        %v1323 = vld [vmem:[%s1308 + $0x70] sm:$0xff]
        %v1324 = vld [vmem:[%s1308 + $0x78] sm:$0xff]
        %v1325 = vld [vmem:[%s1308 + $0x80] sm:$0xff]
        %v1326 = vld [vmem:[%s1308 + $0x88] sm:$0xff]
        %v1327 = vld [vmem:[%s1308 + $0x90] sm:$0xff]
        %v1328 = vld [vmem:[%s1308 + $0x98] sm:$0xff]
        %v1329 = vld [vmem:[%s1308 + $0xa0] sm:$0xff]
        %v1330 = vld [vmem:[%s1308 + $0xa8] sm:$0xff]
        %v1331 = vld [vmem:[%s1308 + $0xb0] sm:$0xff]
        %v1332 = vld [vmem:[%s1308 + $0xb8] sm:$0xff]
        %v1334 = vunpack.c.l.b16 %v1307
        %v1335 = vpack.c.b16 %v1334, %v1334
        %vm1336 = vsmask.f32 6400
        %v1338 = vshrl.u32 %v1052, 16
        %v1340 = vrot.slane %v1338, 1
        %v1341 = vshll.u32 %v1052, 16
        %v1343 = vrot.slane %v1341, 2
        %v1344 = vor.u32 %v1340, %v1343
        %v1345 = vrot.slane %v553, 1
        %v1346 = vrot.slane %v549, 2
        %v1347 = vor.u32 %v1345, %v1346
        %v1348 = vsel %vm1336, %v1344, %v1347
        %v1350 = vshrl.u32 %v1335, 16
        %v1352 = vrot.slane %v1350, 1
        %v1353 = vshll.u32 %v1335, 16
        %v1355 = vrot.slane %v1353, 2
        %v1356 = vor.u32 %v1352, %v1355
        %v1357 = vsel %vm1336, %v1347, %v1356
        %v1382 = vunpack.c.l.b16 %v1309
        %v1383 = vunpack.c.h.b16 %v1309
        %v1384 = vunpack.c.l.b16 %v1310
        %v1385 = vunpack.c.h.b16 %v1310
        %v1386 = vunpack.c.l.b16 %v1311
        %v1387 = vunpack.c.h.b16 %v1311
        %v1388 = vunpack.c.l.b16 %v1312
        %v1389 = vunpack.c.h.b16 %v1312
        %v1390 = vunpack.c.l.b16 %v1313
        %v1391 = vunpack.c.h.b16 %v1313
        %v1392 = vunpack.c.l.b16 %v1314
        %v1393 = vunpack.c.h.b16 %v1314
        %v1394 = vunpack.c.l.b16 %v1315
        %v1395 = vunpack.c.h.b16 %v1315
        %v1396 = vunpack.c.l.b16 %v1316
        %v1397 = vunpack.c.h.b16 %v1316
        %v1398 = vunpack.c.l.b16 %v1317
        %v1399 = vunpack.c.h.b16 %v1317
        %v1400 = vunpack.c.l.b16 %v1318
        %v1401 = vunpack.c.h.b16 %v1318
        %v1402 = vunpack.c.l.b16 %v1319
        %v1403 = vunpack.c.h.b16 %v1319
        %v1404 = vunpack.c.l.b16 %v1320
        %v1405 = vunpack.c.h.b16 %v1320
        %v1406 = vunpack.c.l.b16 %v1321
        %v1407 = vunpack.c.h.b16 %v1321
        %v1408 = vunpack.c.l.b16 %v1322
        %v1409 = vunpack.c.h.b16 %v1322
        %v1410 = vunpack.c.l.b16 %v1323
        %v1411 = vunpack.c.h.b16 %v1323
        %v1412 = vunpack.c.l.b16 %v1324
        %v1413 = vunpack.c.h.b16 %v1324
        %v1414 = vunpack.c.l.b16 %v1325
        %v1415 = vunpack.c.h.b16 %v1325
        %v1416 = vunpack.c.l.b16 %v1326
        %v1417 = vunpack.c.h.b16 %v1326
        %v1418 = vunpack.c.l.b16 %v1327
        %v1419 = vunpack.c.h.b16 %v1327
        %v1420 = vunpack.c.l.b16 %v1328
        %v1421 = vunpack.c.h.b16 %v1328
        %v1422 = vunpack.c.l.b16 %v1329
        %v1423 = vunpack.c.h.b16 %v1329
        %v1424 = vunpack.c.l.b16 %v1330
        %v1425 = vunpack.c.h.b16 %v1330
        %v1426 = vunpack.c.l.b16 %v1331
        %v1427 = vunpack.c.h.b16 %v1331
        %v1428 = vunpack.c.l.b16 %v1332
        %v1429 = vunpack.c.h.b16 %v1332
        %v1430 = vpack.c.b16 %v1386, %v1382
        %v1431 = vpack.c.b16 %v1387, %v1383
        %v1432 = vpack.c.b16 %v1388, %v1384
        %v1433 = vpack.c.b16 %v1389, %v1385
        %v1434 = vpack.c.b16 %v1394, %v1390
        %v1435 = vpack.c.b16 %v1395, %v1391
        %v1436 = vpack.c.b16 %v1396, %v1392
        %v1437 = vpack.c.b16 %v1397, %v1393
        %v1438 = vpack.c.b16 %v1402, %v1398
        %v1439 = vpack.c.b16 %v1403, %v1399
        %v1440 = vpack.c.b16 %v1404, %v1400
        %v1441 = vpack.c.b16 %v1405, %v1401
        %v1442 = vpack.c.b16 %v1410, %v1406
        %v1443 = vpack.c.b16 %v1411, %v1407
        %v1444 = vpack.c.b16 %v1412, %v1408
        %v1445 = vpack.c.b16 %v1413, %v1409
        %v1446 = vpack.c.b16 %v1418, %v1414
        %v1447 = vpack.c.b16 %v1419, %v1415
        %v1448 = vpack.c.b16 %v1420, %v1416
        %v1449 = vpack.c.b16 %v1421, %v1417
        %v1450 = vpack.c.b16 %v1426, %v1422
        %v1451 = vpack.c.b16 %v1427, %v1423
        %v1452 = vpack.c.b16 %v1428, %v1424
        %v1453 = vpack.c.b16 %v1429, %v1425
        %v1479 = vsel %vm681, %v1348, 0
        %v1482 = vsel %vm681, %v1357, 0
        %1484 = vmatprep.subr.bf16.mxu0 %v1431
        %1485 = vmatpush1.bf16.msra.mxu0 %v1430
        %1486 = vmatprep.subr.bf16.mxu0 %v1435
        %1487 = vmatpush1.bf16.msra.mxu0 %v1434
        %1488 = vmatprep.subr.bf16.mxu0 %v1439
        %1489 = vmatpush1.bf16.msra.mxu0 %v1438
        %1490 = vmatprep.subr.bf16.mxu0 %v1443
        %1491 = vmatpush1.bf16.msra.mxu0 %v1442
        %1492 = vmatprep.subr.bf16.mxu0 %v1447
        %1493 = vmatpush1.bf16.msra.mxu0 %v1446
        %1494 = vmatprep.subr.bf16.mxu0 %v1451
        %1495 = vmatpush1.bf16.msra.mxu0 %v1450
        %1496 = vmatprep.subr.bf16.mxu0 0
        %1497 = vmatpush1.bf16.msra.mxu0 0
        %1498 = vmatprep.subr.bf16.mxu0 0
        %1499 = vmatpush1.bf16.msra.mxu0 0
        %1500 = vmatprep.subr.bf16.mxu0 0
        %1501 = vmatpush1.bf16.msra.mxu0 0
        %1502 = vmatprep.subr.bf16.mxu0 0
        %1503 = vmatpush1.bf16.msra.mxu0 0
        %1504 = vmatprep.subr.bf16.mxu0 0
        %1505 = vmatpush1.bf16.msra.mxu0 0
        %1506 = vmatprep.subr.bf16.mxu0 0
        %1507 = vmatpush1.bf16.msra.mxu0 0
        %1508 = vmatprep.subr.bf16.mxu0 0
        %1509 = vmatpush1.bf16.msra.mxu0 0
        %1510 = vmatprep.subr.bf16.mxu0 0
        %1511 = vmatpush1.bf16.msra.mxu0 0
        %1512 = vmatprep.subr.bf16.mxu0 0
        %1513 = vmatpush1.bf16.msra.mxu0 0
        %1514 = vmatprep.subr.bf16.mxu0 0
        %1515 = vmatpush1.bf16.msra.mxu0 0
        %1516 = vmatprep.mubr.bf16.mxu0 0
        %1517 = vmatmul.mubr.bf16.gmra.mrb[0].mxu0 %v1479
        %v1518 = vpop.f32.mrb[0].mxu0
        %v1519 = vadd.f32 0.0, %v1518
        %v1520 = vpop.f32.mrb[0].mxu0
        %v1521 = vadd.f32 0.0, %v1520
        %v1522 = vpop.f32.mrb[0].mxu0
        %v1523 = vadd.f32 0.0, %v1522
        %v1524 = vpop.f32.mrb[0].mxu0
        %v1525 = vadd.f32 0.0, %v1524
        %1526 = vmatprep.mubr.bf16.mxu0 0
        %1527 = vmatmul.mubr.bf16.gmra.mrb[0].mxu0 %v1482
        %v1528 = vpop.f32.mrb[0].mxu0
        %v1529 = vadd.f32 0.0, %v1528
        %v1530 = vpop.f32.mrb[0].mxu0
        %v1531 = vadd.f32 0.0, %v1530
        %v1532 = vpop.f32.mrb[0].mxu0
        %v1533 = vadd.f32 0.0, %v1532
        %v1534 = vpop.f32.mrb[0].mxu0
        %v1535 = vadd.f32 0.0, %v1534
        %1536 = vdwg.mxu0
        %1537 = vmatprep.subr.bf16.mxu0 %v1433
        %1538 = vmatpush1.bf16.msra.mxu0 %v1432
        %1539 = vmatprep.subr.bf16.mxu0 %v1437
        %1540 = vmatpush1.bf16.msra.mxu0 %v1436
        %1541 = vmatprep.subr.bf16.mxu0 %v1441
        %1542 = vmatpush1.bf16.msra.mxu0 %v1440
        %1543 = vmatprep.subr.bf16.mxu0 %v1445
        %1544 = vmatpush1.bf16.msra.mxu0 %v1444
        %1545 = vmatprep.subr.bf16.mxu0 %v1449
        %1546 = vmatpush1.bf16.msra.mxu0 %v1448
        %1547 = vmatprep.subr.bf16.mxu0 %v1453
        %1548 = vmatpush1.bf16.msra.mxu0 %v1452
        %1549 = vmatprep.subr.bf16.mxu0 0
        %1550 = vmatpush1.bf16.msra.mxu0 0
        %1551 = vmatprep.subr.bf16.mxu0 0
        %1552 = vmatpush1.bf16.msra.mxu0 0
        %1553 = vmatprep.subr.bf16.mxu0 0
        %1554 = vmatpush1.bf16.msra.mxu0 0
        %1555 = vmatprep.subr.bf16.mxu0 0
        %1556 = vmatpush1.bf16.msra.mxu0 0
        %1557 = vmatprep.subr.bf16.mxu0 0
        %1558 = vmatpush1.bf16.msra.mxu0 0
        %1559 = vmatprep.subr.bf16.mxu0 0
        %1560 = vmatpush1.bf16.msra.mxu0 0
        %1561 = vmatprep.subr.bf16.mxu0 0
        %1562 = vmatpush1.bf16.msra.mxu0 0
        %1563 = vmatprep.subr.bf16.mxu0 0
        %1564 = vmatpush1.bf16.msra.mxu0 0
        %1565 = vmatprep.subr.bf16.mxu0 0
        %1566 = vmatpush1.bf16.msra.mxu0 0
        %1567 = vmatprep.subr.bf16.mxu0 0
        %1568 = vmatpush1.bf16.msra.mxu0 0
        %1569 = vmatprep.mubr.bf16.mxu0 0
        %1570 = vmatmul.mubr.bf16.gmra.mrb[0].mxu0 %v1479
        %v1571 = vpop.f32.mrb[0].mxu0
        %v1572 = vadd.f32 0.0, %v1571
        %v1573 = vpop.f32.mrb[0].mxu0
        %v1574 = vadd.f32 0.0, %v1573
        %v1575 = vpop.f32.mrb[0].mxu0
        %v1576 = vadd.f32 0.0, %v1575
        %v1577 = vpop.f32.mrb[0].mxu0
        %v1578 = vadd.f32 0.0, %v1577
        %1579 = vmatprep.mubr.bf16.mxu0 0
        %1580 = vmatmul.mubr.bf16.gmra.mrb[0].mxu0 %v1482
        %v1581 = vpop.f32.mrb[0].mxu0
        %v1582 = vadd.f32 0.0, %v1581
        %v1583 = vpop.f32.mrb[0].mxu0
        %v1584 = vadd.f32 0.0, %v1583
        %v1585 = vpop.f32.mrb[0].mxu0
        %v1586 = vadd.f32 0.0, %v1585
        %v1587 = vpop.f32.mrb[0].mxu0
        %v1588 = vadd.f32 0.0, %v1587
        %1589 = vdwg.mxu0
        %v1590 = vadd.f32 %v1291, %v1519
        %v1591 = vadd.f32 %v1292, %v1521
        %v1592 = vadd.f32 %v1293, %v1572
        %v1593 = vadd.f32 %v1294, %v1574
        %v1594 = vadd.f32 %v1295, %v1523
        %v1595 = vadd.f32 %v1296, %v1525
        %v1596 = vadd.f32 %v1297, %v1576
        %v1597 = vadd.f32 %v1298, %v1578
        %v1598 = vadd.f32 %v1299, %v1529
        %v1599 = vadd.f32 %v1300, %v1531
        %v1600 = vadd.f32 %v1301, %v1582
        %v1601 = vadd.f32 %v1302, %v1584
        %v1602 = vadd.f32 %v1303, %v1533
        %v1603 = vadd.f32 %v1304, %v1535
        %v1604 = vadd.f32 %v1305, %v1586
        %v1605 = vadd.f32 %v1306, %v1588
        %v1606 = vld [vmem:[#allocation2] sm:$0xc]
        %s1607 = scalar_lea.vmem [#allocation5], 768
        %v1608 = vld [vmem:[%s1607] sm:$0xff]
        %v1609 = vld [vmem:[%s1607 + $0x8] sm:$0xff]
        %v1610 = vld [vmem:[%s1607 + $0x10] sm:$0xff]
        %v1611 = vld [vmem:[%s1607 + $0x18] sm:$0xff]
        %v1612 = vld [vmem:[%s1607 + $0x20] sm:$0xff]
        %v1613 = vld [vmem:[%s1607 + $0x28] sm:$0xff]
        %v1614 = vld [vmem:[%s1607 + $0x30] sm:$0xff]
        %v1615 = vld [vmem:[%s1607 + $0x38] sm:$0xff]
        %v1616 = vld [vmem:[%s1607 + $0x40] sm:$0xff]
        %v1617 = vld [vmem:[%s1607 + $0x48] sm:$0xff]
        %v1618 = vld [vmem:[%s1607 + $0x50] sm:$0xff]
        %v1619 = vld [vmem:[%s1607 + $0x58] sm:$0xff]
        %v1620 = vld [vmem:[%s1607 + $0x60] sm:$0xff]
        %v1621 = vld [vmem:[%s1607 + $0x68] sm:$0xff]
        %v1622 = vld [vmem:[%s1607 + $0x70] sm:$0xff]
        %v1623 = vld [vmem:[%s1607 + $0x78] sm:$0xff]
        %v1624 = vld [vmem:[%s1607 + $0x80] sm:$0xff]
        %v1625 = vld [vmem:[%s1607 + $0x88] sm:$0xff]
        %v1626 = vld [vmem:[%s1607 + $0x90] sm:$0xff]
        %v1627 = vld [vmem:[%s1607 + $0x98] sm:$0xff]
        %v1628 = vld [vmem:[%s1607 + $0xa0] sm:$0xff]
        %v1629 = vld [vmem:[%s1607 + $0xa8] sm:$0xff]
        %v1630 = vld [vmem:[%s1607 + $0xb0] sm:$0xff]
        %v1631 = vld [vmem:[%s1607 + $0xb8] sm:$0xff]
        %v1633 = vunpack.c.l.b16 %v1606
        %v1634 = vpack.c.b16 %v533, %v1633
        %vm1635 = vcmask 1045504
        %v1636 = vrot.slane %v1634, 2
        %v1637 = vrot.slane %v538, 2
        %v1638 = vsel %vm1635, %v1636, %v1637
        %v1639 = vrot.slane %v1335, 2
        %v1640 = vsel %vm1635, %v1637, %v1639
        %v1665 = vunpack.c.l.b16 %v1608
        %v1666 = vunpack.c.h.b16 %v1608
        %v1667 = vunpack.c.l.b16 %v1609
        %v1668 = vunpack.c.h.b16 %v1609
        %v1669 = vunpack.c.l.b16 %v1610
        %v1670 = vunpack.c.h.b16 %v1610
        %v1671 = vunpack.c.l.b16 %v1611
        %v1672 = vunpack.c.h.b16 %v1611
        %v1673 = vunpack.c.l.b16 %v1612
        %v1674 = vunpack.c.h.b16 %v1612
        %v1675 = vunpack.c.l.b16 %v1613
        %v1676 = vunpack.c.h.b16 %v1613
        %v1677 = vunpack.c.l.b16 %v1614
        %v1678 = vunpack.c.h.b16 %v1614
        %v1679 = vunpack.c.l.b16 %v1615
        %v1680 = vunpack.c.h.b16 %v1615
        %v1681 = vunpack.c.l.b16 %v1616
        %v1682 = vunpack.c.h.b16 %v1616
        %v1683 = vunpack.c.l.b16 %v1617
        %v1684 = vunpack.c.h.b16 %v1617
        %v1685 = vunpack.c.l.b16 %v1618
        %v1686 = vunpack.c.h.b16 %v1618
        %v1687 = vunpack.c.l.b16 %v1619
        %v1688 = vunpack.c.h.b16 %v1619
        %v1689 = vunpack.c.l.b16 %v1620
        %v1690 = vunpack.c.h.b16 %v1620
        %v1691 = vunpack.c.l.b16 %v1621
        %v1692 = vunpack.c.h.b16 %v1621
        %v1693 = vunpack.c.l.b16 %v1622
        %v1694 = vunpack.c.h.b16 %v1622
        %v1695 = vunpack.c.l.b16 %v1623
        %v1696 = vunpack.c.h.b16 %v1623
        %v1697 = vunpack.c.l.b16 %v1624
        %v1698 = vunpack.c.h.b16 %v1624
        %v1699 = vunpack.c.l.b16 %v1625
        %v1700 = vunpack.c.h.b16 %v1625
        %v1701 = vunpack.c.l.b16 %v1626
        %v1702 = vunpack.c.h.b16 %v1626
        %v1703 = vunpack.c.l.b16 %v1627
        %v1704 = vunpack.c.h.b16 %v1627
        %v1705 = vunpack.c.l.b16 %v1628
        %v1706 = vunpack.c.h.b16 %v1628
        %v1707 = vunpack.c.l.b16 %v1629
        %v1708 = vunpack.c.h.b16 %v1629
        %v1709 = vunpack.c.l.b16 %v1630
        %v1710 = vunpack.c.h.b16 %v1630
        %v1711 = vunpack.c.l.b16 %v1631
        %v1712 = vunpack.c.h.b16 %v1631
        %v1713 = vpack.c.b16 %v1669, %v1665
        %v1714 = vpack.c.b16 %v1670, %v1666
        %v1715 = vpack.c.b16 %v1671, %v1667
        %v1716 = vpack.c.b16 %v1672, %v1668
        %v1717 = vpack.c.b16 %v1677, %v1673
        %v1718 = vpack.c.b16 %v1678, %v1674
        %v1719 = vpack.c.b16 %v1679, %v1675
        %v1720 = vpack.c.b16 %v1680, %v1676
        %v1721 = vpack.c.b16 %v1685, %v1681
        %v1722 = vpack.c.b16 %v1686, %v1682
        %v1723 = vpack.c.b16 %v1687, %v1683
        %v1724 = vpack.c.b16 %v1688, %v1684
        %v1725 = vpack.c.b16 %v1693, %v1689
        %v1726 = vpack.c.b16 %v1694, %v1690
        %v1727 = vpack.c.b16 %v1695, %v1691
        %v1728 = vpack.c.b16 %v1696, %v1692
        %v1729 = vpack.c.b16 %v1701, %v1697
        %v1730 = vpack.c.b16 %v1702, %v1698
        %v1731 = vpack.c.b16 %v1703, %v1699
        %v1732 = vpack.c.b16 %v1704, %v1700
        %v1733 = vpack.c.b16 %v1709, %v1705
        %v1734 = vpack.c.b16 %v1710, %v1706
        %v1735 = vpack.c.b16 %v1711, %v1707
        %v1736 = vpack.c.b16 %v1712, %v1708
        %v1762 = vsel %vm681, %v1638, 0
        %v1765 = vsel %vm681, %v1640, 0
        %1767 = vmatprep.subr.bf16.mxu0 %v1714
        %1768 = vmatpush1.bf16.msra.mxu0 %v1713
        %1769 = vmatprep.subr.bf16.mxu0 %v1718
        %1770 = vmatpush1.bf16.msra.mxu0 %v1717
        %1771 = vmatprep.subr.bf16.mxu0 %v1722
        %1772 = vmatpush1.bf16.msra.mxu0 %v1721
        %1773 = vmatprep.subr.bf16.mxu0 %v1726
        %1774 = vmatpush1.bf16.msra.mxu0 %v1725
        %1775 = vmatprep.subr.bf16.mxu0 %v1730
        %1776 = vmatpush1.bf16.msra.mxu0 %v1729
        %1777 = vmatprep.subr.bf16.mxu0 %v1734
        %1778 = vmatpush1.bf16.msra.mxu0 %v1733
        %1779 = vmatprep.subr.bf16.mxu0 0
        %1780 = vmatpush1.bf16.msra.mxu0 0
        %1781 = vmatprep.subr.bf16.mxu0 0
        %1782 = vmatpush1.bf16.msra.mxu0 0
        %1783 = vmatprep.subr.bf16.mxu0 0
        %1784 = vmatpush1.bf16.msra.mxu0 0
        %1785 = vmatprep.subr.bf16.mxu0 0
        %1786 = vmatpush1.bf16.msra.mxu0 0
        %1787 = vmatprep.subr.bf16.mxu0 0
        %1788 = vmatpush1.bf16.msra.mxu0 0
        %1789 = vmatprep.subr.bf16.mxu0 0
        %1790 = vmatpush1.bf16.msra.mxu0 0
        %1791 = vmatprep.subr.bf16.mxu0 0
        %1792 = vmatpush1.bf16.msra.mxu0 0
        %1793 = vmatprep.subr.bf16.mxu0 0
        %1794 = vmatpush1.bf16.msra.mxu0 0
        %1795 = vmatprep.subr.bf16.mxu0 0
        %1796 = vmatpush1.bf16.msra.mxu0 0
        %1797 = vmatprep.subr.bf16.mxu0 0
        %1798 = vmatpush1.bf16.msra.mxu0 0
        %1799 = vmatprep.mubr.bf16.mxu0 0
        %1800 = vmatmul.mubr.bf16.gmra.mrb[0].mxu0 %v1762
        %v1801 = vpop.f32.mrb[0].mxu0
        %v1802 = vadd.f32 0.0, %v1801
        %v1803 = vpop.f32.mrb[0].mxu0
        %v1804 = vadd.f32 0.0, %v1803
        %v1805 = vpop.f32.mrb[0].mxu0
        %v1806 = vadd.f32 0.0, %v1805
        %v1807 = vpop.f32.mrb[0].mxu0
        %v1808 = vadd.f32 0.0, %v1807
        %1809 = vmatprep.mubr.bf16.mxu0 0
        %1810 = vmatmul.mubr.bf16.gmra.mrb[0].mxu0 %v1765
        %v1811 = vpop.f32.mrb[0].mxu0
        %v1812 = vadd.f32 0.0, %v1811
        %v1813 = vpop.f32.mrb[0].mxu0
        %v1814 = vadd.f32 0.0, %v1813
        %v1815 = vpop.f32.mrb[0].mxu0
        %v1816 = vadd.f32 0.0, %v1815
        %v1817 = vpop.f32.mrb[0].mxu0
        %v1818 = vadd.f32 0.0, %v1817
        %1819 = vdwg.mxu0
        %1820 = vmatprep.subr.bf16.mxu0 %v1716
        %1821 = vmatpush1.bf16.msra.mxu0 %v1715
        %1822 = vmatprep.subr.bf16.mxu0 %v1720
        %1823 = vmatpush1.bf16.msra.mxu0 %v1719
        %1824 = vmatprep.subr.bf16.mxu0 %v1724
        %1825 = vmatpush1.bf16.msra.mxu0 %v1723
        %1826 = vmatprep.subr.bf16.mxu0 %v1728
        %1827 = vmatpush1.bf16.msra.mxu0 %v1727
        %1828 = vmatprep.subr.bf16.mxu0 %v1732
        %1829 = vmatpush1.bf16.msra.mxu0 %v1731
        %1830 = vmatprep.subr.bf16.mxu0 %v1736
        %1831 = vmatpush1.bf16.msra.mxu0 %v1735
        %1832 = vmatprep.subr.bf16.mxu0 0
        %1833 = vmatpush1.bf16.msra.mxu0 0
        %1834 = vmatprep.subr.bf16.mxu0 0
        %1835 = vmatpush1.bf16.msra.mxu0 0
        %1836 = vmatprep.subr.bf16.mxu0 0
        %1837 = vmatpush1.bf16.msra.mxu0 0
        %1838 = vmatprep.subr.bf16.mxu0 0
        %1839 = vmatpush1.bf16.msra.mxu0 0
        %1840 = vmatprep.subr.bf16.mxu0 0
        %1841 = vmatpush1.bf16.msra.mxu0 0
        %1842 = vmatprep.subr.bf16.mxu0 0
        %1843 = vmatpush1.bf16.msra.mxu0 0
        %1844 = vmatprep.subr.bf16.mxu0 0
        %1845 = vmatpush1.bf16.msra.mxu0 0
        %1846 = vmatprep.subr.bf16.mxu0 0
        %1847 = vmatpush1.bf16.msra.mxu0 0
        %1848 = vmatprep.subr.bf16.mxu0 0
        %1849 = vmatpush1.bf16.msra.mxu0 0
        %1850 = vmatprep.subr.bf16.mxu0 0
        %1851 = vmatpush1.bf16.msra.mxu0 0
        %1852 = vmatprep.mubr.bf16.mxu0 0
        %1853 = vmatmul.mubr.bf16.gmra.mrb[0].mxu0 %v1762
        %v1854 = vpop.f32.mrb[0].mxu0
        %v1855 = vadd.f32 0.0, %v1854
        %v1856 = vpop.f32.mrb[0].mxu0
        %v1857 = vadd.f32 0.0, %v1856
        %v1858 = vpop.f32.mrb[0].mxu0
        %v1859 = vadd.f32 0.0, %v1858
        %v1860 = vpop.f32.mrb[0].mxu0
        %v1861 = vadd.f32 0.0, %v1860
        %1862 = vmatprep.mubr.bf16.mxu0 0
        %1863 = vmatmul.mubr.bf16.gmra.mrb[0].mxu0 %v1765
        %v1864 = vpop.f32.mrb[0].mxu0
        %v1865 = vadd.f32 0.0, %v1864
        %v1866 = vpop.f32.mrb[0].mxu0
        %v1867 = vadd.f32 0.0, %v1866
        %v1868 = vpop.f32.mrb[0].mxu0
        %v1869 = vadd.f32 0.0, %v1868
        %v1870 = vpop.f32.mrb[0].mxu0
        %v1871 = vadd.f32 0.0, %v1870
        %1872 = vdwg.mxu0
        %v1873 = vadd.f32 %v1590, %v1802
        %v1874 = vadd.f32 %v1591, %v1804
        %v1875 = vadd.f32 %v1592, %v1855
        %v1876 = vadd.f32 %v1593, %v1857
        %v1877 = vadd.f32 %v1594, %v1806
        %v1878 = vadd.f32 %v1595, %v1808
        %v1879 = vadd.f32 %v1596, %v1859
        %v1880 = vadd.f32 %v1597, %v1861
        %v1881 = vadd.f32 %v1598, %v1812
        %v1882 = vadd.f32 %v1599, %v1814
        %v1883 = vadd.f32 %v1600, %v1865
        %v1884 = vadd.f32 %v1601, %v1867
        %v1885 = vadd.f32 %v1602, %v1816
        %v1886 = vadd.f32 %v1603, %v1818
        %v1887 = vadd.f32 %v1604, %v1869
        %v1888 = vadd.f32 %v1605, %v1871
        %v1889 = vld [vmem:[#allocation7] sm:$0xf]
        %v1891 = vlaneseq
        %v1892 = vshrl.u32 %v1891, 7
        %v1893 = vsub.s32 0, %v1892
        %v1894 = vrot.slane %v1889, %v1893
        %v1895 = vlaneseq
        %v1896 = vshrl.u32 %v1895, 7
        %v1897 = vsub.s32 1, %v1896
        %v1898 = vrot.slane %v1889, %v1897
        %v1899 = vlaneseq
        %v1900 = vshrl.u32 %v1899, 7
        %v1901 = vsub.s32 2, %v1900
        %v1902 = vrot.slane %v1889, %v1901
        %v1903 = vlaneseq
        %v1904 = vshrl.u32 %v1903, 7
        %v1905 = vsub.s32 3, %v1904
        %v1906 = vrot.slane %v1889, %v1905
        %v1911 = vmul.f32 %v1873, %v1894
        %v1912 = vmul.f32 %v1874, %v1898
        %v1913 = vmul.f32 %v1875, %v1902
        %v1914 = vmul.f32 %v1876, %v1906
        %v1915 = vmul.f32 %v1877, %v1894
        %v1916 = vmul.f32 %v1878, %v1898
        %v1917 = vmul.f32 %v1879, %v1902
        %v1918 = vmul.f32 %v1880, %v1906
        %v1919 = vmul.f32 %v1881, %v1894
        %v1920 = vmul.f32 %v1882, %v1898
        %v1921 = vmul.f32 %v1883, %v1902
        %v1922 = vmul.f32 %v1884, %v1906
        %v1923 = vmul.f32 %v1885, %v1894
        %v1924 = vmul.f32 %v1886, %v1898
        %v1925 = vmul.f32 %v1887, %v1902
        %v1926 = vmul.f32 %v1888, %v1906
        %v1927 = vld [vmem:[#allocation9] sm:$0xf]
        %v1929 = vlaneseq
        %v1930 = vshrl.u32 %v1929, 7
        %v1931 = vsub.s32 0, %v1930
        %v1932 = vrot.slane %v1927, %v1931
        %v1933 = vlaneseq
        %v1934 = vshrl.u32 %v1933, 7
        %v1935 = vsub.s32 1, %v1934
        %v1936 = vrot.slane %v1927, %v1935
        %v1937 = vlaneseq
        %v1938 = vshrl.u32 %v1937, 7
        %v1939 = vsub.s32 2, %v1938
        %v1940 = vrot.slane %v1927, %v1939
        %v1941 = vlaneseq
        %v1942 = vshrl.u32 %v1941, 7
        %v1943 = vsub.s32 3, %v1942
        %v1944 = vrot.slane %v1927, %v1943
        %v1949 = vadd.f32 %v1911, %v1932
        %v1950 = vadd.f32 %v1912, %v1936
        %v1951 = vadd.f32 %v1913, %v1940
        %v1952 = vadd.f32 %v1914, %v1944
        %v1953 = vadd.f32 %v1915, %v1932
        %v1954 = vadd.f32 %v1916, %v1936
        %v1955 = vadd.f32 %v1917, %v1940
        %v1956 = vadd.f32 %v1918, %v1944
        %v1957 = vadd.f32 %v1919, %v1932
        %v1958 = vadd.f32 %v1920, %v1936
        %v1959 = vadd.f32 %v1921, %v1940
        %v1960 = vadd.f32 %v1922, %v1944
        %v1961 = vadd.f32 %v1923, %v1932
        %v1962 = vadd.f32 %v1924, %v1936
        %v1963 = vadd.f32 %v1925, %v1940
        %v1964 = vadd.f32 %v1926, %v1944
        %v1965 = vmax.f32 %v1949, 0.0
        %v1966 = vmax.f32 %v1950, 0.0
        %v1967 = vmax.f32 %v1951, 0.0
        %v1968 = vmax.f32 %v1952, 0.0
        %v1969 = vmax.f32 %v1953, 0.0
        %v1970 = vmax.f32 %v1954, 0.0
        %v1971 = vmax.f32 %v1955, 0.0
        %v1972 = vmax.f32 %v1956, 0.0
        %v1973 = vmax.f32 %v1957, 0.0
        %v1974 = vmax.f32 %v1958, 0.0
        %v1975 = vmax.f32 %v1959, 0.0
        %v1976 = vmax.f32 %v1960, 0.0
        %v1977 = vmax.f32 %v1961, 0.0
        %v1978 = vmax.f32 %v1962, 0.0
        %v1979 = vmax.f32 %v1963, 0.0
        %v1980 = vmax.f32 %v1964, 0.0
        %v1997 = vcombine.low %v1965, %v1966
        %v1998 = vcombine.high %v1965, %v1966
        %v1999 = vcombine.low %v1967, %v1968
        %v2000 = vcombine.high %v1967, %v1968
        %v2002 = vunpack.c.l.s4 1983009808
        %v2003 = vunpack.c.0.s8 %v2002
        %v2004 = vlaneseq
        %v2005 = vshrl.u32 %v2004, 7
        %v2006 = vsub.s32 %v2003, %v2005
        %v2007 = vrot.slane %v1997, %v2006
        %v2009 = vunpack.c.l.s4 1983009808
        %v2010 = vunpack.c.0.s8 %v2009
        %v2011 = vlaneseq
        %v2012 = vshrl.u32 %v2011, 7
        %v2013 = vsub.s32 %v2010, %v2012
        %v2014 = vrot.slane %v1998, %v2013
        %v2016 = vunpack.c.l.s4 1983009808
        %v2017 = vunpack.c.0.s8 %v2016
        %v2018 = vlaneseq
        %v2019 = vshrl.u32 %v2018, 7
        %v2020 = vsub.s32 %v2017, %v2019
        %v2021 = vrot.slane %v1999, %v2020
        %v2023 = vunpack.c.l.s4 1983009808
        %v2024 = vunpack.c.0.s8 %v2023
        %v2025 = vlaneseq
        %v2026 = vshrl.u32 %v2025, 7
        %v2027 = vsub.s32 %v2024, %v2026
        %v2028 = vrot.slane %v2000, %v2027
        %v2029 = vcombine.low %v2007, %v2021
        %v2030 = vcombine.high %v2007, %v2021
        %v2031 = vcombine.low %v2014, %v2028
        %v2032 = vcombine.high %v2014, %v2028
        %v2033 = vcombine.low %v1969, %v1970
        %v2034 = vcombine.high %v1969, %v1970
        %v2035 = vcombine.low %v1971, %v1972
        %v2036 = vcombine.high %v1971, %v1972
        %v2038 = vunpack.c.l.s4 1983009808
        %v2039 = vunpack.c.0.s8 %v2038
        %v2040 = vlaneseq
        %v2041 = vshrl.u32 %v2040, 7
        %v2042 = vsub.s32 %v2039, %v2041
        %v2043 = vrot.slane %v2033, %v2042
        %v2045 = vunpack.c.l.s4 1983009808
        %v2046 = vunpack.c.0.s8 %v2045
        %v2047 = vlaneseq
        %v2048 = vshrl.u32 %v2047, 7
        %v2049 = vsub.s32 %v2046, %v2048
        %v2050 = vrot.slane %v2034, %v2049
        %v2052 = vunpack.c.l.s4 1983009808
        %v2053 = vunpack.c.0.s8 %v2052
        %v2054 = vlaneseq
        %v2055 = vshrl.u32 %v2054, 7
        %v2056 = vsub.s32 %v2053, %v2055
        %v2057 = vrot.slane %v2035, %v2056
        %v2059 = vunpack.c.l.s4 1983009808
        %v2060 = vunpack.c.0.s8 %v2059
        %v2061 = vlaneseq
        %v2062 = vshrl.u32 %v2061, 7
        %v2063 = vsub.s32 %v2060, %v2062
        %v2064 = vrot.slane %v2036, %v2063
        %v2065 = vcombine.low %v2043, %v2057
        %v2066 = vcombine.high %v2043, %v2057
        %v2067 = vcombine.low %v2050, %v2064
        %v2068 = vcombine.high %v2050, %v2064
        %v2069 = vcombine.low %v1973, %v1974
        %v2070 = vcombine.high %v1973, %v1974
        %v2071 = vcombine.low %v1975, %v1976
        %v2072 = vcombine.high %v1975, %v1976
        %v2074 = vunpack.c.l.s4 1983009808
        %v2075 = vunpack.c.0.s8 %v2074
        %v2076 = vlaneseq
        %v2077 = vshrl.u32 %v2076, 7
        %v2078 = vsub.s32 %v2075, %v2077
        %v2079 = vrot.slane %v2069, %v2078
        %v2081 = vunpack.c.l.s4 1983009808
        %v2082 = vunpack.c.0.s8 %v2081
        %v2083 = vlaneseq
        %v2084 = vshrl.u32 %v2083, 7
        %v2085 = vsub.s32 %v2082, %v2084
        %v2086 = vrot.slane %v2070, %v2085
        %v2088 = vunpack.c.l.s4 1983009808
        %v2089 = vunpack.c.0.s8 %v2088
        %v2090 = vlaneseq
        %v2091 = vshrl.u32 %v2090, 7
        %v2092 = vsub.s32 %v2089, %v2091
        %v2093 = vrot.slane %v2071, %v2092
        %v2095 = vunpack.c.l.s4 1983009808
        %v2096 = vunpack.c.0.s8 %v2095
        %v2097 = vlaneseq
        %v2098 = vshrl.u32 %v2097, 7
        %v2099 = vsub.s32 %v2096, %v2098
        %v2100 = vrot.slane %v2072, %v2099
        %v2101 = vcombine.low %v2079, %v2093
        %v2102 = vcombine.high %v2079, %v2093
        %v2103 = vcombine.low %v2086, %v2100
        %v2104 = vcombine.high %v2086, %v2100
        %v2105 = vcombine.low %v1977, %v1978
        %v2106 = vcombine.high %v1977, %v1978
        %v2107 = vcombine.low %v1979, %v1980
        %v2108 = vcombine.high %v1979, %v1980
        %v2110 = vunpack.c.l.s4 1983009808
        %v2111 = vunpack.c.0.s8 %v2110
        %v2112 = vlaneseq
        %v2113 = vshrl.u32 %v2112, 7
        %v2114 = vsub.s32 %v2111, %v2113
        %v2115 = vrot.slane %v2105, %v2114
        %v2117 = vunpack.c.l.s4 1983009808
        %v2118 = vunpack.c.0.s8 %v2117
        %v2119 = vlaneseq
        %v2120 = vshrl.u32 %v2119, 7
        %v2121 = vsub.s32 %v2118, %v2120
        %v2122 = vrot.slane %v2106, %v2121
        %v2124 = vunpack.c.l.s4 1983009808
        %v2125 = vunpack.c.0.s8 %v2124
        %v2126 = vlaneseq
        %v2127 = vshrl.u32 %v2126, 7
        %v2128 = vsub.s32 %v2125, %v2127
        %v2129 = vrot.slane %v2107, %v2128
        %v2131 = vunpack.c.l.s4 1983009808
        %v2132 = vunpack.c.0.s8 %v2131
        %v2133 = vlaneseq
        %v2134 = vshrl.u32 %v2133, 7
        %v2135 = vsub.s32 %v2132, %v2134
        %v2136 = vrot.slane %v2108, %v2135
        %v2137 = vcombine.low %v2115, %v2129
        %v2138 = vcombine.high %v2115, %v2129
        %v2139 = vcombine.low %v2122, %v2136
        %v2140 = vcombine.high %v2122, %v2136
        %v2141 = vcombine.high %v2029, %v2029
        %v2143 = vunpack.c.l.s4 1983009808
        %v2144 = vunpack.c.0.s8 %v2143
        %v2145 = vlaneseq
        %v2146 = vshrl.u32 %v2145, 7
        %v2147 = vsub.s32 %v2144, %v2146
        %v2148 = vrot.slane %v2029, %v2147
        %v2150 = vunpack.c.l.s4 1983009808
        %v2151 = vunpack.c.0.s8 %v2150
        %v2152 = vlaneseq
        %v2153 = vshrl.u32 %v2152, 7
        %v2154 = vsub.s32 %v2151, %v2153
        %v2155 = vrot.slane %v2141, %v2154
        %v2156 = vcombine.high %v2148, %v2148
        %v2157 = vcombine.high %v2155, %v2155
        %v2158 = vcombine.high %v2030, %v2030
        %v2160 = vunpack.c.l.s4 1983009808
        %v2161 = vunpack.c.0.s8 %v2160
        %v2162 = vlaneseq
        %v2163 = vshrl.u32 %v2162, 7
        %v2164 = vsub.s32 %v2161, %v2163
        %v2165 = vrot.slane %v2030, %v2164
        %v2167 = vunpack.c.l.s4 1983009808
        %v2168 = vunpack.c.0.s8 %v2167
        %v2169 = vlaneseq
        %v2170 = vshrl.u32 %v2169, 7
        %v2171 = vsub.s32 %v2168, %v2170
        %v2172 = vrot.slane %v2158, %v2171
        %v2173 = vcombine.high %v2165, %v2165
        %v2174 = vcombine.high %v2172, %v2172
        %v2175 = vcombine.high %v2031, %v2031
        %v2177 = vunpack.c.l.s4 1983009808
        %v2178 = vunpack.c.0.s8 %v2177
        %v2179 = vlaneseq
        %v2180 = vshrl.u32 %v2179, 7
        %v2181 = vsub.s32 %v2178, %v2180
        %v2182 = vrot.slane %v2031, %v2181
        %v2184 = vunpack.c.l.s4 1983009808
        %v2185 = vunpack.c.0.s8 %v2184
        %v2186 = vlaneseq
        %v2187 = vshrl.u32 %v2186, 7
        %v2188 = vsub.s32 %v2185, %v2187
        %v2189 = vrot.slane %v2175, %v2188
        %v2190 = vcombine.high %v2182, %v2182
        %v2191 = vcombine.high %v2189, %v2189
        %v2192 = vcombine.high %v2032, %v2032
        %v2194 = vunpack.c.l.s4 1983009808
        %v2195 = vunpack.c.0.s8 %v2194
        %v2196 = vlaneseq
        %v2197 = vshrl.u32 %v2196, 7
        %v2198 = vsub.s32 %v2195, %v2197
        %v2199 = vrot.slane %v2032, %v2198
        %v2201 = vunpack.c.l.s4 1983009808
        %v2202 = vunpack.c.0.s8 %v2201
        %v2203 = vlaneseq
        %v2204 = vshrl.u32 %v2203, 7
        %v2205 = vsub.s32 %v2202, %v2204
        %v2206 = vrot.slane %v2192, %v2205
        %v2207 = vcombine.high %v2199, %v2199
        %v2208 = vcombine.high %v2206, %v2206
        %v2209 = vcombine.high %v2065, %v2065
        %v2211 = vunpack.c.l.s4 1983009808
        %v2212 = vunpack.c.0.s8 %v2211
        %v2213 = vlaneseq
        %v2214 = vshrl.u32 %v2213, 7
        %v2215 = vsub.s32 %v2212, %v2214
        %v2216 = vrot.slane %v2065, %v2215
        %v2218 = vunpack.c.l.s4 1983009808
        %v2219 = vunpack.c.0.s8 %v2218
        %v2220 = vlaneseq
        %v2221 = vshrl.u32 %v2220, 7
        %v2222 = vsub.s32 %v2219, %v2221
        %v2223 = vrot.slane %v2209, %v2222
        %v2224 = vcombine.high %v2216, %v2216
        %v2225 = vcombine.high %v2223, %v2223
        %v2226 = vcombine.high %v2066, %v2066
        %v2228 = vunpack.c.l.s4 1983009808
        %v2229 = vunpack.c.0.s8 %v2228
        %v2230 = vlaneseq
        %v2231 = vshrl.u32 %v2230, 7
        %v2232 = vsub.s32 %v2229, %v2231
        %v2233 = vrot.slane %v2066, %v2232
        %v2235 = vunpack.c.l.s4 1983009808
        %v2236 = vunpack.c.0.s8 %v2235
        %v2237 = vlaneseq
        %v2238 = vshrl.u32 %v2237, 7
        %v2239 = vsub.s32 %v2236, %v2238
        %v2240 = vrot.slane %v2226, %v2239
        %v2241 = vcombine.high %v2233, %v2233
        %v2242 = vcombine.high %v2240, %v2240
        %v2243 = vcombine.high %v2067, %v2067
        %v2245 = vunpack.c.l.s4 1983009808
        %v2246 = vunpack.c.0.s8 %v2245
        %v2247 = vlaneseq
        %v2248 = vshrl.u32 %v2247, 7
        %v2249 = vsub.s32 %v2246, %v2248
        %v2250 = vrot.slane %v2067, %v2249
        %v2252 = vunpack.c.l.s4 1983009808
        %v2253 = vunpack.c.0.s8 %v2252
        %v2254 = vlaneseq
        %v2255 = vshrl.u32 %v2254, 7
        %v2256 = vsub.s32 %v2253, %v2255
        %v2257 = vrot.slane %v2243, %v2256
        %v2258 = vcombine.high %v2250, %v2250
        %v2259 = vcombine.high %v2257, %v2257
        %v2260 = vcombine.high %v2068, %v2068
        %v2262 = vunpack.c.l.s4 1983009808
        %v2263 = vunpack.c.0.s8 %v2262
        %v2264 = vlaneseq
        %v2265 = vshrl.u32 %v2264, 7
        %v2266 = vsub.s32 %v2263, %v2265
        %v2267 = vrot.slane %v2068, %v2266
        %v2269 = vunpack.c.l.s4 1983009808
        %v2270 = vunpack.c.0.s8 %v2269
        %v2271 = vlaneseq
        %v2272 = vshrl.u32 %v2271, 7
        %v2273 = vsub.s32 %v2270, %v2272
        %v2274 = vrot.slane %v2260, %v2273
        %v2275 = vcombine.high %v2267, %v2267
        %v2276 = vcombine.high %v2274, %v2274
        %v2277 = vcombine.high %v2101, %v2101
        %v2279 = vunpack.c.l.s4 1983009808
        %v2280 = vunpack.c.0.s8 %v2279
        %v2281 = vlaneseq
        %v2282 = vshrl.u32 %v2281, 7
        %v2283 = vsub.s32 %v2280, %v2282
        %v2284 = vrot.slane %v2101, %v2283
        %v2286 = vunpack.c.l.s4 1983009808
        %v2287 = vunpack.c.0.s8 %v2286
        %v2288 = vlaneseq
        %v2289 = vshrl.u32 %v2288, 7
        %v2290 = vsub.s32 %v2287, %v2289
        %v2291 = vrot.slane %v2277, %v2290
        %v2292 = vcombine.high %v2284, %v2284
        %v2293 = vcombine.high %v2291, %v2291
        %v2294 = vcombine.high %v2102, %v2102
        %v2296 = vunpack.c.l.s4 1983009808
        %v2297 = vunpack.c.0.s8 %v2296
        %v2298 = vlaneseq
        %v2299 = vshrl.u32 %v2298, 7
        %v2300 = vsub.s32 %v2297, %v2299
        %v2301 = vrot.slane %v2102, %v2300
        %v2303 = vunpack.c.l.s4 1983009808
        %v2304 = vunpack.c.0.s8 %v2303
        %v2305 = vlaneseq
        %v2306 = vshrl.u32 %v2305, 7
        %v2307 = vsub.s32 %v2304, %v2306
        %v2308 = vrot.slane %v2294, %v2307
        %v2309 = vcombine.high %v2301, %v2301
        %v2310 = vcombine.high %v2308, %v2308
        %v2311 = vcombine.high %v2103, %v2103
        %v2313 = vunpack.c.l.s4 1983009808
        %v2314 = vunpack.c.0.s8 %v2313
        %v2315 = vlaneseq
        %v2316 = vshrl.u32 %v2315, 7
        %v2317 = vsub.s32 %v2314, %v2316
        %v2318 = vrot.slane %v2103, %v2317
        %v2320 = vunpack.c.l.s4 1983009808
        %v2321 = vunpack.c.0.s8 %v2320
        %v2322 = vlaneseq
        %v2323 = vshrl.u32 %v2322, 7
        %v2324 = vsub.s32 %v2321, %v2323
        %v2325 = vrot.slane %v2311, %v2324
        %v2326 = vcombine.high %v2318, %v2318
        %v2327 = vcombine.high %v2325, %v2325
        %v2328 = vcombine.high %v2104, %v2104
        %v2330 = vunpack.c.l.s4 1983009808
        %v2331 = vunpack.c.0.s8 %v2330
        %v2332 = vlaneseq
        %v2333 = vshrl.u32 %v2332, 7
        %v2334 = vsub.s32 %v2331, %v2333
        %v2335 = vrot.slane %v2104, %v2334
        %v2337 = vunpack.c.l.s4 1983009808
        %v2338 = vunpack.c.0.s8 %v2337
        %v2339 = vlaneseq
        %v2340 = vshrl.u32 %v2339, 7
        %v2341 = vsub.s32 %v2338, %v2340
        %v2342 = vrot.slane %v2328, %v2341
        %v2343 = vcombine.high %v2335, %v2335
        %v2344 = vcombine.high %v2342, %v2342
        %v2345 = vcombine.high %v2137, %v2137
        %v2347 = vunpack.c.l.s4 1983009808
        %v2348 = vunpack.c.0.s8 %v2347
        %v2349 = vlaneseq
        %v2350 = vshrl.u32 %v2349, 7
        %v2351 = vsub.s32 %v2348, %v2350
        %v2352 = vrot.slane %v2137, %v2351
        %v2354 = vunpack.c.l.s4 1983009808
        %v2355 = vunpack.c.0.s8 %v2354
        %v2356 = vlaneseq
        %v2357 = vshrl.u32 %v2356, 7
        %v2358 = vsub.s32 %v2355, %v2357
        %v2359 = vrot.slane %v2345, %v2358
        %v2360 = vcombine.high %v2352, %v2352
        %v2361 = vcombine.high %v2359, %v2359
        %v2362 = vcombine.high %v2138, %v2138
        %v2364 = vunpack.c.l.s4 1983009808
        %v2365 = vunpack.c.0.s8 %v2364
        %v2366 = vlaneseq
        %v2367 = vshrl.u32 %v2366, 7
        %v2368 = vsub.s32 %v2365, %v2367
        %v2369 = vrot.slane %v2138, %v2368
        %v2371 = vunpack.c.l.s4 1983009808
        %v2372 = vunpack.c.0.s8 %v2371
        %v2373 = vlaneseq
        %v2374 = vshrl.u32 %v2373, 7
        %v2375 = vsub.s32 %v2372, %v2374
        %v2376 = vrot.slane %v2362, %v2375
        %v2377 = vcombine.high %v2369, %v2369
        %v2378 = vcombine.high %v2376, %v2376
        %v2379 = vcombine.high %v2139, %v2139
        %v2381 = vunpack.c.l.s4 1983009808
        %v2382 = vunpack.c.0.s8 %v2381
        %v2383 = vlaneseq
        %v2384 = vshrl.u32 %v2383, 7
        %v2385 = vsub.s32 %v2382, %v2384
        %v2386 = vrot.slane %v2139, %v2385
        %v2388 = vunpack.c.l.s4 1983009808
        %v2389 = vunpack.c.0.s8 %v2388
        %v2390 = vlaneseq
        %v2391 = vshrl.u32 %v2390, 7
        %v2392 = vsub.s32 %v2389, %v2391
        %v2393 = vrot.slane %v2379, %v2392
        %v2394 = vcombine.high %v2386, %v2386
        %v2395 = vcombine.high %v2393, %v2393
        %v2396 = vcombine.high %v2140, %v2140
        %v2398 = vunpack.c.l.s4 1983009808
        %v2399 = vunpack.c.0.s8 %v2398
        %v2400 = vlaneseq
        %v2401 = vshrl.u32 %v2400, 7
        %v2402 = vsub.s32 %v2399, %v2401
        %v2403 = vrot.slane %v2140, %v2402
        %v2405 = vunpack.c.l.s4 1983009808
        %v2406 = vunpack.c.0.s8 %v2405
        %v2407 = vlaneseq
        %v2408 = vshrl.u32 %v2407, 7
        %v2409 = vsub.s32 %v2406, %v2408
        %v2410 = vrot.slane %v2396, %v2409
        %v2411 = vcombine.high %v2403, %v2403
        %v2412 = vcombine.high %v2410, %v2410
        %vm2477 = vcmask 1041408
        %v2478 = vsel %vm2477, %v2148, -inf
        %v2479 = vrot.slane %v2478, 4
        %v2480 = vmax.f32 %v2478, %v2479
        %v2481 = vrot.slane %v2480, 2
        %v2482 = vmax.f32 %v2480, %v2481
        %v2483 = vrot.slane %v2482, 1
        %v2484 = vmax.f32 %v2482, %v2483
        %v2485 = vsel %vm2477, %v2156, -inf
        %v2486 = vrot.slane %v2485, 4
        %v2487 = vmax.f32 %v2485, %v2486
        %v2488 = vrot.slane %v2487, 2
        %v2489 = vmax.f32 %v2487, %v2488
        %v2490 = vrot.slane %v2489, 1
        %v2491 = vmax.f32 %v2489, %v2490
        %v2492 = vsel %vm2477, %v2155, -inf
        %v2493 = vrot.slane %v2492, 4
        %v2494 = vmax.f32 %v2492, %v2493
        %v2495 = vrot.slane %v2494, 2
        %v2496 = vmax.f32 %v2494, %v2495
        %v2497 = vrot.slane %v2496, 1
        %v2498 = vmax.f32 %v2496, %v2497
        %v2499 = vsel %vm2477, %v2157, -inf
        %v2500 = vrot.slane %v2499, 4
        %v2501 = vmax.f32 %v2499, %v2500
        %v2502 = vrot.slane %v2501, 2
        %v2503 = vmax.f32 %v2501, %v2502
        %v2504 = vrot.slane %v2503, 1
        %v2505 = vmax.f32 %v2503, %v2504
        %v2506 = vsel %vm2477, %v2165, -inf
        %v2507 = vrot.slane %v2506, 4
        %v2508 = vmax.f32 %v2506, %v2507
        %v2509 = vrot.slane %v2508, 2
        %v2510 = vmax.f32 %v2508, %v2509
        %v2511 = vrot.slane %v2510, 1
        %v2512 = vmax.f32 %v2510, %v2511
        %v2513 = vsel %vm2477, %v2173, -inf
        %v2514 = vrot.slane %v2513, 4
        %v2515 = vmax.f32 %v2513, %v2514
        %v2516 = vrot.slane %v2515, 2
        %v2517 = vmax.f32 %v2515, %v2516
        %v2518 = vrot.slane %v2517, 1
        %v2519 = vmax.f32 %v2517, %v2518
        %v2520 = vsel %vm2477, %v2172, -inf
        %v2521 = vrot.slane %v2520, 4
        %v2522 = vmax.f32 %v2520, %v2521
        %v2523 = vrot.slane %v2522, 2
        %v2524 = vmax.f32 %v2522, %v2523
        %v2525 = vrot.slane %v2524, 1
        %v2526 = vmax.f32 %v2524, %v2525
        %v2527 = vsel %vm2477, %v2174, -inf
        %v2528 = vrot.slane %v2527, 4
        %v2529 = vmax.f32 %v2527, %v2528
        %v2530 = vrot.slane %v2529, 2
        %v2531 = vmax.f32 %v2529, %v2530
        %v2532 = vrot.slane %v2531, 1
        %v2533 = vmax.f32 %v2531, %v2532
        %v2534 = vsel %vm2477, %v2182, -inf
        %v2535 = vrot.slane %v2534, 4
        %v2536 = vmax.f32 %v2534, %v2535
        %v2537 = vrot.slane %v2536, 2
        %v2538 = vmax.f32 %v2536, %v2537
        %v2539 = vrot.slane %v2538, 1
        %v2540 = vmax.f32 %v2538, %v2539
        %v2541 = vsel %vm2477, %v2190, -inf
        %v2542 = vrot.slane %v2541, 4
        %v2543 = vmax.f32 %v2541, %v2542
        %v2544 = vrot.slane %v2543, 2
        %v2545 = vmax.f32 %v2543, %v2544
        %v2546 = vrot.slane %v2545, 1
        %v2547 = vmax.f32 %v2545, %v2546
        %v2548 = vsel %vm2477, %v2189, -inf
        %v2549 = vrot.slane %v2548, 4
        %v2550 = vmax.f32 %v2548, %v2549
        %v2551 = vrot.slane %v2550, 2
        %v2552 = vmax.f32 %v2550, %v2551
        %v2553 = vrot.slane %v2552, 1
        %v2554 = vmax.f32 %v2552, %v2553
        %v2555 = vsel %vm2477, %v2191, -inf
        %v2556 = vrot.slane %v2555, 4
        %v2557 = vmax.f32 %v2555, %v2556
        %v2558 = vrot.slane %v2557, 2
        %v2559 = vmax.f32 %v2557, %v2558
        %v2560 = vrot.slane %v2559, 1
        %v2561 = vmax.f32 %v2559, %v2560
        %v2562 = vsel %vm2477, %v2199, -inf
        %v2563 = vrot.slane %v2562, 4
        %v2564 = vmax.f32 %v2562, %v2563
        %v2565 = vrot.slane %v2564, 2
        %v2566 = vmax.f32 %v2564, %v2565
        %v2567 = vrot.slane %v2566, 1
        %v2568 = vmax.f32 %v2566, %v2567
        %v2569 = vsel %vm2477, %v2207, -inf
        %v2570 = vrot.slane %v2569, 4
        %v2571 = vmax.f32 %v2569, %v2570
        %v2572 = vrot.slane %v2571, 2
        %v2573 = vmax.f32 %v2571, %v2572
        %v2574 = vrot.slane %v2573, 1
        %v2575 = vmax.f32 %v2573, %v2574
        %v2576 = vsel %vm2477, %v2206, -inf
        %v2577 = vrot.slane %v2576, 4
        %v2578 = vmax.f32 %v2576, %v2577
        %v2579 = vrot.slane %v2578, 2
        %v2580 = vmax.f32 %v2578, %v2579
        %v2581 = vrot.slane %v2580, 1
        %v2582 = vmax.f32 %v2580, %v2581
        %v2583 = vsel %vm2477, %v2208, -inf
        %v2584 = vrot.slane %v2583, 4
        %v2585 = vmax.f32 %v2583, %v2584
        %v2586 = vrot.slane %v2585, 2
        %v2587 = vmax.f32 %v2585, %v2586
        %v2588 = vrot.slane %v2587, 1
        %v2589 = vmax.f32 %v2587, %v2588
        %v2590 = vsel %vm2477, %v2216, -inf
        %v2591 = vrot.slane %v2590, 4
        %v2592 = vmax.f32 %v2590, %v2591
        %v2593 = vrot.slane %v2592, 2
        %v2594 = vmax.f32 %v2592, %v2593
        %v2595 = vrot.slane %v2594, 1
        %v2596 = vmax.f32 %v2594, %v2595
        %v2597 = vsel %vm2477, %v2224, -inf
        %v2598 = vrot.slane %v2597, 4
        %v2599 = vmax.f32 %v2597, %v2598
        %v2600 = vrot.slane %v2599, 2
        %v2601 = vmax.f32 %v2599, %v2600
        %v2602 = vrot.slane %v2601, 1
        %v2603 = vmax.f32 %v2601, %v2602
        %v2604 = vsel %vm2477, %v2223, -inf
        %v2605 = vrot.slane %v2604, 4
        %v2606 = vmax.f32 %v2604, %v2605
        %v2607 = vrot.slane %v2606, 2
        %v2608 = vmax.f32 %v2606, %v2607
        %v2609 = vrot.slane %v2608, 1
        %v2610 = vmax.f32 %v2608, %v2609
        %v2611 = vsel %vm2477, %v2225, -inf
        %v2612 = vrot.slane %v2611, 4
        %v2613 = vmax.f32 %v2611, %v2612
        %v2614 = vrot.slane %v2613, 2
        %v2615 = vmax.f32 %v2613, %v2614
        %v2616 = vrot.slane %v2615, 1
        %v2617 = vmax.f32 %v2615, %v2616
        %v2618 = vsel %vm2477, %v2233, -inf
        %v2619 = vrot.slane %v2618, 4
        %v2620 = vmax.f32 %v2618, %v2619
        %v2621 = vrot.slane %v2620, 2
        %v2622 = vmax.f32 %v2620, %v2621
        %v2623 = vrot.slane %v2622, 1
        %v2624 = vmax.f32 %v2622, %v2623
        %v2625 = vsel %vm2477, %v2241, -inf
        %v2626 = vrot.slane %v2625, 4
        %v2627 = vmax.f32 %v2625, %v2626
        %v2628 = vrot.slane %v2627, 2
        %v2629 = vmax.f32 %v2627, %v2628
        %v2630 = vrot.slane %v2629, 1
        %v2631 = vmax.f32 %v2629, %v2630
        %v2632 = vsel %vm2477, %v2240, -inf
        %v2633 = vrot.slane %v2632, 4
        %v2634 = vmax.f32 %v2632, %v2633
        %v2635 = vrot.slane %v2634, 2
        %v2636 = vmax.f32 %v2634, %v2635
        %v2637 = vrot.slane %v2636, 1
        %v2638 = vmax.f32 %v2636, %v2637
        %v2639 = vsel %vm2477, %v2242, -inf
        %v2640 = vrot.slane %v2639, 4
        %v2641 = vmax.f32 %v2639, %v2640
        %v2642 = vrot.slane %v2641, 2
        %v2643 = vmax.f32 %v2641, %v2642
        %v2644 = vrot.slane %v2643, 1
        %v2645 = vmax.f32 %v2643, %v2644
        %v2646 = vsel %vm2477, %v2250, -inf
        %v2647 = vrot.slane %v2646, 4
        %v2648 = vmax.f32 %v2646, %v2647
        %v2649 = vrot.slane %v2648, 2
        %v2650 = vmax.f32 %v2648, %v2649
        %v2651 = vrot.slane %v2650, 1
        %v2652 = vmax.f32 %v2650, %v2651
        %v2653 = vsel %vm2477, %v2258, -inf
        %v2654 = vrot.slane %v2653, 4
        %v2655 = vmax.f32 %v2653, %v2654
        %v2656 = vrot.slane %v2655, 2
        %v2657 = vmax.f32 %v2655, %v2656
        %v2658 = vrot.slane %v2657, 1
        %v2659 = vmax.f32 %v2657, %v2658
        %v2660 = vsel %vm2477, %v2257, -inf
        %v2661 = vrot.slane %v2660, 4
        %v2662 = vmax.f32 %v2660, %v2661
        %v2663 = vrot.slane %v2662, 2
        %v2664 = vmax.f32 %v2662, %v2663
        %v2665 = vrot.slane %v2664, 1
        %v2666 = vmax.f32 %v2664, %v2665
        %v2667 = vsel %vm2477, %v2259, -inf
        %v2668 = vrot.slane %v2667, 4
        %v2669 = vmax.f32 %v2667, %v2668
        %v2670 = vrot.slane %v2669, 2
        %v2671 = vmax.f32 %v2669, %v2670
        %v2672 = vrot.slane %v2671, 1
        %v2673 = vmax.f32 %v2671, %v2672
        %v2674 = vsel %vm2477, %v2267, -inf
        %v2675 = vrot.slane %v2674, 4
        %v2676 = vmax.f32 %v2674, %v2675
        %v2677 = vrot.slane %v2676, 2
        %v2678 = vmax.f32 %v2676, %v2677
        %v2679 = vrot.slane %v2678, 1
        %v2680 = vmax.f32 %v2678, %v2679
        %v2681 = vsel %vm2477, %v2275, -inf
        %v2682 = vrot.slane %v2681, 4
        %v2683 = vmax.f32 %v2681, %v2682
        %v2684 = vrot.slane %v2683, 2
        %v2685 = vmax.f32 %v2683, %v2684
        %v2686 = vrot.slane %v2685, 1
        %v2687 = vmax.f32 %v2685, %v2686
        %v2688 = vsel %vm2477, %v2274, -inf
        %v2689 = vrot.slane %v2688, 4
        %v2690 = vmax.f32 %v2688, %v2689
        %v2691 = vrot.slane %v2690, 2
        %v2692 = vmax.f32 %v2690, %v2691
        %v2693 = vrot.slane %v2692, 1
        %v2694 = vmax.f32 %v2692, %v2693
        %v2695 = vsel %vm2477, %v2276, -inf
        %v2696 = vrot.slane %v2695, 4
        %v2697 = vmax.f32 %v2695, %v2696
        %v2698 = vrot.slane %v2697, 2
        %v2699 = vmax.f32 %v2697, %v2698
        %v2700 = vrot.slane %v2699, 1
        %v2701 = vmax.f32 %v2699, %v2700
        %v2702 = vsel %vm2477, %v2284, -inf
        %v2703 = vrot.slane %v2702, 4
        %v2704 = vmax.f32 %v2702, %v2703
        %v2705 = vrot.slane %v2704, 2
        %v2706 = vmax.f32 %v2704, %v2705
        %v2707 = vrot.slane %v2706, 1
        %v2708 = vmax.f32 %v2706, %v2707
        %v2709 = vsel %vm2477, %v2292, -inf
        %v2710 = vrot.slane %v2709, 4
        %v2711 = vmax.f32 %v2709, %v2710
        %v2712 = vrot.slane %v2711, 2
        %v2713 = vmax.f32 %v2711, %v2712
        %v2714 = vrot.slane %v2713, 1
        %v2715 = vmax.f32 %v2713, %v2714
        %v2716 = vsel %vm2477, %v2291, -inf
        %v2717 = vrot.slane %v2716, 4
        %v2718 = vmax.f32 %v2716, %v2717
        %v2719 = vrot.slane %v2718, 2
        %v2720 = vmax.f32 %v2718, %v2719
        %v2721 = vrot.slane %v2720, 1
        %v2722 = vmax.f32 %v2720, %v2721
        %v2723 = vsel %vm2477, %v2293, -inf
        %v2724 = vrot.slane %v2723, 4
        %v2725 = vmax.f32 %v2723, %v2724
        %v2726 = vrot.slane %v2725, 2
        %v2727 = vmax.f32 %v2725, %v2726
        %v2728 = vrot.slane %v2727, 1
        %v2729 = vmax.f32 %v2727, %v2728
        %v2730 = vsel %vm2477, %v2301, -inf
        %v2731 = vrot.slane %v2730, 4
        %v2732 = vmax.f32 %v2730, %v2731
        %v2733 = vrot.slane %v2732, 2
        %v2734 = vmax.f32 %v2732, %v2733
        %v2735 = vrot.slane %v2734, 1
        %v2736 = vmax.f32 %v2734, %v2735
        %v2737 = vsel %vm2477, %v2309, -inf
        %v2738 = vrot.slane %v2737, 4
        %v2739 = vmax.f32 %v2737, %v2738
        %v2740 = vrot.slane %v2739, 2
        %v2741 = vmax.f32 %v2739, %v2740
        %v2742 = vrot.slane %v2741, 1
        %v2743 = vmax.f32 %v2741, %v2742
        %v2744 = vsel %vm2477, %v2308, -inf
        %v2745 = vrot.slane %v2744, 4
        %v2746 = vmax.f32 %v2744, %v2745
        %v2747 = vrot.slane %v2746, 2
        %v2748 = vmax.f32 %v2746, %v2747
        %v2749 = vrot.slane %v2748, 1
        %v2750 = vmax.f32 %v2748, %v2749
        %v2751 = vsel %vm2477, %v2310, -inf
        %v2752 = vrot.slane %v2751, 4
        %v2753 = vmax.f32 %v2751, %v2752
        %v2754 = vrot.slane %v2753, 2
        %v2755 = vmax.f32 %v2753, %v2754
        %v2756 = vrot.slane %v2755, 1
        %v2757 = vmax.f32 %v2755, %v2756
        %v2758 = vsel %vm2477, %v2318, -inf
        %v2759 = vrot.slane %v2758, 4
        %v2760 = vmax.f32 %v2758, %v2759
        %v2761 = vrot.slane %v2760, 2
        %v2762 = vmax.f32 %v2760, %v2761
        %v2763 = vrot.slane %v2762, 1
        %v2764 = vmax.f32 %v2762, %v2763
        %v2765 = vsel %vm2477, %v2326, -inf
        %v2766 = vrot.slane %v2765, 4
        %v2767 = vmax.f32 %v2765, %v2766
        %v2768 = vrot.slane %v2767, 2
        %v2769 = vmax.f32 %v2767, %v2768
        %v2770 = vrot.slane %v2769, 1
        %v2771 = vmax.f32 %v2769, %v2770
        %v2772 = vsel %vm2477, %v2325, -inf
        %v2773 = vrot.slane %v2772, 4
        %v2774 = vmax.f32 %v2772, %v2773
        %v2775 = vrot.slane %v2774, 2
        %v2776 = vmax.f32 %v2774, %v2775
        %v2777 = vrot.slane %v2776, 1
        %v2778 = vmax.f32 %v2776, %v2777
        %v2779 = vsel %vm2477, %v2327, -inf
        %v2780 = vrot.slane %v2779, 4
        %v2781 = vmax.f32 %v2779, %v2780
        %v2782 = vrot.slane %v2781, 2
        %v2783 = vmax.f32 %v2781, %v2782
        %v2784 = vrot.slane %v2783, 1
        %v2785 = vmax.f32 %v2783, %v2784
        %v2786 = vsel %vm2477, %v2335, -inf
        %v2787 = vrot.slane %v2786, 4
        %v2788 = vmax.f32 %v2786, %v2787
        %v2789 = vrot.slane %v2788, 2
        %v2790 = vmax.f32 %v2788, %v2789
        %v2791 = vrot.slane %v2790, 1
        %v2792 = vmax.f32 %v2790, %v2791
        %v2793 = vsel %vm2477, %v2343, -inf
        %v2794 = vrot.slane %v2793, 4
        %v2795 = vmax.f32 %v2793, %v2794
        %v2796 = vrot.slane %v2795, 2
        %v2797 = vmax.f32 %v2795, %v2796
        %v2798 = vrot.slane %v2797, 1
        %v2799 = vmax.f32 %v2797, %v2798
        %v2800 = vsel %vm2477, %v2342, -inf
        %v2801 = vrot.slane %v2800, 4
        %v2802 = vmax.f32 %v2800, %v2801
        %v2803 = vrot.slane %v2802, 2
        %v2804 = vmax.f32 %v2802, %v2803
        %v2805 = vrot.slane %v2804, 1
        %v2806 = vmax.f32 %v2804, %v2805
        %v2807 = vsel %vm2477, %v2344, -inf
        %v2808 = vrot.slane %v2807, 4
        %v2809 = vmax.f32 %v2807, %v2808
        %v2810 = vrot.slane %v2809, 2
        %v2811 = vmax.f32 %v2809, %v2810
        %v2812 = vrot.slane %v2811, 1
        %v2813 = vmax.f32 %v2811, %v2812
        %v2814 = vsel %vm2477, %v2352, -inf
        %v2815 = vrot.slane %v2814, 4
        %v2816 = vmax.f32 %v2814, %v2815
        %v2817 = vrot.slane %v2816, 2
        %v2818 = vmax.f32 %v2816, %v2817
        %v2819 = vrot.slane %v2818, 1
        %v2820 = vmax.f32 %v2818, %v2819
        %v2821 = vsel %vm2477, %v2360, -inf
        %v2822 = vrot.slane %v2821, 4
        %v2823 = vmax.f32 %v2821, %v2822
        %v2824 = vrot.slane %v2823, 2
        %v2825 = vmax.f32 %v2823, %v2824
        %v2826 = vrot.slane %v2825, 1
        %v2827 = vmax.f32 %v2825, %v2826
        %v2828 = vsel %vm2477, %v2359, -inf
        %v2829 = vrot.slane %v2828, 4
        %v2830 = vmax.f32 %v2828, %v2829
        %v2831 = vrot.slane %v2830, 2
        %v2832 = vmax.f32 %v2830, %v2831
        %v2833 = vrot.slane %v2832, 1
        %v2834 = vmax.f32 %v2832, %v2833
        %v2835 = vsel %vm2477, %v2361, -inf
        %v2836 = vrot.slane %v2835, 4
        %v2837 = vmax.f32 %v2835, %v2836
        %v2838 = vrot.slane %v2837, 2
        %v2839 = vmax.f32 %v2837, %v2838
        %v2840 = vrot.slane %v2839, 1
        %v2841 = vmax.f32 %v2839, %v2840
        %v2842 = vsel %vm2477, %v2369, -inf
        %v2843 = vrot.slane %v2842, 4
        %v2844 = vmax.f32 %v2842, %v2843
        %v2845 = vrot.slane %v2844, 2
        %v2846 = vmax.f32 %v2844, %v2845
        %v2847 = vrot.slane %v2846, 1
        %v2848 = vmax.f32 %v2846, %v2847
        %v2849 = vsel %vm2477, %v2377, -inf
        %v2850 = vrot.slane %v2849, 4
        %v2851 = vmax.f32 %v2849, %v2850
        %v2852 = vrot.slane %v2851, 2
        %v2853 = vmax.f32 %v2851, %v2852
        %v2854 = vrot.slane %v2853, 1
        %v2855 = vmax.f32 %v2853, %v2854
        %v2856 = vsel %vm2477, %v2376, -inf
        %v2857 = vrot.slane %v2856, 4
        %v2858 = vmax.f32 %v2856, %v2857
        %v2859 = vrot.slane %v2858, 2
        %v2860 = vmax.f32 %v2858, %v2859
        %v2861 = vrot.slane %v2860, 1
        %v2862 = vmax.f32 %v2860, %v2861
        %v2863 = vsel %vm2477, %v2378, -inf
        %v2864 = vrot.slane %v2863, 4
        %v2865 = vmax.f32 %v2863, %v2864
        %v2866 = vrot.slane %v2865, 2
        %v2867 = vmax.f32 %v2865, %v2866
        %v2868 = vrot.slane %v2867, 1
        %v2869 = vmax.f32 %v2867, %v2868
        %v2870 = vsel %vm2477, %v2386, -inf
        %v2871 = vrot.slane %v2870, 4
        %v2872 = vmax.f32 %v2870, %v2871
        %v2873 = vrot.slane %v2872, 2
        %v2874 = vmax.f32 %v2872, %v2873
        %v2875 = vrot.slane %v2874, 1
        %v2876 = vmax.f32 %v2874, %v2875
        %v2877 = vsel %vm2477, %v2394, -inf
        %v2878 = vrot.slane %v2877, 4
        %v2879 = vmax.f32 %v2877, %v2878
        %v2880 = vrot.slane %v2879, 2
        %v2881 = vmax.f32 %v2879, %v2880
        %v2882 = vrot.slane %v2881, 1
        %v2883 = vmax.f32 %v2881, %v2882
        %v2884 = vsel %vm2477, %v2393, -inf
        %v2885 = vrot.slane %v2884, 4
        %v2886 = vmax.f32 %v2884, %v2885
        %v2887 = vrot.slane %v2886, 2
        %v2888 = vmax.f32 %v2886, %v2887
        %v2889 = vrot.slane %v2888, 1
        %v2890 = vmax.f32 %v2888, %v2889
        %v2891 = vsel %vm2477, %v2395, -inf
        %v2892 = vrot.slane %v2891, 4
        %v2893 = vmax.f32 %v2891, %v2892
        %v2894 = vrot.slane %v2893, 2
        %v2895 = vmax.f32 %v2893, %v2894
        %v2896 = vrot.slane %v2895, 1
        %v2897 = vmax.f32 %v2895, %v2896
        %v2898 = vsel %vm2477, %v2403, -inf
        %v2899 = vrot.slane %v2898, 4
        %v2900 = vmax.f32 %v2898, %v2899
        %v2901 = vrot.slane %v2900, 2
        %v2902 = vmax.f32 %v2900, %v2901
        %v2903 = vrot.slane %v2902, 1
        %v2904 = vmax.f32 %v2902, %v2903
        %v2905 = vsel %vm2477, %v2411, -inf
        %v2906 = vrot.slane %v2905, 4
        %v2907 = vmax.f32 %v2905, %v2906
        %v2908 = vrot.slane %v2907, 2
        %v2909 = vmax.f32 %v2907, %v2908
        %v2910 = vrot.slane %v2909, 1
        %v2911 = vmax.f32 %v2909, %v2910
        %v2912 = vsel %vm2477, %v2410, -inf
        %v2913 = vrot.slane %v2912, 4
        %v2914 = vmax.f32 %v2912, %v2913
        %v2915 = vrot.slane %v2914, 2
        %v2916 = vmax.f32 %v2914, %v2915
        %v2917 = vrot.slane %v2916, 1
        %v2918 = vmax.f32 %v2916, %v2917
        %v2919 = vsel %vm2477, %v2412, -inf
        %v2920 = vrot.slane %v2919, 4
        %v2921 = vmax.f32 %v2919, %v2920
        %v2922 = vrot.slane %v2921, 2
        %v2923 = vmax.f32 %v2921, %v2922
        %v2924 = vrot.slane %v2923, 1
        %v2925 = vmax.f32 %v2923, %v2924
        %vm2990 = vcmask 1041409
        %v2991 = vsel %vm2990, %v2512, %v2484
        %vm2992 = vcmask 1042434
        %v2993 = vsel %vm2992, %v2540, %v2991
        %vm2994 = vcmask 1043459
        %v2995 = vsel %vm2994, %v2568, %v2993
        %vm2996 = vcmask 1044484
        %v2997 = vsel %vm2996, %v2596, %v2995
        %vm2998 = vcmask 1045509
        %v2999 = vsel %vm2998, %v2624, %v2997
        %vm3000 = vcmask 1046534
        %v3001 = vsel %vm3000, %v2652, %v2999
        %vm3002 = vcmask 1047559
        %v3003 = vsel %vm3002, %v2680, %v3001
        %v3004 = vsel %vm2990, %v2519, %v2491
        %v3005 = vsel %vm2992, %v2547, %v3004
        %v3006 = vsel %vm2994, %v2575, %v3005
        %v3007 = vsel %vm2996, %v2603, %v3006
        %v3008 = vsel %vm2998, %v2631, %v3007
        %v3009 = vsel %vm3000, %v2659, %v3008
        %v3010 = vsel %vm3002, %v2687, %v3009
        %v3011 = vsel %vm2990, %v2526, %v2498
        %v3012 = vsel %vm2992, %v2554, %v3011
        %v3013 = vsel %vm2994, %v2582, %v3012
        %v3014 = vsel %vm2996, %v2610, %v3013
        %v3015 = vsel %vm2998, %v2638, %v3014
        %v3016 = vsel %vm3000, %v2666, %v3015
        %v3017 = vsel %vm3002, %v2694, %v3016
        %v3018 = vsel %vm2990, %v2533, %v2505
        %v3019 = vsel %vm2992, %v2561, %v3018
        %v3020 = vsel %vm2994, %v2589, %v3019
        %v3021 = vsel %vm2996, %v2617, %v3020
        %v3022 = vsel %vm2998, %v2645, %v3021
        %v3023 = vsel %vm3000, %v2673, %v3022
        %v3024 = vsel %vm3002, %v2701, %v3023
        %v3025 = vsel %vm2990, %v2736, %v2708
        %v3026 = vsel %vm2992, %v2764, %v3025
        %v3027 = vsel %vm2994, %v2792, %v3026
        %v3028 = vsel %vm2996, %v2820, %v3027
        %v3029 = vsel %vm2998, %v2848, %v3028
        %v3030 = vsel %vm3000, %v2876, %v3029
        %v3031 = vsel %vm3002, %v2904, %v3030
        %v3032 = vsel %vm2990, %v2743, %v2715
        %v3033 = vsel %vm2992, %v2771, %v3032
        %v3034 = vsel %vm2994, %v2799, %v3033
        %v3035 = vsel %vm2996, %v2827, %v3034
        %v3036 = vsel %vm2998, %v2855, %v3035
        %v3037 = vsel %vm3000, %v2883, %v3036
        %v3038 = vsel %vm3002, %v2911, %v3037
        %v3039 = vsel %vm2990, %v2750, %v2722
        %v3040 = vsel %vm2992, %v2778, %v3039
        %v3041 = vsel %vm2994, %v2806, %v3040
        %v3042 = vsel %vm2996, %v2834, %v3041
        %v3043 = vsel %vm2998, %v2862, %v3042
        %v3044 = vsel %vm3000, %v2890, %v3043
        %v3045 = vsel %vm3002, %v2918, %v3044
        %v3046 = vsel %vm2990, %v2757, %v2729
        %v3047 = vsel %vm2992, %v2785, %v3046
        %v3048 = vsel %vm2994, %v2813, %v3047
        %v3049 = vsel %vm2996, %v2841, %v3048
        %v3050 = vsel %vm2998, %v2869, %v3049
        %v3051 = vsel %vm3000, %v2897, %v3050
        %v3052 = vsel %vm3002, %v2925, %v3051
        %3053 = vrot.lane.b32.xlu0 %v3003, 112
        %v3054 = vpop.permute.xlu0 %3053
        %3055 = vrot.lane.b32.xlu0 %v3010, 112
        %v3056 = vpop.permute.xlu0 %3055
        %3057 = vrot.lane.b32.xlu0 %v3017, 112
        %v3058 = vpop.permute.xlu0 %3057
        %3059 = vrot.lane.b32.xlu0 %v3024, 112
        %v3060 = vpop.permute.xlu0 %3059
        %3061 = vrot.lane.b32.xlu0 %v3031, 112
        %v3062 = vpop.permute.xlu0 %3061
        %3063 = vrot.lane.b32.xlu0 %v3038, 112
        %v3064 = vpop.permute.xlu0 %3063
        %3065 = vrot.lane.b32.xlu0 %v3045, 112
        %v3066 = vpop.permute.xlu0 %3065
        %3067 = vrot.lane.b32.xlu0 %v3052, 112
        %v3068 = vpop.permute.xlu0 %3067
        %vm3069 = vcmask 916480
        %v3070 = vsel %vm3069, %v3054, %v3056
        %v3071 = vsel %vm3069, %v3056, %v3058
        %v3072 = vsel %vm3069, %v3058, %v3060
        %v3073 = vsel %vm3069, %v3062, %v3064
        %v3074 = vsel %vm3069, %v3064, %v3066
        %v3075 = vsel %vm3069, %v3066, %v3068
        %v3080 = vsel %vm3069, %v3060, %v3054
        %v3081 = vsel %vm3069, %v3068, %v3062
        %v3084 = vrot.slane %v3070, 1
        %v3085 = vrot.slane %v3071, 1
        %v3086 = vrot.slane %v3072, 1
        %v3087 = vrot.slane %v3080, 1
        %v3088 = vrot.slane %v3070, 2
        %v3089 = vrot.slane %v3071, 2
        %v3090 = vrot.slane %v3072, 2
        %v3091 = vrot.slane %v3080, 2
        %v3092 = vrot.slane %v3070, 3
        %v3093 = vrot.slane %v3071, 3
        %v3094 = vrot.slane %v3072, 3
        %v3095 = vrot.slane %v3080, 3
        %v3096 = vrot.slane %v3070, 4
        %v3097 = vrot.slane %v3071, 4
        %v3098 = vrot.slane %v3072, 4
        %v3099 = vrot.slane %v3080, 4
        %v3100 = vrot.slane %v3070, 5
        %v3101 = vrot.slane %v3071, 5
        %v3102 = vrot.slane %v3072, 5
        %v3103 = vrot.slane %v3080, 5
        %v3104 = vrot.slane %v3070, 6
        %v3105 = vrot.slane %v3071, 6
        %v3106 = vrot.slane %v3072, 6
        %v3107 = vrot.slane %v3080, 6
        %v3108 = vrot.slane %v3070, 7
        %v3109 = vrot.slane %v3071, 7
        %v3110 = vrot.slane %v3072, 7
        %v3111 = vrot.slane %v3080, 7
        %v3112 = vrot.slane %v3073, 1
        %v3113 = vrot.slane %v3074, 1
        %v3114 = vrot.slane %v3075, 1
        %v3115 = vrot.slane %v3081, 1
        %v3116 = vrot.slane %v3073, 2
        %v3117 = vrot.slane %v3074, 2
        %v3118 = vrot.slane %v3075, 2
        %v3119 = vrot.slane %v3081, 2
        %v3120 = vrot.slane %v3073, 3
        %v3121 = vrot.slane %v3074, 3
        %v3122 = vrot.slane %v3075, 3
        %v3123 = vrot.slane %v3081, 3
        %v3124 = vrot.slane %v3073, 4
        %v3125 = vrot.slane %v3074, 4
        %v3126 = vrot.slane %v3075, 4
        %v3127 = vrot.slane %v3081, 4
        %v3128 = vrot.slane %v3073, 5
        %v3129 = vrot.slane %v3074, 5
        %v3130 = vrot.slane %v3075, 5
        %v3131 = vrot.slane %v3081, 5
        %v3132 = vrot.slane %v3073, 6
        %v3133 = vrot.slane %v3074, 6
        %v3134 = vrot.slane %v3075, 6
        %v3135 = vrot.slane %v3081, 6
        %v3136 = vrot.slane %v3073, 7
        %v3137 = vrot.slane %v3074, 7
        %v3138 = vrot.slane %v3075, 7
        %v3139 = vrot.slane %v3081, 7
        %v3204 = vmax.f32 %v2484, %v3070
        %v3205 = vmax.f32 %v2491, %v3071
        %v3206 = vmax.f32 %v2498, %v3072
        %v3207 = vmax.f32 %v2505, %v3080
        %v3208 = vmax.f32 %v2512, %v3084
        %v3209 = vmax.f32 %v2519, %v3085
        %v3210 = vmax.f32 %v2526, %v3086
        %v3211 = vmax.f32 %v2533, %v3087
        %v3212 = vmax.f32 %v2540, %v3088
        %v3213 = vmax.f32 %v2547, %v3089
        %v3214 = vmax.f32 %v2554, %v3090
        %v3215 = vmax.f32 %v2561, %v3091
        %v3216 = vmax.f32 %v2568, %v3092
        %v3217 = vmax.f32 %v2575, %v3093
        %v3218 = vmax.f32 %v2582, %v3094
        %v3219 = vmax.f32 %v2589, %v3095
        %v3220 = vmax.f32 %v2596, %v3096
        %v3221 = vmax.f32 %v2603, %v3097
        %v3222 = vmax.f32 %v2610, %v3098
        %v3223 = vmax.f32 %v2617, %v3099
        %v3224 = vmax.f32 %v2624, %v3100
        %v3225 = vmax.f32 %v2631, %v3101
        %v3226 = vmax.f32 %v2638, %v3102
        %v3227 = vmax.f32 %v2645, %v3103
        %v3228 = vmax.f32 %v2652, %v3104
        %v3229 = vmax.f32 %v2659, %v3105
        %v3230 = vmax.f32 %v2666, %v3106
        %v3231 = vmax.f32 %v2673, %v3107
        %v3232 = vmax.f32 %v2680, %v3108
        %v3233 = vmax.f32 %v2687, %v3109
        %v3234 = vmax.f32 %v2694, %v3110
        %v3235 = vmax.f32 %v2701, %v3111
        %v3236 = vmax.f32 %v2708, %v3073
        %v3237 = vmax.f32 %v2715, %v3074
        %v3238 = vmax.f32 %v2722, %v3075
        %v3239 = vmax.f32 %v2729, %v3081
        %v3240 = vmax.f32 %v2736, %v3112
        %v3241 = vmax.f32 %v2743, %v3113
        %v3242 = vmax.f32 %v2750, %v3114
        %v3243 = vmax.f32 %v2757, %v3115
        %v3244 = vmax.f32 %v2764, %v3116
        %v3245 = vmax.f32 %v2771, %v3117
        %v3246 = vmax.f32 %v2778, %v3118
        %v3247 = vmax.f32 %v2785, %v3119
        %v3248 = vmax.f32 %v2792, %v3120
        %v3249 = vmax.f32 %v2799, %v3121
        %v3250 = vmax.f32 %v2806, %v3122
        %v3251 = vmax.f32 %v2813, %v3123
        %v3252 = vmax.f32 %v2820, %v3124
        %v3253 = vmax.f32 %v2827, %v3125
        %v3254 = vmax.f32 %v2834, %v3126
        %v3255 = vmax.f32 %v2841, %v3127
        %v3256 = vmax.f32 %v2848, %v3128
        %v3257 = vmax.f32 %v2855, %v3129
        %v3258 = vmax.f32 %v2862, %v3130
        %v3259 = vmax.f32 %v2869, %v3131
        %v3260 = vmax.f32 %v2876, %v3132
        %v3261 = vmax.f32 %v2883, %v3133
        %v3262 = vmax.f32 %v2890, %v3134
        %v3263 = vmax.f32 %v2897, %v3135
        %v3264 = vmax.f32 %v2904, %v3136
        %v3265 = vmax.f32 %v2911, %v3137
        %v3266 = vmax.f32 %v2918, %v3138
        %v3267 = vmax.f32 %v2925, %v3139
        %3268 = vst [vmem:[#allocation3] sm:$0xff] 0
        %3269 = vst [vmem:[#allocation3 + $0x8] sm:$0xff] 0
        %3270 = vst [vmem:[#allocation3 + $0x10] sm:$0xff] 0
        %3271 = vst [vmem:[#allocation3 + $0x18] sm:$0xff] 0
        %3272 = vst [vmem:[#allocation3 + $0x20] sm:$0x33] 0
        %3273 = vst [vmem:[#allocation3 + $0x28] sm:$0x33] 0
        %v3274 = vpack.c.bf16 %v3204, %v3204
        %v3275 = vpack.c.bf16 %v3205, %v3205
        %v3276 = vpack.c.bf16 %v3206, %v3206
        %v3277 = vpack.c.bf16 %v3207, %v3207
        %v3278 = vpack.c.bf16 %v3208, %v3208
        %v3279 = vpack.c.bf16 %v3209, %v3209
        %v3280 = vpack.c.bf16 %v3210, %v3210
        %v3281 = vpack.c.bf16 %v3211, %v3211
        %v3282 = vpack.c.bf16 %v3212, %v3212
        %v3283 = vpack.c.bf16 %v3213, %v3213
        %v3284 = vpack.c.bf16 %v3214, %v3214
        %v3285 = vpack.c.bf16 %v3215, %v3215
        %v3286 = vpack.c.bf16 %v3216, %v3216
        %v3287 = vpack.c.bf16 %v3217, %v3217
        %v3288 = vpack.c.bf16 %v3218, %v3218
        %v3289 = vpack.c.bf16 %v3219, %v3219
        %v3290 = vpack.c.bf16 %v3220, %v3220
        %v3291 = vpack.c.bf16 %v3221, %v3221
        %v3292 = vpack.c.bf16 %v3222, %v3222
        %v3293 = vpack.c.bf16 %v3223, %v3223
        %v3294 = vpack.c.bf16 %v3224, %v3224
        %v3295 = vpack.c.bf16 %v3225, %v3225
        %v3296 = vpack.c.bf16 %v3226, %v3226
        %v3297 = vpack.c.bf16 %v3227, %v3227
        %v3298 = vpack.c.bf16 %v3228, %v3228
        %v3299 = vpack.c.bf16 %v3229, %v3229
        %v3300 = vpack.c.bf16 %v3230, %v3230
        %v3301 = vpack.c.bf16 %v3231, %v3231
        %v3302 = vpack.c.bf16 %v3232, %v3232
        %v3303 = vpack.c.bf16 %v3233, %v3233
        %v3304 = vpack.c.bf16 %v3234, %v3234
        %v3305 = vpack.c.bf16 %v3235, %v3235
        %v3306 = vpack.c.bf16 %v3236, %v3236
        %v3307 = vpack.c.bf16 %v3237, %v3237
        %v3308 = vpack.c.bf16 %v3238, %v3238
        %v3309 = vpack.c.bf16 %v3239, %v3239
        %v3310 = vpack.c.bf16 %v3240, %v3240
        %v3311 = vpack.c.bf16 %v3241, %v3241
        %v3312 = vpack.c.bf16 %v3242, %v3242
        %v3313 = vpack.c.bf16 %v3243, %v3243
        %v3314 = vpack.c.bf16 %v3244, %v3244
        %v3315 = vpack.c.bf16 %v3245, %v3245
        %v3316 = vpack.c.bf16 %v3246, %v3246
        %v3317 = vpack.c.bf16 %v3247, %v3247
        %v3318 = vpack.c.bf16 %v3248, %v3248
        %v3319 = vpack.c.bf16 %v3249, %v3249
        %v3320 = vpack.c.bf16 %v3250, %v3250
        %v3321 = vpack.c.bf16 %v3251, %v3251
        %v3322 = vpack.c.bf16 %v3252, %v3252
        %v3323 = vpack.c.bf16 %v3253, %v3253
        %v3324 = vpack.c.bf16 %v3254, %v3254
        %v3325 = vpack.c.bf16 %v3255, %v3255
        %v3326 = vpack.c.bf16 %v3256, %v3256
        %v3327 = vpack.c.bf16 %v3257, %v3257
        %v3328 = vpack.c.bf16 %v3258, %v3258
        %v3329 = vpack.c.bf16 %v3259, %v3259
        %v3330 = vpack.c.bf16 %v3260, %v3260
        %v3331 = vpack.c.bf16 %v3261, %v3261
        %v3332 = vpack.c.bf16 %v3262, %v3262
        %v3333 = vpack.c.bf16 %v3263, %v3263
        %v3334 = vpack.c.bf16 %v3264, %v3264
        %v3335 = vpack.c.bf16 %v3265, %v3265
        %v3336 = vpack.c.bf16 %v3266, %v3266
        %v3337 = vpack.c.bf16 %v3267, %v3267
        %v3402 = vunpack.c.l.b16 %v3274
        %v3403 = vunpack.c.l.b16 %v3275
        %v3404 = vunpack.c.l.b16 %v3276
        %v3405 = vunpack.c.l.b16 %v3277
        %v3406 = vunpack.c.l.b16 %v3278
        %v3407 = vunpack.c.l.b16 %v3279
        %v3408 = vunpack.c.l.b16 %v3280
        %v3409 = vunpack.c.l.b16 %v3281
        %v3410 = vunpack.c.l.b16 %v3282
        %v3411 = vunpack.c.l.b16 %v3283
        %v3412 = vunpack.c.l.b16 %v3284
        %v3413 = vunpack.c.l.b16 %v3285
        %v3414 = vunpack.c.l.b16 %v3286
        %v3415 = vunpack.c.l.b16 %v3287
        %v3416 = vunpack.c.l.b16 %v3288
        %v3417 = vunpack.c.l.b16 %v3289
        %v3418 = vunpack.c.l.b16 %v3290
        %v3419 = vunpack.c.l.b16 %v3291
        %v3420 = vunpack.c.l.b16 %v3292
        %v3421 = vunpack.c.l.b16 %v3293
        %v3422 = vunpack.c.l.b16 %v3294
        %v3423 = vunpack.c.l.b16 %v3295
        %v3424 = vunpack.c.l.b16 %v3296
        %v3425 = vunpack.c.l.b16 %v3297
        %v3426 = vunpack.c.l.b16 %v3298
        %v3427 = vunpack.c.l.b16 %v3299
        %v3428 = vunpack.c.l.b16 %v3300
        %v3429 = vunpack.c.l.b16 %v3301
        %v3430 = vunpack.c.l.b16 %v3302
        %v3431 = vunpack.c.l.b16 %v3303
        %v3432 = vunpack.c.l.b16 %v3304
        %v3433 = vunpack.c.l.b16 %v3305
        %v3434 = vunpack.c.l.b16 %v3306
        %v3435 = vunpack.c.l.b16 %v3307
        %v3436 = vunpack.c.l.b16 %v3308
        %v3437 = vunpack.c.l.b16 %v3309
        %v3438 = vunpack.c.l.b16 %v3310
        %v3439 = vunpack.c.l.b16 %v3311
        %v3440 = vunpack.c.l.b16 %v3312
        %v3441 = vunpack.c.l.b16 %v3313
        %v3442 = vunpack.c.l.b16 %v3314
        %v3443 = vunpack.c.l.b16 %v3315
        %v3444 = vunpack.c.l.b16 %v3316
        %v3445 = vunpack.c.l.b16 %v3317
        %v3446 = vunpack.c.l.b16 %v3318
        %v3447 = vunpack.c.l.b16 %v3319
        %v3448 = vunpack.c.l.b16 %v3320
        %v3449 = vunpack.c.l.b16 %v3321
        %v3450 = vunpack.c.l.b16 %v3322
        %v3451 = vunpack.c.l.b16 %v3323
        %v3452 = vunpack.c.l.b16 %v3324
        %v3453 = vunpack.c.l.b16 %v3325
        %v3454 = vunpack.c.l.b16 %v3326
        %v3455 = vunpack.c.l.b16 %v3327
        %v3456 = vunpack.c.l.b16 %v3328
        %v3457 = vunpack.c.l.b16 %v3329
        %v3458 = vunpack.c.l.b16 %v3330
        %v3459 = vunpack.c.l.b16 %v3331
        %v3460 = vunpack.c.l.b16 %v3332
        %v3461 = vunpack.c.l.b16 %v3333
        %v3462 = vunpack.c.l.b16 %v3334
        %v3463 = vunpack.c.l.b16 %v3335
        %v3464 = vunpack.c.l.b16 %v3336
        %v3465 = vunpack.c.l.b16 %v3337
        %v3466 = vpack.c.b16 %v3403, %v3402
        %v3467 = vpack.c.b16 %v3405, %v3404
        %v3468 = vpack.c.b16 %v3407, %v3406
        %v3469 = vpack.c.b16 %v3409, %v3408
        %v3470 = vpack.c.b16 %v3411, %v3410
        %v3471 = vpack.c.b16 %v3413, %v3412
        %v3472 = vpack.c.b16 %v3415, %v3414
        %v3473 = vpack.c.b16 %v3417, %v3416
        %v3474 = vpack.c.b16 %v3419, %v3418
        %v3475 = vpack.c.b16 %v3421, %v3420
        %v3476 = vpack.c.b16 %v3423, %v3422
        %v3477 = vpack.c.b16 %v3425, %v3424
        %v3478 = vpack.c.b16 %v3427, %v3426
        %v3479 = vpack.c.b16 %v3429, %v3428
        %v3480 = vpack.c.b16 %v3431, %v3430
        %v3481 = vpack.c.b16 %v3433, %v3432
        %v3482 = vpack.c.b16 %v3435, %v3434
        %v3483 = vpack.c.b16 %v3437, %v3436
        %v3484 = vpack.c.b16 %v3439, %v3438
        %v3485 = vpack.c.b16 %v3441, %v3440
        %v3486 = vpack.c.b16 %v3443, %v3442
        %v3487 = vpack.c.b16 %v3445, %v3444
        %v3488 = vpack.c.b16 %v3447, %v3446
        %v3489 = vpack.c.b16 %v3449, %v3448
        %v3490 = vpack.c.b16 %v3451, %v3450
        %v3491 = vpack.c.b16 %v3453, %v3452
        %v3492 = vpack.c.b16 %v3455, %v3454
        %v3493 = vpack.c.b16 %v3457, %v3456
        %v3494 = vpack.c.b16 %v3459, %v3458
        %v3495 = vpack.c.b16 %v3461, %v3460
        %v3496 = vpack.c.b16 %v3463, %v3462
        %v3497 = vpack.c.b16 %v3465, %v3464
        %v3498 = vunpack.c.l.b16 %v3466
        %v3499 = vunpack.c.h.b16 %v3466
        %v3500 = vunpack.c.l.b16 %v3467
        %v3501 = vunpack.c.h.b16 %v3467
        %v3502 = vunpack.c.l.b16 %v3468
        %v3503 = vunpack.c.h.b16 %v3468
        %v3504 = vunpack.c.l.b16 %v3469
        %v3505 = vunpack.c.h.b16 %v3469
        %v3506 = vunpack.c.l.b16 %v3470
        %v3507 = vunpack.c.h.b16 %v3470
        %v3508 = vunpack.c.l.b16 %v3471
        %v3509 = vunpack.c.h.b16 %v3471
        %v3510 = vunpack.c.l.b16 %v3472
        %v3511 = vunpack.c.h.b16 %v3472
        %v3512 = vunpack.c.l.b16 %v3473
        %v3513 = vunpack.c.h.b16 %v3473
        %v3514 = vunpack.c.l.b16 %v3474
        %v3515 = vunpack.c.h.b16 %v3474
        %v3516 = vunpack.c.l.b16 %v3475
        %v3517 = vunpack.c.h.b16 %v3475
        %v3518 = vunpack.c.l.b16 %v3476
        %v3519 = vunpack.c.h.b16 %v3476
        %v3520 = vunpack.c.l.b16 %v3477
        %v3521 = vunpack.c.h.b16 %v3477
        %v3522 = vunpack.c.l.b16 %v3478
        %v3523 = vunpack.c.h.b16 %v3478
        %v3524 = vunpack.c.l.b16 %v3479
        %v3525 = vunpack.c.h.b16 %v3479
        %v3526 = vunpack.c.l.b16 %v3480
        %v3527 = vunpack.c.h.b16 %v3480
        %v3528 = vunpack.c.l.b16 %v3481
        %v3529 = vunpack.c.h.b16 %v3481
        %v3530 = vunpack.c.l.b16 %v3482
        %v3531 = vunpack.c.h.b16 %v3482
        %v3532 = vunpack.c.l.b16 %v3483
        %v3533 = vunpack.c.h.b16 %v3483
        %v3534 = vunpack.c.l.b16 %v3484
        %v3535 = vunpack.c.h.b16 %v3484
        %v3536 = vunpack.c.l.b16 %v3485
        %v3537 = vunpack.c.h.b16 %v3485
        %v3538 = vunpack.c.l.b16 %v3486
        %v3539 = vunpack.c.h.b16 %v3486
        %v3540 = vunpack.c.l.b16 %v3487
        %v3541 = vunpack.c.h.b16 %v3487
        %v3542 = vunpack.c.l.b16 %v3488
        %v3543 = vunpack.c.h.b16 %v3488
        %v3544 = vunpack.c.l.b16 %v3489
        %v3545 = vunpack.c.h.b16 %v3489
        %v3546 = vunpack.c.l.b16 %v3490
        %v3547 = vunpack.c.h.b16 %v3490
        %v3548 = vunpack.c.l.b16 %v3491
        %v3549 = vunpack.c.h.b16 %v3491
        %v3550 = vunpack.c.l.b16 %v3492
        %v3551 = vunpack.c.h.b16 %v3492
        %v3552 = vunpack.c.l.b16 %v3493
        %v3553 = vunpack.c.h.b16 %v3493
        %v3554 = vunpack.c.l.b16 %v3494
        %v3555 = vunpack.c.h.b16 %v3494
        %v3556 = vunpack.c.l.b16 %v3495
        %v3557 = vunpack.c.h.b16 %v3495
        %v3558 = vunpack.c.l.b16 %v3496
        %v3559 = vunpack.c.h.b16 %v3496
        %v3560 = vunpack.c.l.b16 %v3497
        %v3561 = vunpack.c.h.b16 %v3497
        %v3562 = vrot.slane %v3498, 6
        %v3563 = vrot.slane %v3502, 5
        %v3564 = vsel %vm2994, %v3563, %v3562
        %v3565 = vrot.slane %v3506, 4
        %v3566 = vsel %vm2996, %v3565, %v3564
        %v3567 = vrot.slane %v3510, 3
        %v3568 = vsel %vm2998, %v3567, %v3566
        %v3569 = vrot.slane %v3514, 2
        %v3570 = vsel %vm3000, %v3569, %v3568
        %v3571 = vrot.slane %v3518, 1
        %v3572 = vsel %vm3002, %v3571, %v3570
        %v3573 = vrot.slane %v3499, 6
        %v3574 = vrot.slane %v3503, 5
        %v3575 = vsel %vm2994, %v3574, %v3573
        %v3576 = vrot.slane %v3507, 4
        %v3577 = vsel %vm2996, %v3576, %v3575
        %v3578 = vrot.slane %v3511, 3
        %v3579 = vsel %vm2998, %v3578, %v3577
        %v3580 = vrot.slane %v3515, 2
        %v3581 = vsel %vm3000, %v3580, %v3579
        %v3582 = vrot.slane %v3519, 1
        %v3583 = vsel %vm3002, %v3582, %v3581
        %v3584 = vrot.slane %v3500, 6
        %v3585 = vrot.slane %v3504, 5
        %v3586 = vsel %vm2994, %v3585, %v3584
        %v3587 = vrot.slane %v3508, 4
        %v3588 = vsel %vm2996, %v3587, %v3586
        %v3589 = vrot.slane %v3512, 3
        %v3590 = vsel %vm2998, %v3589, %v3588
        %v3591 = vrot.slane %v3516, 2
        %v3592 = vsel %vm3000, %v3591, %v3590
        %v3593 = vrot.slane %v3520, 1
        %v3594 = vsel %vm3002, %v3593, %v3592
        %v3595 = vrot.slane %v3501, 6
        %v3596 = vrot.slane %v3505, 5
        %v3597 = vsel %vm2994, %v3596, %v3595
        %v3598 = vrot.slane %v3509, 4
        %v3599 = vsel %vm2996, %v3598, %v3597
        %v3600 = vrot.slane %v3513, 3
        %v3601 = vsel %vm2998, %v3600, %v3599
        %v3602 = vrot.slane %v3517, 2
        %v3603 = vsel %vm3000, %v3602, %v3601
        %v3604 = vrot.slane %v3521, 1
        %v3605 = vsel %vm3002, %v3604, %v3603
        %v3606 = vrot.slane %v3526, 7
        %v3607 = vsel %vm2990, %v3606, %v3522
        %v3608 = vrot.slane %v3530, 6
        %v3609 = vsel %vm2992, %v3608, %v3607
        %v3610 = vrot.slane %v3534, 5
        %v3611 = vsel %vm2994, %v3610, %v3609
        %v3612 = vrot.slane %v3538, 4
        %v3613 = vsel %vm2996, %v3612, %v3611
        %v3614 = vrot.slane %v3542, 3
        %v3615 = vsel %vm2998, %v3614, %v3613
        %v3616 = vrot.slane %v3546, 2
        %v3617 = vsel %vm3000, %v3616, %v3615
        %v3618 = vrot.slane %v3550, 1
        %v3619 = vsel %vm3002, %v3618, %v3617
        %v3620 = vrot.slane %v3527, 7
        %v3621 = vsel %vm2990, %v3620, %v3523
        %v3622 = vrot.slane %v3531, 6
        %v3623 = vsel %vm2992, %v3622, %v3621
        %v3624 = vrot.slane %v3535, 5
        %v3625 = vsel %vm2994, %v3624, %v3623
        %v3626 = vrot.slane %v3539, 4
        %v3627 = vsel %vm2996, %v3626, %v3625
        %v3628 = vrot.slane %v3543, 3
        %v3629 = vsel %vm2998, %v3628, %v3627
        %v3630 = vrot.slane %v3547, 2
        %v3631 = vsel %vm3000, %v3630, %v3629
        %v3632 = vrot.slane %v3551, 1
        %v3633 = vsel %vm3002, %v3632, %v3631
        %v3634 = vrot.slane %v3528, 7
        %v3635 = vsel %vm2990, %v3634, %v3524
        %v3636 = vrot.slane %v3532, 6
        %v3637 = vsel %vm2992, %v3636, %v3635
        %v3638 = vrot.slane %v3536, 5
        %v3639 = vsel %vm2994, %v3638, %v3637
        %v3640 = vrot.slane %v3540, 4
        %v3641 = vsel %vm2996, %v3640, %v3639
        %v3642 = vrot.slane %v3544, 3
        %v3643 = vsel %vm2998, %v3642, %v3641
        %v3644 = vrot.slane %v3548, 2
        %v3645 = vsel %vm3000, %v3644, %v3643
        %v3646 = vrot.slane %v3552, 1
        %v3647 = vsel %vm3002, %v3646, %v3645
        %v3648 = vrot.slane %v3529, 7
        %v3649 = vsel %vm2990, %v3648, %v3525
        %v3650 = vrot.slane %v3533, 6
        %v3651 = vsel %vm2992, %v3650, %v3649
        %v3652 = vrot.slane %v3537, 5
        %v3653 = vsel %vm2994, %v3652, %v3651
        %v3654 = vrot.slane %v3541, 4
        %v3655 = vsel %vm2996, %v3654, %v3653
        %v3656 = vrot.slane %v3545, 3
        %v3657 = vsel %vm2998, %v3656, %v3655
        %v3658 = vrot.slane %v3549, 2
        %v3659 = vsel %vm3000, %v3658, %v3657
        %v3660 = vrot.slane %v3553, 1
        %v3661 = vsel %vm3002, %v3660, %v3659
        %v3662 = vrot.slane %v3558, 7
        %v3663 = vsel %vm2990, %v3662, %v3554
        %v3664 = vrot.slane %v3559, 7
        %v3665 = vsel %vm2990, %v3664, %v3555
        %v3666 = vrot.slane %v3560, 7
        %v3667 = vsel %vm2990, %v3666, %v3556
        %v3668 = vrot.slane %v3561, 7
        %v3669 = vsel %vm2990, %v3668, %v3557
        %v3670 = vpack.c.b16 %v3583, %v3572
        %v3671 = vpack.c.b16 %v3605, %v3594
        %v3672 = vpack.c.b16 %v3633, %v3619
        %v3673 = vpack.c.b16 %v3661, %v3647
        %v3674 = vpack.c.b16 %v3665, %v3663
        %v3675 = vpack.c.b16 %v3669, %v3667
        %3682 = vst [vmem:[#allocation3] sm:$0xee] %v3670
        %3683 = vst [vmem:[#allocation3 + $0x8] sm:$0xee] %v3671
        %3684 = vst [vmem:[#allocation3 + $0x10] sm:$0xff] %v3672
        %3685 = vst [vmem:[#allocation3 + $0x18] sm:$0xff] %v3673
        %3686 = vst [vmem:[#allocation3 + $0x20] sm:$0x11] %v3674
        %3687 = vst [vmem:[#allocation3 + $0x28] sm:$0x11] %v3675
        %v3688 = vld [vmem:[#allocation3] sm:$0xff]
        %v3689 = vld [vmem:[#allocation3 + $0x8] sm:$0xff]
        %v3690 = vld [vmem:[#allocation3 + $0x10] sm:$0xff]
        %v3691 = vld [vmem:[#allocation3 + $0x18] sm:$0xff]
        %v3692 = vld [vmem:[#allocation10] sm:$0xff]
        %v3693 = vld [vmem:[#allocation10 + $0x8] sm:$0xff]
        %v3694 = vld [vmem:[#allocation10 + $0x10] sm:$0xff]
        %v3695 = vld [vmem:[#allocation10 + $0x18] sm:$0xff]
        %v3696 = vld [vmem:[#allocation10 + $0x20] sm:$0xff]
        %v3697 = vld [vmem:[#allocation10 + $0x28] sm:$0xff]
        %v3698 = vld [vmem:[#allocation10 + $0x30] sm:$0xff]
        %v3699 = vld [vmem:[#allocation10 + $0x38] sm:$0xff]
        %v3700 = vld [vmem:[#allocation10 + $0x40] sm:$0xff]
        %v3701 = vld [vmem:[#allocation10 + $0x48] sm:$0xff]
        %v3702 = vld [vmem:[#allocation10 + $0x50] sm:$0xff]
        %v3703 = vld [vmem:[#allocation10 + $0x58] sm:$0xff]
        %v3704 = vld [vmem:[#allocation10 + $0x60] sm:$0xff]
        %v3705 = vld [vmem:[#allocation10 + $0x68] sm:$0xff]
        %v3706 = vld [vmem:[#allocation10 + $0x70] sm:$0xff]
        %v3707 = vld [vmem:[#allocation10 + $0x78] sm:$0xff]
        %v3708 = vld [vmem:[#allocation10 + $0x80] sm:$0xff]
        %v3709 = vld [vmem:[#allocation10 + $0x88] sm:$0xff]
        %v3710 = vld [vmem:[#allocation10 + $0x90] sm:$0xff]
        %v3711 = vld [vmem:[#allocation10 + $0x98] sm:$0xff]
        %v3712 = vld [vmem:[#allocation10 + $0xa0] sm:$0xff]
        %v3713 = vld [vmem:[#allocation10 + $0xa8] sm:$0xff]
        %v3714 = vld [vmem:[#allocation10 + $0xb0] sm:$0xff]
        %v3715 = vld [vmem:[#allocation10 + $0xb8] sm:$0xff]
        %v3716 = vld [vmem:[#allocation10 + $0xc0] sm:$0xff]
        %v3717 = vld [vmem:[#allocation10 + $0xc8] sm:$0xff]
        %v3718 = vld [vmem:[#allocation10 + $0xd0] sm:$0xff]
        %v3719 = vld [vmem:[#allocation10 + $0xd8] sm:$0xff]
        %v3720 = vld [vmem:[#allocation10 + $0xe0] sm:$0xff]
        %v3721 = vld [vmem:[#allocation10 + $0xe8] sm:$0xff]
        %v3722 = vld [vmem:[#allocation10 + $0xf0] sm:$0xff]
        %v3723 = vld [vmem:[#allocation10 + $0xf8] sm:$0xff]
        %v3724 = vld [vmem:[#allocation10 + $0x100] sm:$0xff]
        %v3725 = vld [vmem:[#allocation10 + $0x108] sm:$0xff]
        %v3726 = vld [vmem:[#allocation10 + $0x110] sm:$0xff]
        %v3727 = vld [vmem:[#allocation10 + $0x118] sm:$0xff]
        %v3728 = vld [vmem:[#allocation10 + $0x120] sm:$0xff]
        %v3729 = vld [vmem:[#allocation10 + $0x128] sm:$0xff]
        %v3730 = vld [vmem:[#allocation10 + $0x130] sm:$0xff]
        %v3731 = vld [vmem:[#allocation10 + $0x138] sm:$0xff]
        %v3732 = vld [vmem:[#allocation10 + $0x140] sm:$0xff]
        %v3733 = vld [vmem:[#allocation10 + $0x148] sm:$0xff]
        %v3734 = vld [vmem:[#allocation10 + $0x150] sm:$0xff]
        %v3735 = vld [vmem:[#allocation10 + $0x158] sm:$0xff]
        %v3736 = vld [vmem:[#allocation10 + $0x160] sm:$0xff]
        %v3737 = vld [vmem:[#allocation10 + $0x168] sm:$0xff]
        %v3738 = vld [vmem:[#allocation10 + $0x170] sm:$0xff]
        %v3739 = vld [vmem:[#allocation10 + $0x178] sm:$0xff]
        %v3740 = vld [vmem:[#allocation10 + $0x180] sm:$0xff]
        %v3741 = vld [vmem:[#allocation10 + $0x188] sm:$0xff]
        %v3742 = vld [vmem:[#allocation10 + $0x190] sm:$0xff]
        %v3743 = vld [vmem:[#allocation10 + $0x198] sm:$0xff]
        %v3744 = vld [vmem:[#allocation10 + $0x1a0] sm:$0xff]
        %v3745 = vld [vmem:[#allocation10 + $0x1a8] sm:$0xff]
        %v3746 = vld [vmem:[#allocation10 + $0x1b0] sm:$0xff]
        %v3747 = vld [vmem:[#allocation10 + $0x1b8] sm:$0xff]
        %v3748 = vld [vmem:[#allocation10 + $0x1c0] sm:$0xff]
        %v3749 = vld [vmem:[#allocation10 + $0x1c8] sm:$0xff]
        %v3750 = vld [vmem:[#allocation10 + $0x1d0] sm:$0xff]
        %v3751 = vld [vmem:[#allocation10 + $0x1d8] sm:$0xff]
        %v3752 = vld [vmem:[#allocation10 + $0x1e0] sm:$0xff]
        %v3753 = vld [vmem:[#allocation10 + $0x1e8] sm:$0xff]
        %v3754 = vld [vmem:[#allocation10 + $0x1f0] sm:$0xff]
        %v3755 = vld [vmem:[#allocation10 + $0x1f8] sm:$0xff]
        %v3756 = vld [vmem:[#allocation10 + $0x200] sm:$0xff]
        %v3757 = vld [vmem:[#allocation10 + $0x208] sm:$0xff]
        %v3758 = vld [vmem:[#allocation10 + $0x210] sm:$0xff]
        %v3759 = vld [vmem:[#allocation10 + $0x218] sm:$0xff]
        %v3760 = vld [vmem:[#allocation10 + $0x220] sm:$0xff]
        %v3761 = vld [vmem:[#allocation10 + $0x228] sm:$0xff]
        %v3762 = vld [vmem:[#allocation10 + $0x230] sm:$0xff]
        %v3763 = vld [vmem:[#allocation10 + $0x238] sm:$0xff]
        %v3764 = vld [vmem:[#allocation10 + $0x240] sm:$0xff]
        %v3765 = vld [vmem:[#allocation10 + $0x248] sm:$0xff]
        %v3766 = vld [vmem:[#allocation10 + $0x250] sm:$0xff]
        %v3767 = vld [vmem:[#allocation10 + $0x258] sm:$0xff]
        %v3768 = vld [vmem:[#allocation10 + $0x260] sm:$0xff]
        %v3769 = vld [vmem:[#allocation10 + $0x268] sm:$0xff]
        %v3770 = vld [vmem:[#allocation10 + $0x270] sm:$0xff]
        %v3771 = vld [vmem:[#allocation10 + $0x278] sm:$0xff]
        %v3772 = vld [vmem:[#allocation10 + $0x280] sm:$0xff]
        %v3773 = vld [vmem:[#allocation10 + $0x288] sm:$0xff]
        %v3774 = vld [vmem:[#allocation10 + $0x290] sm:$0xff]
        %v3775 = vld [vmem:[#allocation10 + $0x298] sm:$0xff]
        %v3776 = vld [vmem:[#allocation10 + $0x2a0] sm:$0xff]
        %v3777 = vld [vmem:[#allocation10 + $0x2a8] sm:$0xff]
        %v3778 = vld [vmem:[#allocation10 + $0x2b0] sm:$0xff]
        %v3779 = vld [vmem:[#allocation10 + $0x2b8] sm:$0xff]
        %v3780 = vld [vmem:[#allocation10 + $0x2c0] sm:$0xff]
        %v3781 = vld [vmem:[#allocation10 + $0x2c8] sm:$0xff]
        %v3782 = vld [vmem:[#allocation10 + $0x2d0] sm:$0xff]
        %v3783 = vld [vmem:[#allocation10 + $0x2d8] sm:$0xff]
        %v3784 = vld [vmem:[#allocation10 + $0x2e0] sm:$0xff]
        %v3785 = vld [vmem:[#allocation10 + $0x2e8] sm:$0xff]
        %v3786 = vld [vmem:[#allocation10 + $0x2f0] sm:$0xff]
        %v3787 = vld [vmem:[#allocation10 + $0x2f8] sm:$0xff]
        %v3788 = vld [vmem:[#allocation10 + $0x300] sm:$0xff]
        %v3789 = vld [vmem:[#allocation10 + $0x308] sm:$0xff]
        %v3790 = vld [vmem:[#allocation10 + $0x310] sm:$0xff]
        %v3791 = vld [vmem:[#allocation10 + $0x318] sm:$0xff]
        %v3792 = vld [vmem:[#allocation10 + $0x320] sm:$0xff]
        %v3793 = vld [vmem:[#allocation10 + $0x328] sm:$0xff]
        %v3794 = vld [vmem:[#allocation10 + $0x330] sm:$0xff]
        %v3795 = vld [vmem:[#allocation10 + $0x338] sm:$0xff]
        %v3796 = vld [vmem:[#allocation10 + $0x340] sm:$0xff]
        %v3797 = vld [vmem:[#allocation10 + $0x348] sm:$0xff]
        %v3798 = vld [vmem:[#allocation10 + $0x350] sm:$0xff]
        %v3799 = vld [vmem:[#allocation10 + $0x358] sm:$0xff]
        %v3800 = vld [vmem:[#allocation10 + $0x360] sm:$0xff]
        %v3801 = vld [vmem:[#allocation10 + $0x368] sm:$0xff]
        %v3802 = vld [vmem:[#allocation10 + $0x370] sm:$0xff]
        %v3803 = vld [vmem:[#allocation10 + $0x378] sm:$0xff]
        %v3804 = vld [vmem:[#allocation10 + $0x380] sm:$0xff]
        %v3805 = vld [vmem:[#allocation10 + $0x388] sm:$0xff]
        %v3806 = vld [vmem:[#allocation10 + $0x390] sm:$0xff]
        %v3807 = vld [vmem:[#allocation10 + $0x398] sm:$0xff]
        %v3808 = vld [vmem:[#allocation10 + $0x3a0] sm:$0xff]
        %v3809 = vld [vmem:[#allocation10 + $0x3a8] sm:$0xff]
        %v3810 = vld [vmem:[#allocation10 + $0x3b0] sm:$0xff]
        %v3811 = vld [vmem:[#allocation10 + $0x3b8] sm:$0xff]
        %v3812 = vld [vmem:[#allocation10 + $0x3c0] sm:$0xff]
        %v3813 = vld [vmem:[#allocation10 + $0x3c8] sm:$0xff]
        %v3814 = vld [vmem:[#allocation10 + $0x3d0] sm:$0xff]
        %v3815 = vld [vmem:[#allocation10 + $0x3d8] sm:$0xff]
        %v3816 = vld [vmem:[#allocation10 + $0x3e0] sm:$0xff]
        %v3817 = vld [vmem:[#allocation10 + $0x3e8] sm:$0xff]
        %v3818 = vld [vmem:[#allocation10 + $0x3f0] sm:$0xff]
        %v3819 = vld [vmem:[#allocation10 + $0x3f8] sm:$0xff]
        %v3820 = vld [vmem:[#allocation3 + $0x20] sm:$0x11]
        %v3821 = vld [vmem:[#allocation3 + $0x28] sm:$0x11]
        %s3822 = scalar_lea.vmem [#allocation10], 1024
        %v3823 = vld [vmem:[%s3822] sm:$0xff]
        %v3824 = vld [vmem:[%s3822 + $0x8] sm:$0xff]
        %v3825 = vld [vmem:[%s3822 + $0x10] sm:$0xff]
        %v3826 = vld [vmem:[%s3822 + $0x18] sm:$0xff]
        %v3827 = vld [vmem:[%s3822 + $0x20] sm:$0xff]
        %v3828 = vld [vmem:[%s3822 + $0x28] sm:$0xff]
        %v3829 = vld [vmem:[%s3822 + $0x30] sm:$0xff]
        %v3830 = vld [vmem:[%s3822 + $0x38] sm:$0xff]
        %v3831 = vld [vmem:[%s3822 + $0x40] sm:$0xff]
        %v3832 = vld [vmem:[%s3822 + $0x48] sm:$0xff]
        %v3833 = vld [vmem:[%s3822 + $0x50] sm:$0xff]
        %v3834 = vld [vmem:[%s3822 + $0x58] sm:$0xff]
        %v3835 = vld [vmem:[%s3822 + $0x60] sm:$0xff]
        %v3836 = vld [vmem:[%s3822 + $0x68] sm:$0xff]
        %v3837 = vld [vmem:[%s3822 + $0x70] sm:$0xff]
        %v3838 = vld [vmem:[%s3822 + $0x78] sm:$0xff]
        %v3839 = vld [vmem:[%s3822 + $0x80] sm:$0xff]
        %v3840 = vld [vmem:[%s3822 + $0x88] sm:$0xff]
        %v3841 = vld [vmem:[%s3822 + $0x90] sm:$0xff]
        %v3842 = vld [vmem:[%s3822 + $0x98] sm:$0xff]
        %v3843 = vld [vmem:[%s3822 + $0xa0] sm:$0xff]
        %v3844 = vld [vmem:[%s3822 + $0xa8] sm:$0xff]
        %v3845 = vld [vmem:[%s3822 + $0xb0] sm:$0xff]
        %v3846 = vld [vmem:[%s3822 + $0xb8] sm:$0xff]
        %v3847 = vld [vmem:[%s3822 + $0xc0] sm:$0xff]
        %v3848 = vld [vmem:[%s3822 + $0xc8] sm:$0xff]
        %v3849 = vld [vmem:[%s3822 + $0xd0] sm:$0xff]
        %v3850 = vld [vmem:[%s3822 + $0xd8] sm:$0xff]
        %v3851 = vld [vmem:[%s3822 + $0xe0] sm:$0xff]
        %v3852 = vld [vmem:[%s3822 + $0xe8] sm:$0xff]
        %v3853 = vld [vmem:[%s3822 + $0xf0] sm:$0xff]
        %v3854 = vld [vmem:[%s3822 + $0xf8] sm:$0xff]
        %v3855 = vld [vmem:[%s3822 + $0x100] sm:$0xff]
        %v3856 = vld [vmem:[%s3822 + $0x108] sm:$0xff]
        %v3857 = vld [vmem:[%s3822 + $0x110] sm:$0xff]
        %v3858 = vld [vmem:[%s3822 + $0x118] sm:$0xff]
        %v3859 = vld [vmem:[%s3822 + $0x120] sm:$0xff]
        %v3860 = vld [vmem:[%s3822 + $0x128] sm:$0xff]
        %v3861 = vld [vmem:[%s3822 + $0x130] sm:$0xff]
        %v3862 = vld [vmem:[%s3822 + $0x138] sm:$0xff]
        %v3863 = vld [vmem:[%s3822 + $0x140] sm:$0xff]
        %v3864 = vld [vmem:[%s3822 + $0x148] sm:$0xff]
        %v3865 = vld [vmem:[%s3822 + $0x150] sm:$0xff]
        %v3866 = vld [vmem:[%s3822 + $0x158] sm:$0xff]
        %v3867 = vld [vmem:[%s3822 + $0x160] sm:$0xff]
        %v3868 = vld [vmem:[%s3822 + $0x168] sm:$0xff]
        %v3869 = vld [vmem:[%s3822 + $0x170] sm:$0xff]
        %v3870 = vld [vmem:[%s3822 + $0x178] sm:$0xff]
        %v3871 = vld [vmem:[%s3822 + $0x180] sm:$0xff]
        %v3872 = vld [vmem:[%s3822 + $0x188] sm:$0xff]
        %v3873 = vld [vmem:[%s3822 + $0x190] sm:$0xff]
        %v3874 = vld [vmem:[%s3822 + $0x198] sm:$0xff]
        %v3875 = vld [vmem:[%s3822 + $0x1a0] sm:$0xff]
        %v3876 = vld [vmem:[%s3822 + $0x1a8] sm:$0xff]
        %v3877 = vld [vmem:[%s3822 + $0x1b0] sm:$0xff]
        %v3878 = vld [vmem:[%s3822 + $0x1b8] sm:$0xff]
        %v3879 = vld [vmem:[%s3822 + $0x1c0] sm:$0xff]
        %v3880 = vld [vmem:[%s3822 + $0x1c8] sm:$0xff]
        %v3881 = vld [vmem:[%s3822 + $0x1d0] sm:$0xff]
        %v3882 = vld [vmem:[%s3822 + $0x1d8] sm:$0xff]
        %v3883 = vld [vmem:[%s3822 + $0x1e0] sm:$0xff]
        %v3884 = vld [vmem:[%s3822 + $0x1e8] sm:$0xff]
        %v3885 = vld [vmem:[%s3822 + $0x1f0] sm:$0xff]
        %v3886 = vld [vmem:[%s3822 + $0x1f8] sm:$0xff]
        %v3887 = vld [vmem:[%s3822 + $0x200] sm:$0xff]
        %v3888 = vld [vmem:[%s3822 + $0x208] sm:$0xff]
        %v3889 = vld [vmem:[%s3822 + $0x210] sm:$0xff]
        %v3890 = vld [vmem:[%s3822 + $0x218] sm:$0xff]
        %v3891 = vld [vmem:[%s3822 + $0x220] sm:$0xff]
        %v3892 = vld [vmem:[%s3822 + $0x228] sm:$0xff]
        %v3893 = vld [vmem:[%s3822 + $0x230] sm:$0xff]
        %v3894 = vld [vmem:[%s3822 + $0x238] sm:$0xff]
        %v3895 = vld [vmem:[%s3822 + $0x240] sm:$0xff]
        %v3896 = vld [vmem:[%s3822 + $0x248] sm:$0xff]
        %v3897 = vld [vmem:[%s3822 + $0x250] sm:$0xff]
        %v3898 = vld [vmem:[%s3822 + $0x258] sm:$0xff]
        %v3899 = vld [vmem:[%s3822 + $0x260] sm:$0xff]
        %v3900 = vld [vmem:[%s3822 + $0x268] sm:$0xff]
        %v3901 = vld [vmem:[%s3822 + $0x270] sm:$0xff]
        %v3902 = vld [vmem:[%s3822 + $0x278] sm:$0xff]
        %v3903 = vld [vmem:[%s3822 + $0x280] sm:$0xff]
        %v3904 = vld [vmem:[%s3822 + $0x288] sm:$0xff]
        %v3905 = vld [vmem:[%s3822 + $0x290] sm:$0xff]
        %v3906 = vld [vmem:[%s3822 + $0x298] sm:$0xff]
        %v3907 = vld [vmem:[%s3822 + $0x2a0] sm:$0xff]
        %v3908 = vld [vmem:[%s3822 + $0x2a8] sm:$0xff]
        %v3909 = vld [vmem:[%s3822 + $0x2b0] sm:$0xff]
        %v3910 = vld [vmem:[%s3822 + $0x2b8] sm:$0xff]
        %v3911 = vld [vmem:[%s3822 + $0x2c0] sm:$0xff]
        %v3912 = vld [vmem:[%s3822 + $0x2c8] sm:$0xff]
        %v3913 = vld [vmem:[%s3822 + $0x2d0] sm:$0xff]
        %v3914 = vld [vmem:[%s3822 + $0x2d8] sm:$0xff]
        %v3915 = vld [vmem:[%s3822 + $0x2e0] sm:$0xff]
        %v3916 = vld [vmem:[%s3822 + $0x2e8] sm:$0xff]
        %v3917 = vld [vmem:[%s3822 + $0x2f0] sm:$0xff]
        %v3918 = vld [vmem:[%s3822 + $0x2f8] sm:$0xff]
        %v3919 = vld [vmem:[%s3822 + $0x300] sm:$0xff]
        %v3920 = vld [vmem:[%s3822 + $0x308] sm:$0xff]
        %v3921 = vld [vmem:[%s3822 + $0x310] sm:$0xff]
        %v3922 = vld [vmem:[%s3822 + $0x318] sm:$0xff]
        %v3923 = vld [vmem:[%s3822 + $0x320] sm:$0xff]
        %v3924 = vld [vmem:[%s3822 + $0x328] sm:$0xff]
        %v3925 = vld [vmem:[%s3822 + $0x330] sm:$0xff]
        %v3926 = vld [vmem:[%s3822 + $0x338] sm:$0xff]
        %v3927 = vld [vmem:[%s3822 + $0x340] sm:$0xff]
        %v3928 = vld [vmem:[%s3822 + $0x348] sm:$0xff]
        %v3929 = vld [vmem:[%s3822 + $0x350] sm:$0xff]
        %v3930 = vld [vmem:[%s3822 + $0x358] sm:$0xff]
        %v3931 = vld [vmem:[%s3822 + $0x360] sm:$0xff]
        %v3932 = vld [vmem:[%s3822 + $0x368] sm:$0xff]
        %v3933 = vld [vmem:[%s3822 + $0x370] sm:$0xff]
        %v3934 = vld [vmem:[%s3822 + $0x378] sm:$0xff]
        %v3935 = vld [vmem:[%s3822 + $0x380] sm:$0xff]
        %v3936 = vld [vmem:[%s3822 + $0x388] sm:$0xff]
        %v3937 = vld [vmem:[%s3822 + $0x390] sm:$0xff]
        %v3938 = vld [vmem:[%s3822 + $0x398] sm:$0xff]
        %v3939 = vld [vmem:[%s3822 + $0x3a0] sm:$0xff]
        %v3940 = vld [vmem:[%s3822 + $0x3a8] sm:$0xff]
        %v3941 = vld [vmem:[%s3822 + $0x3b0] sm:$0xff]
        %v3942 = vld [vmem:[%s3822 + $0x3b8] sm:$0xff]
        %v3943 = vld [vmem:[%s3822 + $0x3c0] sm:$0xff]
        %v3944 = vld [vmem:[%s3822 + $0x3c8] sm:$0xff]
        %v3945 = vld [vmem:[%s3822 + $0x3d0] sm:$0xff]
        %v3946 = vld [vmem:[%s3822 + $0x3d8] sm:$0xff]
        %v3947 = vld [vmem:[%s3822 + $0x3e0] sm:$0xff]
        %v3948 = vld [vmem:[%s3822 + $0x3e8] sm:$0xff]
        %v3949 = vld [vmem:[%s3822 + $0x3f0] sm:$0xff]
        %v3950 = vld [vmem:[%s3822 + $0x3f8] sm:$0xff]
        %v3957 = vunpack.c.l.b16 %v3688
        %v3958 = vunpack.c.h.b16 %v3688
        %v3959 = vunpack.c.l.b16 %v3689
        %v3960 = vunpack.c.h.b16 %v3689
        %v3961 = vunpack.c.l.b16 %v3690
        %v3962 = vunpack.c.h.b16 %v3690
        %v3963 = vunpack.c.l.b16 %v3691
        %v3964 = vunpack.c.h.b16 %v3691
        %v3965 = vunpack.c.l.b16 %v3820
        %v3966 = vunpack.c.h.b16 %v3820
        %v3967 = vunpack.c.l.b16 %v3821
        %v3968 = vunpack.c.h.b16 %v3821
        %v3969 = vpack.c.b16 %v3961, %v3957
        %v3970 = vpack.c.b16 %v3962, %v3958
        %v3971 = vpack.c.b16 %v3963, %v3959
        %v3972 = vpack.c.b16 %v3964, %v3960
        %v3973 = vpack.c.b16 %v3965, %v3965
        %v3974 = vpack.c.b16 %v3966, %v3966
        %v3975 = vpack.c.b16 %v3967, %v3967
        %v3976 = vpack.c.b16 %v3968, %v3968
        %v3978 = vshrl.u32 %v3969, 16
        %v3980 = vshll.u32 %v3969, 16
        %v3982 = vrot.slane %v3980, 1
        %v3983 = vor.u32 %v3978, %v3982
        %v3985 = vshll.u32 %v3973, 16
        %v3987 = vrot.slane %v3985, 1
        %v3988 = vsel %vm540, %v3983, %v3987
        %v3990 = vshrl.u32 %v3970, 16
        %v3992 = vshll.u32 %v3970, 16
        %v3994 = vrot.slane %v3992, 1
        %v3995 = vor.u32 %v3990, %v3994
        %v3997 = vshll.u32 %v3974, 16
        %v3999 = vrot.slane %v3997, 1
        %v4000 = vsel %vm540, %v3995, %v3999
        %v4002 = vshrl.u32 %v3971, 16
        %v4004 = vshll.u32 %v3971, 16
        %v4006 = vrot.slane %v4004, 1
        %v4007 = vor.u32 %v4002, %v4006
        %v4009 = vshll.u32 %v3975, 16
        %v4011 = vrot.slane %v4009, 1
        %v4012 = vsel %vm540, %v4007, %v4011
        %v4014 = vshrl.u32 %v3972, 16
        %v4016 = vshll.u32 %v3972, 16
        %v4018 = vrot.slane %v4016, 1
        %v4019 = vor.u32 %v4014, %v4018
        %v4021 = vshll.u32 %v3976, 16
        %v4023 = vrot.slane %v4021, 1
        %v4024 = vsel %vm540, %v4019, %v4023
        %v4157 = vunpack.c.l.b16 %v3823
        %v4158 = vunpack.c.h.b16 %v3823
        %v4159 = vunpack.c.l.b16 %v3824
        %v4160 = vunpack.c.h.b16 %v3824
        %v4161 = vunpack.c.l.b16 %v3825
        %v4162 = vunpack.c.h.b16 %v3825
        %v4163 = vunpack.c.l.b16 %v3826
        %v4164 = vunpack.c.h.b16 %v3826
        %v4165 = vunpack.c.l.b16 %v3827
        %v4166 = vunpack.c.h.b16 %v3827
        %v4167 = vunpack.c.l.b16 %v3828
        %v4168 = vunpack.c.h.b16 %v3828
        %v4169 = vunpack.c.l.b16 %v3829
        %v4170 = vunpack.c.h.b16 %v3829
        %v4171 = vunpack.c.l.b16 %v3830
        %v4172 = vunpack.c.h.b16 %v3830
        %v4173 = vunpack.c.l.b16 %v3831
        %v4174 = vunpack.c.h.b16 %v3831
        %v4175 = vunpack.c.l.b16 %v3832
        %v4176 = vunpack.c.h.b16 %v3832
        %v4177 = vunpack.c.l.b16 %v3833
        %v4178 = vunpack.c.h.b16 %v3833
        %v4179 = vunpack.c.l.b16 %v3834
        %v4180 = vunpack.c.h.b16 %v3834
        %v4181 = vunpack.c.l.b16 %v3835
        %v4182 = vunpack.c.h.b16 %v3835
        %v4183 = vunpack.c.l.b16 %v3836
        %v4184 = vunpack.c.h.b16 %v3836
        %v4185 = vunpack.c.l.b16 %v3837
        %v4186 = vunpack.c.h.b16 %v3837
        %v4187 = vunpack.c.l.b16 %v3838
        %v4188 = vunpack.c.h.b16 %v3838
        %v4189 = vunpack.c.l.b16 %v3839
        %v4190 = vunpack.c.h.b16 %v3839
        %v4191 = vunpack.c.l.b16 %v3840
        %v4192 = vunpack.c.h.b16 %v3840
        %v4193 = vunpack.c.l.b16 %v3841
        %v4194 = vunpack.c.h.b16 %v3841
        %v4195 = vunpack.c.l.b16 %v3842
        %v4196 = vunpack.c.h.b16 %v3842
        %v4197 = vunpack.c.l.b16 %v3843
        %v4198 = vunpack.c.h.b16 %v3843
        %v4199 = vunpack.c.l.b16 %v3844
        %v4200 = vunpack.c.h.b16 %v3844
        %v4201 = vunpack.c.l.b16 %v3845
        %v4202 = vunpack.c.h.b16 %v3845
        %v4203 = vunpack.c.l.b16 %v3846
        %v4204 = vunpack.c.h.b16 %v3846
        %v4205 = vunpack.c.l.b16 %v3847
        %v4206 = vunpack.c.h.b16 %v3847
        %v4207 = vunpack.c.l.b16 %v3848
        %v4208 = vunpack.c.h.b16 %v3848
        %v4209 = vunpack.c.l.b16 %v3849
        %v4210 = vunpack.c.h.b16 %v3849
        %v4211 = vunpack.c.l.b16 %v3850
        %v4212 = vunpack.c.h.b16 %v3850
        %v4213 = vunpack.c.l.b16 %v3851
        %v4214 = vunpack.c.h.b16 %v3851
        %v4215 = vunpack.c.l.b16 %v3852
        %v4216 = vunpack.c.h.b16 %v3852
        %v4217 = vunpack.c.l.b16 %v3853
        %v4218 = vunpack.c.h.b16 %v3853
        %v4219 = vunpack.c.l.b16 %v3854
        %v4220 = vunpack.c.h.b16 %v3854
        %v4221 = vunpack.c.l.b16 %v3855
        %v4222 = vunpack.c.h.b16 %v3855
        %v4223 = vunpack.c.l.b16 %v3856
        %v4224 = vunpack.c.h.b16 %v3856
        %v4225 = vunpack.c.l.b16 %v3857
        %v4226 = vunpack.c.h.b16 %v3857
        %v4227 = vunpack.c.l.b16 %v3858
        %v4228 = vunpack.c.h.b16 %v3858
        %v4229 = vunpack.c.l.b16 %v3859
        %v4230 = vunpack.c.h.b16 %v3859
        %v4231 = vunpack.c.l.b16 %v3860
        %v4232 = vunpack.c.h.b16 %v3860
        %v4233 = vunpack.c.l.b16 %v3861
        %v4234 = vunpack.c.h.b16 %v3861
        %v4235 = vunpack.c.l.b16 %v3862
        %v4236 = vunpack.c.h.b16 %v3862
        %v4237 = vunpack.c.l.b16 %v3863
        %v4238 = vunpack.c.h.b16 %v3863
        %v4239 = vunpack.c.l.b16 %v3864
        %v4240 = vunpack.c.h.b16 %v3864
        %v4241 = vunpack.c.l.b16 %v3865
        %v4242 = vunpack.c.h.b16 %v3865
        %v4243 = vunpack.c.l.b16 %v3866
        %v4244 = vunpack.c.h.b16 %v3866
        %v4245 = vunpack.c.l.b16 %v3867
        %v4246 = vunpack.c.h.b16 %v3867
        %v4247 = vunpack.c.l.b16 %v3868
        %v4248 = vunpack.c.h.b16 %v3868
        %v4249 = vunpack.c.l.b16 %v3869
        %v4250 = vunpack.c.h.b16 %v3869
        %v4251 = vunpack.c.l.b16 %v3870
        %v4252 = vunpack.c.h.b16 %v3870
        %v4253 = vunpack.c.l.b16 %v3871
        %v4254 = vunpack.c.h.b16 %v3871
        %v4255 = vunpack.c.l.b16 %v3872
        %v4256 = vunpack.c.h.b16 %v3872
        %v4257 = vunpack.c.l.b16 %v3873
        %v4258 = vunpack.c.h.b16 %v3873
        %v4259 = vunpack.c.l.b16 %v3874
        %v4260 = vunpack.c.h.b16 %v3874
        %v4261 = vunpack.c.l.b16 %v3875
        %v4262 = vunpack.c.h.b16 %v3875
        %v4263 = vunpack.c.l.b16 %v3876
        %v4264 = vunpack.c.h.b16 %v3876
        %v4265 = vunpack.c.l.b16 %v3877
        %v4266 = vunpack.c.h.b16 %v3877
        %v4267 = vunpack.c.l.b16 %v3878
        %v4268 = vunpack.c.h.b16 %v3878
        %v4269 = vunpack.c.l.b16 %v3879
        %v4270 = vunpack.c.h.b16 %v3879
        %v4271 = vunpack.c.l.b16 %v3880
        %v4272 = vunpack.c.h.b16 %v3880
        %v4273 = vunpack.c.l.b16 %v3881
        %v4274 = vunpack.c.h.b16 %v3881
        %v4275 = vunpack.c.l.b16 %v3882
        %v4276 = vunpack.c.h.b16 %v3882
        %v4277 = vunpack.c.l.b16 %v3883
        %v4278 = vunpack.c.h.b16 %v3883
        %v4279 = vunpack.c.l.b16 %v3884
        %v4280 = vunpack.c.h.b16 %v3884
        %v4281 = vunpack.c.l.b16 %v3885
        %v4282 = vunpack.c.h.b16 %v3885
        %v4283 = vunpack.c.l.b16 %v3886
        %v4284 = vunpack.c.h.b16 %v3886
        %v4285 = vunpack.c.l.b16 %v3887
        %v4286 = vunpack.c.h.b16 %v3887
        %v4287 = vunpack.c.l.b16 %v3888
        %v4288 = vunpack.c.h.b16 %v3888
        %v4289 = vunpack.c.l.b16 %v3889
        %v4290 = vunpack.c.h.b16 %v3889
        %v4291 = vunpack.c.l.b16 %v3890
        %v4292 = vunpack.c.h.b16 %v3890
        %v4293 = vunpack.c.l.b16 %v3891
        %v4294 = vunpack.c.h.b16 %v3891
        %v4295 = vunpack.c.l.b16 %v3892
        %v4296 = vunpack.c.h.b16 %v3892
        %v4297 = vunpack.c.l.b16 %v3893
        %v4298 = vunpack.c.h.b16 %v3893
        %v4299 = vunpack.c.l.b16 %v3894
        %v4300 = vunpack.c.h.b16 %v3894
        %v4301 = vunpack.c.l.b16 %v3895
        %v4302 = vunpack.c.h.b16 %v3895
        %v4303 = vunpack.c.l.b16 %v3896
        %v4304 = vunpack.c.h.b16 %v3896
        %v4305 = vunpack.c.l.b16 %v3897
        %v4306 = vunpack.c.h.b16 %v3897
        %v4307 = vunpack.c.l.b16 %v3898
        %v4308 = vunpack.c.h.b16 %v3898
        %v4309 = vunpack.c.l.b16 %v3899
        %v4310 = vunpack.c.h.b16 %v3899
        %v4311 = vunpack.c.l.b16 %v3900
        %v4312 = vunpack.c.h.b16 %v3900
        %v4313 = vunpack.c.l.b16 %v3901
        %v4314 = vunpack.c.h.b16 %v3901
        %v4315 = vunpack.c.l.b16 %v3902
        %v4316 = vunpack.c.h.b16 %v3902
        %v4317 = vunpack.c.l.b16 %v3903
        %v4318 = vunpack.c.h.b16 %v3903
        %v4319 = vunpack.c.l.b16 %v3904
        %v4320 = vunpack.c.h.b16 %v3904
        %v4321 = vunpack.c.l.b16 %v3905
        %v4322 = vunpack.c.h.b16 %v3905
        %v4323 = vunpack.c.l.b16 %v3906
        %v4324 = vunpack.c.h.b16 %v3906
        %v4325 = vunpack.c.l.b16 %v3907
        %v4326 = vunpack.c.h.b16 %v3907
        %v4327 = vunpack.c.l.b16 %v3908
        %v4328 = vunpack.c.h.b16 %v3908
        %v4329 = vunpack.c.l.b16 %v3909
        %v4330 = vunpack.c.h.b16 %v3909
        %v4331 = vunpack.c.l.b16 %v3910
        %v4332 = vunpack.c.h.b16 %v3910
        %v4333 = vunpack.c.l.b16 %v3911
        %v4334 = vunpack.c.h.b16 %v3911
        %v4335 = vunpack.c.l.b16 %v3912
        %v4336 = vunpack.c.h.b16 %v3912
        %v4337 = vunpack.c.l.b16 %v3913
        %v4338 = vunpack.c.h.b16 %v3913
        %v4339 = vunpack.c.l.b16 %v3914
        %v4340 = vunpack.c.h.b16 %v3914
        %v4341 = vunpack.c.l.b16 %v3915
        %v4342 = vunpack.c.h.b16 %v3915
        %v4343 = vunpack.c.l.b16 %v3916
        %v4344 = vunpack.c.h.b16 %v3916
        %v4345 = vunpack.c.l.b16 %v3917
        %v4346 = vunpack.c.h.b16 %v3917
        %v4347 = vunpack.c.l.b16 %v3918
        %v4348 = vunpack.c.h.b16 %v3918
        %v4349 = vunpack.c.l.b16 %v3919
        %v4350 = vunpack.c.h.b16 %v3919
        %v4351 = vunpack.c.l.b16 %v3920
        %v4352 = vunpack.c.h.b16 %v3920
        %v4353 = vunpack.c.l.b16 %v3921
        %v4354 = vunpack.c.h.b16 %v3921
        %v4355 = vunpack.c.l.b16 %v3922
        %v4356 = vunpack.c.h.b16 %v3922
        %v4357 = vunpack.c.l.b16 %v3923
        %v4358 = vunpack.c.h.b16 %v3923
        %v4359 = vunpack.c.l.b16 %v3924
        %v4360 = vunpack.c.h.b16 %v3924
        %v4361 = vunpack.c.l.b16 %v3925
        %v4362 = vunpack.c.h.b16 %v3925
        %v4363 = vunpack.c.l.b16 %v3926
        %v4364 = vunpack.c.h.b16 %v3926
        %v4365 = vunpack.c.l.b16 %v3927
        %v4366 = vunpack.c.h.b16 %v3927
        %v4367 = vunpack.c.l.b16 %v3928
        %v4368 = vunpack.c.h.b16 %v3928
        %v4369 = vunpack.c.l.b16 %v3929
        %v4370 = vunpack.c.h.b16 %v3929
        %v4371 = vunpack.c.l.b16 %v3930
        %v4372 = vunpack.c.h.b16 %v3930
        %v4373 = vunpack.c.l.b16 %v3931
        %v4374 = vunpack.c.h.b16 %v3931
        %v4375 = vunpack.c.l.b16 %v3932
        %v4376 = vunpack.c.h.b16 %v3932
        %v4377 = vunpack.c.l.b16 %v3933
        %v4378 = vunpack.c.h.b16 %v3933
        %v4379 = vunpack.c.l.b16 %v3934
        %v4380 = vunpack.c.h.b16 %v3934
        %v4381 = vunpack.c.l.b16 %v3935
        %v4382 = vunpack.c.h.b16 %v3935
        %v4383 = vunpack.c.l.b16 %v3936
        %v4384 = vunpack.c.h.b16 %v3936
        %v4385 = vunpack.c.l.b16 %v3937
        %v4386 = vunpack.c.h.b16 %v3937
        %v4387 = vunpack.c.l.b16 %v3938
        %v4388 = vunpack.c.h.b16 %v3938
        %v4389 = vunpack.c.l.b16 %v3939
        %v4390 = vunpack.c.h.b16 %v3939
        %v4391 = vunpack.c.l.b16 %v3940
        %v4392 = vunpack.c.h.b16 %v3940
        %v4393 = vunpack.c.l.b16 %v3941
        %v4394 = vunpack.c.h.b16 %v3941
        %v4395 = vunpack.c.l.b16 %v3942
        %v4396 = vunpack.c.h.b16 %v3942
        %v4397 = vunpack.c.l.b16 %v3943
        %v4398 = vunpack.c.h.b16 %v3943
        %v4399 = vunpack.c.l.b16 %v3944
        %v4400 = vunpack.c.h.b16 %v3944
        %v4401 = vunpack.c.l.b16 %v3945
        %v4402 = vunpack.c.h.b16 %v3945
        %v4403 = vunpack.c.l.b16 %v3946
        %v4404 = vunpack.c.h.b16 %v3946
        %v4405 = vunpack.c.l.b16 %v3947
        %v4406 = vunpack.c.h.b16 %v3947
        %v4407 = vunpack.c.l.b16 %v3948
        %v4408 = vunpack.c.h.b16 %v3948
        %v4409 = vunpack.c.l.b16 %v3949
        %v4410 = vunpack.c.h.b16 %v3949
        %v4411 = vunpack.c.l.b16 %v3950
        %v4412 = vunpack.c.h.b16 %v3950
        %v4413 = vpack.c.b16 %v4161, %v4157
        %v4414 = vpack.c.b16 %v4162, %v4158
        %v4415 = vpack.c.b16 %v4163, %v4159
        %v4416 = vpack.c.b16 %v4164, %v4160
        %v4417 = vpack.c.b16 %v4169, %v4165
        %v4418 = vpack.c.b16 %v4170, %v4166
        %v4419 = vpack.c.b16 %v4171, %v4167
        %v4420 = vpack.c.b16 %v4172, %v4168
        %v4421 = vpack.c.b16 %v4177, %v4173
        %v4422 = vpack.c.b16 %v4178, %v4174
        %v4423 = vpack.c.b16 %v4179, %v4175
        %v4424 = vpack.c.b16 %v4180, %v4176
        %v4425 = vpack.c.b16 %v4185, %v4181
        %v4426 = vpack.c.b16 %v4186, %v4182
        %v4427 = vpack.c.b16 %v4187, %v4183
        %v4428 = vpack.c.b16 %v4188, %v4184
        %v4429 = vpack.c.b16 %v4193, %v4189
        %v4430 = vpack.c.b16 %v4194, %v4190
        %v4431 = vpack.c.b16 %v4195, %v4191
        %v4432 = vpack.c.b16 %v4196, %v4192
        %v4433 = vpack.c.b16 %v4201, %v4197
        %v4434 = vpack.c.b16 %v4202, %v4198
        %v4435 = vpack.c.b16 %v4203, %v4199
        %v4436 = vpack.c.b16 %v4204, %v4200
        %v4437 = vpack.c.b16 %v4209, %v4205
        %v4438 = vpack.c.b16 %v4210, %v4206
        %v4439 = vpack.c.b16 %v4211, %v4207
        %v4440 = vpack.c.b16 %v4212, %v4208
        %v4441 = vpack.c.b16 %v4217, %v4213
        %v4442 = vpack.c.b16 %v4218, %v4214
        %v4443 = vpack.c.b16 %v4219, %v4215
        %v4444 = vpack.c.b16 %v4220, %v4216
        %v4445 = vpack.c.b16 %v4225, %v4221
        %v4446 = vpack.c.b16 %v4226, %v4222
        %v4447 = vpack.c.b16 %v4227, %v4223
        %v4448 = vpack.c.b16 %v4228, %v4224
        %v4449 = vpack.c.b16 %v4233, %v4229
        %v4450 = vpack.c.b16 %v4234, %v4230
        %v4451 = vpack.c.b16 %v4235, %v4231
        %v4452 = vpack.c.b16 %v4236, %v4232
        %v4453 = vpack.c.b16 %v4241, %v4237
        %v4454 = vpack.c.b16 %v4242, %v4238
        %v4455 = vpack.c.b16 %v4243, %v4239
        %v4456 = vpack.c.b16 %v4244, %v4240
        %v4457 = vpack.c.b16 %v4249, %v4245
        %v4458 = vpack.c.b16 %v4250, %v4246
        %v4459 = vpack.c.b16 %v4251, %v4247
        %v4460 = vpack.c.b16 %v4252, %v4248
        %v4461 = vpack.c.b16 %v4257, %v4253
        %v4462 = vpack.c.b16 %v4258, %v4254
        %v4463 = vpack.c.b16 %v4259, %v4255
        %v4464 = vpack.c.b16 %v4260, %v4256
        %v4465 = vpack.c.b16 %v4265, %v4261
        %v4466 = vpack.c.b16 %v4266, %v4262
        %v4467 = vpack.c.b16 %v4267, %v4263
        %v4468 = vpack.c.b16 %v4268, %v4264
        %v4469 = vpack.c.b16 %v4273, %v4269
        %v4470 = vpack.c.b16 %v4274, %v4270
        %v4471 = vpack.c.b16 %v4275, %v4271
        %v4472 = vpack.c.b16 %v4276, %v4272
        %v4473 = vpack.c.b16 %v4281, %v4277
        %v4474 = vpack.c.b16 %v4282, %v4278
        %v4475 = vpack.c.b16 %v4283, %v4279
        %v4476 = vpack.c.b16 %v4284, %v4280
        %v4477 = vpack.c.b16 %v4289, %v4285
        %v4478 = vpack.c.b16 %v4290, %v4286
        %v4479 = vpack.c.b16 %v4291, %v4287
        %v4480 = vpack.c.b16 %v4292, %v4288
        %v4481 = vpack.c.b16 %v4297, %v4293
        %v4482 = vpack.c.b16 %v4298, %v4294
        %v4483 = vpack.c.b16 %v4299, %v4295
        %v4484 = vpack.c.b16 %v4300, %v4296
        %v4485 = vpack.c.b16 %v4305, %v4301
        %v4486 = vpack.c.b16 %v4306, %v4302
        %v4487 = vpack.c.b16 %v4307, %v4303
        %v4488 = vpack.c.b16 %v4308, %v4304
        %v4489 = vpack.c.b16 %v4313, %v4309
        %v4490 = vpack.c.b16 %v4314, %v4310
        %v4491 = vpack.c.b16 %v4315, %v4311
        %v4492 = vpack.c.b16 %v4316, %v4312
        %v4493 = vpack.c.b16 %v4321, %v4317
        %v4494 = vpack.c.b16 %v4322, %v4318
        %v4495 = vpack.c.b16 %v4323, %v4319
        %v4496 = vpack.c.b16 %v4324, %v4320
        %v4497 = vpack.c.b16 %v4329, %v4325
        %v4498 = vpack.c.b16 %v4330, %v4326
        %v4499 = vpack.c.b16 %v4331, %v4327
        %v4500 = vpack.c.b16 %v4332, %v4328
        %v4501 = vpack.c.b16 %v4337, %v4333
        %v4502 = vpack.c.b16 %v4338, %v4334
        %v4503 = vpack.c.b16 %v4339, %v4335
        %v4504 = vpack.c.b16 %v4340, %v4336
        %v4505 = vpack.c.b16 %v4345, %v4341
        %v4506 = vpack.c.b16 %v4346, %v4342
        %v4507 = vpack.c.b16 %v4347, %v4343
        %v4508 = vpack.c.b16 %v4348, %v4344
        %v4509 = vpack.c.b16 %v4353, %v4349
        %v4510 = vpack.c.b16 %v4354, %v4350
        %v4511 = vpack.c.b16 %v4355, %v4351
        %v4512 = vpack.c.b16 %v4356, %v4352
        %v4513 = vpack.c.b16 %v4361, %v4357
        %v4514 = vpack.c.b16 %v4362, %v4358
        %v4515 = vpack.c.b16 %v4363, %v4359
        %v4516 = vpack.c.b16 %v4364, %v4360
        %v4517 = vpack.c.b16 %v4369, %v4365
        %v4518 = vpack.c.b16 %v4370, %v4366
        %v4519 = vpack.c.b16 %v4371, %v4367
        %v4520 = vpack.c.b16 %v4372, %v4368
        %v4521 = vpack.c.b16 %v4377, %v4373
        %v4522 = vpack.c.b16 %v4378, %v4374
        %v4523 = vpack.c.b16 %v4379, %v4375
        %v4524 = vpack.c.b16 %v4380, %v4376
        %v4525 = vpack.c.b16 %v4385, %v4381
        %v4526 = vpack.c.b16 %v4386, %v4382
        %v4527 = vpack.c.b16 %v4387, %v4383
        %v4528 = vpack.c.b16 %v4388, %v4384
        %v4529 = vpack.c.b16 %v4393, %v4389
        %v4530 = vpack.c.b16 %v4394, %v4390
        %v4531 = vpack.c.b16 %v4395, %v4391
        %v4532 = vpack.c.b16 %v4396, %v4392
        %v4533 = vpack.c.b16 %v4401, %v4397
        %v4534 = vpack.c.b16 %v4402, %v4398
        %v4535 = vpack.c.b16 %v4403, %v4399
        %v4536 = vpack.c.b16 %v4404, %v4400
        %v4537 = vpack.c.b16 %v4409, %v4405
        %v4538 = vpack.c.b16 %v4410, %v4406
        %v4539 = vpack.c.b16 %v4411, %v4407
        %v4540 = vpack.c.b16 %v4412, %v4408
        %4669 = vmatprep.subr.bf16.mxu0 %v4414
        %4670 = vmatpush1.bf16.msra.mxu0 %v4413
        %4671 = vmatprep.subr.bf16.mxu0 %v4418
        %4672 = vmatpush1.bf16.msra.mxu0 %v4417
        %4673 = vmatprep.subr.bf16.mxu0 %v4422
        %4674 = vmatpush1.bf16.msra.mxu0 %v4421
        %4675 = vmatprep.subr.bf16.mxu0 %v4426
        %4676 = vmatpush1.bf16.msra.mxu0 %v4425
        %4677 = vmatprep.subr.bf16.mxu0 %v4430
        %4678 = vmatpush1.bf16.msra.mxu0 %v4429
        %4679 = vmatprep.subr.bf16.mxu0 %v4434
        %4680 = vmatpush1.bf16.msra.mxu0 %v4433
        %4681 = vmatprep.subr.bf16.mxu0 %v4438
        %4682 = vmatpush1.bf16.msra.mxu0 %v4437
        %4683 = vmatprep.subr.bf16.mxu0 %v4442
        %4684 = vmatpush1.bf16.msra.mxu0 %v4441
        %4685 = vmatprep.subr.bf16.mxu0 %v4446
        %4686 = vmatpush1.bf16.msra.mxu0 %v4445
        %4687 = vmatprep.subr.bf16.mxu0 %v4450
        %4688 = vmatpush1.bf16.msra.mxu0 %v4449
        %4689 = vmatprep.subr.bf16.mxu0 %v4454
        %4690 = vmatpush1.bf16.msra.mxu0 %v4453
        %4691 = vmatprep.subr.bf16.mxu0 %v4458
        %4692 = vmatpush1.bf16.msra.mxu0 %v4457
        %4693 = vmatprep.subr.bf16.mxu0 %v4462
        %4694 = vmatpush1.bf16.msra.mxu0 %v4461
        %4695 = vmatprep.subr.bf16.mxu0 %v4466
        %4696 = vmatpush1.bf16.msra.mxu0 %v4465
        %4697 = vmatprep.subr.bf16.mxu0 %v4470
        %4698 = vmatpush1.bf16.msra.mxu0 %v4469
        %4699 = vmatprep.subr.bf16.mxu0 %v4474
        %4700 = vmatpush1.bf16.msra.mxu0 %v4473
        %4701 = vmatprep.mubr.bf16.mxu0 %v4000
        %4702 = vmatmul.mubr.bf16.gmra.mrb[0].mxu0 %v3988
        %v4703 = vpop.f32.mrb[0].mxu0
        %v4704 = vadd.f32 0.0, %v4703
        %v4705 = vpop.f32.mrb[0].mxu0
        %v4706 = vadd.f32 0.0, %v4705
        %v4707 = vpop.f32.mrb[0].mxu0
        %v4708 = vadd.f32 0.0, %v4707
        %v4709 = vpop.f32.mrb[0].mxu0
        %v4710 = vadd.f32 0.0, %v4709
        %4711 = vdwg.mxu0
        %4712 = vmatprep.subr.bf16.mxu0 %v4478
        %4713 = vmatpush1.bf16.msra.mxu0 %v4477
        %4714 = vmatprep.subr.bf16.mxu0 %v4482
        %4715 = vmatpush1.bf16.msra.mxu0 %v4481
        %4716 = vmatprep.subr.bf16.mxu0 %v4486
        %4717 = vmatpush1.bf16.msra.mxu0 %v4485
        %4718 = vmatprep.subr.bf16.mxu0 %v4490
        %4719 = vmatpush1.bf16.msra.mxu0 %v4489
        %4720 = vmatprep.subr.bf16.mxu0 %v4494
        %4721 = vmatpush1.bf16.msra.mxu0 %v4493
        %4722 = vmatprep.subr.bf16.mxu0 %v4498
        %4723 = vmatpush1.bf16.msra.mxu0 %v4497
        %4724 = vmatprep.subr.bf16.mxu0 %v4502
        %4725 = vmatpush1.bf16.msra.mxu0 %v4501
        %4726 = vmatprep.subr.bf16.mxu0 %v4506
        %4727 = vmatpush1.bf16.msra.mxu0 %v4505
        %4728 = vmatprep.subr.bf16.mxu0 %v4510
        %4729 = vmatpush1.bf16.msra.mxu0 %v4509
        %4730 = vmatprep.subr.bf16.mxu0 %v4514
        %4731 = vmatpush1.bf16.msra.mxu0 %v4513
        %4732 = vmatprep.subr.bf16.mxu0 %v4518
        %4733 = vmatpush1.bf16.msra.mxu0 %v4517
        %4734 = vmatprep.subr.bf16.mxu0 %v4522
        %4735 = vmatpush1.bf16.msra.mxu0 %v4521
        %4736 = vmatprep.subr.bf16.mxu0 %v4526
        %4737 = vmatpush1.bf16.msra.mxu0 %v4525
        %4738 = vmatprep.subr.bf16.mxu0 %v4530
        %4739 = vmatpush1.bf16.msra.mxu0 %v4529
        %4740 = vmatprep.subr.bf16.mxu0 %v4534
        %4741 = vmatpush1.bf16.msra.mxu0 %v4533
        %4742 = vmatprep.subr.bf16.mxu0 %v4538
        %4743 = vmatpush1.bf16.msra.mxu0 %v4537
        %4744 = vmatprep.mubr.bf16.mxu0 %v4024
        %4745 = vmatmul.mubr.bf16.gmra.mrb[0].mxu0 %v4012
        %v4746 = vpop.f32.mrb[0].mxu0
        %v4747 = vadd.f32 %v4704, %v4746
        %v4748 = vpop.f32.mrb[0].mxu0
        %v4749 = vadd.f32 %v4706, %v4748
        %v4750 = vpop.f32.mrb[0].mxu0
        %v4751 = vadd.f32 %v4708, %v4750
        %v4752 = vpop.f32.mrb[0].mxu0
        %v4753 = vadd.f32 %v4710, %v4752
        %4754 = vdwg.mxu0
        %4755 = vmatprep.subr.bf16.mxu0 %v4416
        %4756 = vmatpush1.bf16.msra.mxu0 %v4415
        %4757 = vmatprep.subr.bf16.mxu0 %v4420
        %4758 = vmatpush1.bf16.msra.mxu0 %v4419
        %4759 = vmatprep.subr.bf16.mxu0 %v4424
        %4760 = vmatpush1.bf16.msra.mxu0 %v4423
        %4761 = vmatprep.subr.bf16.mxu0 %v4428
        %4762 = vmatpush1.bf16.msra.mxu0 %v4427
        %4763 = vmatprep.subr.bf16.mxu0 %v4432
        %4764 = vmatpush1.bf16.msra.mxu0 %v4431
        %4765 = vmatprep.subr.bf16.mxu0 %v4436
        %4766 = vmatpush1.bf16.msra.mxu0 %v4435
        %4767 = vmatprep.subr.bf16.mxu0 %v4440
        %4768 = vmatpush1.bf16.msra.mxu0 %v4439
        %4769 = vmatprep.subr.bf16.mxu0 %v4444
        %4770 = vmatpush1.bf16.msra.mxu0 %v4443
        %4771 = vmatprep.subr.bf16.mxu0 %v4448
        %4772 = vmatpush1.bf16.msra.mxu0 %v4447
        %4773 = vmatprep.subr.bf16.mxu0 %v4452
        %4774 = vmatpush1.bf16.msra.mxu0 %v4451
        %4775 = vmatprep.subr.bf16.mxu0 %v4456
        %4776 = vmatpush1.bf16.msra.mxu0 %v4455
        %4777 = vmatprep.subr.bf16.mxu0 %v4460
        %4778 = vmatpush1.bf16.msra.mxu0 %v4459
        %4779 = vmatprep.subr.bf16.mxu0 %v4464
        %4780 = vmatpush1.bf16.msra.mxu0 %v4463
        %4781 = vmatprep.subr.bf16.mxu0 %v4468
        %4782 = vmatpush1.bf16.msra.mxu0 %v4467
        %4783 = vmatprep.subr.bf16.mxu0 %v4472
        %4784 = vmatpush1.bf16.msra.mxu0 %v4471
        %4785 = vmatprep.subr.bf16.mxu0 %v4476
        %4786 = vmatpush1.bf16.msra.mxu0 %v4475
        %4787 = vmatprep.mubr.bf16.mxu0 %v4000
        %4788 = vmatmul.mubr.bf16.gmra.mrb[0].mxu0 %v3988
        %v4789 = vpop.f32.mrb[0].mxu0
        %v4790 = vadd.f32 0.0, %v4789
        %v4791 = vpop.f32.mrb[0].mxu0
        %v4792 = vadd.f32 0.0, %v4791
        %v4793 = vpop.f32.mrb[0].mxu0
        %v4794 = vadd.f32 0.0, %v4793
        %v4795 = vpop.f32.mrb[0].mxu0
        %v4796 = vadd.f32 0.0, %v4795
        %4797 = vdwg.mxu0
        %4798 = vmatprep.subr.bf16.mxu0 %v4480
        %4799 = vmatpush1.bf16.msra.mxu0 %v4479
        %4800 = vmatprep.subr.bf16.mxu0 %v4484
        %4801 = vmatpush1.bf16.msra.mxu0 %v4483
        %4802 = vmatprep.subr.bf16.mxu0 %v4488
        %4803 = vmatpush1.bf16.msra.mxu0 %v4487
        %4804 = vmatprep.subr.bf16.mxu0 %v4492
        %4805 = vmatpush1.bf16.msra.mxu0 %v4491
        %4806 = vmatprep.subr.bf16.mxu0 %v4496
        %4807 = vmatpush1.bf16.msra.mxu0 %v4495
        %4808 = vmatprep.subr.bf16.mxu0 %v4500
        %4809 = vmatpush1.bf16.msra.mxu0 %v4499
        %4810 = vmatprep.subr.bf16.mxu0 %v4504
        %4811 = vmatpush1.bf16.msra.mxu0 %v4503
        %4812 = vmatprep.subr.bf16.mxu0 %v4508
        %4813 = vmatpush1.bf16.msra.mxu0 %v4507
        %4814 = vmatprep.subr.bf16.mxu0 %v4512
        %4815 = vmatpush1.bf16.msra.mxu0 %v4511
        %4816 = vmatprep.subr.bf16.mxu0 %v4516
        %4817 = vmatpush1.bf16.msra.mxu0 %v4515
        %4818 = vmatprep.subr.bf16.mxu0 %v4520
        %4819 = vmatpush1.bf16.msra.mxu0 %v4519
        %4820 = vmatprep.subr.bf16.mxu0 %v4524
        %4821 = vmatpush1.bf16.msra.mxu0 %v4523
        %4822 = vmatprep.subr.bf16.mxu0 %v4528
        %4823 = vmatpush1.bf16.msra.mxu0 %v4527
        %4824 = vmatprep.subr.bf16.mxu0 %v4532
        %4825 = vmatpush1.bf16.msra.mxu0 %v4531
        %4826 = vmatprep.subr.bf16.mxu0 %v4536
        %4827 = vmatpush1.bf16.msra.mxu0 %v4535
        %4828 = vmatprep.subr.bf16.mxu0 %v4540
        %4829 = vmatpush1.bf16.msra.mxu0 %v4539
        %4830 = vmatprep.mubr.bf16.mxu0 %v4024
        %4831 = vmatmul.mubr.bf16.gmra.mrb[0].mxu0 %v4012
        %v4832 = vpop.f32.mrb[0].mxu0
        %v4833 = vadd.f32 %v4790, %v4832
        %v4834 = vpop.f32.mrb[0].mxu0
        %v4835 = vadd.f32 %v4792, %v4834
        %v4836 = vpop.f32.mrb[0].mxu0
        %v4837 = vadd.f32 %v4794, %v4836
        %v4838 = vpop.f32.mrb[0].mxu0
        %v4839 = vadd.f32 %v4796, %v4838
        %4840 = vdwg.mxu0
        %v4973 = vunpack.c.l.b16 %v3692
        %v4974 = vunpack.c.h.b16 %v3692
        %v4975 = vunpack.c.l.b16 %v3693
        %v4976 = vunpack.c.h.b16 %v3693
        %v4977 = vunpack.c.l.b16 %v3694
        %v4978 = vunpack.c.h.b16 %v3694
        %v4979 = vunpack.c.l.b16 %v3695
        %v4980 = vunpack.c.h.b16 %v3695
        %v4981 = vunpack.c.l.b16 %v3696
        %v4982 = vunpack.c.h.b16 %v3696
        %v4983 = vunpack.c.l.b16 %v3697
        %v4984 = vunpack.c.h.b16 %v3697
        %v4985 = vunpack.c.l.b16 %v3698
        %v4986 = vunpack.c.h.b16 %v3698
        %v4987 = vunpack.c.l.b16 %v3699
        %v4988 = vunpack.c.h.b16 %v3699
        %v4989 = vunpack.c.l.b16 %v3700
        %v4990 = vunpack.c.h.b16 %v3700
        %v4991 = vunpack.c.l.b16 %v3701
        %v4992 = vunpack.c.h.b16 %v3701
        %v4993 = vunpack.c.l.b16 %v3702
        %v4994 = vunpack.c.h.b16 %v3702
        %v4995 = vunpack.c.l.b16 %v3703
        %v4996 = vunpack.c.h.b16 %v3703
        %v4997 = vunpack.c.l.b16 %v3704
        %v4998 = vunpack.c.h.b16 %v3704
        %v4999 = vunpack.c.l.b16 %v3705
        %v5000 = vunpack.c.h.b16 %v3705
        %v5001 = vunpack.c.l.b16 %v3706
        %v5002 = vunpack.c.h.b16 %v3706
        %v5003 = vunpack.c.l.b16 %v3707
        %v5004 = vunpack.c.h.b16 %v3707
        %v5005 = vunpack.c.l.b16 %v3708
        %v5006 = vunpack.c.h.b16 %v3708
        %v5007 = vunpack.c.l.b16 %v3709
        %v5008 = vunpack.c.h.b16 %v3709
        %v5009 = vunpack.c.l.b16 %v3710
        %v5010 = vunpack.c.h.b16 %v3710
        %v5011 = vunpack.c.l.b16 %v3711
        %v5012 = vunpack.c.h.b16 %v3711
        %v5013 = vunpack.c.l.b16 %v3712
        %v5014 = vunpack.c.h.b16 %v3712
        %v5015 = vunpack.c.l.b16 %v3713
        %v5016 = vunpack.c.h.b16 %v3713
        %v5017 = vunpack.c.l.b16 %v3714
        %v5018 = vunpack.c.h.b16 %v3714
        %v5019 = vunpack.c.l.b16 %v3715
        %v5020 = vunpack.c.h.b16 %v3715
        %v5021 = vunpack.c.l.b16 %v3716
        %v5022 = vunpack.c.h.b16 %v3716
        %v5023 = vunpack.c.l.b16 %v3717
        %v5024 = vunpack.c.h.b16 %v3717
        %v5025 = vunpack.c.l.b16 %v3718
        %v5026 = vunpack.c.h.b16 %v3718
        %v5027 = vunpack.c.l.b16 %v3719
        %v5028 = vunpack.c.h.b16 %v3719
        %v5029 = vunpack.c.l.b16 %v3720
        %v5030 = vunpack.c.h.b16 %v3720
        %v5031 = vunpack.c.l.b16 %v3721
        %v5032 = vunpack.c.h.b16 %v3721
        %v5033 = vunpack.c.l.b16 %v3722
        %v5034 = vunpack.c.h.b16 %v3722
        %v5035 = vunpack.c.l.b16 %v3723
        %v5036 = vunpack.c.h.b16 %v3723
        %v5037 = vunpack.c.l.b16 %v3724
        %v5038 = vunpack.c.h.b16 %v3724
        %v5039 = vunpack.c.l.b16 %v3725
        %v5040 = vunpack.c.h.b16 %v3725
        %v5041 = vunpack.c.l.b16 %v3726
        %v5042 = vunpack.c.h.b16 %v3726
        %v5043 = vunpack.c.l.b16 %v3727
        %v5044 = vunpack.c.h.b16 %v3727
        %v5045 = vunpack.c.l.b16 %v3728
        %v5046 = vunpack.c.h.b16 %v3728
        %v5047 = vunpack.c.l.b16 %v3729
        %v5048 = vunpack.c.h.b16 %v3729
        %v5049 = vunpack.c.l.b16 %v3730
        %v5050 = vunpack.c.h.b16 %v3730
        %v5051 = vunpack.c.l.b16 %v3731
        %v5052 = vunpack.c.h.b16 %v3731
        %v5053 = vunpack.c.l.b16 %v3732
        %v5054 = vunpack.c.h.b16 %v3732
        %v5055 = vunpack.c.l.b16 %v3733
        %v5056 = vunpack.c.h.b16 %v3733
        %v5057 = vunpack.c.l.b16 %v3734
        %v5058 = vunpack.c.h.b16 %v3734
        %v5059 = vunpack.c.l.b16 %v3735
        %v5060 = vunpack.c.h.b16 %v3735
        %v5061 = vunpack.c.l.b16 %v3736
        %v5062 = vunpack.c.h.b16 %v3736
        %v5063 = vunpack.c.l.b16 %v3737
        %v5064 = vunpack.c.h.b16 %v3737
        %v5065 = vunpack.c.l.b16 %v3738
        %v5066 = vunpack.c.h.b16 %v3738
        %v5067 = vunpack.c.l.b16 %v3739
        %v5068 = vunpack.c.h.b16 %v3739
        %v5069 = vunpack.c.l.b16 %v3740
        %v5070 = vunpack.c.h.b16 %v3740
        %v5071 = vunpack.c.l.b16 %v3741
        %v5072 = vunpack.c.h.b16 %v3741
        %v5073 = vunpack.c.l.b16 %v3742
        %v5074 = vunpack.c.h.b16 %v3742
        %v5075 = vunpack.c.l.b16 %v3743
        %v5076 = vunpack.c.h.b16 %v3743
        %v5077 = vunpack.c.l.b16 %v3744
        %v5078 = vunpack.c.h.b16 %v3744
        %v5079 = vunpack.c.l.b16 %v3745
        %v5080 = vunpack.c.h.b16 %v3745
        %v5081 = vunpack.c.l.b16 %v3746
        %v5082 = vunpack.c.h.b16 %v3746
        %v5083 = vunpack.c.l.b16 %v3747
        %v5084 = vunpack.c.h.b16 %v3747
        %v5085 = vunpack.c.l.b16 %v3748
        %v5086 = vunpack.c.h.b16 %v3748
        %v5087 = vunpack.c.l.b16 %v3749
        %v5088 = vunpack.c.h.b16 %v3749
        %v5089 = vunpack.c.l.b16 %v3750
        %v5090 = vunpack.c.h.b16 %v3750
        %v5091 = vunpack.c.l.b16 %v3751
        %v5092 = vunpack.c.h.b16 %v3751
        %v5093 = vunpack.c.l.b16 %v3752
        %v5094 = vunpack.c.h.b16 %v3752
        %v5095 = vunpack.c.l.b16 %v3753
        %v5096 = vunpack.c.h.b16 %v3753
        %v5097 = vunpack.c.l.b16 %v3754
        %v5098 = vunpack.c.h.b16 %v3754
        %v5099 = vunpack.c.l.b16 %v3755
        %v5100 = vunpack.c.h.b16 %v3755
        %v5101 = vunpack.c.l.b16 %v3756
        %v5102 = vunpack.c.h.b16 %v3756
        %v5103 = vunpack.c.l.b16 %v3757
        %v5104 = vunpack.c.h.b16 %v3757
        %v5105 = vunpack.c.l.b16 %v3758
        %v5106 = vunpack.c.h.b16 %v3758
        %v5107 = vunpack.c.l.b16 %v3759
        %v5108 = vunpack.c.h.b16 %v3759
        %v5109 = vunpack.c.l.b16 %v3760
        %v5110 = vunpack.c.h.b16 %v3760
        %v5111 = vunpack.c.l.b16 %v3761
        %v5112 = vunpack.c.h.b16 %v3761
        %v5113 = vunpack.c.l.b16 %v3762
        %v5114 = vunpack.c.h.b16 %v3762
        %v5115 = vunpack.c.l.b16 %v3763
        %v5116 = vunpack.c.h.b16 %v3763
        %v5117 = vunpack.c.l.b16 %v3764
        %v5118 = vunpack.c.h.b16 %v3764
        %v5119 = vunpack.c.l.b16 %v3765
        %v5120 = vunpack.c.h.b16 %v3765
        %v5121 = vunpack.c.l.b16 %v3766
        %v5122 = vunpack.c.h.b16 %v3766
        %v5123 = vunpack.c.l.b16 %v3767
        %v5124 = vunpack.c.h.b16 %v3767
        %v5125 = vunpack.c.l.b16 %v3768
        %v5126 = vunpack.c.h.b16 %v3768
        %v5127 = vunpack.c.l.b16 %v3769
        %v5128 = vunpack.c.h.b16 %v3769
        %v5129 = vunpack.c.l.b16 %v3770
        %v5130 = vunpack.c.h.b16 %v3770
        %v5131 = vunpack.c.l.b16 %v3771
        %v5132 = vunpack.c.h.b16 %v3771
        %v5133 = vunpack.c.l.b16 %v3772
        %v5134 = vunpack.c.h.b16 %v3772
        %v5135 = vunpack.c.l.b16 %v3773
        %v5136 = vunpack.c.h.b16 %v3773
        %v5137 = vunpack.c.l.b16 %v3774
        %v5138 = vunpack.c.h.b16 %v3774
        %v5139 = vunpack.c.l.b16 %v3775
        %v5140 = vunpack.c.h.b16 %v3775
        %v5141 = vunpack.c.l.b16 %v3776
        %v5142 = vunpack.c.h.b16 %v3776
        %v5143 = vunpack.c.l.b16 %v3777
        %v5144 = vunpack.c.h.b16 %v3777
        %v5145 = vunpack.c.l.b16 %v3778
        %v5146 = vunpack.c.h.b16 %v3778
        %v5147 = vunpack.c.l.b16 %v3779
        %v5148 = vunpack.c.h.b16 %v3779
        %v5149 = vunpack.c.l.b16 %v3780
        %v5150 = vunpack.c.h.b16 %v3780
        %v5151 = vunpack.c.l.b16 %v3781
        %v5152 = vunpack.c.h.b16 %v3781
        %v5153 = vunpack.c.l.b16 %v3782
        %v5154 = vunpack.c.h.b16 %v3782
        %v5155 = vunpack.c.l.b16 %v3783
        %v5156 = vunpack.c.h.b16 %v3783
        %v5157 = vunpack.c.l.b16 %v3784
        %v5158 = vunpack.c.h.b16 %v3784
        %v5159 = vunpack.c.l.b16 %v3785
        %v5160 = vunpack.c.h.b16 %v3785
        %v5161 = vunpack.c.l.b16 %v3786
        %v5162 = vunpack.c.h.b16 %v3786
        %v5163 = vunpack.c.l.b16 %v3787
        %v5164 = vunpack.c.h.b16 %v3787
        %v5165 = vunpack.c.l.b16 %v3788
        %v5166 = vunpack.c.h.b16 %v3788
        %v5167 = vunpack.c.l.b16 %v3789
        %v5168 = vunpack.c.h.b16 %v3789
        %v5169 = vunpack.c.l.b16 %v3790
        %v5170 = vunpack.c.h.b16 %v3790
        %v5171 = vunpack.c.l.b16 %v3791
        %v5172 = vunpack.c.h.b16 %v3791
        %v5173 = vunpack.c.l.b16 %v3792
        %v5174 = vunpack.c.h.b16 %v3792
        %v5175 = vunpack.c.l.b16 %v3793
        %v5176 = vunpack.c.h.b16 %v3793
        %v5177 = vunpack.c.l.b16 %v3794
        %v5178 = vunpack.c.h.b16 %v3794
        %v5179 = vunpack.c.l.b16 %v3795
        %v5180 = vunpack.c.h.b16 %v3795
        %v5181 = vunpack.c.l.b16 %v3796
        %v5182 = vunpack.c.h.b16 %v3796
        %v5183 = vunpack.c.l.b16 %v3797
        %v5184 = vunpack.c.h.b16 %v3797
        %v5185 = vunpack.c.l.b16 %v3798
        %v5186 = vunpack.c.h.b16 %v3798
        %v5187 = vunpack.c.l.b16 %v3799
        %v5188 = vunpack.c.h.b16 %v3799
        %v5189 = vunpack.c.l.b16 %v3800
        %v5190 = vunpack.c.h.b16 %v3800
        %v5191 = vunpack.c.l.b16 %v3801
        %v5192 = vunpack.c.h.b16 %v3801
        %v5193 = vunpack.c.l.b16 %v3802
        %v5194 = vunpack.c.h.b16 %v3802
        %v5195 = vunpack.c.l.b16 %v3803
        %v5196 = vunpack.c.h.b16 %v3803
        %v5197 = vunpack.c.l.b16 %v3804
        %v5198 = vunpack.c.h.b16 %v3804
        %v5199 = vunpack.c.l.b16 %v3805
        %v5200 = vunpack.c.h.b16 %v3805
        %v5201 = vunpack.c.l.b16 %v3806
        %v5202 = vunpack.c.h.b16 %v3806
        %v5203 = vunpack.c.l.b16 %v3807
        %v5204 = vunpack.c.h.b16 %v3807
        %v5205 = vunpack.c.l.b16 %v3808
        %v5206 = vunpack.c.h.b16 %v3808
        %v5207 = vunpack.c.l.b16 %v3809
        %v5208 = vunpack.c.h.b16 %v3809
        %v5209 = vunpack.c.l.b16 %v3810
        %v5210 = vunpack.c.h.b16 %v3810
        %v5211 = vunpack.c.l.b16 %v3811
        %v5212 = vunpack.c.h.b16 %v3811
        %v5213 = vunpack.c.l.b16 %v3812
        %v5214 = vunpack.c.h.b16 %v3812
        %v5215 = vunpack.c.l.b16 %v3813
        %v5216 = vunpack.c.h.b16 %v3813
        %v5217 = vunpack.c.l.b16 %v3814
        %v5218 = vunpack.c.h.b16 %v3814
        %v5219 = vunpack.c.l.b16 %v3815
        %v5220 = vunpack.c.h.b16 %v3815
        %v5221 = vunpack.c.l.b16 %v3816
        %v5222 = vunpack.c.h.b16 %v3816
        %v5223 = vunpack.c.l.b16 %v3817
        %v5224 = vunpack.c.h.b16 %v3817
        %v5225 = vunpack.c.l.b16 %v3818
        %v5226 = vunpack.c.h.b16 %v3818
        %v5227 = vunpack.c.l.b16 %v3819
        %v5228 = vunpack.c.h.b16 %v3819
        %v5229 = vpack.c.b16 %v4977, %v4973
        %v5230 = vpack.c.b16 %v4978, %v4974
        %v5231 = vpack.c.b16 %v4979, %v4975
        %v5232 = vpack.c.b16 %v4980, %v4976
        %v5233 = vpack.c.b16 %v4985, %v4981
        %v5234 = vpack.c.b16 %v4986, %v4982
        %v5235 = vpack.c.b16 %v4987, %v4983
        %v5236 = vpack.c.b16 %v4988, %v4984
        %v5237 = vpack.c.b16 %v4993, %v4989
        %v5238 = vpack.c.b16 %v4994, %v4990
        %v5239 = vpack.c.b16 %v4995, %v4991
        %v5240 = vpack.c.b16 %v4996, %v4992
        %v5241 = vpack.c.b16 %v5001, %v4997
        %v5242 = vpack.c.b16 %v5002, %v4998
        %v5243 = vpack.c.b16 %v5003, %v4999
        %v5244 = vpack.c.b16 %v5004, %v5000
        %v5245 = vpack.c.b16 %v5009, %v5005
        %v5246 = vpack.c.b16 %v5010, %v5006
        %v5247 = vpack.c.b16 %v5011, %v5007
        %v5248 = vpack.c.b16 %v5012, %v5008
        %v5249 = vpack.c.b16 %v5017, %v5013
        %v5250 = vpack.c.b16 %v5018, %v5014
        %v5251 = vpack.c.b16 %v5019, %v5015
        %v5252 = vpack.c.b16 %v5020, %v5016
        %v5253 = vpack.c.b16 %v5025, %v5021
        %v5254 = vpack.c.b16 %v5026, %v5022
        %v5255 = vpack.c.b16 %v5027, %v5023
        %v5256 = vpack.c.b16 %v5028, %v5024
        %v5257 = vpack.c.b16 %v5033, %v5029
        %v5258 = vpack.c.b16 %v5034, %v5030
        %v5259 = vpack.c.b16 %v5035, %v5031
        %v5260 = vpack.c.b16 %v5036, %v5032
        %v5261 = vpack.c.b16 %v5041, %v5037
        %v5262 = vpack.c.b16 %v5042, %v5038
        %v5263 = vpack.c.b16 %v5043, %v5039
        %v5264 = vpack.c.b16 %v5044, %v5040
        %v5265 = vpack.c.b16 %v5049, %v5045
        %v5266 = vpack.c.b16 %v5050, %v5046
        %v5267 = vpack.c.b16 %v5051, %v5047
        %v5268 = vpack.c.b16 %v5052, %v5048
        %v5269 = vpack.c.b16 %v5057, %v5053
        %v5270 = vpack.c.b16 %v5058, %v5054
        %v5271 = vpack.c.b16 %v5059, %v5055
        %v5272 = vpack.c.b16 %v5060, %v5056
        %v5273 = vpack.c.b16 %v5065, %v5061
        %v5274 = vpack.c.b16 %v5066, %v5062
        %v5275 = vpack.c.b16 %v5067, %v5063
        %v5276 = vpack.c.b16 %v5068, %v5064
        %v5277 = vpack.c.b16 %v5073, %v5069
        %v5278 = vpack.c.b16 %v5074, %v5070
        %v5279 = vpack.c.b16 %v5075, %v5071
        %v5280 = vpack.c.b16 %v5076, %v5072
        %v5281 = vpack.c.b16 %v5081, %v5077
        %v5282 = vpack.c.b16 %v5082, %v5078
        %v5283 = vpack.c.b16 %v5083, %v5079
        %v5284 = vpack.c.b16 %v5084, %v5080
        %v5285 = vpack.c.b16 %v5089, %v5085
        %v5286 = vpack.c.b16 %v5090, %v5086
        %v5287 = vpack.c.b16 %v5091, %v5087
        %v5288 = vpack.c.b16 %v5092, %v5088
        %v5289 = vpack.c.b16 %v5097, %v5093
        %v5290 = vpack.c.b16 %v5098, %v5094
        %v5291 = vpack.c.b16 %v5099, %v5095
        %v5292 = vpack.c.b16 %v5100, %v5096
        %v5293 = vpack.c.b16 %v5105, %v5101
        %v5294 = vpack.c.b16 %v5106, %v5102
        %v5295 = vpack.c.b16 %v5107, %v5103
        %v5296 = vpack.c.b16 %v5108, %v5104
        %v5297 = vpack.c.b16 %v5113, %v5109
        %v5298 = vpack.c.b16 %v5114, %v5110
        %v5299 = vpack.c.b16 %v5115, %v5111
        %v5300 = vpack.c.b16 %v5116, %v5112
        %v5301 = vpack.c.b16 %v5121, %v5117
        %v5302 = vpack.c.b16 %v5122, %v5118
        %v5303 = vpack.c.b16 %v5123, %v5119
        %v5304 = vpack.c.b16 %v5124, %v5120
        %v5305 = vpack.c.b16 %v5129, %v5125
        %v5306 = vpack.c.b16 %v5130, %v5126
        %v5307 = vpack.c.b16 %v5131, %v5127
        %v5308 = vpack.c.b16 %v5132, %v5128
        %v5309 = vpack.c.b16 %v5137, %v5133
        %v5310 = vpack.c.b16 %v5138, %v5134
        %v5311 = vpack.c.b16 %v5139, %v5135
        %v5312 = vpack.c.b16 %v5140, %v5136
        %v5313 = vpack.c.b16 %v5145, %v5141
        %v5314 = vpack.c.b16 %v5146, %v5142
        %v5315 = vpack.c.b16 %v5147, %v5143
        %v5316 = vpack.c.b16 %v5148, %v5144
        %v5317 = vpack.c.b16 %v5153, %v5149
        %v5318 = vpack.c.b16 %v5154, %v5150
        %v5319 = vpack.c.b16 %v5155, %v5151
        %v5320 = vpack.c.b16 %v5156, %v5152
        %v5321 = vpack.c.b16 %v5161, %v5157
        %v5322 = vpack.c.b16 %v5162, %v5158
        %v5323 = vpack.c.b16 %v5163, %v5159
        %v5324 = vpack.c.b16 %v5164, %v5160
        %v5325 = vpack.c.b16 %v5169, %v5165
        %v5326 = vpack.c.b16 %v5170, %v5166
        %v5327 = vpack.c.b16 %v5171, %v5167
        %v5328 = vpack.c.b16 %v5172, %v5168
        %v5329 = vpack.c.b16 %v5177, %v5173
        %v5330 = vpack.c.b16 %v5178, %v5174
        %v5331 = vpack.c.b16 %v5179, %v5175
        %v5332 = vpack.c.b16 %v5180, %v5176
        %v5333 = vpack.c.b16 %v5185, %v5181
        %v5334 = vpack.c.b16 %v5186, %v5182
        %v5335 = vpack.c.b16 %v5187, %v5183
        %v5336 = vpack.c.b16 %v5188, %v5184
        %v5337 = vpack.c.b16 %v5193, %v5189
        %v5338 = vpack.c.b16 %v5194, %v5190
        %v5339 = vpack.c.b16 %v5195, %v5191
        %v5340 = vpack.c.b16 %v5196, %v5192
        %v5341 = vpack.c.b16 %v5201, %v5197
        %v5342 = vpack.c.b16 %v5202, %v5198
        %v5343 = vpack.c.b16 %v5203, %v5199
        %v5344 = vpack.c.b16 %v5204, %v5200
        %v5345 = vpack.c.b16 %v5209, %v5205
        %v5346 = vpack.c.b16 %v5210, %v5206
        %v5347 = vpack.c.b16 %v5211, %v5207
        %v5348 = vpack.c.b16 %v5212, %v5208
        %v5349 = vpack.c.b16 %v5217, %v5213
        %v5350 = vpack.c.b16 %v5218, %v5214
        %v5351 = vpack.c.b16 %v5219, %v5215
        %v5352 = vpack.c.b16 %v5220, %v5216
        %v5353 = vpack.c.b16 %v5225, %v5221
        %v5354 = vpack.c.b16 %v5226, %v5222
        %v5355 = vpack.c.b16 %v5227, %v5223
        %v5356 = vpack.c.b16 %v5228, %v5224
        %5485 = vmatprep.subr.bf16.mxu0 %v5230
        %5486 = vmatpush1.bf16.msra.mxu0 %v5229
        %5487 = vmatprep.subr.bf16.mxu0 %v5234
        %5488 = vmatpush1.bf16.msra.mxu0 %v5233
        %5489 = vmatprep.subr.bf16.mxu0 %v5238
        %5490 = vmatpush1.bf16.msra.mxu0 %v5237
        %5491 = vmatprep.subr.bf16.mxu0 %v5242
        %5492 = vmatpush1.bf16.msra.mxu0 %v5241
        %5493 = vmatprep.subr.bf16.mxu0 %v5246
        %5494 = vmatpush1.bf16.msra.mxu0 %v5245
        %5495 = vmatprep.subr.bf16.mxu0 %v5250
        %5496 = vmatpush1.bf16.msra.mxu0 %v5249
        %5497 = vmatprep.subr.bf16.mxu0 %v5254
        %5498 = vmatpush1.bf16.msra.mxu0 %v5253
        %5499 = vmatprep.subr.bf16.mxu0 %v5258
        %5500 = vmatpush1.bf16.msra.mxu0 %v5257
        %5501 = vmatprep.subr.bf16.mxu0 %v5262
        %5502 = vmatpush1.bf16.msra.mxu0 %v5261
        %5503 = vmatprep.subr.bf16.mxu0 %v5266
        %5504 = vmatpush1.bf16.msra.mxu0 %v5265
        %5505 = vmatprep.subr.bf16.mxu0 %v5270
        %5506 = vmatpush1.bf16.msra.mxu0 %v5269
        %5507 = vmatprep.subr.bf16.mxu0 %v5274
        %5508 = vmatpush1.bf16.msra.mxu0 %v5273
        %5509 = vmatprep.subr.bf16.mxu0 %v5278
        %5510 = vmatpush1.bf16.msra.mxu0 %v5277
        %5511 = vmatprep.subr.bf16.mxu0 %v5282
        %5512 = vmatpush1.bf16.msra.mxu0 %v5281
        %5513 = vmatprep.subr.bf16.mxu0 %v5286
        %5514 = vmatpush1.bf16.msra.mxu0 %v5285
        %5515 = vmatprep.subr.bf16.mxu0 %v5290
        %5516 = vmatpush1.bf16.msra.mxu0 %v5289
        %5517 = vmatprep.mubr.bf16.mxu0 %v3970
        %5518 = vmatmul.mubr.bf16.gmra.mrb[0].mxu0 %v3969
        %v5519 = vpop.f32.mrb[0].mxu0
        %v5520 = vadd.f32 %v4747, %v5519
        %v5521 = vpop.f32.mrb[0].mxu0
        %v5522 = vadd.f32 %v4749, %v5521
        %v5523 = vpop.f32.mrb[0].mxu0
        %v5524 = vadd.f32 %v4751, %v5523
        %v5525 = vpop.f32.mrb[0].mxu0
        %v5526 = vadd.f32 %v4753, %v5525
        %5527 = vdwg.mxu0
        %5528 = vmatprep.subr.bf16.mxu0 %v5294
        %5529 = vmatpush1.bf16.msra.mxu0 %v5293
        %5530 = vmatprep.subr.bf16.mxu0 %v5298
        %5531 = vmatpush1.bf16.msra.mxu0 %v5297
        %5532 = vmatprep.subr.bf16.mxu0 %v5302
        %5533 = vmatpush1.bf16.msra.mxu0 %v5301
        %5534 = vmatprep.subr.bf16.mxu0 %v5306
        %5535 = vmatpush1.bf16.msra.mxu0 %v5305
        %5536 = vmatprep.subr.bf16.mxu0 %v5310
        %5537 = vmatpush1.bf16.msra.mxu0 %v5309
        %5538 = vmatprep.subr.bf16.mxu0 %v5314
        %5539 = vmatpush1.bf16.msra.mxu0 %v5313
        %5540 = vmatprep.subr.bf16.mxu0 %v5318
        %5541 = vmatpush1.bf16.msra.mxu0 %v5317
        %5542 = vmatprep.subr.bf16.mxu0 %v5322
        %5543 = vmatpush1.bf16.msra.mxu0 %v5321
        %5544 = vmatprep.subr.bf16.mxu0 %v5326
        %5545 = vmatpush1.bf16.msra.mxu0 %v5325
        %5546 = vmatprep.subr.bf16.mxu0 %v5330
        %5547 = vmatpush1.bf16.msra.mxu0 %v5329
        %5548 = vmatprep.subr.bf16.mxu0 %v5334
        %5549 = vmatpush1.bf16.msra.mxu0 %v5333
        %5550 = vmatprep.subr.bf16.mxu0 %v5338
        %5551 = vmatpush1.bf16.msra.mxu0 %v5337
        %5552 = vmatprep.subr.bf16.mxu0 %v5342
        %5553 = vmatpush1.bf16.msra.mxu0 %v5341
        %5554 = vmatprep.subr.bf16.mxu0 %v5346
        %5555 = vmatpush1.bf16.msra.mxu0 %v5345
        %5556 = vmatprep.subr.bf16.mxu0 %v5350
        %5557 = vmatpush1.bf16.msra.mxu0 %v5349
        %5558 = vmatprep.subr.bf16.mxu0 %v5354
        %5559 = vmatpush1.bf16.msra.mxu0 %v5353
        %5560 = vmatprep.mubr.bf16.mxu0 %v3972
        %5561 = vmatmul.mubr.bf16.gmra.mrb[0].mxu0 %v3971
        %v5562 = vpop.f32.mrb[0].mxu0
        %v5563 = vadd.f32 %v5520, %v5562
        %v5564 = vpop.f32.mrb[0].mxu0
        %v5565 = vadd.f32 %v5522, %v5564
        %v5566 = vpop.f32.mrb[0].mxu0
        %v5567 = vadd.f32 %v5524, %v5566
        %v5568 = vpop.f32.mrb[0].mxu0
        %v5569 = vadd.f32 %v5526, %v5568
        %5570 = vdwg.mxu0
        %5571 = vmatprep.subr.bf16.mxu0 %v5232
        %5572 = vmatpush1.bf16.msra.mxu0 %v5231
        %5573 = vmatprep.subr.bf16.mxu0 %v5236
        %5574 = vmatpush1.bf16.msra.mxu0 %v5235
        %5575 = vmatprep.subr.bf16.mxu0 %v5240
        %5576 = vmatpush1.bf16.msra.mxu0 %v5239
        %5577 = vmatprep.subr.bf16.mxu0 %v5244
        %5578 = vmatpush1.bf16.msra.mxu0 %v5243
        %5579 = vmatprep.subr.bf16.mxu0 %v5248
        %5580 = vmatpush1.bf16.msra.mxu0 %v5247
        %5581 = vmatprep.subr.bf16.mxu0 %v5252
        %5582 = vmatpush1.bf16.msra.mxu0 %v5251
        %5583 = vmatprep.subr.bf16.mxu0 %v5256
        %5584 = vmatpush1.bf16.msra.mxu0 %v5255
        %5585 = vmatprep.subr.bf16.mxu0 %v5260
        %5586 = vmatpush1.bf16.msra.mxu0 %v5259
        %5587 = vmatprep.subr.bf16.mxu0 %v5264
        %5588 = vmatpush1.bf16.msra.mxu0 %v5263
        %5589 = vmatprep.subr.bf16.mxu0 %v5268
        %5590 = vmatpush1.bf16.msra.mxu0 %v5267
        %5591 = vmatprep.subr.bf16.mxu0 %v5272
        %5592 = vmatpush1.bf16.msra.mxu0 %v5271
        %5593 = vmatprep.subr.bf16.mxu0 %v5276
        %5594 = vmatpush1.bf16.msra.mxu0 %v5275
        %5595 = vmatprep.subr.bf16.mxu0 %v5280
        %5596 = vmatpush1.bf16.msra.mxu0 %v5279
        %5597 = vmatprep.subr.bf16.mxu0 %v5284
        %5598 = vmatpush1.bf16.msra.mxu0 %v5283
        %5599 = vmatprep.subr.bf16.mxu0 %v5288
        %5600 = vmatpush1.bf16.msra.mxu0 %v5287
        %5601 = vmatprep.subr.bf16.mxu0 %v5292
        %5602 = vmatpush1.bf16.msra.mxu0 %v5291
        %5603 = vmatprep.mubr.bf16.mxu0 %v3970
        %5604 = vmatmul.mubr.bf16.gmra.mrb[0].mxu0 %v3969
        %v5605 = vpop.f32.mrb[0].mxu0
        %v5606 = vadd.f32 %v4833, %v5605
        %v5607 = vpop.f32.mrb[0].mxu0
        %v5608 = vadd.f32 %v4835, %v5607
        %v5609 = vpop.f32.mrb[0].mxu0
        %v5610 = vadd.f32 %v4837, %v5609
        %v5611 = vpop.f32.mrb[0].mxu0
        %v5612 = vadd.f32 %v4839, %v5611
        %5613 = vdwg.mxu0
        %5614 = vmatprep.subr.bf16.mxu0 %v5296
        %5615 = vmatpush1.bf16.msra.mxu0 %v5295
        %5616 = vmatprep.subr.bf16.mxu0 %v5300
        %5617 = vmatpush1.bf16.msra.mxu0 %v5299
        %5618 = vmatprep.subr.bf16.mxu0 %v5304
        %5619 = vmatpush1.bf16.msra.mxu0 %v5303
        %5620 = vmatprep.subr.bf16.mxu0 %v5308
        %5621 = vmatpush1.bf16.msra.mxu0 %v5307
        %5622 = vmatprep.subr.bf16.mxu0 %v5312
        %5623 = vmatpush1.bf16.msra.mxu0 %v5311
        %5624 = vmatprep.subr.bf16.mxu0 %v5316
        %5625 = vmatpush1.bf16.msra.mxu0 %v5315
        %5626 = vmatprep.subr.bf16.mxu0 %v5320
        %5627 = vmatpush1.bf16.msra.mxu0 %v5319
        %5628 = vmatprep.subr.bf16.mxu0 %v5324
        %5629 = vmatpush1.bf16.msra.mxu0 %v5323
        %5630 = vmatprep.subr.bf16.mxu0 %v5328
        %5631 = vmatpush1.bf16.msra.mxu0 %v5327
        %5632 = vmatprep.subr.bf16.mxu0 %v5332
        %5633 = vmatpush1.bf16.msra.mxu0 %v5331
        %5634 = vmatprep.subr.bf16.mxu0 %v5336
        %5635 = vmatpush1.bf16.msra.mxu0 %v5335
        %5636 = vmatprep.subr.bf16.mxu0 %v5340
        %5637 = vmatpush1.bf16.msra.mxu0 %v5339
        %5638 = vmatprep.subr.bf16.mxu0 %v5344
        %5639 = vmatpush1.bf16.msra.mxu0 %v5343
        %5640 = vmatprep.subr.bf16.mxu0 %v5348
        %5641 = vmatpush1.bf16.msra.mxu0 %v5347
        %5642 = vmatprep.subr.bf16.mxu0 %v5352
        %5643 = vmatpush1.bf16.msra.mxu0 %v5351
        %5644 = vmatprep.subr.bf16.mxu0 %v5356
        %5645 = vmatpush1.bf16.msra.mxu0 %v5355
        %5646 = vmatprep.mubr.bf16.mxu0 %v3972
        %5647 = vmatmul.mubr.bf16.gmra.mrb[0].mxu0 %v3971
        %v5648 = vpop.f32.mrb[0].mxu0
        %v5649 = vadd.f32 %v5606, %v5648
        %v5650 = vpop.f32.mrb[0].mxu0
        %v5651 = vadd.f32 %v5608, %v5650
        %v5652 = vpop.f32.mrb[0].mxu0
        %v5653 = vadd.f32 %v5610, %v5652
        %v5654 = vpop.f32.mrb[0].mxu0
        %v5655 = vadd.f32 %v5612, %v5654
        %5656 = vdwg.mxu0
        %v5657 = vld [vmem:[#allocation3] sm:$0xee]
        %v5658 = vld [vmem:[#allocation3 + $0x8] sm:$0xee]
        %s5659 = scalar_lea.vmem [#allocation10], 2048
        %v5660 = vld [vmem:[%s5659] sm:$0xff]
        %v5661 = vld [vmem:[%s5659 + $0x8] sm:$0xff]
        %v5662 = vld [vmem:[%s5659 + $0x10] sm:$0xff]
        %v5663 = vld [vmem:[%s5659 + $0x18] sm:$0xff]
        %v5664 = vld [vmem:[%s5659 + $0x20] sm:$0xff]
        %v5665 = vld [vmem:[%s5659 + $0x28] sm:$0xff]
        %v5666 = vld [vmem:[%s5659 + $0x30] sm:$0xff]
        %v5667 = vld [vmem:[%s5659 + $0x38] sm:$0xff]
        %v5668 = vld [vmem:[%s5659 + $0x40] sm:$0xff]
        %v5669 = vld [vmem:[%s5659 + $0x48] sm:$0xff]
        %v5670 = vld [vmem:[%s5659 + $0x50] sm:$0xff]
        %v5671 = vld [vmem:[%s5659 + $0x58] sm:$0xff]
        %v5672 = vld [vmem:[%s5659 + $0x60] sm:$0xff]
        %v5673 = vld [vmem:[%s5659 + $0x68] sm:$0xff]
        %v5674 = vld [vmem:[%s5659 + $0x70] sm:$0xff]
        %v5675 = vld [vmem:[%s5659 + $0x78] sm:$0xff]
        %v5676 = vld [vmem:[%s5659 + $0x80] sm:$0xff]
        %v5677 = vld [vmem:[%s5659 + $0x88] sm:$0xff]
        %v5678 = vld [vmem:[%s5659 + $0x90] sm:$0xff]
        %v5679 = vld [vmem:[%s5659 + $0x98] sm:$0xff]
        %v5680 = vld [vmem:[%s5659 + $0xa0] sm:$0xff]
        %v5681 = vld [vmem:[%s5659 + $0xa8] sm:$0xff]
        %v5682 = vld [vmem:[%s5659 + $0xb0] sm:$0xff]
        %v5683 = vld [vmem:[%s5659 + $0xb8] sm:$0xff]
        %v5684 = vld [vmem:[%s5659 + $0xc0] sm:$0xff]
        %v5685 = vld [vmem:[%s5659 + $0xc8] sm:$0xff]
        %v5686 = vld [vmem:[%s5659 + $0xd0] sm:$0xff]
        %v5687 = vld [vmem:[%s5659 + $0xd8] sm:$0xff]
        %v5688 = vld [vmem:[%s5659 + $0xe0] sm:$0xff]
        %v5689 = vld [vmem:[%s5659 + $0xe8] sm:$0xff]
        %v5690 = vld [vmem:[%s5659 + $0xf0] sm:$0xff]
        %v5691 = vld [vmem:[%s5659 + $0xf8] sm:$0xff]
        %v5692 = vld [vmem:[%s5659 + $0x100] sm:$0xff]
        %v5693 = vld [vmem:[%s5659 + $0x108] sm:$0xff]
        %v5694 = vld [vmem:[%s5659 + $0x110] sm:$0xff]
        %v5695 = vld [vmem:[%s5659 + $0x118] sm:$0xff]
        %v5696 = vld [vmem:[%s5659 + $0x120] sm:$0xff]
        %v5697 = vld [vmem:[%s5659 + $0x128] sm:$0xff]
        %v5698 = vld [vmem:[%s5659 + $0x130] sm:$0xff]
        %v5699 = vld [vmem:[%s5659 + $0x138] sm:$0xff]
        %v5700 = vld [vmem:[%s5659 + $0x140] sm:$0xff]
        %v5701 = vld [vmem:[%s5659 + $0x148] sm:$0xff]
        %v5702 = vld [vmem:[%s5659 + $0x150] sm:$0xff]
        %v5703 = vld [vmem:[%s5659 + $0x158] sm:$0xff]
        %v5704 = vld [vmem:[%s5659 + $0x160] sm:$0xff]
        %v5705 = vld [vmem:[%s5659 + $0x168] sm:$0xff]
        %v5706 = vld [vmem:[%s5659 + $0x170] sm:$0xff]
        %v5707 = vld [vmem:[%s5659 + $0x178] sm:$0xff]
        %v5708 = vld [vmem:[%s5659 + $0x180] sm:$0xff]
        %v5709 = vld [vmem:[%s5659 + $0x188] sm:$0xff]
        %v5710 = vld [vmem:[%s5659 + $0x190] sm:$0xff]
        %v5711 = vld [vmem:[%s5659 + $0x198] sm:$0xff]
        %v5712 = vld [vmem:[%s5659 + $0x1a0] sm:$0xff]
        %v5713 = vld [vmem:[%s5659 + $0x1a8] sm:$0xff]
        %v5714 = vld [vmem:[%s5659 + $0x1b0] sm:$0xff]
        %v5715 = vld [vmem:[%s5659 + $0x1b8] sm:$0xff]
        %v5716 = vld [vmem:[%s5659 + $0x1c0] sm:$0xff]
        %v5717 = vld [vmem:[%s5659 + $0x1c8] sm:$0xff]
        %v5718 = vld [vmem:[%s5659 + $0x1d0] sm:$0xff]
        %v5719 = vld [vmem:[%s5659 + $0x1d8] sm:$0xff]
        %v5720 = vld [vmem:[%s5659 + $0x1e0] sm:$0xff]
        %v5721 = vld [vmem:[%s5659 + $0x1e8] sm:$0xff]
        %v5722 = vld [vmem:[%s5659 + $0x1f0] sm:$0xff]
        %v5723 = vld [vmem:[%s5659 + $0x1f8] sm:$0xff]
        %v5724 = vld [vmem:[%s5659 + $0x200] sm:$0xff]
        %v5725 = vld [vmem:[%s5659 + $0x208] sm:$0xff]
        %v5726 = vld [vmem:[%s5659 + $0x210] sm:$0xff]
        %v5727 = vld [vmem:[%s5659 + $0x218] sm:$0xff]
        %v5728 = vld [vmem:[%s5659 + $0x220] sm:$0xff]
        %v5729 = vld [vmem:[%s5659 + $0x228] sm:$0xff]
        %v5730 = vld [vmem:[%s5659 + $0x230] sm:$0xff]
        %v5731 = vld [vmem:[%s5659 + $0x238] sm:$0xff]
        %v5732 = vld [vmem:[%s5659 + $0x240] sm:$0xff]
        %v5733 = vld [vmem:[%s5659 + $0x248] sm:$0xff]
        %v5734 = vld [vmem:[%s5659 + $0x250] sm:$0xff]
        %v5735 = vld [vmem:[%s5659 + $0x258] sm:$0xff]
        %v5736 = vld [vmem:[%s5659 + $0x260] sm:$0xff]
        %v5737 = vld [vmem:[%s5659 + $0x268] sm:$0xff]
        %v5738 = vld [vmem:[%s5659 + $0x270] sm:$0xff]
        %v5739 = vld [vmem:[%s5659 + $0x278] sm:$0xff]
        %v5740 = vld [vmem:[%s5659 + $0x280] sm:$0xff]
        %v5741 = vld [vmem:[%s5659 + $0x288] sm:$0xff]
        %v5742 = vld [vmem:[%s5659 + $0x290] sm:$0xff]
        %v5743 = vld [vmem:[%s5659 + $0x298] sm:$0xff]
        %v5744 = vld [vmem:[%s5659 + $0x2a0] sm:$0xff]
        %v5745 = vld [vmem:[%s5659 + $0x2a8] sm:$0xff]
        %v5746 = vld [vmem:[%s5659 + $0x2b0] sm:$0xff]
        %v5747 = vld [vmem:[%s5659 + $0x2b8] sm:$0xff]
        %v5748 = vld [vmem:[%s5659 + $0x2c0] sm:$0xff]
        %v5749 = vld [vmem:[%s5659 + $0x2c8] sm:$0xff]
        %v5750 = vld [vmem:[%s5659 + $0x2d0] sm:$0xff]
        %v5751 = vld [vmem:[%s5659 + $0x2d8] sm:$0xff]
        %v5752 = vld [vmem:[%s5659 + $0x2e0] sm:$0xff]
        %v5753 = vld [vmem:[%s5659 + $0x2e8] sm:$0xff]
        %v5754 = vld [vmem:[%s5659 + $0x2f0] sm:$0xff]
        %v5755 = vld [vmem:[%s5659 + $0x2f8] sm:$0xff]
        %v5756 = vld [vmem:[%s5659 + $0x300] sm:$0xff]
        %v5757 = vld [vmem:[%s5659 + $0x308] sm:$0xff]
        %v5758 = vld [vmem:[%s5659 + $0x310] sm:$0xff]
        %v5759 = vld [vmem:[%s5659 + $0x318] sm:$0xff]
        %v5760 = vld [vmem:[%s5659 + $0x320] sm:$0xff]
        %v5761 = vld [vmem:[%s5659 + $0x328] sm:$0xff]
        %v5762 = vld [vmem:[%s5659 + $0x330] sm:$0xff]
        %v5763 = vld [vmem:[%s5659 + $0x338] sm:$0xff]
        %v5764 = vld [vmem:[%s5659 + $0x340] sm:$0xff]
        %v5765 = vld [vmem:[%s5659 + $0x348] sm:$0xff]
        %v5766 = vld [vmem:[%s5659 + $0x350] sm:$0xff]
        %v5767 = vld [vmem:[%s5659 + $0x358] sm:$0xff]
        %v5768 = vld [vmem:[%s5659 + $0x360] sm:$0xff]
        %v5769 = vld [vmem:[%s5659 + $0x368] sm:$0xff]
        %v5770 = vld [vmem:[%s5659 + $0x370] sm:$0xff]
        %v5771 = vld [vmem:[%s5659 + $0x378] sm:$0xff]
        %v5772 = vld [vmem:[%s5659 + $0x380] sm:$0xff]
        %v5773 = vld [vmem:[%s5659 + $0x388] sm:$0xff]
        %v5774 = vld [vmem:[%s5659 + $0x390] sm:$0xff]
        %v5775 = vld [vmem:[%s5659 + $0x398] sm:$0xff]
        %v5776 = vld [vmem:[%s5659 + $0x3a0] sm:$0xff]
        %v5777 = vld [vmem:[%s5659 + $0x3a8] sm:$0xff]
        %v5778 = vld [vmem:[%s5659 + $0x3b0] sm:$0xff]
        %v5779 = vld [vmem:[%s5659 + $0x3b8] sm:$0xff]
        %v5780 = vld [vmem:[%s5659 + $0x3c0] sm:$0xff]
        %v5781 = vld [vmem:[%s5659 + $0x3c8] sm:$0xff]
        %v5782 = vld [vmem:[%s5659 + $0x3d0] sm:$0xff]
        %v5783 = vld [vmem:[%s5659 + $0x3d8] sm:$0xff]
        %v5784 = vld [vmem:[%s5659 + $0x3e0] sm:$0xff]
        %v5785 = vld [vmem:[%s5659 + $0x3e8] sm:$0xff]
        %v5786 = vld [vmem:[%s5659 + $0x3f0] sm:$0xff]
        %v5787 = vld [vmem:[%s5659 + $0x3f8] sm:$0xff]
        %v5790 = vunpack.c.l.b16 %v5657
        %v5791 = vunpack.c.h.b16 %v5657
        %v5792 = vunpack.c.l.b16 %v5658
        %v5793 = vunpack.c.h.b16 %v5658
        %v5794 = vpack.c.b16 %v3961, %v5790
        %v5795 = vpack.c.b16 %v3962, %v5791
        %v5796 = vpack.c.b16 %v3963, %v5792
        %v5797 = vpack.c.b16 %v3964, %v5793
        %v5798 = vrot.slane %v5794, 1
        %v5799 = vrot.slane %v3973, 1
        %v5800 = vsel %vm1053, %v5798, %v5799
        %v5801 = vrot.slane %v5795, 1
        %v5802 = vrot.slane %v3974, 1
        %v5803 = vsel %vm1053, %v5801, %v5802
        %v5804 = vrot.slane %v5796, 1
        %v5805 = vrot.slane %v3975, 1
        %v5806 = vsel %vm1053, %v5804, %v5805
        %v5807 = vrot.slane %v5797, 1
        %v5808 = vrot.slane %v3976, 1
        %v5809 = vsel %vm1053, %v5807, %v5808
        %v5942 = vunpack.c.l.b16 %v5660
        %v5943 = vunpack.c.h.b16 %v5660
        %v5944 = vunpack.c.l.b16 %v5661
        %v5945 = vunpack.c.h.b16 %v5661
        %v5946 = vunpack.c.l.b16 %v5662
        %v5947 = vunpack.c.h.b16 %v5662
        %v5948 = vunpack.c.l.b16 %v5663
        %v5949 = vunpack.c.h.b16 %v5663
        %v5950 = vunpack.c.l.b16 %v5664
        %v5951 = vunpack.c.h.b16 %v5664
        %v5952 = vunpack.c.l.b16 %v5665
        %v5953 = vunpack.c.h.b16 %v5665
        %v5954 = vunpack.c.l.b16 %v5666
        %v5955 = vunpack.c.h.b16 %v5666
        %v5956 = vunpack.c.l.b16 %v5667
        %v5957 = vunpack.c.h.b16 %v5667
        %v5958 = vunpack.c.l.b16 %v5668
        %v5959 = vunpack.c.h.b16 %v5668
        %v5960 = vunpack.c.l.b16 %v5669
        %v5961 = vunpack.c.h.b16 %v5669
        %v5962 = vunpack.c.l.b16 %v5670
        %v5963 = vunpack.c.h.b16 %v5670
        %v5964 = vunpack.c.l.b16 %v5671
        %v5965 = vunpack.c.h.b16 %v5671
        %v5966 = vunpack.c.l.b16 %v5672
        %v5967 = vunpack.c.h.b16 %v5672
        %v5968 = vunpack.c.l.b16 %v5673
        %v5969 = vunpack.c.h.b16 %v5673
        %v5970 = vunpack.c.l.b16 %v5674
        %v5971 = vunpack.c.h.b16 %v5674
        %v5972 = vunpack.c.l.b16 %v5675
        %v5973 = vunpack.c.h.b16 %v5675
        %v5974 = vunpack.c.l.b16 %v5676
        %v5975 = vunpack.c.h.b16 %v5676
        %v5976 = vunpack.c.l.b16 %v5677
        %v5977 = vunpack.c.h.b16 %v5677
        %v5978 = vunpack.c.l.b16 %v5678
        %v5979 = vunpack.c.h.b16 %v5678
        %v5980 = vunpack.c.l.b16 %v5679
        %v5981 = vunpack.c.h.b16 %v5679
        %v5982 = vunpack.c.l.b16 %v5680
        %v5983 = vunpack.c.h.b16 %v5680
        %v5984 = vunpack.c.l.b16 %v5681
        %v5985 = vunpack.c.h.b16 %v5681
        %v5986 = vunpack.c.l.b16 %v5682
        %v5987 = vunpack.c.h.b16 %v5682
        %v5988 = vunpack.c.l.b16 %v5683
        %v5989 = vunpack.c.h.b16 %v5683
        %v5990 = vunpack.c.l.b16 %v5684
        %v5991 = vunpack.c.h.b16 %v5684
        %v5992 = vunpack.c.l.b16 %v5685
        %v5993 = vunpack.c.h.b16 %v5685
        %v5994 = vunpack.c.l.b16 %v5686
        %v5995 = vunpack.c.h.b16 %v5686
        %v5996 = vunpack.c.l.b16 %v5687
        %v5997 = vunpack.c.h.b16 %v5687
        %v5998 = vunpack.c.l.b16 %v5688
        %v5999 = vunpack.c.h.b16 %v5688
        %v6000 = vunpack.c.l.b16 %v5689
        %v6001 = vunpack.c.h.b16 %v5689
        %v6002 = vunpack.c.l.b16 %v5690
        %v6003 = vunpack.c.h.b16 %v5690
        %v6004 = vunpack.c.l.b16 %v5691
        %v6005 = vunpack.c.h.b16 %v5691
        %v6006 = vunpack.c.l.b16 %v5692
        %v6007 = vunpack.c.h.b16 %v5692
        %v6008 = vunpack.c.l.b16 %v5693
        %v6009 = vunpack.c.h.b16 %v5693
        %v6010 = vunpack.c.l.b16 %v5694
        %v6011 = vunpack.c.h.b16 %v5694
        %v6012 = vunpack.c.l.b16 %v5695
        %v6013 = vunpack.c.h.b16 %v5695
        %v6014 = vunpack.c.l.b16 %v5696
        %v6015 = vunpack.c.h.b16 %v5696
        %v6016 = vunpack.c.l.b16 %v5697
        %v6017 = vunpack.c.h.b16 %v5697
        %v6018 = vunpack.c.l.b16 %v5698
        %v6019 = vunpack.c.h.b16 %v5698
        %v6020 = vunpack.c.l.b16 %v5699
        %v6021 = vunpack.c.h.b16 %v5699
        %v6022 = vunpack.c.l.b16 %v5700
        %v6023 = vunpack.c.h.b16 %v5700
        %v6024 = vunpack.c.l.b16 %v5701
        %v6025 = vunpack.c.h.b16 %v5701
        %v6026 = vunpack.c.l.b16 %v5702
        %v6027 = vunpack.c.h.b16 %v5702
        %v6028 = vunpack.c.l.b16 %v5703
        %v6029 = vunpack.c.h.b16 %v5703
        %v6030 = vunpack.c.l.b16 %v5704
        %v6031 = vunpack.c.h.b16 %v5704
        %v6032 = vunpack.c.l.b16 %v5705
        %v6033 = vunpack.c.h.b16 %v5705
        %v6034 = vunpack.c.l.b16 %v5706
        %v6035 = vunpack.c.h.b16 %v5706
        %v6036 = vunpack.c.l.b16 %v5707
        %v6037 = vunpack.c.h.b16 %v5707
        %v6038 = vunpack.c.l.b16 %v5708
        %v6039 = vunpack.c.h.b16 %v5708
        %v6040 = vunpack.c.l.b16 %v5709
        %v6041 = vunpack.c.h.b16 %v5709
        %v6042 = vunpack.c.l.b16 %v5710
        %v6043 = vunpack.c.h.b16 %v5710
        %v6044 = vunpack.c.l.b16 %v5711
        %v6045 = vunpack.c.h.b16 %v5711
        %v6046 = vunpack.c.l.b16 %v5712
        %v6047 = vunpack.c.h.b16 %v5712
        %v6048 = vunpack.c.l.b16 %v5713
        %v6049 = vunpack.c.h.b16 %v5713
        %v6050 = vunpack.c.l.b16 %v5714
        %v6051 = vunpack.c.h.b16 %v5714
        %v6052 = vunpack.c.l.b16 %v5715
        %v6053 = vunpack.c.h.b16 %v5715
        %v6054 = vunpack.c.l.b16 %v5716
        %v6055 = vunpack.c.h.b16 %v5716
        %v6056 = vunpack.c.l.b16 %v5717
        %v6057 = vunpack.c.h.b16 %v5717
        %v6058 = vunpack.c.l.b16 %v5718
        %v6059 = vunpack.c.h.b16 %v5718
        %v6060 = vunpack.c.l.b16 %v5719
        %v6061 = vunpack.c.h.b16 %v5719
        %v6062 = vunpack.c.l.b16 %v5720
        %v6063 = vunpack.c.h.b16 %v5720
        %v6064 = vunpack.c.l.b16 %v5721
        %v6065 = vunpack.c.h.b16 %v5721
        %v6066 = vunpack.c.l.b16 %v5722
        %v6067 = vunpack.c.h.b16 %v5722
        %v6068 = vunpack.c.l.b16 %v5723
        %v6069 = vunpack.c.h.b16 %v5723
        %v6070 = vunpack.c.l.b16 %v5724
        %v6071 = vunpack.c.h.b16 %v5724
        %v6072 = vunpack.c.l.b16 %v5725
        %v6073 = vunpack.c.h.b16 %v5725
        %v6074 = vunpack.c.l.b16 %v5726
        %v6075 = vunpack.c.h.b16 %v5726
        %v6076 = vunpack.c.l.b16 %v5727
        %v6077 = vunpack.c.h.b16 %v5727
        %v6078 = vunpack.c.l.b16 %v5728
        %v6079 = vunpack.c.h.b16 %v5728
        %v6080 = vunpack.c.l.b16 %v5729
        %v6081 = vunpack.c.h.b16 %v5729
        %v6082 = vunpack.c.l.b16 %v5730
        %v6083 = vunpack.c.h.b16 %v5730
        %v6084 = vunpack.c.l.b16 %v5731
        %v6085 = vunpack.c.h.b16 %v5731
        %v6086 = vunpack.c.l.b16 %v5732
        %v6087 = vunpack.c.h.b16 %v5732
        %v6088 = vunpack.c.l.b16 %v5733
        %v6089 = vunpack.c.h.b16 %v5733
        %v6090 = vunpack.c.l.b16 %v5734
        %v6091 = vunpack.c.h.b16 %v5734
        %v6092 = vunpack.c.l.b16 %v5735
        %v6093 = vunpack.c.h.b16 %v5735
        %v6094 = vunpack.c.l.b16 %v5736
        %v6095 = vunpack.c.h.b16 %v5736
        %v6096 = vunpack.c.l.b16 %v5737
        %v6097 = vunpack.c.h.b16 %v5737
        %v6098 = vunpack.c.l.b16 %v5738
        %v6099 = vunpack.c.h.b16 %v5738
        %v6100 = vunpack.c.l.b16 %v5739
        %v6101 = vunpack.c.h.b16 %v5739
        %v6102 = vunpack.c.l.b16 %v5740
        %v6103 = vunpack.c.h.b16 %v5740
        %v6104 = vunpack.c.l.b16 %v5741
        %v6105 = vunpack.c.h.b16 %v5741
        %v6106 = vunpack.c.l.b16 %v5742
        %v6107 = vunpack.c.h.b16 %v5742
        %v6108 = vunpack.c.l.b16 %v5743
        %v6109 = vunpack.c.h.b16 %v5743
        %v6110 = vunpack.c.l.b16 %v5744
        %v6111 = vunpack.c.h.b16 %v5744
        %v6112 = vunpack.c.l.b16 %v5745
        %v6113 = vunpack.c.h.b16 %v5745
        %v6114 = vunpack.c.l.b16 %v5746
        %v6115 = vunpack.c.h.b16 %v5746
        %v6116 = vunpack.c.l.b16 %v5747
        %v6117 = vunpack.c.h.b16 %v5747
        %v6118 = vunpack.c.l.b16 %v5748
        %v6119 = vunpack.c.h.b16 %v5748
        %v6120 = vunpack.c.l.b16 %v5749
        %v6121 = vunpack.c.h.b16 %v5749
        %v6122 = vunpack.c.l.b16 %v5750
        %v6123 = vunpack.c.h.b16 %v5750
        %v6124 = vunpack.c.l.b16 %v5751
        %v6125 = vunpack.c.h.b16 %v5751
        %v6126 = vunpack.c.l.b16 %v5752
        %v6127 = vunpack.c.h.b16 %v5752
        %v6128 = vunpack.c.l.b16 %v5753
        %v6129 = vunpack.c.h.b16 %v5753
        %v6130 = vunpack.c.l.b16 %v5754
        %v6131 = vunpack.c.h.b16 %v5754
        %v6132 = vunpack.c.l.b16 %v5755
        %v6133 = vunpack.c.h.b16 %v5755
        %v6134 = vunpack.c.l.b16 %v5756
        %v6135 = vunpack.c.h.b16 %v5756
        %v6136 = vunpack.c.l.b16 %v5757
        %v6137 = vunpack.c.h.b16 %v5757
        %v6138 = vunpack.c.l.b16 %v5758
        %v6139 = vunpack.c.h.b16 %v5758
        %v6140 = vunpack.c.l.b16 %v5759
        %v6141 = vunpack.c.h.b16 %v5759
        %v6142 = vunpack.c.l.b16 %v5760
        %v6143 = vunpack.c.h.b16 %v5760
        %v6144 = vunpack.c.l.b16 %v5761
        %v6145 = vunpack.c.h.b16 %v5761
        %v6146 = vunpack.c.l.b16 %v5762
        %v6147 = vunpack.c.h.b16 %v5762
        %v6148 = vunpack.c.l.b16 %v5763
        %v6149 = vunpack.c.h.b16 %v5763
        %v6150 = vunpack.c.l.b16 %v5764
        %v6151 = vunpack.c.h.b16 %v5764
        %v6152 = vunpack.c.l.b16 %v5765
        %v6153 = vunpack.c.h.b16 %v5765
        %v6154 = vunpack.c.l.b16 %v5766
        %v6155 = vunpack.c.h.b16 %v5766
        %v6156 = vunpack.c.l.b16 %v5767
        %v6157 = vunpack.c.h.b16 %v5767
        %v6158 = vunpack.c.l.b16 %v5768
        %v6159 = vunpack.c.h.b16 %v5768
        %v6160 = vunpack.c.l.b16 %v5769
        %v6161 = vunpack.c.h.b16 %v5769
        %v6162 = vunpack.c.l.b16 %v5770
        %v6163 = vunpack.c.h.b16 %v5770
        %v6164 = vunpack.c.l.b16 %v5771
        %v6165 = vunpack.c.h.b16 %v5771
        %v6166 = vunpack.c.l.b16 %v5772
        %v6167 = vunpack.c.h.b16 %v5772
        %v6168 = vunpack.c.l.b16 %v5773
        %v6169 = vunpack.c.h.b16 %v5773
        %v6170 = vunpack.c.l.b16 %v5774
        %v6171 = vunpack.c.h.b16 %v5774
        %v6172 = vunpack.c.l.b16 %v5775
        %v6173 = vunpack.c.h.b16 %v5775
        %v6174 = vunpack.c.l.b16 %v5776
        %v6175 = vunpack.c.h.b16 %v5776
        %v6176 = vunpack.c.l.b16 %v5777
        %v6177 = vunpack.c.h.b16 %v5777
        %v6178 = vunpack.c.l.b16 %v5778
        %v6179 = vunpack.c.h.b16 %v5778
        %v6180 = vunpack.c.l.b16 %v5779
        %v6181 = vunpack.c.h.b16 %v5779
        %v6182 = vunpack.c.l.b16 %v5780
        %v6183 = vunpack.c.h.b16 %v5780
        %v6184 = vunpack.c.l.b16 %v5781
        %v6185 = vunpack.c.h.b16 %v5781
        %v6186 = vunpack.c.l.b16 %v5782
        %v6187 = vunpack.c.h.b16 %v5782
        %v6188 = vunpack.c.l.b16 %v5783
        %v6189 = vunpack.c.h.b16 %v5783
        %v6190 = vunpack.c.l.b16 %v5784
        %v6191 = vunpack.c.h.b16 %v5784
        %v6192 = vunpack.c.l.b16 %v5785
        %v6193 = vunpack.c.h.b16 %v5785
        %v6194 = vunpack.c.l.b16 %v5786
        %v6195 = vunpack.c.h.b16 %v5786
        %v6196 = vunpack.c.l.b16 %v5787
        %v6197 = vunpack.c.h.b16 %v5787
        %v6198 = vpack.c.b16 %v5946, %v5942
        %v6199 = vpack.c.b16 %v5947, %v5943
        %v6200 = vpack.c.b16 %v5948, %v5944
        %v6201 = vpack.c.b16 %v5949, %v5945
        %v6202 = vpack.c.b16 %v5954, %v5950
        %v6203 = vpack.c.b16 %v5955, %v5951
        %v6204 = vpack.c.b16 %v5956, %v5952
        %v6205 = vpack.c.b16 %v5957, %v5953
        %v6206 = vpack.c.b16 %v5962, %v5958
        %v6207 = vpack.c.b16 %v5963, %v5959
        %v6208 = vpack.c.b16 %v5964, %v5960
        %v6209 = vpack.c.b16 %v5965, %v5961
        %v6210 = vpack.c.b16 %v5970, %v5966
        %v6211 = vpack.c.b16 %v5971, %v5967
        %v6212 = vpack.c.b16 %v5972, %v5968
        %v6213 = vpack.c.b16 %v5973, %v5969
        %v6214 = vpack.c.b16 %v5978, %v5974
        %v6215 = vpack.c.b16 %v5979, %v5975
        %v6216 = vpack.c.b16 %v5980, %v5976
        %v6217 = vpack.c.b16 %v5981, %v5977
        %v6218 = vpack.c.b16 %v5986, %v5982
        %v6219 = vpack.c.b16 %v5987, %v5983
        %v6220 = vpack.c.b16 %v5988, %v5984
        %v6221 = vpack.c.b16 %v5989, %v5985
        %v6222 = vpack.c.b16 %v5994, %v5990
        %v6223 = vpack.c.b16 %v5995, %v5991
        %v6224 = vpack.c.b16 %v5996, %v5992
        %v6225 = vpack.c.b16 %v5997, %v5993
        %v6226 = vpack.c.b16 %v6002, %v5998
        %v6227 = vpack.c.b16 %v6003, %v5999
        %v6228 = vpack.c.b16 %v6004, %v6000
        %v6229 = vpack.c.b16 %v6005, %v6001
        %v6230 = vpack.c.b16 %v6010, %v6006
        %v6231 = vpack.c.b16 %v6011, %v6007
        %v6232 = vpack.c.b16 %v6012, %v6008
        %v6233 = vpack.c.b16 %v6013, %v6009
        %v6234 = vpack.c.b16 %v6018, %v6014
        %v6235 = vpack.c.b16 %v6019, %v6015
        %v6236 = vpack.c.b16 %v6020, %v6016
        %v6237 = vpack.c.b16 %v6021, %v6017
        %v6238 = vpack.c.b16 %v6026, %v6022
        %v6239 = vpack.c.b16 %v6027, %v6023
        %v6240 = vpack.c.b16 %v6028, %v6024
        %v6241 = vpack.c.b16 %v6029, %v6025
        %v6242 = vpack.c.b16 %v6034, %v6030
        %v6243 = vpack.c.b16 %v6035, %v6031
        %v6244 = vpack.c.b16 %v6036, %v6032
        %v6245 = vpack.c.b16 %v6037, %v6033
        %v6246 = vpack.c.b16 %v6042, %v6038
        %v6247 = vpack.c.b16 %v6043, %v6039
        %v6248 = vpack.c.b16 %v6044, %v6040
        %v6249 = vpack.c.b16 %v6045, %v6041
        %v6250 = vpack.c.b16 %v6050, %v6046
        %v6251 = vpack.c.b16 %v6051, %v6047
        %v6252 = vpack.c.b16 %v6052, %v6048
        %v6253 = vpack.c.b16 %v6053, %v6049
        %v6254 = vpack.c.b16 %v6058, %v6054
        %v6255 = vpack.c.b16 %v6059, %v6055
        %v6256 = vpack.c.b16 %v6060, %v6056
        %v6257 = vpack.c.b16 %v6061, %v6057
        %v6258 = vpack.c.b16 %v6066, %v6062
        %v6259 = vpack.c.b16 %v6067, %v6063
        %v6260 = vpack.c.b16 %v6068, %v6064
        %v6261 = vpack.c.b16 %v6069, %v6065
        %v6262 = vpack.c.b16 %v6074, %v6070
        %v6263 = vpack.c.b16 %v6075, %v6071
        %v6264 = vpack.c.b16 %v6076, %v6072
        %v6265 = vpack.c.b16 %v6077, %v6073
        %v6266 = vpack.c.b16 %v6082, %v6078
        %v6267 = vpack.c.b16 %v6083, %v6079
        %v6268 = vpack.c.b16 %v6084, %v6080
        %v6269 = vpack.c.b16 %v6085, %v6081
        %v6270 = vpack.c.b16 %v6090, %v6086
        %v6271 = vpack.c.b16 %v6091, %v6087
        %v6272 = vpack.c.b16 %v6092, %v6088
        %v6273 = vpack.c.b16 %v6093, %v6089
        %v6274 = vpack.c.b16 %v6098, %v6094
        %v6275 = vpack.c.b16 %v6099, %v6095
        %v6276 = vpack.c.b16 %v6100, %v6096
        %v6277 = vpack.c.b16 %v6101, %v6097
        %v6278 = vpack.c.b16 %v6106, %v6102
        %v6279 = vpack.c.b16 %v6107, %v6103
        %v6280 = vpack.c.b16 %v6108, %v6104
        %v6281 = vpack.c.b16 %v6109, %v6105
        %v6282 = vpack.c.b16 %v6114, %v6110
        %v6283 = vpack.c.b16 %v6115, %v6111
        %v6284 = vpack.c.b16 %v6116, %v6112
        %v6285 = vpack.c.b16 %v6117, %v6113
        %v6286 = vpack.c.b16 %v6122, %v6118
        %v6287 = vpack.c.b16 %v6123, %v6119
        %v6288 = vpack.c.b16 %v6124, %v6120
        %v6289 = vpack.c.b16 %v6125, %v6121
        %v6290 = vpack.c.b16 %v6130, %v6126
        %v6291 = vpack.c.b16 %v6131, %v6127
        %v6292 = vpack.c.b16 %v6132, %v6128
        %v6293 = vpack.c.b16 %v6133, %v6129
        %v6294 = vpack.c.b16 %v6138, %v6134
        %v6295 = vpack.c.b16 %v6139, %v6135
        %v6296 = vpack.c.b16 %v6140, %v6136
        %v6297 = vpack.c.b16 %v6141, %v6137
        %v6298 = vpack.c.b16 %v6146, %v6142
        %v6299 = vpack.c.b16 %v6147, %v6143
        %v6300 = vpack.c.b16 %v6148, %v6144
        %v6301 = vpack.c.b16 %v6149, %v6145
        %v6302 = vpack.c.b16 %v6154, %v6150
        %v6303 = vpack.c.b16 %v6155, %v6151
        %v6304 = vpack.c.b16 %v6156, %v6152
        %v6305 = vpack.c.b16 %v6157, %v6153
        %v6306 = vpack.c.b16 %v6162, %v6158
        %v6307 = vpack.c.b16 %v6163, %v6159
        %v6308 = vpack.c.b16 %v6164, %v6160
        %v6309 = vpack.c.b16 %v6165, %v6161
        %v6310 = vpack.c.b16 %v6170, %v6166
        %v6311 = vpack.c.b16 %v6171, %v6167
        %v6312 = vpack.c.b16 %v6172, %v6168
        %v6313 = vpack.c.b16 %v6173, %v6169
        %v6314 = vpack.c.b16 %v6178, %v6174
        %v6315 = vpack.c.b16 %v6179, %v6175
        %v6316 = vpack.c.b16 %v6180, %v6176
        %v6317 = vpack.c.b16 %v6181, %v6177
        %v6318 = vpack.c.b16 %v6186, %v6182
        %v6319 = vpack.c.b16 %v6187, %v6183
        %v6320 = vpack.c.b16 %v6188, %v6184
        %v6321 = vpack.c.b16 %v6189, %v6185
        %v6322 = vpack.c.b16 %v6194, %v6190
        %v6323 = vpack.c.b16 %v6195, %v6191
        %v6324 = vpack.c.b16 %v6196, %v6192
        %v6325 = vpack.c.b16 %v6197, %v6193
        %6454 = vmatprep.subr.bf16.mxu0 %v6199
        %6455 = vmatpush1.bf16.msra.mxu0 %v6198
        %6456 = vmatprep.subr.bf16.mxu0 %v6203
        %6457 = vmatpush1.bf16.msra.mxu0 %v6202
        %6458 = vmatprep.subr.bf16.mxu0 %v6207
        %6459 = vmatpush1.bf16.msra.mxu0 %v6206
        %6460 = vmatprep.subr.bf16.mxu0 %v6211
        %6461 = vmatpush1.bf16.msra.mxu0 %v6210
        %6462 = vmatprep.subr.bf16.mxu0 %v6215
        %6463 = vmatpush1.bf16.msra.mxu0 %v6214
        %6464 = vmatprep.subr.bf16.mxu0 %v6219
        %6465 = vmatpush1.bf16.msra.mxu0 %v6218
        %6466 = vmatprep.subr.bf16.mxu0 %v6223
        %6467 = vmatpush1.bf16.msra.mxu0 %v6222
        %6468 = vmatprep.subr.bf16.mxu0 %v6227
        %6469 = vmatpush1.bf16.msra.mxu0 %v6226
        %6470 = vmatprep.subr.bf16.mxu0 %v6231
        %6471 = vmatpush1.bf16.msra.mxu0 %v6230
        %6472 = vmatprep.subr.bf16.mxu0 %v6235
        %6473 = vmatpush1.bf16.msra.mxu0 %v6234
        %6474 = vmatprep.subr.bf16.mxu0 %v6239
        %6475 = vmatpush1.bf16.msra.mxu0 %v6238
        %6476 = vmatprep.subr.bf16.mxu0 %v6243
        %6477 = vmatpush1.bf16.msra.mxu0 %v6242
        %6478 = vmatprep.subr.bf16.mxu0 %v6247
        %6479 = vmatpush1.bf16.msra.mxu0 %v6246
        %6480 = vmatprep.subr.bf16.mxu0 %v6251
        %6481 = vmatpush1.bf16.msra.mxu0 %v6250
        %6482 = vmatprep.subr.bf16.mxu0 %v6255
        %6483 = vmatpush1.bf16.msra.mxu0 %v6254
        %6484 = vmatprep.subr.bf16.mxu0 %v6259
        %6485 = vmatpush1.bf16.msra.mxu0 %v6258
        %6486 = vmatprep.mubr.bf16.mxu0 %v5803
        %6487 = vmatmul.mubr.bf16.gmra.mrb[0].mxu0 %v5800
        %v6488 = vpop.f32.mrb[0].mxu0
        %v6489 = vadd.f32 0.0, %v6488
        %v6490 = vpop.f32.mrb[0].mxu0
        %v6491 = vadd.f32 0.0, %v6490
        %v6492 = vpop.f32.mrb[0].mxu0
        %v6493 = vadd.f32 0.0, %v6492
        %v6494 = vpop.f32.mrb[0].mxu0
        %v6495 = vadd.f32 0.0, %v6494
        %6496 = vdwg.mxu0
        %6497 = vmatprep.subr.bf16.mxu0 %v6263
        %6498 = vmatpush1.bf16.msra.mxu0 %v6262
        %6499 = vmatprep.subr.bf16.mxu0 %v6267
        %6500 = vmatpush1.bf16.msra.mxu0 %v6266
        %6501 = vmatprep.subr.bf16.mxu0 %v6271
        %6502 = vmatpush1.bf16.msra.mxu0 %v6270
        %6503 = vmatprep.subr.bf16.mxu0 %v6275
        %6504 = vmatpush1.bf16.msra.mxu0 %v6274
        %6505 = vmatprep.subr.bf16.mxu0 %v6279
        %6506 = vmatpush1.bf16.msra.mxu0 %v6278
        %6507 = vmatprep.subr.bf16.mxu0 %v6283
        %6508 = vmatpush1.bf16.msra.mxu0 %v6282
        %6509 = vmatprep.subr.bf16.mxu0 %v6287
        %6510 = vmatpush1.bf16.msra.mxu0 %v6286
        %6511 = vmatprep.subr.bf16.mxu0 %v6291
        %6512 = vmatpush1.bf16.msra.mxu0 %v6290
        %6513 = vmatprep.subr.bf16.mxu0 %v6295
        %6514 = vmatpush1.bf16.msra.mxu0 %v6294
        %6515 = vmatprep.subr.bf16.mxu0 %v6299
        %6516 = vmatpush1.bf16.msra.mxu0 %v6298
        %6517 = vmatprep.subr.bf16.mxu0 %v6303
        %6518 = vmatpush1.bf16.msra.mxu0 %v6302
        %6519 = vmatprep.subr.bf16.mxu0 %v6307
        %6520 = vmatpush1.bf16.msra.mxu0 %v6306
        %6521 = vmatprep.subr.bf16.mxu0 %v6311
        %6522 = vmatpush1.bf16.msra.mxu0 %v6310
        %6523 = vmatprep.subr.bf16.mxu0 %v6315
        %6524 = vmatpush1.bf16.msra.mxu0 %v6314
        %6525 = vmatprep.subr.bf16.mxu0 %v6319
        %6526 = vmatpush1.bf16.msra.mxu0 %v6318
        %6527 = vmatprep.subr.bf16.mxu0 %v6323
        %6528 = vmatpush1.bf16.msra.mxu0 %v6322
        %6529 = vmatprep.mubr.bf16.mxu0 %v5809
        %6530 = vmatmul.mubr.bf16.gmra.mrb[0].mxu0 %v5806
        %v6531 = vpop.f32.mrb[0].mxu0
        %v6532 = vadd.f32 %v6489, %v6531
        %v6533 = vpop.f32.mrb[0].mxu0
        %v6534 = vadd.f32 %v6491, %v6533
        %v6535 = vpop.f32.mrb[0].mxu0
        %v6536 = vadd.f32 %v6493, %v6535
        %v6537 = vpop.f32.mrb[0].mxu0
        %v6538 = vadd.f32 %v6495, %v6537
        %6539 = vdwg.mxu0
        %6540 = vmatprep.subr.bf16.mxu0 %v6201
        %6541 = vmatpush1.bf16.msra.mxu0 %v6200
        %6542 = vmatprep.subr.bf16.mxu0 %v6205
        %6543 = vmatpush1.bf16.msra.mxu0 %v6204
        %6544 = vmatprep.subr.bf16.mxu0 %v6209
        %6545 = vmatpush1.bf16.msra.mxu0 %v6208
        %6546 = vmatprep.subr.bf16.mxu0 %v6213
        %6547 = vmatpush1.bf16.msra.mxu0 %v6212
        %6548 = vmatprep.subr.bf16.mxu0 %v6217
        %6549 = vmatpush1.bf16.msra.mxu0 %v6216
        %6550 = vmatprep.subr.bf16.mxu0 %v6221
        %6551 = vmatpush1.bf16.msra.mxu0 %v6220
        %6552 = vmatprep.subr.bf16.mxu0 %v6225
        %6553 = vmatpush1.bf16.msra.mxu0 %v6224
        %6554 = vmatprep.subr.bf16.mxu0 %v6229
        %6555 = vmatpush1.bf16.msra.mxu0 %v6228
        %6556 = vmatprep.subr.bf16.mxu0 %v6233
        %6557 = vmatpush1.bf16.msra.mxu0 %v6232
        %6558 = vmatprep.subr.bf16.mxu0 %v6237
        %6559 = vmatpush1.bf16.msra.mxu0 %v6236
        %6560 = vmatprep.subr.bf16.mxu0 %v6241
        %6561 = vmatpush1.bf16.msra.mxu0 %v6240
        %6562 = vmatprep.subr.bf16.mxu0 %v6245
        %6563 = vmatpush1.bf16.msra.mxu0 %v6244
        %6564 = vmatprep.subr.bf16.mxu0 %v6249
        %6565 = vmatpush1.bf16.msra.mxu0 %v6248
        %6566 = vmatprep.subr.bf16.mxu0 %v6253
        %6567 = vmatpush1.bf16.msra.mxu0 %v6252
        %6568 = vmatprep.subr.bf16.mxu0 %v6257
        %6569 = vmatpush1.bf16.msra.mxu0 %v6256
        %6570 = vmatprep.subr.bf16.mxu0 %v6261
        %6571 = vmatpush1.bf16.msra.mxu0 %v6260
        %6572 = vmatprep.mubr.bf16.mxu0 %v5803
        %6573 = vmatmul.mubr.bf16.gmra.mrb[0].mxu0 %v5800
        %v6574 = vpop.f32.mrb[0].mxu0
        %v6575 = vadd.f32 0.0, %v6574
        %v6576 = vpop.f32.mrb[0].mxu0
        %v6577 = vadd.f32 0.0, %v6576
        %v6578 = vpop.f32.mrb[0].mxu0
        %v6579 = vadd.f32 0.0, %v6578
        %v6580 = vpop.f32.mrb[0].mxu0
        %v6581 = vadd.f32 0.0, %v6580
        %6582 = vdwg.mxu0
        %6583 = vmatprep.subr.bf16.mxu0 %v6265
        %6584 = vmatpush1.bf16.msra.mxu0 %v6264
        %6585 = vmatprep.subr.bf16.mxu0 %v6269
        %6586 = vmatpush1.bf16.msra.mxu0 %v6268
        %6587 = vmatprep.subr.bf16.mxu0 %v6273
        %6588 = vmatpush1.bf16.msra.mxu0 %v6272
        %6589 = vmatprep.subr.bf16.mxu0 %v6277
        %6590 = vmatpush1.bf16.msra.mxu0 %v6276
        %6591 = vmatprep.subr.bf16.mxu0 %v6281
        %6592 = vmatpush1.bf16.msra.mxu0 %v6280
        %6593 = vmatprep.subr.bf16.mxu0 %v6285
        %6594 = vmatpush1.bf16.msra.mxu0 %v6284
        %6595 = vmatprep.subr.bf16.mxu0 %v6289
        %6596 = vmatpush1.bf16.msra.mxu0 %v6288
        %6597 = vmatprep.subr.bf16.mxu0 %v6293
        %6598 = vmatpush1.bf16.msra.mxu0 %v6292
        %6599 = vmatprep.subr.bf16.mxu0 %v6297
        %6600 = vmatpush1.bf16.msra.mxu0 %v6296
        %6601 = vmatprep.subr.bf16.mxu0 %v6301
        %6602 = vmatpush1.bf16.msra.mxu0 %v6300
        %6603 = vmatprep.subr.bf16.mxu0 %v6305
        %6604 = vmatpush1.bf16.msra.mxu0 %v6304
        %6605 = vmatprep.subr.bf16.mxu0 %v6309
        %6606 = vmatpush1.bf16.msra.mxu0 %v6308
        %6607 = vmatprep.subr.bf16.mxu0 %v6313
        %6608 = vmatpush1.bf16.msra.mxu0 %v6312
        %6609 = vmatprep.subr.bf16.mxu0 %v6317
        %6610 = vmatpush1.bf16.msra.mxu0 %v6316
        %6611 = vmatprep.subr.bf16.mxu0 %v6321
        %6612 = vmatpush1.bf16.msra.mxu0 %v6320
        %6613 = vmatprep.subr.bf16.mxu0 %v6325
        %6614 = vmatpush1.bf16.msra.mxu0 %v6324
        %6615 = vmatprep.mubr.bf16.mxu0 %v5809
        %6616 = vmatmul.mubr.bf16.gmra.mrb[0].mxu0 %v5806
        %v6617 = vpop.f32.mrb[0].mxu0
        %v6618 = vadd.f32 %v6575, %v6617
        %v6619 = vpop.f32.mrb[0].mxu0
        %v6620 = vadd.f32 %v6577, %v6619
        %v6621 = vpop.f32.mrb[0].mxu0
        %v6622 = vadd.f32 %v6579, %v6621
        %v6623 = vpop.f32.mrb[0].mxu0
        %v6624 = vadd.f32 %v6581, %v6623
        %6625 = vdwg.mxu0
        %v6626 = vadd.f32 %v5563, %v6532
        %v6627 = vadd.f32 %v5565, %v6534
        %v6628 = vadd.f32 %v5649, %v6618
        %v6629 = vadd.f32 %v5651, %v6620
        %v6630 = vadd.f32 %v5567, %v6536
        %v6631 = vadd.f32 %v5569, %v6538
        %v6632 = vadd.f32 %v5653, %v6622
        %v6633 = vadd.f32 %v5655, %v6624
        %v6634 = vld [vmem:[#allocation3 + $0x20] sm:$0x33]
        %v6635 = vld [vmem:[#allocation3 + $0x28] sm:$0x33]
        %s6636 = scalar_lea.vmem [#allocation10], 3072
        %v6637 = vld [vmem:[%s6636] sm:$0xff]
        %v6638 = vld [vmem:[%s6636 + $0x8] sm:$0xff]
        %v6639 = vld [vmem:[%s6636 + $0x10] sm:$0xff]
        %v6640 = vld [vmem:[%s6636 + $0x18] sm:$0xff]
        %v6641 = vld [vmem:[%s6636 + $0x20] sm:$0xff]
        %v6642 = vld [vmem:[%s6636 + $0x28] sm:$0xff]
        %v6643 = vld [vmem:[%s6636 + $0x30] sm:$0xff]
        %v6644 = vld [vmem:[%s6636 + $0x38] sm:$0xff]
        %v6645 = vld [vmem:[%s6636 + $0x40] sm:$0xff]
        %v6646 = vld [vmem:[%s6636 + $0x48] sm:$0xff]
        %v6647 = vld [vmem:[%s6636 + $0x50] sm:$0xff]
        %v6648 = vld [vmem:[%s6636 + $0x58] sm:$0xff]
        %v6649 = vld [vmem:[%s6636 + $0x60] sm:$0xff]
        %v6650 = vld [vmem:[%s6636 + $0x68] sm:$0xff]
        %v6651 = vld [vmem:[%s6636 + $0x70] sm:$0xff]
        %v6652 = vld [vmem:[%s6636 + $0x78] sm:$0xff]
        %v6653 = vld [vmem:[%s6636 + $0x80] sm:$0xff]
        %v6654 = vld [vmem:[%s6636 + $0x88] sm:$0xff]
        %v6655 = vld [vmem:[%s6636 + $0x90] sm:$0xff]
        %v6656 = vld [vmem:[%s6636 + $0x98] sm:$0xff]
        %v6657 = vld [vmem:[%s6636 + $0xa0] sm:$0xff]
        %v6658 = vld [vmem:[%s6636 + $0xa8] sm:$0xff]
        %v6659 = vld [vmem:[%s6636 + $0xb0] sm:$0xff]
        %v6660 = vld [vmem:[%s6636 + $0xb8] sm:$0xff]
        %v6661 = vld [vmem:[%s6636 + $0xc0] sm:$0xff]
        %v6662 = vld [vmem:[%s6636 + $0xc8] sm:$0xff]
        %v6663 = vld [vmem:[%s6636 + $0xd0] sm:$0xff]
        %v6664 = vld [vmem:[%s6636 + $0xd8] sm:$0xff]
        %v6665 = vld [vmem:[%s6636 + $0xe0] sm:$0xff]
        %v6666 = vld [vmem:[%s6636 + $0xe8] sm:$0xff]
        %v6667 = vld [vmem:[%s6636 + $0xf0] sm:$0xff]
        %v6668 = vld [vmem:[%s6636 + $0xf8] sm:$0xff]
        %v6669 = vld [vmem:[%s6636 + $0x100] sm:$0xff]
        %v6670 = vld [vmem:[%s6636 + $0x108] sm:$0xff]
        %v6671 = vld [vmem:[%s6636 + $0x110] sm:$0xff]
        %v6672 = vld [vmem:[%s6636 + $0x118] sm:$0xff]
        %v6673 = vld [vmem:[%s6636 + $0x120] sm:$0xff]
        %v6674 = vld [vmem:[%s6636 + $0x128] sm:$0xff]
        %v6675 = vld [vmem:[%s6636 + $0x130] sm:$0xff]
        %v6676 = vld [vmem:[%s6636 + $0x138] sm:$0xff]
        %v6677 = vld [vmem:[%s6636 + $0x140] sm:$0xff]
        %v6678 = vld [vmem:[%s6636 + $0x148] sm:$0xff]
        %v6679 = vld [vmem:[%s6636 + $0x150] sm:$0xff]
        %v6680 = vld [vmem:[%s6636 + $0x158] sm:$0xff]
        %v6681 = vld [vmem:[%s6636 + $0x160] sm:$0xff]
        %v6682 = vld [vmem:[%s6636 + $0x168] sm:$0xff]
        %v6683 = vld [vmem:[%s6636 + $0x170] sm:$0xff]
        %v6684 = vld [vmem:[%s6636 + $0x178] sm:$0xff]
        %v6685 = vld [vmem:[%s6636 + $0x180] sm:$0xff]
        %v6686 = vld [vmem:[%s6636 + $0x188] sm:$0xff]
        %v6687 = vld [vmem:[%s6636 + $0x190] sm:$0xff]
        %v6688 = vld [vmem:[%s6636 + $0x198] sm:$0xff]
        %v6689 = vld [vmem:[%s6636 + $0x1a0] sm:$0xff]
        %v6690 = vld [vmem:[%s6636 + $0x1a8] sm:$0xff]
        %v6691 = vld [vmem:[%s6636 + $0x1b0] sm:$0xff]
        %v6692 = vld [vmem:[%s6636 + $0x1b8] sm:$0xff]
        %v6693 = vld [vmem:[%s6636 + $0x1c0] sm:$0xff]
        %v6694 = vld [vmem:[%s6636 + $0x1c8] sm:$0xff]
        %v6695 = vld [vmem:[%s6636 + $0x1d0] sm:$0xff]
        %v6696 = vld [vmem:[%s6636 + $0x1d8] sm:$0xff]
        %v6697 = vld [vmem:[%s6636 + $0x1e0] sm:$0xff]
        %v6698 = vld [vmem:[%s6636 + $0x1e8] sm:$0xff]
        %v6699 = vld [vmem:[%s6636 + $0x1f0] sm:$0xff]
        %v6700 = vld [vmem:[%s6636 + $0x1f8] sm:$0xff]
        %v6701 = vld [vmem:[%s6636 + $0x200] sm:$0xff]
        %v6702 = vld [vmem:[%s6636 + $0x208] sm:$0xff]
        %v6703 = vld [vmem:[%s6636 + $0x210] sm:$0xff]
        %v6704 = vld [vmem:[%s6636 + $0x218] sm:$0xff]
        %v6705 = vld [vmem:[%s6636 + $0x220] sm:$0xff]
        %v6706 = vld [vmem:[%s6636 + $0x228] sm:$0xff]
        %v6707 = vld [vmem:[%s6636 + $0x230] sm:$0xff]
        %v6708 = vld [vmem:[%s6636 + $0x238] sm:$0xff]
        %v6709 = vld [vmem:[%s6636 + $0x240] sm:$0xff]
        %v6710 = vld [vmem:[%s6636 + $0x248] sm:$0xff]
        %v6711 = vld [vmem:[%s6636 + $0x250] sm:$0xff]
        %v6712 = vld [vmem:[%s6636 + $0x258] sm:$0xff]
        %v6713 = vld [vmem:[%s6636 + $0x260] sm:$0xff]
        %v6714 = vld [vmem:[%s6636 + $0x268] sm:$0xff]
        %v6715 = vld [vmem:[%s6636 + $0x270] sm:$0xff]
        %v6716 = vld [vmem:[%s6636 + $0x278] sm:$0xff]
        %v6717 = vld [vmem:[%s6636 + $0x280] sm:$0xff]
        %v6718 = vld [vmem:[%s6636 + $0x288] sm:$0xff]
        %v6719 = vld [vmem:[%s6636 + $0x290] sm:$0xff]
        %v6720 = vld [vmem:[%s6636 + $0x298] sm:$0xff]
        %v6721 = vld [vmem:[%s6636 + $0x2a0] sm:$0xff]
        %v6722 = vld [vmem:[%s6636 + $0x2a8] sm:$0xff]
        %v6723 = vld [vmem:[%s6636 + $0x2b0] sm:$0xff]
        %v6724 = vld [vmem:[%s6636 + $0x2b8] sm:$0xff]
        %v6725 = vld [vmem:[%s6636 + $0x2c0] sm:$0xff]
        %v6726 = vld [vmem:[%s6636 + $0x2c8] sm:$0xff]
        %v6727 = vld [vmem:[%s6636 + $0x2d0] sm:$0xff]
        %v6728 = vld [vmem:[%s6636 + $0x2d8] sm:$0xff]
        %v6729 = vld [vmem:[%s6636 + $0x2e0] sm:$0xff]
        %v6730 = vld [vmem:[%s6636 + $0x2e8] sm:$0xff]
        %v6731 = vld [vmem:[%s6636 + $0x2f0] sm:$0xff]
        %v6732 = vld [vmem:[%s6636 + $0x2f8] sm:$0xff]
        %v6733 = vld [vmem:[%s6636 + $0x300] sm:$0xff]
        %v6734 = vld [vmem:[%s6636 + $0x308] sm:$0xff]
        %v6735 = vld [vmem:[%s6636 + $0x310] sm:$0xff]
        %v6736 = vld [vmem:[%s6636 + $0x318] sm:$0xff]
        %v6737 = vld [vmem:[%s6636 + $0x320] sm:$0xff]
        %v6738 = vld [vmem:[%s6636 + $0x328] sm:$0xff]
        %v6739 = vld [vmem:[%s6636 + $0x330] sm:$0xff]
        %v6740 = vld [vmem:[%s6636 + $0x338] sm:$0xff]
        %v6741 = vld [vmem:[%s6636 + $0x340] sm:$0xff]
        %v6742 = vld [vmem:[%s6636 + $0x348] sm:$0xff]
        %v6743 = vld [vmem:[%s6636 + $0x350] sm:$0xff]
        %v6744 = vld [vmem:[%s6636 + $0x358] sm:$0xff]
        %v6745 = vld [vmem:[%s6636 + $0x360] sm:$0xff]
        %v6746 = vld [vmem:[%s6636 + $0x368] sm:$0xff]
        %v6747 = vld [vmem:[%s6636 + $0x370] sm:$0xff]
        %v6748 = vld [vmem:[%s6636 + $0x378] sm:$0xff]
        %v6749 = vld [vmem:[%s6636 + $0x380] sm:$0xff]
        %v6750 = vld [vmem:[%s6636 + $0x388] sm:$0xff]
        %v6751 = vld [vmem:[%s6636 + $0x390] sm:$0xff]
        %v6752 = vld [vmem:[%s6636 + $0x398] sm:$0xff]
        %v6753 = vld [vmem:[%s6636 + $0x3a0] sm:$0xff]
        %v6754 = vld [vmem:[%s6636 + $0x3a8] sm:$0xff]
        %v6755 = vld [vmem:[%s6636 + $0x3b0] sm:$0xff]
        %v6756 = vld [vmem:[%s6636 + $0x3b8] sm:$0xff]
        %v6757 = vld [vmem:[%s6636 + $0x3c0] sm:$0xff]
        %v6758 = vld [vmem:[%s6636 + $0x3c8] sm:$0xff]
        %v6759 = vld [vmem:[%s6636 + $0x3d0] sm:$0xff]
        %v6760 = vld [vmem:[%s6636 + $0x3d8] sm:$0xff]
        %v6761 = vld [vmem:[%s6636 + $0x3e0] sm:$0xff]
        %v6762 = vld [vmem:[%s6636 + $0x3e8] sm:$0xff]
        %v6763 = vld [vmem:[%s6636 + $0x3f0] sm:$0xff]
        %v6764 = vld [vmem:[%s6636 + $0x3f8] sm:$0xff]
        %v6767 = vunpack.c.l.b16 %v6634
        %v6768 = vunpack.c.h.b16 %v6634
        %v6769 = vunpack.c.l.b16 %v6635
        %v6770 = vunpack.c.h.b16 %v6635
        %v6771 = vpack.c.b16 %v6767, %v6767
        %v6772 = vpack.c.b16 %v6768, %v6768
        %v6773 = vpack.c.b16 %v6769, %v6769
        %v6774 = vpack.c.b16 %v6770, %v6770
        %v6776 = vshrl.u32 %v5794, 16
        %v6778 = vrot.slane %v6776, 1
        %v6779 = vshll.u32 %v5794, 16
        %v6781 = vrot.slane %v6779, 2
        %v6782 = vor.u32 %v6778, %v6781
        %v6784 = vshrl.u32 %v6771, 16
        %v6786 = vrot.slane %v6784, 1
        %v6787 = vshll.u32 %v6771, 16
        %v6789 = vrot.slane %v6787, 2
        %v6790 = vor.u32 %v6786, %v6789
        %v6791 = vsel %vm1336, %v6782, %v6790
        %v6793 = vshrl.u32 %v5795, 16
        %v6795 = vrot.slane %v6793, 1
        %v6796 = vshll.u32 %v5795, 16
        %v6798 = vrot.slane %v6796, 2
        %v6799 = vor.u32 %v6795, %v6798
        %v6801 = vshrl.u32 %v6772, 16
        %v6803 = vrot.slane %v6801, 1
        %v6804 = vshll.u32 %v6772, 16
        %v6806 = vrot.slane %v6804, 2
        %v6807 = vor.u32 %v6803, %v6806
        %v6808 = vsel %vm1336, %v6799, %v6807
        %v6810 = vshrl.u32 %v5796, 16
        %v6812 = vrot.slane %v6810, 1
        %v6813 = vshll.u32 %v5796, 16
        %v6815 = vrot.slane %v6813, 2
        %v6816 = vor.u32 %v6812, %v6815
        %v6818 = vshrl.u32 %v6773, 16
        %v6820 = vrot.slane %v6818, 1
        %v6821 = vshll.u32 %v6773, 16
        %v6823 = vrot.slane %v6821, 2
        %v6824 = vor.u32 %v6820, %v6823
        %v6825 = vsel %vm1336, %v6816, %v6824
        %v6827 = vshrl.u32 %v5797, 16
        %v6829 = vrot.slane %v6827, 1
        %v6830 = vshll.u32 %v5797, 16
        %v6832 = vrot.slane %v6830, 2
        %v6833 = vor.u32 %v6829, %v6832
        %v6835 = vshrl.u32 %v6774, 16
        %v6837 = vrot.slane %v6835, 1
        %v6838 = vshll.u32 %v6774, 16
        %v6840 = vrot.slane %v6838, 2
        %v6841 = vor.u32 %v6837, %v6840
        %v6842 = vsel %vm1336, %v6833, %v6841
        %v6975 = vunpack.c.l.b16 %v6637
        %v6976 = vunpack.c.h.b16 %v6637
        %v6977 = vunpack.c.l.b16 %v6638
        %v6978 = vunpack.c.h.b16 %v6638
        %v6979 = vunpack.c.l.b16 %v6639
        %v6980 = vunpack.c.h.b16 %v6639
        %v6981 = vunpack.c.l.b16 %v6640
        %v6982 = vunpack.c.h.b16 %v6640
        %v6983 = vunpack.c.l.b16 %v6641
        %v6984 = vunpack.c.h.b16 %v6641
        %v6985 = vunpack.c.l.b16 %v6642
        %v6986 = vunpack.c.h.b16 %v6642
        %v6987 = vunpack.c.l.b16 %v6643
        %v6988 = vunpack.c.h.b16 %v6643
        %v6989 = vunpack.c.l.b16 %v6644
        %v6990 = vunpack.c.h.b16 %v6644
        %v6991 = vunpack.c.l.b16 %v6645
        %v6992 = vunpack.c.h.b16 %v6645
        %v6993 = vunpack.c.l.b16 %v6646
        %v6994 = vunpack.c.h.b16 %v6646
        %v6995 = vunpack.c.l.b16 %v6647
        %v6996 = vunpack.c.h.b16 %v6647
        %v6997 = vunpack.c.l.b16 %v6648
        %v6998 = vunpack.c.h.b16 %v6648
        %v6999 = vunpack.c.l.b16 %v6649
        %v7000 = vunpack.c.h.b16 %v6649
        %v7001 = vunpack.c.l.b16 %v6650
        %v7002 = vunpack.c.h.b16 %v6650
        %v7003 = vunpack.c.l.b16 %v6651
        %v7004 = vunpack.c.h.b16 %v6651
        %v7005 = vunpack.c.l.b16 %v6652
        %v7006 = vunpack.c.h.b16 %v6652
        %v7007 = vunpack.c.l.b16 %v6653
        %v7008 = vunpack.c.h.b16 %v6653
        %v7009 = vunpack.c.l.b16 %v6654
        %v7010 = vunpack.c.h.b16 %v6654
        %v7011 = vunpack.c.l.b16 %v6655
        %v7012 = vunpack.c.h.b16 %v6655
        %v7013 = vunpack.c.l.b16 %v6656
        %v7014 = vunpack.c.h.b16 %v6656
        %v7015 = vunpack.c.l.b16 %v6657
        %v7016 = vunpack.c.h.b16 %v6657
        %v7017 = vunpack.c.l.b16 %v6658
        %v7018 = vunpack.c.h.b16 %v6658
        %v7019 = vunpack.c.l.b16 %v6659
        %v7020 = vunpack.c.h.b16 %v6659
        %v7021 = vunpack.c.l.b16 %v6660
        %v7022 = vunpack.c.h.b16 %v6660
        %v7023 = vunpack.c.l.b16 %v6661
        %v7024 = vunpack.c.h.b16 %v6661
        %v7025 = vunpack.c.l.b16 %v6662
        %v7026 = vunpack.c.h.b16 %v6662
        %v7027 = vunpack.c.l.b16 %v6663
        %v7028 = vunpack.c.h.b16 %v6663
        %v7029 = vunpack.c.l.b16 %v6664
        %v7030 = vunpack.c.h.b16 %v6664
        %v7031 = vunpack.c.l.b16 %v6665
        %v7032 = vunpack.c.h.b16 %v6665
        %v7033 = vunpack.c.l.b16 %v6666
        %v7034 = vunpack.c.h.b16 %v6666
        %v7035 = vunpack.c.l.b16 %v6667
        %v7036 = vunpack.c.h.b16 %v6667
        %v7037 = vunpack.c.l.b16 %v6668
        %v7038 = vunpack.c.h.b16 %v6668
        %v7039 = vunpack.c.l.b16 %v6669
        %v7040 = vunpack.c.h.b16 %v6669
        %v7041 = vunpack.c.l.b16 %v6670
        %v7042 = vunpack.c.h.b16 %v6670
        %v7043 = vunpack.c.l.b16 %v6671
        %v7044 = vunpack.c.h.b16 %v6671
        %v7045 = vunpack.c.l.b16 %v6672
        %v7046 = vunpack.c.h.b16 %v6672
        %v7047 = vunpack.c.l.b16 %v6673
        %v7048 = vunpack.c.h.b16 %v6673
        %v7049 = vunpack.c.l.b16 %v6674
        %v7050 = vunpack.c.h.b16 %v6674
        %v7051 = vunpack.c.l.b16 %v6675
        %v7052 = vunpack.c.h.b16 %v6675
        %v7053 = vunpack.c.l.b16 %v6676
        %v7054 = vunpack.c.h.b16 %v6676
        %v7055 = vunpack.c.l.b16 %v6677
        %v7056 = vunpack.c.h.b16 %v6677
        %v7057 = vunpack.c.l.b16 %v6678
        %v7058 = vunpack.c.h.b16 %v6678
        %v7059 = vunpack.c.l.b16 %v6679
        %v7060 = vunpack.c.h.b16 %v6679
        %v7061 = vunpack.c.l.b16 %v6680
        %v7062 = vunpack.c.h.b16 %v6680
        %v7063 = vunpack.c.l.b16 %v6681
        %v7064 = vunpack.c.h.b16 %v6681
        %v7065 = vunpack.c.l.b16 %v6682
        %v7066 = vunpack.c.h.b16 %v6682
        %v7067 = vunpack.c.l.b16 %v6683
        %v7068 = vunpack.c.h.b16 %v6683
        %v7069 = vunpack.c.l.b16 %v6684
        %v7070 = vunpack.c.h.b16 %v6684
        %v7071 = vunpack.c.l.b16 %v6685
        %v7072 = vunpack.c.h.b16 %v6685
        %v7073 = vunpack.c.l.b16 %v6686
        %v7074 = vunpack.c.h.b16 %v6686
        %v7075 = vunpack.c.l.b16 %v6687
        %v7076 = vunpack.c.h.b16 %v6687
        %v7077 = vunpack.c.l.b16 %v6688
        %v7078 = vunpack.c.h.b16 %v6688
        %v7079 = vunpack.c.l.b16 %v6689
        %v7080 = vunpack.c.h.b16 %v6689
        %v7081 = vunpack.c.l.b16 %v6690
        %v7082 = vunpack.c.h.b16 %v6690
        %v7083 = vunpack.c.l.b16 %v6691
        %v7084 = vunpack.c.h.b16 %v6691
        %v7085 = vunpack.c.l.b16 %v6692
        %v7086 = vunpack.c.h.b16 %v6692
        %v7087 = vunpack.c.l.b16 %v6693
        %v7088 = vunpack.c.h.b16 %v6693
        %v7089 = vunpack.c.l.b16 %v6694
        %v7090 = vunpack.c.h.b16 %v6694
        %v7091 = vunpack.c.l.b16 %v6695
        %v7092 = vunpack.c.h.b16 %v6695
        %v7093 = vunpack.c.l.b16 %v6696
        %v7094 = vunpack.c.h.b16 %v6696
        %v7095 = vunpack.c.l.b16 %v6697
        %v7096 = vunpack.c.h.b16 %v6697
        %v7097 = vunpack.c.l.b16 %v6698
        %v7098 = vunpack.c.h.b16 %v6698
        %v7099 = vunpack.c.l.b16 %v6699
        %v7100 = vunpack.c.h.b16 %v6699
        %v7101 = vunpack.c.l.b16 %v6700
        %v7102 = vunpack.c.h.b16 %v6700
        %v7103 = vunpack.c.l.b16 %v6701
        %v7104 = vunpack.c.h.b16 %v6701
        %v7105 = vunpack.c.l.b16 %v6702
        %v7106 = vunpack.c.h.b16 %v6702
        %v7107 = vunpack.c.l.b16 %v6703
        %v7108 = vunpack.c.h.b16 %v6703
        %v7109 = vunpack.c.l.b16 %v6704
        %v7110 = vunpack.c.h.b16 %v6704
        %v7111 = vunpack.c.l.b16 %v6705
        %v7112 = vunpack.c.h.b16 %v6705
        %v7113 = vunpack.c.l.b16 %v6706
        %v7114 = vunpack.c.h.b16 %v6706
        %v7115 = vunpack.c.l.b16 %v6707
        %v7116 = vunpack.c.h.b16 %v6707
        %v7117 = vunpack.c.l.b16 %v6708
        %v7118 = vunpack.c.h.b16 %v6708
        %v7119 = vunpack.c.l.b16 %v6709
        %v7120 = vunpack.c.h.b16 %v6709
        %v7121 = vunpack.c.l.b16 %v6710
        %v7122 = vunpack.c.h.b16 %v6710
        %v7123 = vunpack.c.l.b16 %v6711
        %v7124 = vunpack.c.h.b16 %v6711
        %v7125 = vunpack.c.l.b16 %v6712
        %v7126 = vunpack.c.h.b16 %v6712
        %v7127 = vunpack.c.l.b16 %v6713
        %v7128 = vunpack.c.h.b16 %v6713
        %v7129 = vunpack.c.l.b16 %v6714
        %v7130 = vunpack.c.h.b16 %v6714
        %v7131 = vunpack.c.l.b16 %v6715
        %v7132 = vunpack.c.h.b16 %v6715
        %v7133 = vunpack.c.l.b16 %v6716
        %v7134 = vunpack.c.h.b16 %v6716
        %v7135 = vunpack.c.l.b16 %v6717
        %v7136 = vunpack.c.h.b16 %v6717
        %v7137 = vunpack.c.l.b16 %v6718
        %v7138 = vunpack.c.h.b16 %v6718
        %v7139 = vunpack.c.l.b16 %v6719
        %v7140 = vunpack.c.h.b16 %v6719
        %v7141 = vunpack.c.l.b16 %v6720
        %v7142 = vunpack.c.h.b16 %v6720
        %v7143 = vunpack.c.l.b16 %v6721
        %v7144 = vunpack.c.h.b16 %v6721
        %v7145 = vunpack.c.l.b16 %v6722
        %v7146 = vunpack.c.h.b16 %v6722
        %v7147 = vunpack.c.l.b16 %v6723
        %v7148 = vunpack.c.h.b16 %v6723
        %v7149 = vunpack.c.l.b16 %v6724
        %v7150 = vunpack.c.h.b16 %v6724
        %v7151 = vunpack.c.l.b16 %v6725
        %v7152 = vunpack.c.h.b16 %v6725
        %v7153 = vunpack.c.l.b16 %v6726
        %v7154 = vunpack.c.h.b16 %v6726
        %v7155 = vunpack.c.l.b16 %v6727
        %v7156 = vunpack.c.h.b16 %v6727
        %v7157 = vunpack.c.l.b16 %v6728
        %v7158 = vunpack.c.h.b16 %v6728
        %v7159 = vunpack.c.l.b16 %v6729
        %v7160 = vunpack.c.h.b16 %v6729
        %v7161 = vunpack.c.l.b16 %v6730
        %v7162 = vunpack.c.h.b16 %v6730
        %v7163 = vunpack.c.l.b16 %v6731
        %v7164 = vunpack.c.h.b16 %v6731
        %v7165 = vunpack.c.l.b16 %v6732
        %v7166 = vunpack.c.h.b16 %v6732
        %v7167 = vunpack.c.l.b16 %v6733
        %v7168 = vunpack.c.h.b16 %v6733
        %v7169 = vunpack.c.l.b16 %v6734
        %v7170 = vunpack.c.h.b16 %v6734
        %v7171 = vunpack.c.l.b16 %v6735
        %v7172 = vunpack.c.h.b16 %v6735
        %v7173 = vunpack.c.l.b16 %v6736
        %v7174 = vunpack.c.h.b16 %v6736
        %v7175 = vunpack.c.l.b16 %v6737
        %v7176 = vunpack.c.h.b16 %v6737
        %v7177 = vunpack.c.l.b16 %v6738
        %v7178 = vunpack.c.h.b16 %v6738
        %v7179 = vunpack.c.l.b16 %v6739
        %v7180 = vunpack.c.h.b16 %v6739
        %v7181 = vunpack.c.l.b16 %v6740
        %v7182 = vunpack.c.h.b16 %v6740
        %v7183 = vunpack.c.l.b16 %v6741
        %v7184 = vunpack.c.h.b16 %v6741
        %v7185 = vunpack.c.l.b16 %v6742
        %v7186 = vunpack.c.h.b16 %v6742
        %v7187 = vunpack.c.l.b16 %v6743
        %v7188 = vunpack.c.h.b16 %v6743
        %v7189 = vunpack.c.l.b16 %v6744
        %v7190 = vunpack.c.h.b16 %v6744
        %v7191 = vunpack.c.l.b16 %v6745
        %v7192 = vunpack.c.h.b16 %v6745
        %v7193 = vunpack.c.l.b16 %v6746
        %v7194 = vunpack.c.h.b16 %v6746
        %v7195 = vunpack.c.l.b16 %v6747
        %v7196 = vunpack.c.h.b16 %v6747
        %v7197 = vunpack.c.l.b16 %v6748
        %v7198 = vunpack.c.h.b16 %v6748
        %v7199 = vunpack.c.l.b16 %v6749
        %v7200 = vunpack.c.h.b16 %v6749
        %v7201 = vunpack.c.l.b16 %v6750
        %v7202 = vunpack.c.h.b16 %v6750
        %v7203 = vunpack.c.l.b16 %v6751
        %v7204 = vunpack.c.h.b16 %v6751
        %v7205 = vunpack.c.l.b16 %v6752
        %v7206 = vunpack.c.h.b16 %v6752
        %v7207 = vunpack.c.l.b16 %v6753
        %v7208 = vunpack.c.h.b16 %v6753
        %v7209 = vunpack.c.l.b16 %v6754
        %v7210 = vunpack.c.h.b16 %v6754
        %v7211 = vunpack.c.l.b16 %v6755
        %v7212 = vunpack.c.h.b16 %v6755
        %v7213 = vunpack.c.l.b16 %v6756
        %v7214 = vunpack.c.h.b16 %v6756
        %v7215 = vunpack.c.l.b16 %v6757
        %v7216 = vunpack.c.h.b16 %v6757
        %v7217 = vunpack.c.l.b16 %v6758
        %v7218 = vunpack.c.h.b16 %v6758
        %v7219 = vunpack.c.l.b16 %v6759
        %v7220 = vunpack.c.h.b16 %v6759
        %v7221 = vunpack.c.l.b16 %v6760
        %v7222 = vunpack.c.h.b16 %v6760
        %v7223 = vunpack.c.l.b16 %v6761
        %v7224 = vunpack.c.h.b16 %v6761
        %v7225 = vunpack.c.l.b16 %v6762
        %v7226 = vunpack.c.h.b16 %v6762
        %v7227 = vunpack.c.l.b16 %v6763
        %v7228 = vunpack.c.h.b16 %v6763
        %v7229 = vunpack.c.l.b16 %v6764
        %v7230 = vunpack.c.h.b16 %v6764
        %v7231 = vpack.c.b16 %v6979, %v6975
        %v7232 = vpack.c.b16 %v6980, %v6976
        %v7233 = vpack.c.b16 %v6981, %v6977
        %v7234 = vpack.c.b16 %v6982, %v6978
        %v7235 = vpack.c.b16 %v6987, %v6983
        %v7236 = vpack.c.b16 %v6988, %v6984
        %v7237 = vpack.c.b16 %v6989, %v6985
        %v7238 = vpack.c.b16 %v6990, %v6986
        %v7239 = vpack.c.b16 %v6995, %v6991
        %v7240 = vpack.c.b16 %v6996, %v6992
        %v7241 = vpack.c.b16 %v6997, %v6993
        %v7242 = vpack.c.b16 %v6998, %v6994
        %v7243 = vpack.c.b16 %v7003, %v6999
        %v7244 = vpack.c.b16 %v7004, %v7000
        %v7245 = vpack.c.b16 %v7005, %v7001
        %v7246 = vpack.c.b16 %v7006, %v7002
        %v7247 = vpack.c.b16 %v7011, %v7007
        %v7248 = vpack.c.b16 %v7012, %v7008
        %v7249 = vpack.c.b16 %v7013, %v7009
        %v7250 = vpack.c.b16 %v7014, %v7010
        %v7251 = vpack.c.b16 %v7019, %v7015
        %v7252 = vpack.c.b16 %v7020, %v7016
        %v7253 = vpack.c.b16 %v7021, %v7017
        %v7254 = vpack.c.b16 %v7022, %v7018
        %v7255 = vpack.c.b16 %v7027, %v7023
        %v7256 = vpack.c.b16 %v7028, %v7024
        %v7257 = vpack.c.b16 %v7029, %v7025
        %v7258 = vpack.c.b16 %v7030, %v7026
        %v7259 = vpack.c.b16 %v7035, %v7031
        %v7260 = vpack.c.b16 %v7036, %v7032
        %v7261 = vpack.c.b16 %v7037, %v7033
        %v7262 = vpack.c.b16 %v7038, %v7034
        %v7263 = vpack.c.b16 %v7043, %v7039
        %v7264 = vpack.c.b16 %v7044, %v7040
        %v7265 = vpack.c.b16 %v7045, %v7041
        %v7266 = vpack.c.b16 %v7046, %v7042
        %v7267 = vpack.c.b16 %v7051, %v7047
        %v7268 = vpack.c.b16 %v7052, %v7048
        %v7269 = vpack.c.b16 %v7053, %v7049
        %v7270 = vpack.c.b16 %v7054, %v7050
        %v7271 = vpack.c.b16 %v7059, %v7055
        %v7272 = vpack.c.b16 %v7060, %v7056
        %v7273 = vpack.c.b16 %v7061, %v7057
        %v7274 = vpack.c.b16 %v7062, %v7058
        %v7275 = vpack.c.b16 %v7067, %v7063
        %v7276 = vpack.c.b16 %v7068, %v7064
        %v7277 = vpack.c.b16 %v7069, %v7065
        %v7278 = vpack.c.b16 %v7070, %v7066
        %v7279 = vpack.c.b16 %v7075, %v7071
        %v7280 = vpack.c.b16 %v7076, %v7072
        %v7281 = vpack.c.b16 %v7077, %v7073
        %v7282 = vpack.c.b16 %v7078, %v7074
        %v7283 = vpack.c.b16 %v7083, %v7079
        %v7284 = vpack.c.b16 %v7084, %v7080
        %v7285 = vpack.c.b16 %v7085, %v7081
        %v7286 = vpack.c.b16 %v7086, %v7082
        %v7287 = vpack.c.b16 %v7091, %v7087
        %v7288 = vpack.c.b16 %v7092, %v7088
        %v7289 = vpack.c.b16 %v7093, %v7089
        %v7290 = vpack.c.b16 %v7094, %v7090
        %v7291 = vpack.c.b16 %v7099, %v7095
        %v7292 = vpack.c.b16 %v7100, %v7096
        %v7293 = vpack.c.b16 %v7101, %v7097
        %v7294 = vpack.c.b16 %v7102, %v7098
        %v7295 = vpack.c.b16 %v7107, %v7103
        %v7296 = vpack.c.b16 %v7108, %v7104
        %v7297 = vpack.c.b16 %v7109, %v7105
        %v7298 = vpack.c.b16 %v7110, %v7106
        %v7299 = vpack.c.b16 %v7115, %v7111
        %v7300 = vpack.c.b16 %v7116, %v7112
        %v7301 = vpack.c.b16 %v7117, %v7113
        %v7302 = vpack.c.b16 %v7118, %v7114
        %v7303 = vpack.c.b16 %v7123, %v7119
        %v7304 = vpack.c.b16 %v7124, %v7120
        %v7305 = vpack.c.b16 %v7125, %v7121
        %v7306 = vpack.c.b16 %v7126, %v7122
        %v7307 = vpack.c.b16 %v7131, %v7127
        %v7308 = vpack.c.b16 %v7132, %v7128
        %v7309 = vpack.c.b16 %v7133, %v7129
        %v7310 = vpack.c.b16 %v7134, %v7130
        %v7311 = vpack.c.b16 %v7139, %v7135
        %v7312 = vpack.c.b16 %v7140, %v7136
        %v7313 = vpack.c.b16 %v7141, %v7137
        %v7314 = vpack.c.b16 %v7142, %v7138
        %v7315 = vpack.c.b16 %v7147, %v7143
        %v7316 = vpack.c.b16 %v7148, %v7144
        %v7317 = vpack.c.b16 %v7149, %v7145
        %v7318 = vpack.c.b16 %v7150, %v7146
        %v7319 = vpack.c.b16 %v7155, %v7151
        %v7320 = vpack.c.b16 %v7156, %v7152
        %v7321 = vpack.c.b16 %v7157, %v7153
        %v7322 = vpack.c.b16 %v7158, %v7154
        %v7323 = vpack.c.b16 %v7163, %v7159
        %v7324 = vpack.c.b16 %v7164, %v7160
        %v7325 = vpack.c.b16 %v7165, %v7161
        %v7326 = vpack.c.b16 %v7166, %v7162
        %v7327 = vpack.c.b16 %v7171, %v7167
        %v7328 = vpack.c.b16 %v7172, %v7168
        %v7329 = vpack.c.b16 %v7173, %v7169
        %v7330 = vpack.c.b16 %v7174, %v7170
        %v7331 = vpack.c.b16 %v7179, %v7175
        %v7332 = vpack.c.b16 %v7180, %v7176
        %v7333 = vpack.c.b16 %v7181, %v7177
        %v7334 = vpack.c.b16 %v7182, %v7178
        %v7335 = vpack.c.b16 %v7187, %v7183
        %v7336 = vpack.c.b16 %v7188, %v7184
        %v7337 = vpack.c.b16 %v7189, %v7185
        %v7338 = vpack.c.b16 %v7190, %v7186
        %v7339 = vpack.c.b16 %v7195, %v7191
        %v7340 = vpack.c.b16 %v7196, %v7192
        %v7341 = vpack.c.b16 %v7197, %v7193
        %v7342 = vpack.c.b16 %v7198, %v7194
        %v7343 = vpack.c.b16 %v7203, %v7199
        %v7344 = vpack.c.b16 %v7204, %v7200
        %v7345 = vpack.c.b16 %v7205, %v7201
        %v7346 = vpack.c.b16 %v7206, %v7202
        %v7347 = vpack.c.b16 %v7211, %v7207
        %v7348 = vpack.c.b16 %v7212, %v7208
        %v7349 = vpack.c.b16 %v7213, %v7209
        %v7350 = vpack.c.b16 %v7214, %v7210
        %v7351 = vpack.c.b16 %v7219, %v7215
        %v7352 = vpack.c.b16 %v7220, %v7216
        %v7353 = vpack.c.b16 %v7221, %v7217
        %v7354 = vpack.c.b16 %v7222, %v7218
        %v7355 = vpack.c.b16 %v7227, %v7223
        %v7356 = vpack.c.b16 %v7228, %v7224
        %v7357 = vpack.c.b16 %v7229, %v7225
        %v7358 = vpack.c.b16 %v7230, %v7226
        %7487 = vmatprep.subr.bf16.mxu0 %v7232
        %7488 = vmatpush1.bf16.msra.mxu0 %v7231
        %7489 = vmatprep.subr.bf16.mxu0 %v7236
        %7490 = vmatpush1.bf16.msra.mxu0 %v7235
        %7491 = vmatprep.subr.bf16.mxu0 %v7240
        %7492 = vmatpush1.bf16.msra.mxu0 %v7239
        %7493 = vmatprep.subr.bf16.mxu0 %v7244
        %7494 = vmatpush1.bf16.msra.mxu0 %v7243
        %7495 = vmatprep.subr.bf16.mxu0 %v7248
        %7496 = vmatpush1.bf16.msra.mxu0 %v7247
        %7497 = vmatprep.subr.bf16.mxu0 %v7252
        %7498 = vmatpush1.bf16.msra.mxu0 %v7251
        %7499 = vmatprep.subr.bf16.mxu0 %v7256
        %7500 = vmatpush1.bf16.msra.mxu0 %v7255
        %7501 = vmatprep.subr.bf16.mxu0 %v7260
        %7502 = vmatpush1.bf16.msra.mxu0 %v7259
        %7503 = vmatprep.subr.bf16.mxu0 %v7264
        %7504 = vmatpush1.bf16.msra.mxu0 %v7263
        %7505 = vmatprep.subr.bf16.mxu0 %v7268
        %7506 = vmatpush1.bf16.msra.mxu0 %v7267
        %7507 = vmatprep.subr.bf16.mxu0 %v7272
        %7508 = vmatpush1.bf16.msra.mxu0 %v7271
        %7509 = vmatprep.subr.bf16.mxu0 %v7276
        %7510 = vmatpush1.bf16.msra.mxu0 %v7275
        %7511 = vmatprep.subr.bf16.mxu0 %v7280
        %7512 = vmatpush1.bf16.msra.mxu0 %v7279
        %7513 = vmatprep.subr.bf16.mxu0 %v7284
        %7514 = vmatpush1.bf16.msra.mxu0 %v7283
        %7515 = vmatprep.subr.bf16.mxu0 %v7288
        %7516 = vmatpush1.bf16.msra.mxu0 %v7287
        %7517 = vmatprep.subr.bf16.mxu0 %v7292
        %7518 = vmatpush1.bf16.msra.mxu0 %v7291
        %7519 = vmatprep.mubr.bf16.mxu0 %v6808
        %7520 = vmatmul.mubr.bf16.gmra.mrb[0].mxu0 %v6791
        %v7521 = vpop.f32.mrb[0].mxu0
        %v7522 = vadd.f32 0.0, %v7521
        %v7523 = vpop.f32.mrb[0].mxu0
        %v7524 = vadd.f32 0.0, %v7523
        %v7525 = vpop.f32.mrb[0].mxu0
        %v7526 = vadd.f32 0.0, %v7525
        %v7527 = vpop.f32.mrb[0].mxu0
        %v7528 = vadd.f32 0.0, %v7527
        %7529 = vdwg.mxu0
        %7530 = vmatprep.subr.bf16.mxu0 %v7296
        %7531 = vmatpush1.bf16.msra.mxu0 %v7295
        %7532 = vmatprep.subr.bf16.mxu0 %v7300
        %7533 = vmatpush1.bf16.msra.mxu0 %v7299
        %7534 = vmatprep.subr.bf16.mxu0 %v7304
        %7535 = vmatpush1.bf16.msra.mxu0 %v7303
        %7536 = vmatprep.subr.bf16.mxu0 %v7308
        %7537 = vmatpush1.bf16.msra.mxu0 %v7307
        %7538 = vmatprep.subr.bf16.mxu0 %v7312
        %7539 = vmatpush1.bf16.msra.mxu0 %v7311
        %7540 = vmatprep.subr.bf16.mxu0 %v7316
        %7541 = vmatpush1.bf16.msra.mxu0 %v7315
        %7542 = vmatprep.subr.bf16.mxu0 %v7320
        %7543 = vmatpush1.bf16.msra.mxu0 %v7319
        %7544 = vmatprep.subr.bf16.mxu0 %v7324
        %7545 = vmatpush1.bf16.msra.mxu0 %v7323
        %7546 = vmatprep.subr.bf16.mxu0 %v7328
        %7547 = vmatpush1.bf16.msra.mxu0 %v7327
        %7548 = vmatprep.subr.bf16.mxu0 %v7332
        %7549 = vmatpush1.bf16.msra.mxu0 %v7331
        %7550 = vmatprep.subr.bf16.mxu0 %v7336
        %7551 = vmatpush1.bf16.msra.mxu0 %v7335
        %7552 = vmatprep.subr.bf16.mxu0 %v7340
        %7553 = vmatpush1.bf16.msra.mxu0 %v7339
        %7554 = vmatprep.subr.bf16.mxu0 %v7344
        %7555 = vmatpush1.bf16.msra.mxu0 %v7343
        %7556 = vmatprep.subr.bf16.mxu0 %v7348
        %7557 = vmatpush1.bf16.msra.mxu0 %v7347
        %7558 = vmatprep.subr.bf16.mxu0 %v7352
        %7559 = vmatpush1.bf16.msra.mxu0 %v7351
        %7560 = vmatprep.subr.bf16.mxu0 %v7356
        %7561 = vmatpush1.bf16.msra.mxu0 %v7355
        %7562 = vmatprep.mubr.bf16.mxu0 %v6842
        %7563 = vmatmul.mubr.bf16.gmra.mrb[0].mxu0 %v6825
        %v7564 = vpop.f32.mrb[0].mxu0
        %v7565 = vadd.f32 %v7522, %v7564
        %v7566 = vpop.f32.mrb[0].mxu0
        %v7567 = vadd.f32 %v7524, %v7566
        %v7568 = vpop.f32.mrb[0].mxu0
        %v7569 = vadd.f32 %v7526, %v7568
        %v7570 = vpop.f32.mrb[0].mxu0
        %v7571 = vadd.f32 %v7528, %v7570
        %7572 = vdwg.mxu0
        %7573 = vmatprep.subr.bf16.mxu0 %v7234
        %7574 = vmatpush1.bf16.msra.mxu0 %v7233
        %7575 = vmatprep.subr.bf16.mxu0 %v7238
        %7576 = vmatpush1.bf16.msra.mxu0 %v7237
        %7577 = vmatprep.subr.bf16.mxu0 %v7242
        %7578 = vmatpush1.bf16.msra.mxu0 %v7241
        %7579 = vmatprep.subr.bf16.mxu0 %v7246
        %7580 = vmatpush1.bf16.msra.mxu0 %v7245
        %7581 = vmatprep.subr.bf16.mxu0 %v7250
        %7582 = vmatpush1.bf16.msra.mxu0 %v7249
        %7583 = vmatprep.subr.bf16.mxu0 %v7254
        %7584 = vmatpush1.bf16.msra.mxu0 %v7253
        %7585 = vmatprep.subr.bf16.mxu0 %v7258
        %7586 = vmatpush1.bf16.msra.mxu0 %v7257
        %7587 = vmatprep.subr.bf16.mxu0 %v7262
        %7588 = vmatpush1.bf16.msra.mxu0 %v7261
        %7589 = vmatprep.subr.bf16.mxu0 %v7266
        %7590 = vmatpush1.bf16.msra.mxu0 %v7265
        %7591 = vmatprep.subr.bf16.mxu0 %v7270
        %7592 = vmatpush1.bf16.msra.mxu0 %v7269
        %7593 = vmatprep.subr.bf16.mxu0 %v7274
        %7594 = vmatpush1.bf16.msra.mxu0 %v7273
        %7595 = vmatprep.subr.bf16.mxu0 %v7278
        %7596 = vmatpush1.bf16.msra.mxu0 %v7277
        %7597 = vmatprep.subr.bf16.mxu0 %v7282
        %7598 = vmatpush1.bf16.msra.mxu0 %v7281
        %7599 = vmatprep.subr.bf16.mxu0 %v7286
        %7600 = vmatpush1.bf16.msra.mxu0 %v7285
        %7601 = vmatprep.subr.bf16.mxu0 %v7290
        %7602 = vmatpush1.bf16.msra.mxu0 %v7289
        %7603 = vmatprep.subr.bf16.mxu0 %v7294
        %7604 = vmatpush1.bf16.msra.mxu0 %v7293
        %7605 = vmatprep.mubr.bf16.mxu0 %v6808
        %7606 = vmatmul.mubr.bf16.gmra.mrb[0].mxu0 %v6791
        %v7607 = vpop.f32.mrb[0].mxu0
        %v7608 = vadd.f32 0.0, %v7607
        %v7609 = vpop.f32.mrb[0].mxu0
        %v7610 = vadd.f32 0.0, %v7609
        %v7611 = vpop.f32.mrb[0].mxu0
        %v7612 = vadd.f32 0.0, %v7611
        %v7613 = vpop.f32.mrb[0].mxu0
        %v7614 = vadd.f32 0.0, %v7613
        %7615 = vdwg.mxu0
        %7616 = vmatprep.subr.bf16.mxu0 %v7298
        %7617 = vmatpush1.bf16.msra.mxu0 %v7297
        %7618 = vmatprep.subr.bf16.mxu0 %v7302
        %7619 = vmatpush1.bf16.msra.mxu0 %v7301
        %7620 = vmatprep.subr.bf16.mxu0 %v7306
        %7621 = vmatpush1.bf16.msra.mxu0 %v7305
        %7622 = vmatprep.subr.bf16.mxu0 %v7310
        %7623 = vmatpush1.bf16.msra.mxu0 %v7309
        %7624 = vmatprep.subr.bf16.mxu0 %v7314
        %7625 = vmatpush1.bf16.msra.mxu0 %v7313
        %7626 = vmatprep.subr.bf16.mxu0 %v7318
        %7627 = vmatpush1.bf16.msra.mxu0 %v7317
        %7628 = vmatprep.subr.bf16.mxu0 %v7322
        %7629 = vmatpush1.bf16.msra.mxu0 %v7321
        %7630 = vmatprep.subr.bf16.mxu0 %v7326
        %7631 = vmatpush1.bf16.msra.mxu0 %v7325
        %7632 = vmatprep.subr.bf16.mxu0 %v7330
        %7633 = vmatpush1.bf16.msra.mxu0 %v7329
        %7634 = vmatprep.subr.bf16.mxu0 %v7334
        %7635 = vmatpush1.bf16.msra.mxu0 %v7333
        %7636 = vmatprep.subr.bf16.mxu0 %v7338
        %7637 = vmatpush1.bf16.msra.mxu0 %v7337
        %7638 = vmatprep.subr.bf16.mxu0 %v7342
        %7639 = vmatpush1.bf16.msra.mxu0 %v7341
        %7640 = vmatprep.subr.bf16.mxu0 %v7346
        %7641 = vmatpush1.bf16.msra.mxu0 %v7345
        %7642 = vmatprep.subr.bf16.mxu0 %v7350
        %7643 = vmatpush1.bf16.msra.mxu0 %v7349
        %7644 = vmatprep.subr.bf16.mxu0 %v7354
        %7645 = vmatpush1.bf16.msra.mxu0 %v7353
        %7646 = vmatprep.subr.bf16.mxu0 %v7358
        %7647 = vmatpush1.bf16.msra.mxu0 %v7357
        %7648 = vmatprep.mubr.bf16.mxu0 %v6842
        %7649 = vmatmul.mubr.bf16.gmra.mrb[0].mxu0 %v6825
        %v7650 = vpop.f32.mrb[0].mxu0
        %v7651 = vadd.f32 %v7608, %v7650
        %v7652 = vpop.f32.mrb[0].mxu0
        %v7653 = vadd.f32 %v7610, %v7652
        %v7654 = vpop.f32.mrb[0].mxu0
        %v7655 = vadd.f32 %v7612, %v7654
        %v7656 = vpop.f32.mrb[0].mxu0
        %v7657 = vadd.f32 %v7614, %v7656
        %7658 = vdwg.mxu0
        %v7659 = vadd.f32 %v6626, %v7565
        %v7660 = vadd.f32 %v6627, %v7567
        %v7661 = vadd.f32 %v6628, %v7651
        %v7662 = vadd.f32 %v6629, %v7653
        %v7663 = vadd.f32 %v6630, %v7569
        %v7664 = vadd.f32 %v6631, %v7571
        %v7665 = vadd.f32 %v6632, %v7655
        %v7666 = vadd.f32 %v6633, %v7657
        %v7667 = vld [vmem:[#allocation3] sm:$0xcc]
        %v7668 = vld [vmem:[#allocation3 + $0x8] sm:$0xcc]
        %s7669 = scalar_lea.vmem [#allocation10], 4096
        %v7670 = vld [vmem:[%s7669] sm:$0xff]
        %v7671 = vld [vmem:[%s7669 + $0x8] sm:$0xff]
        %v7672 = vld [vmem:[%s7669 + $0x10] sm:$0xff]
        %v7673 = vld [vmem:[%s7669 + $0x18] sm:$0xff]
        %v7674 = vld [vmem:[%s7669 + $0x20] sm:$0xff]
        %v7675 = vld [vmem:[%s7669 + $0x28] sm:$0xff]
        %v7676 = vld [vmem:[%s7669 + $0x30] sm:$0xff]
        %v7677 = vld [vmem:[%s7669 + $0x38] sm:$0xff]
        %v7678 = vld [vmem:[%s7669 + $0x40] sm:$0xff]
        %v7679 = vld [vmem:[%s7669 + $0x48] sm:$0xff]
        %v7680 = vld [vmem:[%s7669 + $0x50] sm:$0xff]
        %v7681 = vld [vmem:[%s7669 + $0x58] sm:$0xff]
        %v7682 = vld [vmem:[%s7669 + $0x60] sm:$0xff]
        %v7683 = vld [vmem:[%s7669 + $0x68] sm:$0xff]
        %v7684 = vld [vmem:[%s7669 + $0x70] sm:$0xff]
        %v7685 = vld [vmem:[%s7669 + $0x78] sm:$0xff]
        %v7686 = vld [vmem:[%s7669 + $0x80] sm:$0xff]
        %v7687 = vld [vmem:[%s7669 + $0x88] sm:$0xff]
        %v7688 = vld [vmem:[%s7669 + $0x90] sm:$0xff]
        %v7689 = vld [vmem:[%s7669 + $0x98] sm:$0xff]
        %v7690 = vld [vmem:[%s7669 + $0xa0] sm:$0xff]
        %v7691 = vld [vmem:[%s7669 + $0xa8] sm:$0xff]
        %v7692 = vld [vmem:[%s7669 + $0xb0] sm:$0xff]
        %v7693 = vld [vmem:[%s7669 + $0xb8] sm:$0xff]
        %v7694 = vld [vmem:[%s7669 + $0xc0] sm:$0xff]
        %v7695 = vld [vmem:[%s7669 + $0xc8] sm:$0xff]
        %v7696 = vld [vmem:[%s7669 + $0xd0] sm:$0xff]
        %v7697 = vld [vmem:[%s7669 + $0xd8] sm:$0xff]
        %v7698 = vld [vmem:[%s7669 + $0xe0] sm:$0xff]
        %v7699 = vld [vmem:[%s7669 + $0xe8] sm:$0xff]
        %v7700 = vld [vmem:[%s7669 + $0xf0] sm:$0xff]
        %v7701 = vld [vmem:[%s7669 + $0xf8] sm:$0xff]
        %v7702 = vld [vmem:[%s7669 + $0x100] sm:$0xff]
        %v7703 = vld [vmem:[%s7669 + $0x108] sm:$0xff]
        %v7704 = vld [vmem:[%s7669 + $0x110] sm:$0xff]
        %v7705 = vld [vmem:[%s7669 + $0x118] sm:$0xff]
        %v7706 = vld [vmem:[%s7669 + $0x120] sm:$0xff]
        %v7707 = vld [vmem:[%s7669 + $0x128] sm:$0xff]
        %v7708 = vld [vmem:[%s7669 + $0x130] sm:$0xff]
        %v7709 = vld [vmem:[%s7669 + $0x138] sm:$0xff]
        %v7710 = vld [vmem:[%s7669 + $0x140] sm:$0xff]
        %v7711 = vld [vmem:[%s7669 + $0x148] sm:$0xff]
        %v7712 = vld [vmem:[%s7669 + $0x150] sm:$0xff]
        %v7713 = vld [vmem:[%s7669 + $0x158] sm:$0xff]
        %v7714 = vld [vmem:[%s7669 + $0x160] sm:$0xff]
        %v7715 = vld [vmem:[%s7669 + $0x168] sm:$0xff]
        %v7716 = vld [vmem:[%s7669 + $0x170] sm:$0xff]
        %v7717 = vld [vmem:[%s7669 + $0x178] sm:$0xff]
        %v7718 = vld [vmem:[%s7669 + $0x180] sm:$0xff]
        %v7719 = vld [vmem:[%s7669 + $0x188] sm:$0xff]
        %v7720 = vld [vmem:[%s7669 + $0x190] sm:$0xff]
        %v7721 = vld [vmem:[%s7669 + $0x198] sm:$0xff]
        %v7722 = vld [vmem:[%s7669 + $0x1a0] sm:$0xff]
        %v7723 = vld [vmem:[%s7669 + $0x1a8] sm:$0xff]
        %v7724 = vld [vmem:[%s7669 + $0x1b0] sm:$0xff]
        %v7725 = vld [vmem:[%s7669 + $0x1b8] sm:$0xff]
        %v7726 = vld [vmem:[%s7669 + $0x1c0] sm:$0xff]
        %v7727 = vld [vmem:[%s7669 + $0x1c8] sm:$0xff]
        %v7728 = vld [vmem:[%s7669 + $0x1d0] sm:$0xff]
        %v7729 = vld [vmem:[%s7669 + $0x1d8] sm:$0xff]
        %v7730 = vld [vmem:[%s7669 + $0x1e0] sm:$0xff]
        %v7731 = vld [vmem:[%s7669 + $0x1e8] sm:$0xff]
        %v7732 = vld [vmem:[%s7669 + $0x1f0] sm:$0xff]
        %v7733 = vld [vmem:[%s7669 + $0x1f8] sm:$0xff]
        %v7734 = vld [vmem:[%s7669 + $0x200] sm:$0xff]
        %v7735 = vld [vmem:[%s7669 + $0x208] sm:$0xff]
        %v7736 = vld [vmem:[%s7669 + $0x210] sm:$0xff]
        %v7737 = vld [vmem:[%s7669 + $0x218] sm:$0xff]
        %v7738 = vld [vmem:[%s7669 + $0x220] sm:$0xff]
        %v7739 = vld [vmem:[%s7669 + $0x228] sm:$0xff]
        %v7740 = vld [vmem:[%s7669 + $0x230] sm:$0xff]
        %v7741 = vld [vmem:[%s7669 + $0x238] sm:$0xff]
        %v7742 = vld [vmem:[%s7669 + $0x240] sm:$0xff]
        %v7743 = vld [vmem:[%s7669 + $0x248] sm:$0xff]
        %v7744 = vld [vmem:[%s7669 + $0x250] sm:$0xff]
        %v7745 = vld [vmem:[%s7669 + $0x258] sm:$0xff]
        %v7746 = vld [vmem:[%s7669 + $0x260] sm:$0xff]
        %v7747 = vld [vmem:[%s7669 + $0x268] sm:$0xff]
        %v7748 = vld [vmem:[%s7669 + $0x270] sm:$0xff]
        %v7749 = vld [vmem:[%s7669 + $0x278] sm:$0xff]
        %v7750 = vld [vmem:[%s7669 + $0x280] sm:$0xff]
        %v7751 = vld [vmem:[%s7669 + $0x288] sm:$0xff]
        %v7752 = vld [vmem:[%s7669 + $0x290] sm:$0xff]
        %v7753 = vld [vmem:[%s7669 + $0x298] sm:$0xff]
        %v7754 = vld [vmem:[%s7669 + $0x2a0] sm:$0xff]
        %v7755 = vld [vmem:[%s7669 + $0x2a8] sm:$0xff]
        %v7756 = vld [vmem:[%s7669 + $0x2b0] sm:$0xff]
        %v7757 = vld [vmem:[%s7669 + $0x2b8] sm:$0xff]
        %v7758 = vld [vmem:[%s7669 + $0x2c0] sm:$0xff]
        %v7759 = vld [vmem:[%s7669 + $0x2c8] sm:$0xff]
        %v7760 = vld [vmem:[%s7669 + $0x2d0] sm:$0xff]
        %v7761 = vld [vmem:[%s7669 + $0x2d8] sm:$0xff]
        %v7762 = vld [vmem:[%s7669 + $0x2e0] sm:$0xff]
        %v7763 = vld [vmem:[%s7669 + $0x2e8] sm:$0xff]
        %v7764 = vld [vmem:[%s7669 + $0x2f0] sm:$0xff]
        %v7765 = vld [vmem:[%s7669 + $0x2f8] sm:$0xff]
        %v7766 = vld [vmem:[%s7669 + $0x300] sm:$0xff]
        %v7767 = vld [vmem:[%s7669 + $0x308] sm:$0xff]
        %v7768 = vld [vmem:[%s7669 + $0x310] sm:$0xff]
        %v7769 = vld [vmem:[%s7669 + $0x318] sm:$0xff]
        %v7770 = vld [vmem:[%s7669 + $0x320] sm:$0xff]
        %v7771 = vld [vmem:[%s7669 + $0x328] sm:$0xff]
        %v7772 = vld [vmem:[%s7669 + $0x330] sm:$0xff]
        %v7773 = vld [vmem:[%s7669 + $0x338] sm:$0xff]
        %v7774 = vld [vmem:[%s7669 + $0x340] sm:$0xff]
        %v7775 = vld [vmem:[%s7669 + $0x348] sm:$0xff]
        %v7776 = vld [vmem:[%s7669 + $0x350] sm:$0xff]
        %v7777 = vld [vmem:[%s7669 + $0x358] sm:$0xff]
        %v7778 = vld [vmem:[%s7669 + $0x360] sm:$0xff]
        %v7779 = vld [vmem:[%s7669 + $0x368] sm:$0xff]
        %v7780 = vld [vmem:[%s7669 + $0x370] sm:$0xff]
        %v7781 = vld [vmem:[%s7669 + $0x378] sm:$0xff]
        %v7782 = vld [vmem:[%s7669 + $0x380] sm:$0xff]
        %v7783 = vld [vmem:[%s7669 + $0x388] sm:$0xff]
        %v7784 = vld [vmem:[%s7669 + $0x390] sm:$0xff]
        %v7785 = vld [vmem:[%s7669 + $0x398] sm:$0xff]
        %v7786 = vld [vmem:[%s7669 + $0x3a0] sm:$0xff]
        %v7787 = vld [vmem:[%s7669 + $0x3a8] sm:$0xff]
        %v7788 = vld [vmem:[%s7669 + $0x3b0] sm:$0xff]
        %v7789 = vld [vmem:[%s7669 + $0x3b8] sm:$0xff]
        %v7790 = vld [vmem:[%s7669 + $0x3c0] sm:$0xff]
        %v7791 = vld [vmem:[%s7669 + $0x3c8] sm:$0xff]
        %v7792 = vld [vmem:[%s7669 + $0x3d0] sm:$0xff]
        %v7793 = vld [vmem:[%s7669 + $0x3d8] sm:$0xff]
        %v7794 = vld [vmem:[%s7669 + $0x3e0] sm:$0xff]
        %v7795 = vld [vmem:[%s7669 + $0x3e8] sm:$0xff]
        %v7796 = vld [vmem:[%s7669 + $0x3f0] sm:$0xff]
        %v7797 = vld [vmem:[%s7669 + $0x3f8] sm:$0xff]
        %v7800 = vunpack.c.l.b16 %v7667
        %v7801 = vunpack.c.h.b16 %v7667
        %v7802 = vunpack.c.l.b16 %v7668
        %v7803 = vunpack.c.h.b16 %v7668
        %v7804 = vpack.c.b16 %v3961, %v7800
        %v7805 = vpack.c.b16 %v3962, %v7801
        %v7806 = vpack.c.b16 %v3963, %v7802
        %v7807 = vpack.c.b16 %v3964, %v7803
        %v7808 = vrot.slane %v7804, 2
        %v7809 = vrot.slane %v6771, 2
        %v7810 = vsel %vm1635, %v7808, %v7809
        %v7811 = vrot.slane %v7805, 2
        %v7812 = vrot.slane %v6772, 2
        %v7813 = vsel %vm1635, %v7811, %v7812
        %v7814 = vrot.slane %v7806, 2
        %v7815 = vrot.slane %v6773, 2
        %v7816 = vsel %vm1635, %v7814, %v7815
        %v7817 = vrot.slane %v7807, 2
        %v7818 = vrot.slane %v6774, 2
        %v7819 = vsel %vm1635, %v7817, %v7818
        %v7952 = vunpack.c.l.b16 %v7670
        %v7953 = vunpack.c.h.b16 %v7670
        %v7954 = vunpack.c.l.b16 %v7671
        %v7955 = vunpack.c.h.b16 %v7671
        %v7956 = vunpack.c.l.b16 %v7672
        %v7957 = vunpack.c.h.b16 %v7672
        %v7958 = vunpack.c.l.b16 %v7673
        %v7959 = vunpack.c.h.b16 %v7673
        %v7960 = vunpack.c.l.b16 %v7674
        %v7961 = vunpack.c.h.b16 %v7674
        %v7962 = vunpack.c.l.b16 %v7675
        %v7963 = vunpack.c.h.b16 %v7675
        %v7964 = vunpack.c.l.b16 %v7676
        %v7965 = vunpack.c.h.b16 %v7676
        %v7966 = vunpack.c.l.b16 %v7677
        %v7967 = vunpack.c.h.b16 %v7677
        %v7968 = vunpack.c.l.b16 %v7678
        %v7969 = vunpack.c.h.b16 %v7678
        %v7970 = vunpack.c.l.b16 %v7679
        %v7971 = vunpack.c.h.b16 %v7679
        %v7972 = vunpack.c.l.b16 %v7680
        %v7973 = vunpack.c.h.b16 %v7680
        %v7974 = vunpack.c.l.b16 %v7681
        %v7975 = vunpack.c.h.b16 %v7681
        %v7976 = vunpack.c.l.b16 %v7682
        %v7977 = vunpack.c.h.b16 %v7682
        %v7978 = vunpack.c.l.b16 %v7683
        %v7979 = vunpack.c.h.b16 %v7683
        %v7980 = vunpack.c.l.b16 %v7684
        %v7981 = vunpack.c.h.b16 %v7684
        %v7982 = vunpack.c.l.b16 %v7685
        %v7983 = vunpack.c.h.b16 %v7685
        %v7984 = vunpack.c.l.b16 %v7686
        %v7985 = vunpack.c.h.b16 %v7686
        %v7986 = vunpack.c.l.b16 %v7687
        %v7987 = vunpack.c.h.b16 %v7687
        %v7988 = vunpack.c.l.b16 %v7688
        %v7989 = vunpack.c.h.b16 %v7688
        %v7990 = vunpack.c.l.b16 %v7689
        %v7991 = vunpack.c.h.b16 %v7689
        %v7992 = vunpack.c.l.b16 %v7690
        %v7993 = vunpack.c.h.b16 %v7690
        %v7994 = vunpack.c.l.b16 %v7691
        %v7995 = vunpack.c.h.b16 %v7691
        %v7996 = vunpack.c.l.b16 %v7692
        %v7997 = vunpack.c.h.b16 %v7692
        %v7998 = vunpack.c.l.b16 %v7693
        %v7999 = vunpack.c.h.b16 %v7693
        %v8000 = vunpack.c.l.b16 %v7694
        %v8001 = vunpack.c.h.b16 %v7694
        %v8002 = vunpack.c.l.b16 %v7695
        %v8003 = vunpack.c.h.b16 %v7695
        %v8004 = vunpack.c.l.b16 %v7696
        %v8005 = vunpack.c.h.b16 %v7696
        %v8006 = vunpack.c.l.b16 %v7697
        %v8007 = vunpack.c.h.b16 %v7697
        %v8008 = vunpack.c.l.b16 %v7698
        %v8009 = vunpack.c.h.b16 %v7698
        %v8010 = vunpack.c.l.b16 %v7699
        %v8011 = vunpack.c.h.b16 %v7699
        %v8012 = vunpack.c.l.b16 %v7700
        %v8013 = vunpack.c.h.b16 %v7700
        %v8014 = vunpack.c.l.b16 %v7701
        %v8015 = vunpack.c.h.b16 %v7701
        %v8016 = vunpack.c.l.b16 %v7702
        %v8017 = vunpack.c.h.b16 %v7702
        %v8018 = vunpack.c.l.b16 %v7703
        %v8019 = vunpack.c.h.b16 %v7703
        %v8020 = vunpack.c.l.b16 %v7704
        %v8021 = vunpack.c.h.b16 %v7704
        %v8022 = vunpack.c.l.b16 %v7705
        %v8023 = vunpack.c.h.b16 %v7705
        %v8024 = vunpack.c.l.b16 %v7706
        %v8025 = vunpack.c.h.b16 %v7706
        %v8026 = vunpack.c.l.b16 %v7707
        %v8027 = vunpack.c.h.b16 %v7707
        %v8028 = vunpack.c.l.b16 %v7708
        %v8029 = vunpack.c.h.b16 %v7708
        %v8030 = vunpack.c.l.b16 %v7709
        %v8031 = vunpack.c.h.b16 %v7709
        %v8032 = vunpack.c.l.b16 %v7710
        %v8033 = vunpack.c.h.b16 %v7710
        %v8034 = vunpack.c.l.b16 %v7711
        %v8035 = vunpack.c.h.b16 %v7711
        %v8036 = vunpack.c.l.b16 %v7712
        %v8037 = vunpack.c.h.b16 %v7712
        %v8038 = vunpack.c.l.b16 %v7713
        %v8039 = vunpack.c.h.b16 %v7713
        %v8040 = vunpack.c.l.b16 %v7714
        %v8041 = vunpack.c.h.b16 %v7714
        %v8042 = vunpack.c.l.b16 %v7715
        %v8043 = vunpack.c.h.b16 %v7715
        %v8044 = vunpack.c.l.b16 %v7716
        %v8045 = vunpack.c.h.b16 %v7716
        %v8046 = vunpack.c.l.b16 %v7717
        %v8047 = vunpack.c.h.b16 %v7717
        %v8048 = vunpack.c.l.b16 %v7718
        %v8049 = vunpack.c.h.b16 %v7718
        %v8050 = vunpack.c.l.b16 %v7719
        %v8051 = vunpack.c.h.b16 %v7719
        %v8052 = vunpack.c.l.b16 %v7720
        %v8053 = vunpack.c.h.b16 %v7720
        %v8054 = vunpack.c.l.b16 %v7721
        %v8055 = vunpack.c.h.b16 %v7721
        %v8056 = vunpack.c.l.b16 %v7722
        %v8057 = vunpack.c.h.b16 %v7722
        %v8058 = vunpack.c.l.b16 %v7723
        %v8059 = vunpack.c.h.b16 %v7723
        %v8060 = vunpack.c.l.b16 %v7724
        %v8061 = vunpack.c.h.b16 %v7724
        %v8062 = vunpack.c.l.b16 %v7725
        %v8063 = vunpack.c.h.b16 %v7725
        %v8064 = vunpack.c.l.b16 %v7726
        %v8065 = vunpack.c.h.b16 %v7726
        %v8066 = vunpack.c.l.b16 %v7727
        %v8067 = vunpack.c.h.b16 %v7727
        %v8068 = vunpack.c.l.b16 %v7728
        %v8069 = vunpack.c.h.b16 %v7728
        %v8070 = vunpack.c.l.b16 %v7729
        %v8071 = vunpack.c.h.b16 %v7729
        %v8072 = vunpack.c.l.b16 %v7730
        %v8073 = vunpack.c.h.b16 %v7730
        %v8074 = vunpack.c.l.b16 %v7731
        %v8075 = vunpack.c.h.b16 %v7731
        %v8076 = vunpack.c.l.b16 %v7732
        %v8077 = vunpack.c.h.b16 %v7732
        %v8078 = vunpack.c.l.b16 %v7733
        %v8079 = vunpack.c.h.b16 %v7733
        %v8080 = vunpack.c.l.b16 %v7734
        %v8081 = vunpack.c.h.b16 %v7734
        %v8082 = vunpack.c.l.b16 %v7735
        %v8083 = vunpack.c.h.b16 %v7735
        %v8084 = vunpack.c.l.b16 %v7736
        %v8085 = vunpack.c.h.b16 %v7736
        %v8086 = vunpack.c.l.b16 %v7737
        %v8087 = vunpack.c.h.b16 %v7737
        %v8088 = vunpack.c.l.b16 %v7738
        %v8089 = vunpack.c.h.b16 %v7738
        %v8090 = vunpack.c.l.b16 %v7739
        %v8091 = vunpack.c.h.b16 %v7739
        %v8092 = vunpack.c.l.b16 %v7740
        %v8093 = vunpack.c.h.b16 %v7740
        %v8094 = vunpack.c.l.b16 %v7741
        %v8095 = vunpack.c.h.b16 %v7741
        %v8096 = vunpack.c.l.b16 %v7742
        %v8097 = vunpack.c.h.b16 %v7742
        %v8098 = vunpack.c.l.b16 %v7743
        %v8099 = vunpack.c.h.b16 %v7743
        %v8100 = vunpack.c.l.b16 %v7744
        %v8101 = vunpack.c.h.b16 %v7744
        %v8102 = vunpack.c.l.b16 %v7745
        %v8103 = vunpack.c.h.b16 %v7745
        %v8104 = vunpack.c.l.b16 %v7746
        %v8105 = vunpack.c.h.b16 %v7746
        %v8106 = vunpack.c.l.b16 %v7747
        %v8107 = vunpack.c.h.b16 %v7747
        %v8108 = vunpack.c.l.b16 %v7748
        %v8109 = vunpack.c.h.b16 %v7748
        %v8110 = vunpack.c.l.b16 %v7749
        %v8111 = vunpack.c.h.b16 %v7749
        %v8112 = vunpack.c.l.b16 %v7750
        %v8113 = vunpack.c.h.b16 %v7750
        %v8114 = vunpack.c.l.b16 %v7751
        %v8115 = vunpack.c.h.b16 %v7751
        %v8116 = vunpack.c.l.b16 %v7752
        %v8117 = vunpack.c.h.b16 %v7752
        %v8118 = vunpack.c.l.b16 %v7753
        %v8119 = vunpack.c.h.b16 %v7753
        %v8120 = vunpack.c.l.b16 %v7754
        %v8121 = vunpack.c.h.b16 %v7754
        %v8122 = vunpack.c.l.b16 %v7755
        %v8123 = vunpack.c.h.b16 %v7755
        %v8124 = vunpack.c.l.b16 %v7756
        %v8125 = vunpack.c.h.b16 %v7756
        %v8126 = vunpack.c.l.b16 %v7757
        %v8127 = vunpack.c.h.b16 %v7757
        %v8128 = vunpack.c.l.b16 %v7758
        %v8129 = vunpack.c.h.b16 %v7758
        %v8130 = vunpack.c.l.b16 %v7759
        %v8131 = vunpack.c.h.b16 %v7759
        %v8132 = vunpack.c.l.b16 %v7760
        %v8133 = vunpack.c.h.b16 %v7760
        %v8134 = vunpack.c.l.b16 %v7761
        %v8135 = vunpack.c.h.b16 %v7761
        %v8136 = vunpack.c.l.b16 %v7762
        %v8137 = vunpack.c.h.b16 %v7762
        %v8138 = vunpack.c.l.b16 %v7763
        %v8139 = vunpack.c.h.b16 %v7763
        %v8140 = vunpack.c.l.b16 %v7764
        %v8141 = vunpack.c.h.b16 %v7764
        %v8142 = vunpack.c.l.b16 %v7765
        %v8143 = vunpack.c.h.b16 %v7765
        %v8144 = vunpack.c.l.b16 %v7766
        %v8145 = vunpack.c.h.b16 %v7766
        %v8146 = vunpack.c.l.b16 %v7767
        %v8147 = vunpack.c.h.b16 %v7767
        %v8148 = vunpack.c.l.b16 %v7768
        %v8149 = vunpack.c.h.b16 %v7768
        %v8150 = vunpack.c.l.b16 %v7769
        %v8151 = vunpack.c.h.b16 %v7769
        %v8152 = vunpack.c.l.b16 %v7770
        %v8153 = vunpack.c.h.b16 %v7770
        %v8154 = vunpack.c.l.b16 %v7771
        %v8155 = vunpack.c.h.b16 %v7771
        %v8156 = vunpack.c.l.b16 %v7772
        %v8157 = vunpack.c.h.b16 %v7772
        %v8158 = vunpack.c.l.b16 %v7773
        %v8159 = vunpack.c.h.b16 %v7773
        %v8160 = vunpack.c.l.b16 %v7774
        %v8161 = vunpack.c.h.b16 %v7774
        %v8162 = vunpack.c.l.b16 %v7775
        %v8163 = vunpack.c.h.b16 %v7775
        %v8164 = vunpack.c.l.b16 %v7776
        %v8165 = vunpack.c.h.b16 %v7776
        %v8166 = vunpack.c.l.b16 %v7777
        %v8167 = vunpack.c.h.b16 %v7777
        %v8168 = vunpack.c.l.b16 %v7778
        %v8169 = vunpack.c.h.b16 %v7778
        %v8170 = vunpack.c.l.b16 %v7779
        %v8171 = vunpack.c.h.b16 %v7779
        %v8172 = vunpack.c.l.b16 %v7780
        %v8173 = vunpack.c.h.b16 %v7780
        %v8174 = vunpack.c.l.b16 %v7781
        %v8175 = vunpack.c.h.b16 %v7781
        %v8176 = vunpack.c.l.b16 %v7782
        %v8177 = vunpack.c.h.b16 %v7782
        %v8178 = vunpack.c.l.b16 %v7783
        %v8179 = vunpack.c.h.b16 %v7783
        %v8180 = vunpack.c.l.b16 %v7784
        %v8181 = vunpack.c.h.b16 %v7784
        %v8182 = vunpack.c.l.b16 %v7785
        %v8183 = vunpack.c.h.b16 %v7785
        %v8184 = vunpack.c.l.b16 %v7786
        %v8185 = vunpack.c.h.b16 %v7786
        %v8186 = vunpack.c.l.b16 %v7787
        %v8187 = vunpack.c.h.b16 %v7787
        %v8188 = vunpack.c.l.b16 %v7788
        %v8189 = vunpack.c.h.b16 %v7788
        %v8190 = vunpack.c.l.b16 %v7789
        %v8191 = vunpack.c.h.b16 %v7789
        %v8192 = vunpack.c.l.b16 %v7790
        %v8193 = vunpack.c.h.b16 %v7790
        %v8194 = vunpack.c.l.b16 %v7791
        %v8195 = vunpack.c.h.b16 %v7791
        %v8196 = vunpack.c.l.b16 %v7792
        %v8197 = vunpack.c.h.b16 %v7792
        %v8198 = vunpack.c.l.b16 %v7793
        %v8199 = vunpack.c.h.b16 %v7793
        %v8200 = vunpack.c.l.b16 %v7794
        %v8201 = vunpack.c.h.b16 %v7794
        %v8202 = vunpack.c.l.b16 %v7795
        %v8203 = vunpack.c.h.b16 %v7795
        %v8204 = vunpack.c.l.b16 %v7796
        %v8205 = vunpack.c.h.b16 %v7796
        %v8206 = vunpack.c.l.b16 %v7797
        %v8207 = vunpack.c.h.b16 %v7797
        %v8208 = vpack.c.b16 %v7956, %v7952
        %v8209 = vpack.c.b16 %v7957, %v7953
        %v8210 = vpack.c.b16 %v7958, %v7954
        %v8211 = vpack.c.b16 %v7959, %v7955
        %v8212 = vpack.c.b16 %v7964, %v7960
        %v8213 = vpack.c.b16 %v7965, %v7961
        %v8214 = vpack.c.b16 %v7966, %v7962
        %v8215 = vpack.c.b16 %v7967, %v7963
        %v8216 = vpack.c.b16 %v7972, %v7968
        %v8217 = vpack.c.b16 %v7973, %v7969
        %v8218 = vpack.c.b16 %v7974, %v7970
        %v8219 = vpack.c.b16 %v7975, %v7971
        %v8220 = vpack.c.b16 %v7980, %v7976
        %v8221 = vpack.c.b16 %v7981, %v7977
        %v8222 = vpack.c.b16 %v7982, %v7978
        %v8223 = vpack.c.b16 %v7983, %v7979
        %v8224 = vpack.c.b16 %v7988, %v7984
        %v8225 = vpack.c.b16 %v7989, %v7985
        %v8226 = vpack.c.b16 %v7990, %v7986
        %v8227 = vpack.c.b16 %v7991, %v7987
        %v8228 = vpack.c.b16 %v7996, %v7992
        %v8229 = vpack.c.b16 %v7997, %v7993
        %v8230 = vpack.c.b16 %v7998, %v7994
        %v8231 = vpack.c.b16 %v7999, %v7995
        %v8232 = vpack.c.b16 %v8004, %v8000
        %v8233 = vpack.c.b16 %v8005, %v8001
        %v8234 = vpack.c.b16 %v8006, %v8002
        %v8235 = vpack.c.b16 %v8007, %v8003
        %v8236 = vpack.c.b16 %v8012, %v8008
        %v8237 = vpack.c.b16 %v8013, %v8009
        %v8238 = vpack.c.b16 %v8014, %v8010
        %v8239 = vpack.c.b16 %v8015, %v8011
        %v8240 = vpack.c.b16 %v8020, %v8016
        %v8241 = vpack.c.b16 %v8021, %v8017
        %v8242 = vpack.c.b16 %v8022, %v8018
        %v8243 = vpack.c.b16 %v8023, %v8019
        %v8244 = vpack.c.b16 %v8028, %v8024
        %v8245 = vpack.c.b16 %v8029, %v8025
        %v8246 = vpack.c.b16 %v8030, %v8026
        %v8247 = vpack.c.b16 %v8031, %v8027
        %v8248 = vpack.c.b16 %v8036, %v8032
        %v8249 = vpack.c.b16 %v8037, %v8033
        %v8250 = vpack.c.b16 %v8038, %v8034
        %v8251 = vpack.c.b16 %v8039, %v8035
        %v8252 = vpack.c.b16 %v8044, %v8040
        %v8253 = vpack.c.b16 %v8045, %v8041
        %v8254 = vpack.c.b16 %v8046, %v8042
        %v8255 = vpack.c.b16 %v8047, %v8043
        %v8256 = vpack.c.b16 %v8052, %v8048
        %v8257 = vpack.c.b16 %v8053, %v8049
        %v8258 = vpack.c.b16 %v8054, %v8050
        %v8259 = vpack.c.b16 %v8055, %v8051
        %v8260 = vpack.c.b16 %v8060, %v8056
        %v8261 = vpack.c.b16 %v8061, %v8057
        %v8262 = vpack.c.b16 %v8062, %v8058
        %v8263 = vpack.c.b16 %v8063, %v8059
        %v8264 = vpack.c.b16 %v8068, %v8064
        %v8265 = vpack.c.b16 %v8069, %v8065
        %v8266 = vpack.c.b16 %v8070, %v8066
        %v8267 = vpack.c.b16 %v8071, %v8067
        %v8268 = vpack.c.b16 %v8076, %v8072
        %v8269 = vpack.c.b16 %v8077, %v8073
        %v8270 = vpack.c.b16 %v8078, %v8074
        %v8271 = vpack.c.b16 %v8079, %v8075
        %v8272 = vpack.c.b16 %v8084, %v8080
        %v8273 = vpack.c.b16 %v8085, %v8081
        %v8274 = vpack.c.b16 %v8086, %v8082
        %v8275 = vpack.c.b16 %v8087, %v8083
        %v8276 = vpack.c.b16 %v8092, %v8088
        %v8277 = vpack.c.b16 %v8093, %v8089
        %v8278 = vpack.c.b16 %v8094, %v8090
        %v8279 = vpack.c.b16 %v8095, %v8091
        %v8280 = vpack.c.b16 %v8100, %v8096
        %v8281 = vpack.c.b16 %v8101, %v8097
        %v8282 = vpack.c.b16 %v8102, %v8098
        %v8283 = vpack.c.b16 %v8103, %v8099
        %v8284 = vpack.c.b16 %v8108, %v8104
        %v8285 = vpack.c.b16 %v8109, %v8105
        %v8286 = vpack.c.b16 %v8110, %v8106
        %v8287 = vpack.c.b16 %v8111, %v8107
        %v8288 = vpack.c.b16 %v8116, %v8112
        %v8289 = vpack.c.b16 %v8117, %v8113
        %v8290 = vpack.c.b16 %v8118, %v8114
        %v8291 = vpack.c.b16 %v8119, %v8115
        %v8292 = vpack.c.b16 %v8124, %v8120
        %v8293 = vpack.c.b16 %v8125, %v8121
        %v8294 = vpack.c.b16 %v8126, %v8122
        %v8295 = vpack.c.b16 %v8127, %v8123
        %v8296 = vpack.c.b16 %v8132, %v8128
        %v8297 = vpack.c.b16 %v8133, %v8129
        %v8298 = vpack.c.b16 %v8134, %v8130
        %v8299 = vpack.c.b16 %v8135, %v8131
        %v8300 = vpack.c.b16 %v8140, %v8136
        %v8301 = vpack.c.b16 %v8141, %v8137
        %v8302 = vpack.c.b16 %v8142, %v8138
        %v8303 = vpack.c.b16 %v8143, %v8139
        %v8304 = vpack.c.b16 %v8148, %v8144
        %v8305 = vpack.c.b16 %v8149, %v8145
        %v8306 = vpack.c.b16 %v8150, %v8146
        %v8307 = vpack.c.b16 %v8151, %v8147
        %v8308 = vpack.c.b16 %v8156, %v8152
        %v8309 = vpack.c.b16 %v8157, %v8153
        %v8310 = vpack.c.b16 %v8158, %v8154
        %v8311 = vpack.c.b16 %v8159, %v8155
        %v8312 = vpack.c.b16 %v8164, %v8160
        %v8313 = vpack.c.b16 %v8165, %v8161
        %v8314 = vpack.c.b16 %v8166, %v8162
        %v8315 = vpack.c.b16 %v8167, %v8163
        %v8316 = vpack.c.b16 %v8172, %v8168
        %v8317 = vpack.c.b16 %v8173, %v8169
        %v8318 = vpack.c.b16 %v8174, %v8170
        %v8319 = vpack.c.b16 %v8175, %v8171
        %v8320 = vpack.c.b16 %v8180, %v8176
        %v8321 = vpack.c.b16 %v8181, %v8177
        %v8322 = vpack.c.b16 %v8182, %v8178
        %v8323 = vpack.c.b16 %v8183, %v8179
        %v8324 = vpack.c.b16 %v8188, %v8184
        %v8325 = vpack.c.b16 %v8189, %v8185
        %v8326 = vpack.c.b16 %v8190, %v8186
        %v8327 = vpack.c.b16 %v8191, %v8187
        %v8328 = vpack.c.b16 %v8196, %v8192
        %v8329 = vpack.c.b16 %v8197, %v8193
        %v8330 = vpack.c.b16 %v8198, %v8194
        %v8331 = vpack.c.b16 %v8199, %v8195
        %v8332 = vpack.c.b16 %v8204, %v8200
        %v8333 = vpack.c.b16 %v8205, %v8201
        %v8334 = vpack.c.b16 %v8206, %v8202
        %v8335 = vpack.c.b16 %v8207, %v8203
        %8464 = vmatprep.subr.bf16.mxu0 %v8209
        %8465 = vmatpush1.bf16.msra.mxu0 %v8208
        %8466 = vmatprep.subr.bf16.mxu0 %v8213
        %8467 = vmatpush1.bf16.msra.mxu0 %v8212
        %8468 = vmatprep.subr.bf16.mxu0 %v8217
        %8469 = vmatpush1.bf16.msra.mxu0 %v8216
        %8470 = vmatprep.subr.bf16.mxu0 %v8221
        %8471 = vmatpush1.bf16.msra.mxu0 %v8220
        %8472 = vmatprep.subr.bf16.mxu0 %v8225
        %8473 = vmatpush1.bf16.msra.mxu0 %v8224
        %8474 = vmatprep.subr.bf16.mxu0 %v8229
        %8475 = vmatpush1.bf16.msra.mxu0 %v8228
        %8476 = vmatprep.subr.bf16.mxu0 %v8233
        %8477 = vmatpush1.bf16.msra.mxu0 %v8232
        %8478 = vmatprep.subr.bf16.mxu0 %v8237
        %8479 = vmatpush1.bf16.msra.mxu0 %v8236
        %8480 = vmatprep.subr.bf16.mxu0 %v8241
        %8481 = vmatpush1.bf16.msra.mxu0 %v8240
        %8482 = vmatprep.subr.bf16.mxu0 %v8245
        %8483 = vmatpush1.bf16.msra.mxu0 %v8244
        %8484 = vmatprep.subr.bf16.mxu0 %v8249
        %8485 = vmatpush1.bf16.msra.mxu0 %v8248
        %8486 = vmatprep.subr.bf16.mxu0 %v8253
        %8487 = vmatpush1.bf16.msra.mxu0 %v8252
        %8488 = vmatprep.subr.bf16.mxu0 %v8257
        %8489 = vmatpush1.bf16.msra.mxu0 %v8256
        %8490 = vmatprep.subr.bf16.mxu0 %v8261
        %8491 = vmatpush1.bf16.msra.mxu0 %v8260
        %8492 = vmatprep.subr.bf16.mxu0 %v8265
        %8493 = vmatpush1.bf16.msra.mxu0 %v8264
        %8494 = vmatprep.subr.bf16.mxu0 %v8269
        %8495 = vmatpush1.bf16.msra.mxu0 %v8268
        %8496 = vmatprep.mubr.bf16.mxu0 %v7813
        %8497 = vmatmul.mubr.bf16.gmra.mrb[0].mxu0 %v7810
        %v8498 = vpop.f32.mrb[0].mxu0
        %v8499 = vadd.f32 0.0, %v8498
        %v8500 = vpop.f32.mrb[0].mxu0
        %v8501 = vadd.f32 0.0, %v8500
        %v8502 = vpop.f32.mrb[0].mxu0
        %v8503 = vadd.f32 0.0, %v8502
        %v8504 = vpop.f32.mrb[0].mxu0
        %v8505 = vadd.f32 0.0, %v8504
        %8506 = vdwg.mxu0
        %8507 = vmatprep.subr.bf16.mxu0 %v8273
        %8508 = vmatpush1.bf16.msra.mxu0 %v8272
        %8509 = vmatprep.subr.bf16.mxu0 %v8277
        %8510 = vmatpush1.bf16.msra.mxu0 %v8276
        %8511 = vmatprep.subr.bf16.mxu0 %v8281
        %8512 = vmatpush1.bf16.msra.mxu0 %v8280
        %8513 = vmatprep.subr.bf16.mxu0 %v8285
        %8514 = vmatpush1.bf16.msra.mxu0 %v8284
        %8515 = vmatprep.subr.bf16.mxu0 %v8289
        %8516 = vmatpush1.bf16.msra.mxu0 %v8288
        %8517 = vmatprep.subr.bf16.mxu0 %v8293
        %8518 = vmatpush1.bf16.msra.mxu0 %v8292
        %8519 = vmatprep.subr.bf16.mxu0 %v8297
        %8520 = vmatpush1.bf16.msra.mxu0 %v8296
        %8521 = vmatprep.subr.bf16.mxu0 %v8301
        %8522 = vmatpush1.bf16.msra.mxu0 %v8300
        %8523 = vmatprep.subr.bf16.mxu0 %v8305
        %8524 = vmatpush1.bf16.msra.mxu0 %v8304
        %8525 = vmatprep.subr.bf16.mxu0 %v8309
        %8526 = vmatpush1.bf16.msra.mxu0 %v8308
        %8527 = vmatprep.subr.bf16.mxu0 %v8313
        %8528 = vmatpush1.bf16.msra.mxu0 %v8312
        %8529 = vmatprep.subr.bf16.mxu0 %v8317
        %8530 = vmatpush1.bf16.msra.mxu0 %v8316
        %8531 = vmatprep.subr.bf16.mxu0 %v8321
        %8532 = vmatpush1.bf16.msra.mxu0 %v8320
        %8533 = vmatprep.subr.bf16.mxu0 %v8325
        %8534 = vmatpush1.bf16.msra.mxu0 %v8324
        %8535 = vmatprep.subr.bf16.mxu0 %v8329
        %8536 = vmatpush1.bf16.msra.mxu0 %v8328
        %8537 = vmatprep.subr.bf16.mxu0 %v8333
        %8538 = vmatpush1.bf16.msra.mxu0 %v8332
        %8539 = vmatprep.mubr.bf16.mxu0 %v7819
        %8540 = vmatmul.mubr.bf16.gmra.mrb[0].mxu0 %v7816
        %v8541 = vpop.f32.mrb[0].mxu0
        %v8542 = vadd.f32 %v8499, %v8541
        %v8543 = vpop.f32.mrb[0].mxu0
        %v8544 = vadd.f32 %v8501, %v8543
        %v8545 = vpop.f32.mrb[0].mxu0
        %v8546 = vadd.f32 %v8503, %v8545
        %v8547 = vpop.f32.mrb[0].mxu0
        %v8548 = vadd.f32 %v8505, %v8547
        %8549 = vdwg.mxu0
        %8550 = vmatprep.subr.bf16.mxu0 %v8211
        %8551 = vmatpush1.bf16.msra.mxu0 %v8210
        %8552 = vmatprep.subr.bf16.mxu0 %v8215
        %8553 = vmatpush1.bf16.msra.mxu0 %v8214
        %8554 = vmatprep.subr.bf16.mxu0 %v8219
        %8555 = vmatpush1.bf16.msra.mxu0 %v8218
        %8556 = vmatprep.subr.bf16.mxu0 %v8223
        %8557 = vmatpush1.bf16.msra.mxu0 %v8222
        %8558 = vmatprep.subr.bf16.mxu0 %v8227
        %8559 = vmatpush1.bf16.msra.mxu0 %v8226
        %8560 = vmatprep.subr.bf16.mxu0 %v8231
        %8561 = vmatpush1.bf16.msra.mxu0 %v8230
        %8562 = vmatprep.subr.bf16.mxu0 %v8235
        %8563 = vmatpush1.bf16.msra.mxu0 %v8234
        %8564 = vmatprep.subr.bf16.mxu0 %v8239
        %8565 = vmatpush1.bf16.msra.mxu0 %v8238
        %8566 = vmatprep.subr.bf16.mxu0 %v8243
        %8567 = vmatpush1.bf16.msra.mxu0 %v8242
        %8568 = vmatprep.subr.bf16.mxu0 %v8247
        %8569 = vmatpush1.bf16.msra.mxu0 %v8246
        %8570 = vmatprep.subr.bf16.mxu0 %v8251
        %8571 = vmatpush1.bf16.msra.mxu0 %v8250
        %8572 = vmatprep.subr.bf16.mxu0 %v8255
        %8573 = vmatpush1.bf16.msra.mxu0 %v8254
        %8574 = vmatprep.subr.bf16.mxu0 %v8259
        %8575 = vmatpush1.bf16.msra.mxu0 %v8258
        %8576 = vmatprep.subr.bf16.mxu0 %v8263
        %8577 = vmatpush1.bf16.msra.mxu0 %v8262
        %8578 = vmatprep.subr.bf16.mxu0 %v8267
        %8579 = vmatpush1.bf16.msra.mxu0 %v8266
        %8580 = vmatprep.subr.bf16.mxu0 %v8271
        %8581 = vmatpush1.bf16.msra.mxu0 %v8270
        %8582 = vmatprep.mubr.bf16.mxu0 %v7813
        %8583 = vmatmul.mubr.bf16.gmra.mrb[0].mxu0 %v7810
        %v8584 = vpop.f32.mrb[0].mxu0
        %v8585 = vadd.f32 0.0, %v8584
        %v8586 = vpop.f32.mrb[0].mxu0
        %v8587 = vadd.f32 0.0, %v8586
        %v8588 = vpop.f32.mrb[0].mxu0
        %v8589 = vadd.f32 0.0, %v8588
        %v8590 = vpop.f32.mrb[0].mxu0
        %v8591 = vadd.f32 0.0, %v8590
        %8592 = vdwg.mxu0
        %8593 = vmatprep.subr.bf16.mxu0 %v8275
        %8594 = vmatpush1.bf16.msra.mxu0 %v8274
        %8595 = vmatprep.subr.bf16.mxu0 %v8279
        %8596 = vmatpush1.bf16.msra.mxu0 %v8278
        %8597 = vmatprep.subr.bf16.mxu0 %v8283
        %8598 = vmatpush1.bf16.msra.mxu0 %v8282
        %8599 = vmatprep.subr.bf16.mxu0 %v8287
        %8600 = vmatpush1.bf16.msra.mxu0 %v8286
        %8601 = vmatprep.subr.bf16.mxu0 %v8291
        %8602 = vmatpush1.bf16.msra.mxu0 %v8290
        %8603 = vmatprep.subr.bf16.mxu0 %v8295
        %8604 = vmatpush1.bf16.msra.mxu0 %v8294
        %8605 = vmatprep.subr.bf16.mxu0 %v8299
        %8606 = vmatpush1.bf16.msra.mxu0 %v8298
        %8607 = vmatprep.subr.bf16.mxu0 %v8303
        %8608 = vmatpush1.bf16.msra.mxu0 %v8302
        %8609 = vmatprep.subr.bf16.mxu0 %v8307
        %8610 = vmatpush1.bf16.msra.mxu0 %v8306
        %8611 = vmatprep.subr.bf16.mxu0 %v8311
        %8612 = vmatpush1.bf16.msra.mxu0 %v8310
        %8613 = vmatprep.subr.bf16.mxu0 %v8315
        %8614 = vmatpush1.bf16.msra.mxu0 %v8314
        %8615 = vmatprep.subr.bf16.mxu0 %v8319
        %8616 = vmatpush1.bf16.msra.mxu0 %v8318
        %8617 = vmatprep.subr.bf16.mxu0 %v8323
        %8618 = vmatpush1.bf16.msra.mxu0 %v8322
        %8619 = vmatprep.subr.bf16.mxu0 %v8327
        %8620 = vmatpush1.bf16.msra.mxu0 %v8326
        %8621 = vmatprep.subr.bf16.mxu0 %v8331
        %8622 = vmatpush1.bf16.msra.mxu0 %v8330
        %8623 = vmatprep.subr.bf16.mxu0 %v8335
        %8624 = vmatpush1.bf16.msra.mxu0 %v8334
        %8625 = vmatprep.mubr.bf16.mxu0 %v7819
        %8626 = vmatmul.mubr.bf16.gmra.mrb[0].mxu0 %v7816
        %v8627 = vpop.f32.mrb[0].mxu0
        %v8628 = vadd.f32 %v8585, %v8627
        %v8629 = vpop.f32.mrb[0].mxu0
        %v8630 = vadd.f32 %v8587, %v8629
        %v8631 = vpop.f32.mrb[0].mxu0
        %v8632 = vadd.f32 %v8589, %v8631
        %v8633 = vpop.f32.mrb[0].mxu0
        %v8634 = vadd.f32 %v8591, %v8633
        %8635 = vdwg.mxu0
        %v8636 = vadd.f32 %v7659, %v8542
        %v8637 = vadd.f32 %v7660, %v8544
        %v8638 = vadd.f32 %v7661, %v8628
        %v8639 = vadd.f32 %v7662, %v8630
        %v8640 = vadd.f32 %v7663, %v8546
        %v8641 = vadd.f32 %v7664, %v8548
        %v8642 = vadd.f32 %v7665, %v8632
        %v8643 = vadd.f32 %v7666, %v8634
        %v8644 = vld [vmem:[#allocation12] sm:$0xf]
        %v8646 = vlaneseq
        %v8647 = vshrl.u32 %v8646, 7
        %v8648 = vsub.s32 0, %v8647
        %v8649 = vrot.slane %v8644, %v8648
        %v8650 = vlaneseq
        %v8651 = vshrl.u32 %v8650, 7
        %v8652 = vsub.s32 1, %v8651
        %v8653 = vrot.slane %v8644, %v8652
        %v8654 = vlaneseq
        %v8655 = vshrl.u32 %v8654, 7
        %v8656 = vsub.s32 2, %v8655
        %v8657 = vrot.slane %v8644, %v8656
        %v8658 = vlaneseq
        %v8659 = vshrl.u32 %v8658, 7
        %v8660 = vsub.s32 3, %v8659
        %v8661 = vrot.slane %v8644, %v8660
        %v8666 = vmul.f32 %v8636, %v8649
        %v8667 = vmul.f32 %v8637, %v8653
        %v8668 = vmul.f32 %v8638, %v8657
        %v8669 = vmul.f32 %v8639, %v8661
        %v8670 = vmul.f32 %v8640, %v8649
        %v8671 = vmul.f32 %v8641, %v8653
        %v8672 = vmul.f32 %v8642, %v8657
        %v8673 = vmul.f32 %v8643, %v8661
        %v8674 = vld [vmem:[#allocation13] sm:$0xf]
        %v8676 = vlaneseq
        %v8677 = vshrl.u32 %v8676, 7
        %v8678 = vsub.s32 0, %v8677
        %v8679 = vrot.slane %v8674, %v8678
        %v8680 = vlaneseq
        %v8681 = vshrl.u32 %v8680, 7
        %v8682 = vsub.s32 1, %v8681
        %v8683 = vrot.slane %v8674, %v8682
        %v8684 = vlaneseq
        %v8685 = vshrl.u32 %v8684, 7
        %v8686 = vsub.s32 2, %v8685
        %v8687 = vrot.slane %v8674, %v8686
        %v8688 = vlaneseq
        %v8689 = vshrl.u32 %v8688, 7
        %v8690 = vsub.s32 3, %v8689
        %v8691 = vrot.slane %v8674, %v8690
        %v8696 = vadd.f32 %v8666, %v8679
        %v8697 = vadd.f32 %v8667, %v8683
        %v8698 = vadd.f32 %v8668, %v8687
        %v8699 = vadd.f32 %v8669, %v8691
        %v8700 = vadd.f32 %v8670, %v8679
        %v8701 = vadd.f32 %v8671, %v8683
        %v8702 = vadd.f32 %v8672, %v8687
        %v8703 = vadd.f32 %v8673, %v8691
        %v8704 = vmax.f32 %v8696, 0.0
        %v8705 = vmax.f32 %v8697, 0.0
        %v8706 = vmax.f32 %v8698, 0.0
        %v8707 = vmax.f32 %v8699, 0.0
        %v8708 = vmax.f32 %v8700, 0.0
        %v8709 = vmax.f32 %v8701, 0.0
        %v8710 = vmax.f32 %v8702, 0.0
        %v8711 = vmax.f32 %v8703, 0.0
        %v8720 = vcombine.low %v8704, %v8705
        %v8721 = vcombine.high %v8704, %v8705
        %v8722 = vcombine.low %v8706, %v8707
        %v8723 = vcombine.high %v8706, %v8707
        %v8725 = vunpack.c.l.s4 1983009808
        %v8726 = vunpack.c.0.s8 %v8725
        %v8727 = vlaneseq
        %v8728 = vshrl.u32 %v8727, 7
        %v8729 = vsub.s32 %v8726, %v8728
        %v8730 = vrot.slane %v8720, %v8729
        %v8732 = vunpack.c.l.s4 1983009808
        %v8733 = vunpack.c.0.s8 %v8732
        %v8734 = vlaneseq
        %v8735 = vshrl.u32 %v8734, 7
        %v8736 = vsub.s32 %v8733, %v8735
        %v8737 = vrot.slane %v8721, %v8736
        %v8739 = vunpack.c.l.s4 1983009808
        %v8740 = vunpack.c.0.s8 %v8739
        %v8741 = vlaneseq
        %v8742 = vshrl.u32 %v8741, 7
        %v8743 = vsub.s32 %v8740, %v8742
        %v8744 = vrot.slane %v8722, %v8743
        %v8746 = vunpack.c.l.s4 1983009808
        %v8747 = vunpack.c.0.s8 %v8746
        %v8748 = vlaneseq
        %v8749 = vshrl.u32 %v8748, 7
        %v8750 = vsub.s32 %v8747, %v8749
        %v8751 = vrot.slane %v8723, %v8750
        %v8752 = vcombine.low %v8730, %v8744
        %v8753 = vcombine.high %v8730, %v8744
        %v8754 = vcombine.low %v8737, %v8751
        %v8755 = vcombine.high %v8737, %v8751
        %v8756 = vcombine.low %v8708, %v8709
        %v8757 = vcombine.high %v8708, %v8709
        %v8758 = vcombine.low %v8710, %v8711
        %v8759 = vcombine.high %v8710, %v8711
        %v8761 = vunpack.c.l.s4 1983009808
        %v8762 = vunpack.c.0.s8 %v8761
        %v8763 = vlaneseq
        %v8764 = vshrl.u32 %v8763, 7
        %v8765 = vsub.s32 %v8762, %v8764
        %v8766 = vrot.slane %v8756, %v8765
        %v8768 = vunpack.c.l.s4 1983009808
        %v8769 = vunpack.c.0.s8 %v8768
        %v8770 = vlaneseq
        %v8771 = vshrl.u32 %v8770, 7
        %v8772 = vsub.s32 %v8769, %v8771
        %v8773 = vrot.slane %v8757, %v8772
        %v8775 = vunpack.c.l.s4 1983009808
        %v8776 = vunpack.c.0.s8 %v8775
        %v8777 = vlaneseq
        %v8778 = vshrl.u32 %v8777, 7
        %v8779 = vsub.s32 %v8776, %v8778
        %v8780 = vrot.slane %v8758, %v8779
        %v8782 = vunpack.c.l.s4 1983009808
        %v8783 = vunpack.c.0.s8 %v8782
        %v8784 = vlaneseq
        %v8785 = vshrl.u32 %v8784, 7
        %v8786 = vsub.s32 %v8783, %v8785
        %v8787 = vrot.slane %v8759, %v8786
        %v8788 = vcombine.low %v8766, %v8780
        %v8789 = vcombine.high %v8766, %v8780
        %v8790 = vcombine.low %v8773, %v8787
        %v8791 = vcombine.high %v8773, %v8787
        %v8792 = vcombine.high %v8752, %v8752
        %v8794 = vunpack.c.l.s4 1983009808
        %v8795 = vunpack.c.0.s8 %v8794
        %v8796 = vlaneseq
        %v8797 = vshrl.u32 %v8796, 7
        %v8798 = vsub.s32 %v8795, %v8797
        %v8799 = vrot.slane %v8752, %v8798
        %v8801 = vunpack.c.l.s4 1983009808
        %v8802 = vunpack.c.0.s8 %v8801
        %v8803 = vlaneseq
        %v8804 = vshrl.u32 %v8803, 7
        %v8805 = vsub.s32 %v8802, %v8804
        %v8806 = vrot.slane %v8792, %v8805
        %v8807 = vcombine.high %v8799, %v8799
        %v8808 = vcombine.high %v8806, %v8806
        %v8809 = vcombine.high %v8753, %v8753
        %v8811 = vunpack.c.l.s4 1983009808
        %v8812 = vunpack.c.0.s8 %v8811
        %v8813 = vlaneseq
        %v8814 = vshrl.u32 %v8813, 7
        %v8815 = vsub.s32 %v8812, %v8814
        %v8816 = vrot.slane %v8753, %v8815
        %v8818 = vunpack.c.l.s4 1983009808
        %v8819 = vunpack.c.0.s8 %v8818
        %v8820 = vlaneseq
        %v8821 = vshrl.u32 %v8820, 7
        %v8822 = vsub.s32 %v8819, %v8821
        %v8823 = vrot.slane %v8809, %v8822
        %v8824 = vcombine.high %v8816, %v8816
        %v8825 = vcombine.high %v8823, %v8823
        %v8826 = vcombine.high %v8754, %v8754
        %v8828 = vunpack.c.l.s4 1983009808
        %v8829 = vunpack.c.0.s8 %v8828
        %v8830 = vlaneseq
        %v8831 = vshrl.u32 %v8830, 7
        %v8832 = vsub.s32 %v8829, %v8831
        %v8833 = vrot.slane %v8754, %v8832
        %v8835 = vunpack.c.l.s4 1983009808
        %v8836 = vunpack.c.0.s8 %v8835
        %v8837 = vlaneseq
        %v8838 = vshrl.u32 %v8837, 7
        %v8839 = vsub.s32 %v8836, %v8838
        %v8840 = vrot.slane %v8826, %v8839
        %v8841 = vcombine.high %v8833, %v8833
        %v8842 = vcombine.high %v8840, %v8840
        %v8843 = vcombine.high %v8755, %v8755
        %v8845 = vunpack.c.l.s4 1983009808
        %v8846 = vunpack.c.0.s8 %v8845
        %v8847 = vlaneseq
        %v8848 = vshrl.u32 %v8847, 7
        %v8849 = vsub.s32 %v8846, %v8848
        %v8850 = vrot.slane %v8755, %v8849
        %v8852 = vunpack.c.l.s4 1983009808
        %v8853 = vunpack.c.0.s8 %v8852
        %v8854 = vlaneseq
        %v8855 = vshrl.u32 %v8854, 7
        %v8856 = vsub.s32 %v8853, %v8855
        %v8857 = vrot.slane %v8843, %v8856
        %v8858 = vcombine.high %v8850, %v8850
        %v8859 = vcombine.high %v8857, %v8857
        %v8860 = vcombine.high %v8788, %v8788
        %v8862 = vunpack.c.l.s4 1983009808
        %v8863 = vunpack.c.0.s8 %v8862
        %v8864 = vlaneseq
        %v8865 = vshrl.u32 %v8864, 7
        %v8866 = vsub.s32 %v8863, %v8865
        %v8867 = vrot.slane %v8788, %v8866
        %v8869 = vunpack.c.l.s4 1983009808
        %v8870 = vunpack.c.0.s8 %v8869
        %v8871 = vlaneseq
        %v8872 = vshrl.u32 %v8871, 7
        %v8873 = vsub.s32 %v8870, %v8872
        %v8874 = vrot.slane %v8860, %v8873
        %v8875 = vcombine.high %v8867, %v8867
        %v8876 = vcombine.high %v8874, %v8874
        %v8877 = vcombine.high %v8789, %v8789
        %v8879 = vunpack.c.l.s4 1983009808
        %v8880 = vunpack.c.0.s8 %v8879
        %v8881 = vlaneseq
        %v8882 = vshrl.u32 %v8881, 7
        %v8883 = vsub.s32 %v8880, %v8882
        %v8884 = vrot.slane %v8789, %v8883
        %v8886 = vunpack.c.l.s4 1983009808
        %v8887 = vunpack.c.0.s8 %v8886
        %v8888 = vlaneseq
        %v8889 = vshrl.u32 %v8888, 7
        %v8890 = vsub.s32 %v8887, %v8889
        %v8891 = vrot.slane %v8877, %v8890
        %v8892 = vcombine.high %v8884, %v8884
        %v8893 = vcombine.high %v8891, %v8891
        %v8894 = vcombine.high %v8790, %v8790
        %v8896 = vunpack.c.l.s4 1983009808
        %v8897 = vunpack.c.0.s8 %v8896
        %v8898 = vlaneseq
        %v8899 = vshrl.u32 %v8898, 7
        %v8900 = vsub.s32 %v8897, %v8899
        %v8901 = vrot.slane %v8790, %v8900
        %v8903 = vunpack.c.l.s4 1983009808
        %v8904 = vunpack.c.0.s8 %v8903
        %v8905 = vlaneseq
        %v8906 = vshrl.u32 %v8905, 7
        %v8907 = vsub.s32 %v8904, %v8906
        %v8908 = vrot.slane %v8894, %v8907
        %v8909 = vcombine.high %v8901, %v8901
        %v8910 = vcombine.high %v8908, %v8908
        %v8911 = vcombine.high %v8791, %v8791
        %v8913 = vunpack.c.l.s4 1983009808
        %v8914 = vunpack.c.0.s8 %v8913
        %v8915 = vlaneseq
        %v8916 = vshrl.u32 %v8915, 7
        %v8917 = vsub.s32 %v8914, %v8916
        %v8918 = vrot.slane %v8791, %v8917
        %v8920 = vunpack.c.l.s4 1983009808
        %v8921 = vunpack.c.0.s8 %v8920
        %v8922 = vlaneseq
        %v8923 = vshrl.u32 %v8922, 7
        %v8924 = vsub.s32 %v8921, %v8923
        %v8925 = vrot.slane %v8911, %v8924
        %v8926 = vcombine.high %v8918, %v8918
        %v8927 = vcombine.high %v8925, %v8925
        %v8960 = vsel %vm2477, %v8799, -inf
        %v8961 = vrot.slane %v8960, 4
        %v8962 = vmax.f32 %v8960, %v8961
        %v8963 = vrot.slane %v8962, 2
        %v8964 = vmax.f32 %v8962, %v8963
        %v8965 = vrot.slane %v8964, 1
        %v8966 = vmax.f32 %v8964, %v8965
        %v8967 = vsel %vm2477, %v8807, -inf
        %v8968 = vrot.slane %v8967, 4
        %v8969 = vmax.f32 %v8967, %v8968
        %v8970 = vrot.slane %v8969, 2
        %v8971 = vmax.f32 %v8969, %v8970
        %v8972 = vrot.slane %v8971, 1
        %v8973 = vmax.f32 %v8971, %v8972
        %v8974 = vsel %vm2477, %v8806, -inf
        %v8975 = vrot.slane %v8974, 4
        %v8976 = vmax.f32 %v8974, %v8975
        %v8977 = vrot.slane %v8976, 2
        %v8978 = vmax.f32 %v8976, %v8977
        %v8979 = vrot.slane %v8978, 1
        %v8980 = vmax.f32 %v8978, %v8979
        %v8981 = vsel %vm2477, %v8808, -inf
        %v8982 = vrot.slane %v8981, 4
        %v8983 = vmax.f32 %v8981, %v8982
        %v8984 = vrot.slane %v8983, 2
        %v8985 = vmax.f32 %v8983, %v8984
        %v8986 = vrot.slane %v8985, 1
        %v8987 = vmax.f32 %v8985, %v8986
        %v8988 = vsel %vm2477, %v8816, -inf
        %v8989 = vrot.slane %v8988, 4
        %v8990 = vmax.f32 %v8988, %v8989
        %v8991 = vrot.slane %v8990, 2
        %v8992 = vmax.f32 %v8990, %v8991
        %v8993 = vrot.slane %v8992, 1
        %v8994 = vmax.f32 %v8992, %v8993
        %v8995 = vsel %vm2477, %v8824, -inf
        %v8996 = vrot.slane %v8995, 4
        %v8997 = vmax.f32 %v8995, %v8996
        %v8998 = vrot.slane %v8997, 2
        %v8999 = vmax.f32 %v8997, %v8998
        %v9000 = vrot.slane %v8999, 1
        %v9001 = vmax.f32 %v8999, %v9000
        %v9002 = vsel %vm2477, %v8823, -inf
        %v9003 = vrot.slane %v9002, 4
        %v9004 = vmax.f32 %v9002, %v9003
        %v9005 = vrot.slane %v9004, 2
        %v9006 = vmax.f32 %v9004, %v9005
        %v9007 = vrot.slane %v9006, 1
        %v9008 = vmax.f32 %v9006, %v9007
        %v9009 = vsel %vm2477, %v8825, -inf
        %v9010 = vrot.slane %v9009, 4
        %v9011 = vmax.f32 %v9009, %v9010
        %v9012 = vrot.slane %v9011, 2
        %v9013 = vmax.f32 %v9011, %v9012
        %v9014 = vrot.slane %v9013, 1
        %v9015 = vmax.f32 %v9013, %v9014
        %v9016 = vsel %vm2477, %v8833, -inf
        %v9017 = vrot.slane %v9016, 4
        %v9018 = vmax.f32 %v9016, %v9017
        %v9019 = vrot.slane %v9018, 2
        %v9020 = vmax.f32 %v9018, %v9019
        %v9021 = vrot.slane %v9020, 1
        %v9022 = vmax.f32 %v9020, %v9021
        %v9023 = vsel %vm2477, %v8841, -inf
        %v9024 = vrot.slane %v9023, 4
        %v9025 = vmax.f32 %v9023, %v9024
        %v9026 = vrot.slane %v9025, 2
        %v9027 = vmax.f32 %v9025, %v9026
        %v9028 = vrot.slane %v9027, 1
        %v9029 = vmax.f32 %v9027, %v9028
        %v9030 = vsel %vm2477, %v8840, -inf
        %v9031 = vrot.slane %v9030, 4
        %v9032 = vmax.f32 %v9030, %v9031
        %v9033 = vrot.slane %v9032, 2
        %v9034 = vmax.f32 %v9032, %v9033
        %v9035 = vrot.slane %v9034, 1
        %v9036 = vmax.f32 %v9034, %v9035
        %v9037 = vsel %vm2477, %v8842, -inf
        %v9038 = vrot.slane %v9037, 4
        %v9039 = vmax.f32 %v9037, %v9038
        %v9040 = vrot.slane %v9039, 2
        %v9041 = vmax.f32 %v9039, %v9040
        %v9042 = vrot.slane %v9041, 1
        %v9043 = vmax.f32 %v9041, %v9042
        %v9044 = vsel %vm2477, %v8850, -inf
        %v9045 = vrot.slane %v9044, 4
        %v9046 = vmax.f32 %v9044, %v9045
        %v9047 = vrot.slane %v9046, 2
        %v9048 = vmax.f32 %v9046, %v9047
        %v9049 = vrot.slane %v9048, 1
        %v9050 = vmax.f32 %v9048, %v9049
        %v9051 = vsel %vm2477, %v8858, -inf
        %v9052 = vrot.slane %v9051, 4
        %v9053 = vmax.f32 %v9051, %v9052
        %v9054 = vrot.slane %v9053, 2
        %v9055 = vmax.f32 %v9053, %v9054
        %v9056 = vrot.slane %v9055, 1
        %v9057 = vmax.f32 %v9055, %v9056
        %v9058 = vsel %vm2477, %v8857, -inf
        %v9059 = vrot.slane %v9058, 4
        %v9060 = vmax.f32 %v9058, %v9059
        %v9061 = vrot.slane %v9060, 2
        %v9062 = vmax.f32 %v9060, %v9061
        %v9063 = vrot.slane %v9062, 1
        %v9064 = vmax.f32 %v9062, %v9063
        %v9065 = vsel %vm2477, %v8859, -inf
        %v9066 = vrot.slane %v9065, 4
        %v9067 = vmax.f32 %v9065, %v9066
        %v9068 = vrot.slane %v9067, 2
        %v9069 = vmax.f32 %v9067, %v9068
        %v9070 = vrot.slane %v9069, 1
        %v9071 = vmax.f32 %v9069, %v9070
        %v9072 = vsel %vm2477, %v8867, -inf
        %v9073 = vrot.slane %v9072, 4
        %v9074 = vmax.f32 %v9072, %v9073
        %v9075 = vrot.slane %v9074, 2
        %v9076 = vmax.f32 %v9074, %v9075
        %v9077 = vrot.slane %v9076, 1
        %v9078 = vmax.f32 %v9076, %v9077
        %v9079 = vsel %vm2477, %v8875, -inf
        %v9080 = vrot.slane %v9079, 4
        %v9081 = vmax.f32 %v9079, %v9080
        %v9082 = vrot.slane %v9081, 2
        %v9083 = vmax.f32 %v9081, %v9082
        %v9084 = vrot.slane %v9083, 1
        %v9085 = vmax.f32 %v9083, %v9084
        %v9086 = vsel %vm2477, %v8874, -inf
        %v9087 = vrot.slane %v9086, 4
        %v9088 = vmax.f32 %v9086, %v9087
        %v9089 = vrot.slane %v9088, 2
        %v9090 = vmax.f32 %v9088, %v9089
        %v9091 = vrot.slane %v9090, 1
        %v9092 = vmax.f32 %v9090, %v9091
        %v9093 = vsel %vm2477, %v8876, -inf
        %v9094 = vrot.slane %v9093, 4
        %v9095 = vmax.f32 %v9093, %v9094
        %v9096 = vrot.slane %v9095, 2
        %v9097 = vmax.f32 %v9095, %v9096
        %v9098 = vrot.slane %v9097, 1
        %v9099 = vmax.f32 %v9097, %v9098
        %v9100 = vsel %vm2477, %v8884, -inf
        %v9101 = vrot.slane %v9100, 4
        %v9102 = vmax.f32 %v9100, %v9101
        %v9103 = vrot.slane %v9102, 2
        %v9104 = vmax.f32 %v9102, %v9103
        %v9105 = vrot.slane %v9104, 1
        %v9106 = vmax.f32 %v9104, %v9105
        %v9107 = vsel %vm2477, %v8892, -inf
        %v9108 = vrot.slane %v9107, 4
        %v9109 = vmax.f32 %v9107, %v9108
        %v9110 = vrot.slane %v9109, 2
        %v9111 = vmax.f32 %v9109, %v9110
        %v9112 = vrot.slane %v9111, 1
        %v9113 = vmax.f32 %v9111, %v9112
        %v9114 = vsel %vm2477, %v8891, -inf
        %v9115 = vrot.slane %v9114, 4
        %v9116 = vmax.f32 %v9114, %v9115
        %v9117 = vrot.slane %v9116, 2
        %v9118 = vmax.f32 %v9116, %v9117
        %v9119 = vrot.slane %v9118, 1
        %v9120 = vmax.f32 %v9118, %v9119
        %v9121 = vsel %vm2477, %v8893, -inf
        %v9122 = vrot.slane %v9121, 4
        %v9123 = vmax.f32 %v9121, %v9122
        %v9124 = vrot.slane %v9123, 2
        %v9125 = vmax.f32 %v9123, %v9124
        %v9126 = vrot.slane %v9125, 1
        %v9127 = vmax.f32 %v9125, %v9126
        %v9128 = vsel %vm2477, %v8901, -inf
        %v9129 = vrot.slane %v9128, 4
        %v9130 = vmax.f32 %v9128, %v9129
        %v9131 = vrot.slane %v9130, 2
        %v9132 = vmax.f32 %v9130, %v9131
        %v9133 = vrot.slane %v9132, 1
        %v9134 = vmax.f32 %v9132, %v9133
        %v9135 = vsel %vm2477, %v8909, -inf
        %v9136 = vrot.slane %v9135, 4
        %v9137 = vmax.f32 %v9135, %v9136
        %v9138 = vrot.slane %v9137, 2
        %v9139 = vmax.f32 %v9137, %v9138
        %v9140 = vrot.slane %v9139, 1
        %v9141 = vmax.f32 %v9139, %v9140
        %v9142 = vsel %vm2477, %v8908, -inf
        %v9143 = vrot.slane %v9142, 4
        %v9144 = vmax.f32 %v9142, %v9143
        %v9145 = vrot.slane %v9144, 2
        %v9146 = vmax.f32 %v9144, %v9145
        %v9147 = vrot.slane %v9146, 1
        %v9148 = vmax.f32 %v9146, %v9147
        %v9149 = vsel %vm2477, %v8910, -inf
        %v9150 = vrot.slane %v9149, 4
        %v9151 = vmax.f32 %v9149, %v9150
        %v9152 = vrot.slane %v9151, 2
        %v9153 = vmax.f32 %v9151, %v9152
        %v9154 = vrot.slane %v9153, 1
        %v9155 = vmax.f32 %v9153, %v9154
        %v9156 = vsel %vm2477, %v8918, -inf
        %v9157 = vrot.slane %v9156, 4
        %v9158 = vmax.f32 %v9156, %v9157
        %v9159 = vrot.slane %v9158, 2
        %v9160 = vmax.f32 %v9158, %v9159
        %v9161 = vrot.slane %v9160, 1
        %v9162 = vmax.f32 %v9160, %v9161
        %v9163 = vsel %vm2477, %v8926, -inf
        %v9164 = vrot.slane %v9163, 4
        %v9165 = vmax.f32 %v9163, %v9164
        %v9166 = vrot.slane %v9165, 2
        %v9167 = vmax.f32 %v9165, %v9166
        %v9168 = vrot.slane %v9167, 1
        %v9169 = vmax.f32 %v9167, %v9168
        %v9170 = vsel %vm2477, %v8925, -inf
        %v9171 = vrot.slane %v9170, 4
        %v9172 = vmax.f32 %v9170, %v9171
        %v9173 = vrot.slane %v9172, 2
        %v9174 = vmax.f32 %v9172, %v9173
        %v9175 = vrot.slane %v9174, 1
        %v9176 = vmax.f32 %v9174, %v9175
        %v9177 = vsel %vm2477, %v8927, -inf
        %v9178 = vrot.slane %v9177, 4
        %v9179 = vmax.f32 %v9177, %v9178
        %v9180 = vrot.slane %v9179, 2
        %v9181 = vmax.f32 %v9179, %v9180
        %v9182 = vrot.slane %v9181, 1
        %v9183 = vmax.f32 %v9181, %v9182
        %v9216 = vsel %vm2990, %v8994, %v8966
        %v9217 = vsel %vm2992, %v9022, %v9216
        %v9218 = vsel %vm2994, %v9050, %v9217
        %v9219 = vsel %vm2996, %v9078, %v9218
        %v9220 = vsel %vm2998, %v9106, %v9219
        %v9221 = vsel %vm3000, %v9134, %v9220
        %v9222 = vsel %vm3002, %v9162, %v9221
        %v9223 = vsel %vm2990, %v9001, %v8973
        %v9224 = vsel %vm2992, %v9029, %v9223
        %v9225 = vsel %vm2994, %v9057, %v9224
        %v9226 = vsel %vm2996, %v9085, %v9225
        %v9227 = vsel %vm2998, %v9113, %v9226
        %v9228 = vsel %vm3000, %v9141, %v9227
        %v9229 = vsel %vm3002, %v9169, %v9228
        %v9230 = vsel %vm2990, %v9008, %v8980
        %v9231 = vsel %vm2992, %v9036, %v9230
        %v9232 = vsel %vm2994, %v9064, %v9231
        %v9233 = vsel %vm2996, %v9092, %v9232
        %v9234 = vsel %vm2998, %v9120, %v9233
        %v9235 = vsel %vm3000, %v9148, %v9234
        %v9236 = vsel %vm3002, %v9176, %v9235
        %v9237 = vsel %vm2990, %v9015, %v8987
        %v9238 = vsel %vm2992, %v9043, %v9237
        %v9239 = vsel %vm2994, %v9071, %v9238
        %v9240 = vsel %vm2996, %v9099, %v9239
        %v9241 = vsel %vm2998, %v9127, %v9240
        %v9242 = vsel %vm3000, %v9155, %v9241
        %v9243 = vsel %vm3002, %v9183, %v9242
        %9244 = vrot.lane.b32.xlu0 %v9222, 96
        %v9245 = vpop.permute.xlu0 %9244
        %9246 = vrot.lane.b32.xlu0 %v9229, 96
        %v9247 = vpop.permute.xlu0 %9246
        %9248 = vrot.lane.b32.xlu0 %v9236, 96
        %v9249 = vpop.permute.xlu0 %9248
        %9250 = vrot.lane.b32.xlu0 %v9243, 96
        %v9251 = vpop.permute.xlu0 %9250
        %v9252 = vsel %vm681, %v9245, %v9247
        %v9253 = vsel %vm681, %v9247, %v9249
        %v9254 = vsel %vm681, %v9249, %v9251
        %v9257 = vsel %vm681, %v9251, %v9245
        %v9259 = vrot.slane %v9252, 1
        %v9260 = vrot.slane %v9253, 1
        %v9261 = vrot.slane %v9254, 1
        %v9262 = vrot.slane %v9257, 1
        %v9263 = vrot.slane %v9252, 2
        %v9264 = vrot.slane %v9253, 2
        %v9265 = vrot.slane %v9254, 2
        %v9266 = vrot.slane %v9257, 2
        %v9267 = vrot.slane %v9252, 3
        %v9268 = vrot.slane %v9253, 3
        %v9269 = vrot.slane %v9254, 3
        %v9270 = vrot.slane %v9257, 3
        %v9271 = vrot.slane %v9252, 4
        %v9272 = vrot.slane %v9253, 4
        %v9273 = vrot.slane %v9254, 4
        %v9274 = vrot.slane %v9257, 4
        %v9275 = vrot.slane %v9252, 5
        %v9276 = vrot.slane %v9253, 5
        %v9277 = vrot.slane %v9254, 5
        %v9278 = vrot.slane %v9257, 5
        %v9279 = vrot.slane %v9252, 6
        %v9280 = vrot.slane %v9253, 6
        %v9281 = vrot.slane %v9254, 6
        %v9282 = vrot.slane %v9257, 6
        %v9283 = vrot.slane %v9252, 7
        %v9284 = vrot.slane %v9253, 7
        %v9285 = vrot.slane %v9254, 7
        %v9286 = vrot.slane %v9257, 7
        %v9319 = vmax.f32 %v8966, %v9252
        %v9320 = vmax.f32 %v8973, %v9253
        %v9321 = vmax.f32 %v8980, %v9254
        %v9322 = vmax.f32 %v8987, %v9257
        %v9323 = vmax.f32 %v8994, %v9259
        %v9324 = vmax.f32 %v9001, %v9260
        %v9325 = vmax.f32 %v9008, %v9261
        %v9326 = vmax.f32 %v9015, %v9262
        %v9327 = vmax.f32 %v9022, %v9263
        %v9328 = vmax.f32 %v9029, %v9264
        %v9329 = vmax.f32 %v9036, %v9265
        %v9330 = vmax.f32 %v9043, %v9266
        %v9331 = vmax.f32 %v9050, %v9267
        %v9332 = vmax.f32 %v9057, %v9268
        %v9333 = vmax.f32 %v9064, %v9269
        %v9334 = vmax.f32 %v9071, %v9270
        %v9335 = vmax.f32 %v9078, %v9271
        %v9336 = vmax.f32 %v9085, %v9272
        %v9337 = vmax.f32 %v9092, %v9273
        %v9338 = vmax.f32 %v9099, %v9274
        %v9339 = vmax.f32 %v9106, %v9275
        %v9340 = vmax.f32 %v9113, %v9276
        %v9341 = vmax.f32 %v9120, %v9277
        %v9342 = vmax.f32 %v9127, %v9278
        %v9343 = vmax.f32 %v9134, %v9279
        %v9344 = vmax.f32 %v9141, %v9280
        %v9345 = vmax.f32 %v9148, %v9281
        %v9346 = vmax.f32 %v9155, %v9282
        %v9347 = vmax.f32 %v9162, %v9283
        %v9348 = vmax.f32 %v9169, %v9284
        %v9349 = vmax.f32 %v9176, %v9285
        %v9350 = vmax.f32 %v9183, %v9286
        %v9351 = vld [vmem:[#allocation15] sm:$0xff]
        %v9352 = vld [vmem:[#allocation15 + $0x8] sm:$0xff]
        %v9353 = vld [vmem:[#allocation15 + $0x10] sm:$0xff]
        %v9354 = vld [vmem:[#allocation15 + $0x18] sm:$0xff]
        %v9359 = vrot.slane %v9351, 1
        %v9360 = vrot.slane %v9352, 1
        %v9361 = vrot.slane %v9353, 1
        %v9362 = vrot.slane %v9354, 1
        %v9363 = vrot.slane %v9351, 2
        %v9364 = vrot.slane %v9352, 2
        %v9365 = vrot.slane %v9353, 2
        %v9366 = vrot.slane %v9354, 2
        %v9367 = vrot.slane %v9351, 3
        %v9368 = vrot.slane %v9352, 3
        %v9369 = vrot.slane %v9353, 3
        %v9370 = vrot.slane %v9354, 3
        %v9371 = vrot.slane %v9351, 4
        %v9372 = vrot.slane %v9352, 4
        %v9373 = vrot.slane %v9353, 4
        %v9374 = vrot.slane %v9354, 4
        %v9375 = vrot.slane %v9351, 5
        %v9376 = vrot.slane %v9352, 5
        %v9377 = vrot.slane %v9353, 5
        %v9378 = vrot.slane %v9354, 5
        %v9379 = vrot.slane %v9351, 6
        %v9380 = vrot.slane %v9352, 6
        %v9381 = vrot.slane %v9353, 6
        %v9382 = vrot.slane %v9354, 6
        %v9383 = vrot.slane %v9351, 7
        %v9384 = vrot.slane %v9352, 7
        %v9385 = vrot.slane %v9353, 7
        %v9386 = vrot.slane %v9354, 7
        %v9419 = vmul.f32 %v9319, %v9351
        %v9420 = vmul.f32 %v9320, %v9352
        %v9421 = vmul.f32 %v9321, %v9353
        %v9422 = vmul.f32 %v9322, %v9354
        %v9423 = vmul.f32 %v9323, %v9359
        %v9424 = vmul.f32 %v9324, %v9360
        %v9425 = vmul.f32 %v9325, %v9361
        %v9426 = vmul.f32 %v9326, %v9362
        %v9427 = vmul.f32 %v9327, %v9363
        %v9428 = vmul.f32 %v9328, %v9364
        %v9429 = vmul.f32 %v9329, %v9365
        %v9430 = vmul.f32 %v9330, %v9366
        %v9431 = vmul.f32 %v9331, %v9367
        %v9432 = vmul.f32 %v9332, %v9368
        %v9433 = vmul.f32 %v9333, %v9369
        %v9434 = vmul.f32 %v9334, %v9370
        %v9435 = vmul.f32 %v9335, %v9371
        %v9436 = vmul.f32 %v9336, %v9372
        %v9437 = vmul.f32 %v9337, %v9373
        %v9438 = vmul.f32 %v9338, %v9374
        %v9439 = vmul.f32 %v9339, %v9375
        %v9440 = vmul.f32 %v9340, %v9376
        %v9441 = vmul.f32 %v9341, %v9377
        %v9442 = vmul.f32 %v9342, %v9378
        %v9443 = vmul.f32 %v9343, %v9379
        %v9444 = vmul.f32 %v9344, %v9380
        %v9445 = vmul.f32 %v9345, %v9381
        %v9446 = vmul.f32 %v9346, %v9382
        %v9447 = vmul.f32 %v9347, %v9383
        %v9448 = vmul.f32 %v9348, %v9384
        %v9449 = vmul.f32 %v9349, %v9385
        %v9450 = vmul.f32 %v9350, %v9386
        %v9483 = vrot.slane %v9423, 7
        %v9484 = vsel %vm2990, %v9483, %v9419
        %v9485 = vrot.slane %v9427, 6
        %v9486 = vsel %vm2992, %v9485, %v9484
        %v9487 = vrot.slane %v9431, 5
        %v9488 = vsel %vm2994, %v9487, %v9486
        %v9489 = vrot.slane %v9435, 4
        %v9490 = vsel %vm2996, %v9489, %v9488
        %v9491 = vrot.slane %v9439, 3
        %v9492 = vsel %vm2998, %v9491, %v9490
        %v9493 = vrot.slane %v9443, 2
        %v9494 = vsel %vm3000, %v9493, %v9492
        %v9495 = vrot.slane %v9447, 1
        %v9496 = vsel %vm3002, %v9495, %v9494
        %v9497 = vrot.slane %v9424, 7
        %v9498 = vsel %vm2990, %v9497, %v9420
        %v9499 = vrot.slane %v9428, 6
        %v9500 = vsel %vm2992, %v9499, %v9498
        %v9501 = vrot.slane %v9432, 5
        %v9502 = vsel %vm2994, %v9501, %v9500
        %v9503 = vrot.slane %v9436, 4
        %v9504 = vsel %vm2996, %v9503, %v9502
        %v9505 = vrot.slane %v9440, 3
        %v9506 = vsel %vm2998, %v9505, %v9504
        %v9507 = vrot.slane %v9444, 2
        %v9508 = vsel %vm3000, %v9507, %v9506
        %v9509 = vrot.slane %v9448, 1
        %v9510 = vsel %vm3002, %v9509, %v9508
        %v9511 = vrot.slane %v9425, 7
        %v9512 = vsel %vm2990, %v9511, %v9421
        %v9513 = vrot.slane %v9429, 6
        %v9514 = vsel %vm2992, %v9513, %v9512
        %v9515 = vrot.slane %v9433, 5
        %v9516 = vsel %vm2994, %v9515, %v9514
        %v9517 = vrot.slane %v9437, 4
        %v9518 = vsel %vm2996, %v9517, %v9516
        %v9519 = vrot.slane %v9441, 3
        %v9520 = vsel %vm2998, %v9519, %v9518
        %v9521 = vrot.slane %v9445, 2
        %v9522 = vsel %vm3000, %v9521, %v9520
        %v9523 = vrot.slane %v9449, 1
        %v9524 = vsel %vm3002, %v9523, %v9522
        %v9525 = vrot.slane %v9426, 7
        %v9526 = vsel %vm2990, %v9525, %v9422
        %v9527 = vrot.slane %v9430, 6
        %v9528 = vsel %vm2992, %v9527, %v9526
        %v9529 = vrot.slane %v9434, 5
        %v9530 = vsel %vm2994, %v9529, %v9528
        %v9531 = vrot.slane %v9438, 4
        %v9532 = vsel %vm2996, %v9531, %v9530
        %v9533 = vrot.slane %v9442, 3
        %v9534 = vsel %vm2998, %v9533, %v9532
        %v9535 = vrot.slane %v9446, 2
        %v9536 = vsel %vm3000, %v9535, %v9534
        %v9537 = vrot.slane %v9450, 1
        %v9538 = vsel %vm3002, %v9537, %v9536
        %v9543 = vadd.f32 %v9496, %v9510
        %v9544 = vadd.f32 %v9543, %v9524
        %v9545 = vadd.f32 %v9544, %v9538
        %9546 = vadd.xlane.f32.xlu0 %v9545
        %v9547 = vpop.xlane.xlu0 %9546
        %v9548 = vrot.slane %v9547, 4
        %v9549 = vadd.f32 %v9547, %v9548
        %v9550 = vrot.slane %v9549, 2
        %v9551 = vadd.f32 %v9549, %v9550
        %v9552 = vrot.slane %v9551, 1
        %v9553 = vadd.f32 %v9551, %v9552
        %v9554 = vld [vmem:[#allocation4] sm:$0x1]
        %v9555 = vadd.f32 %v9553, %v9554
        %vm9556 = vcmask 0
        %9557 = vst.msk [vmem:[%s422] sm:$0x1] %vm9556, %v9555
        %p9558 = scmp.lt.s32.totalorder %s26, 1
        %s9559 = scalar_select %p9558, %s26, 1
        %s9560 = scalar_lea.vmem %s9, %s9559
        // Predicated region
        $region85: #{cnn_forward.1} parent=55 // pred_check
          %p9561 = pneg %p238
        $region86: #{cnn_forward.1} parent=55 // pred_check_branch
          %9563 = sbr.rel (%p9561) target = $region88
        $region87: #{cnn_forward.1} parent=55 // pred_region
          _
        $region88: #{cnn_forward.1} parent=55 // pred_fallthru
          _
      $region56: #{cnn_forward.1} parent=5 // pred_fallthru
        _
      %p9564 = scmp.le.s32.totalorder 2, %s21
      // Predicated region
      $region89: #{cnn_forward.1} parent=5 // pred_check
        %p9565 = pneg %p9564
      $region90: #{cnn_forward.1} parent=5 // pred_check_branch
        %9567 = sbr.rel (%p9565) target = $region92
      $region91: #{cnn_forward.1} parent=5 // pred_region
        %s9568 = ssub.s32 %s21, 2
        // Predicated region
        $region93: #{cnn_forward.1} parent=91 // pred_check
          %p9569 = pneg %p244
        $region94: #{cnn_forward.1} parent=91 // pred_check_branch
          %9571 = sbr.rel (%p9569) target = $region96
        $region95: #{cnn_forward.1} parent=91 // pred_region
          %p9572 = scmp.lt.s32.totalorder %s27, 1
          %s9573 = scalar_select %p9572, %s27, 1
          %s9574 = scalar_lea.vmem %s9, %s9573
        $region96: #{cnn_forward.1} parent=91 // pred_fallthru
          _
      $region92: #{cnn_forward.1} parent=5 // pred_fallthru
        _
    $region6: #{cnn_forward.1} parent=1 // loop_footer
      %s25 = sadd.s32 1, %s21
    $region7: #{cnn_forward.1} parent=1 // loop_footer_branch
      %20 = sbr.rel target = $region3
    $region8: #{cnn_forward.1} parent=1 // loop_exit
      _
    %9575 = vsyncpa [#allocation6], 1
    %s9576 = scalar_lea.sflag [#allocation6], 1
    %9577 = vsyncpa %s9576, 1
    %9578 = vsyncpa [#allocation8], 1
    %9579 = vsyncpa [#allocation11], 1
    %9580 = vsyncpa [#allocation14], 1

</llo_original>
